<compile_context>
chip_gen: v7x
topology: tpu7x:2x2x1
jax: 0.10.0
libtpu: 0.0.40
codegen_flags: <defaults>
</compile_context>

<pallas_src>
import functools

import numpy as np
import jax
import jax.numpy as jnp
from jax.experimental import pallas as pl
from jax.experimental.pallas import tpu as pltpu

KSIZE = 3
LEVEL = 2              # every pyramid level reads the same `large` -> duplication is a softmax no-op
SOFTMAX_SCALE = 10.0
RES_SCALE = 1.0
ESCAPE_NAN = 1e-4      # the module's `escape_NaN` buffer


# ---------------------------------------------------------------------------
# small helpers
# ---------------------------------------------------------------------------
def _pick_tile(n, candidates):
    for t in candidates:
        if t <= n and n % t == 0:
            return t
    return n


def _vmem_bytes(shape, itemsize):
    """(8,128)-padded VMEM footprint estimate for one buffer."""
    shape = tuple(int(s) for s in shape)
    if len(shape) == 1:
        shape = (1,) + shape
    lead = 1
    for s in shape[:-2]:
        lead *= s
    sub = -(-shape[-2] // 8) * 8
    lane = -(-shape[-1] // 128) * 128
    return lead * sub * lane * itemsize


def _vmem_capacity_bytes():
    try:
        return int(pltpu.get_tpu_info().vmem_capacity_bytes)
    except Exception:
        return 64 * 1024 * 1024        # v7x-conservative fallback


# ---------------------------------------------------------------------------
# Kernel 1: 1x1 conv + PReLU  (BasicBlock(conv1x1, bn=False, act=PReLU()))
# Channels-first: (Cout,Cin) @ (Cin, tcol) with the spatial axis on lanes.
# conv_match / conv_assembly are fused by concatenating weights along Cout.
# ---------------------------------------------------------------------------
def _pw_prelu_kernel(x_ref, w_ref, b_ref, a_ref, o_ref):
    y = jnp.dot(w_ref[...], x_ref[0], preferred_element_type=jnp.float32)  # (Cout, tcol)
    y = y + b_ref[...]
    o_ref[0] = jnp.where(y >= 0.0, y, a_ref[...] * y)


def pointwise_conv_prelu(x_nchw, w, b, alpha_vec):
    """x: (N,Cin,H,W) f32; w: (Cin,Cout); b, alpha_vec: (Cout,). Returns (N,Cout,H,W)."""
    N, Cin, H, W = x_nchw.shape
    Cout = w.shape[1]
    hw = H * W
    tcol = _pick_tile(hw, (512, 256, 128))
    x3 = x_nchw.reshape(N, Cin, hw)
    out = pl.pallas_call(
        _pw_prelu_kernel,
        out_shape=jax.ShapeDtypeStruct((N, Cout, hw), jnp.float32),
        grid=(N, hw // tcol),
        in_specs=[
            pl.BlockSpec((1, Cin, tcol), lambda n, j: (n, 0, j)),
            pl.BlockSpec((Cout, Cin), lambda n, j: (0, 0)),
            pl.BlockSpec((Cout, 1), lambda n, j: (0, 0)),
            pl.BlockSpec((Cout, 1), lambda n, j: (0, 0)),
        ],
        out_specs=pl.BlockSpec((1, Cout, tcol), lambda n, j: (n, 0, j)),
        compiler_params=pltpu.CompilerParams(
            dimension_semantics=("parallel", "parallel")),
    )(x3,
      jnp.transpose(w).astype(jnp.float32),
      b.reshape(Cout, 1).astype(jnp.float32),
      alpha_vec.reshape(Cout, 1).astype(jnp.float32))
    return out.reshape(N, Cout, H, W)


# ---------------------------------------------------------------------------
# Kernel 2: per-image pyramid attention, grid = (batch, query_tile)
#   per q-tile : scores = q @ K_t ; att = softmax(scores*scale) ; out9 = att @ V
#                then the conv_transpose2d 'paste' contribution of this tile is
#                assembled locally and accumulated into a padded scratch.
#   last q-tile: crop the scratch, /4 and + residual, single output writeback.
# ---------------------------------------------------------------------------
def _attn_kernel(q_ref, kt_ref, v_ref, r_ref, o_ref, acc_ref, *,
                 H, W, C, tq, pad, softmax_scale, res_scale):
    qi = pl.program_id(1)
    HW = H * W
    tot = tq + 2 * pad

    # fresh paste accumulator at the start of each image
    @pl.when(qi == 0)
    def _init():
        acc_ref[...] = jnp.zeros_like(acc_ref)

    # ---- scores & softmax: keys arrive pre-normalized, pre-transposed, bf16 ----
    scores = jnp.dot(q_ref[0], kt_ref[0], preferred_element_type=jnp.float32)   # (tq, P)
    logits = scores * softmax_scale
    m = jnp.max(logits, axis=1, keepdims=True)
    e = jnp.exp(logits - m)
    att = e * pl.reciprocal(jnp.sum(e, axis=1, keepdims=True), approx=True)

    # ---- single value matmul over all 9 taps (bf16 operands, f32 accumulate) ----
    out9 = jnp.dot(att.astype(jnp.bfloat16), v_ref[0],
                   preferred_element_type=jnp.float32)                           # (tq, 9C)

    # ---- distributed conv_transpose2d 'paste' -----------------------------------
    # Each tile only touches output rows [row0 - (W+1), row0 + tq + W]; assemble
    # its contribution as one (tot, C) value, then a single scratch accumulate.
    row0 = qi * tq
    xq = (row0 + jax.lax.broadcasted_iota(jnp.int32, (tq, 1), 0)) % W
    mask_l = (xq > 0).astype(jnp.float32)          # dx = -1 must not wrap into the previous row
    mask_r = (xq < W - 1).astype(jnp.float32)      # dx = +1 must not wrap into the next row

    tile_paste = jnp.zeros((tot, C), jnp.float32)
    for k in range(KSIZE * KSIZE):
        dy = k // KSIZE - 1
        dx = k % KSIZE - 1
        slab = out9[:, k * C:(k + 1) * C]
        if dx < 0:
            slab = slab * mask_l
        elif dx > 0:
            slab = slab * mask_r
        off = pad + dy * W + dx                    # static per tap, >= 0 since pad >= W+1
        pieces = []
        if off > 0:
            pieces.append(jnp.zeros((off, C), jnp.float32))
        pieces.append(slab)
        if tot - tq - off > 0:
            pieces.append(jnp.zeros((tot - tq - off, C), jnp.float32))
        part = jnp.concatenate(pieces, axis=0) if len(pieces) > 1 else pieces[0]
        tile_paste = tile_paste + part

    start = pl.multiple_of(row0, tq)
    acc_ref[pl.ds(start, tot), :] += tile_paste

    # ---- last query tile: crop the padded accumulator, scale, add residual ----
    @pl.when(qi == pl.num_programs(1) - 1)
    def _finalize():
        o_ref[0] = acc_ref[pad:pad + HW, :] * 0.25 + r_ref[0] * res_scale


def attention_pallas(q, keys_t, vals, res, H, W, softmax_scale, res_scale, tq=None):
    """q: (N,HW,9C) bf16; keys_t: (N,9C,P) bf16 (normalized); vals: (N,P,9C) bf16;
    res: (N,HW,C) f32.  Returns (N,HW,C) f32."""
    N, HW, K9 = q.shape
    P = keys_t.shape[2]
    C = res.shape[2]
    cap = _vmem_capacity_bytes()
    pad = ((W + 1 + 7) // 8) * 8                   # sublane-aligned paste margin >= W+1

    # resident-per-image blocks (pipeline double-buffers inputs) + scratch
    # TODO(synk): pl.Buffered(1) / single-buffering for the batch-constant K/V/res
    # blocks, and a KV-chunked online-softmax path for reference images whose
    # resident K/V cannot fit VMEM at all.
    fixed = (2 * _vmem_bytes((K9, P), 2) + 2 * _vmem_bytes((P, K9), 2)
             + 2 * _vmem_bytes((HW, C), 4)                 # residual block
             + 2 * _vmem_bytes((HW, C), 4)                 # output block
             + _vmem_bytes((HW + 2 * pad, C), 4))          # paste accumulator

    def _var(t):
        return (2 * _vmem_bytes((t, K9), 2)                # q (double-buffered)
                + 4 * _vmem_bytes((t, P), 4)               # scores / exp / att temporaries
                + 3 * _vmem_bytes((t, K9), 4))             # out9 + paste assembly

    if tq is None:
        divs = [t for t in (512, 256, 128, 64, 32, 16, 8) if HW % t == 0]
        tq = divs[-1] if divs else HW
        for t in divs:                                     # largest tile that fits the budget
            if fixed + _var(t) <= cap // 2:
                tq = t
                break
    n_qt = HW // tq

    need = fixed + _var(tq)
    vmem_limit = int(min(0.85 * cap, max(need * 1.3, 32 * 1024 * 1024)))

    kernel = functools.partial(_attn_kernel, H=H, W=W, C=C, tq=tq, pad=pad,
                               softmax_scale=softmax_scale, res_scale=res_scale)

    cost = pl.CostEstimate(
        flops=int(4 * N * HW * P * K9),
        transcendentals=int(N * HW * P),
        bytes_accessed=int(q.size * 2 + keys_t.size * 2 + vals.size * 2
                           + res.size * 4 + N * HW * C * 4),
    )

    # TODO(synk): when N == 1 on v7x, split HW across the two TensorCores instead
    # of relying only on the batch axis for megacore parallelism.
    return pl.pallas_call(
        kernel,
        out_shape=jax.ShapeDtypeStruct((N, HW, C), jnp.float32),
        grid=(N, n_qt),
        in_specs=[
            pl.BlockSpec((1, tq, K9), lambda b, i: (b, i, 0)),
            pl.BlockSpec((1, K9, P), lambda b, i: (b, 0, 0)),
            pl.BlockSpec((1, P, K9), lambda b, i: (b, 0, 0)),
            pl.BlockSpec((1, HW, C), lambda b, i: (b, 0, 0)),
        ],
        out_specs=pl.BlockSpec((1, HW, C), lambda b, i: (b, 0, 0)),
        scratch_shapes=[pltpu.VMEM((HW + 2 * pad, C), jnp.float32)],
        compiler_params=pltpu.CompilerParams(
            dimension_semantics=("parallel", "arbitrary"),
            vmem_limit_bytes=vmem_limit),
        cost_estimate=cost,
    )(q, keys_t, vals, res)


# ---------------------------------------------------------------------------
# Glue: 3x3 'same' patch extraction in the two orientations the kernel wants.
# ---------------------------------------------------------------------------
def extract_patches_hwc(feat_nchw):
    """(N,C,H,W) -> (N, H*W, 9C); last axis ordered (ky*3+kx)*C + c."""
    N, C, H, W = feat_nchw.shape
    x = jnp.transpose(feat_nchw, (0, 2, 3, 1))
    xp = jnp.pad(x, ((0, 0), (1, 1), (1, 1), (0, 0)))
    taps = [xp[:, ky:ky + H, kx:kx + W, :] for ky in range(KSIZE) for kx in range(KSIZE)]
    return jnp.stack(taps, axis=3).reshape(N, H * W, KSIZE * KSIZE * C)


def extract_patches_cf(feat_nchw):
    """(N,C,H,W) -> (N, 9C, H*W); axis 1 ordered (ky*3+kx)*C + c (transposed keys)."""
    N, C, H, W = feat_nchw.shape
    xp = jnp.pad(feat_nchw, ((0, 0), (0, 0), (1, 1), (1, 1)))
    taps = [xp[:, :, ky:ky + H, kx:kx + W] for ky in range(KSIZE) for kx in range(KSIZE)]
    return jnp.concatenate(taps, axis=1).reshape(N, KSIZE * KSIZE * C, H * W)


# ---------------------------------------------------------------------------
# Full forward pass (NCHW in / NCHW out), matching LargePyramidAttention.forward
# ---------------------------------------------------------------------------
def large_pyramid_attention_forward(x_nchw, large_nchw, params):
    N, C, H, W = x_nchw.shape
    x = x_nchw.astype(jnp.float32)
    lg = large_nchw.astype(jnp.float32)

    # query projection (1x1 conv + PReLU), channels-first / lane-dense
    mb = pointwise_conv_prelu(x, params['mb_w'], params['mb_b'],
                              jnp.full((C,), params['mb_a'], jnp.float32))

    # fused conv_match + conv_assembly: one pass over the big `large` input
    w_f = jnp.concatenate([params['cm_w'], params['ca_w']], axis=1)
    b_f = jnp.concatenate([params['cm_b'], params['ca_b']], axis=0)
    a_f = jnp.concatenate([jnp.full((C,), params['cm_a'], jnp.float32),
                           jnp.full((C,), params['ca_a'], jnp.float32)], axis=0)
    both = pointwise_conv_prelu(lg, w_f, b_f, a_f)
    km, vm = both[:, :C], both[:, C:]

    # Host-side patch prep: every pyramid level reads the same `large`, so the
    # LEVEL-times key/value duplication is a softmax no-op and is dropped. Keys
    # are normalized, transposed and bf16-cast once here, so the kernel's inner
    # loop is pure MXU/EUP work.
    # TODO(synk): build q/K/V patches in-kernel from the base maps (rolls/slices
    # at qi==0) to cut their HBM traffic ~9x instead of materializing them here.
    q = extract_patches_hwc(mb).astype(jnp.bfloat16)                      # (N, HW, 9C)
    k_cf = extract_patches_cf(km)                                         # (N, 9C, P) f32
    ssq = jnp.sum(k_cf * k_cf, axis=1, keepdims=True)
    keys_t = (k_cf * jnp.minimum(jax.lax.rsqrt(ssq),
                                 1.0 / ESCAPE_NAN)).astype(jnp.bfloat16)  # (N, 9C, P)
    vals = extract_patches_hwc(vm).astype(jnp.bfloat16)                   # (N, P, 9C)
    res = jnp.transpose(x, (0, 2, 3, 1)).reshape(N, H * W, C)

    out = attention_pallas(q, keys_t, vals, res, H, W, SOFTMAX_SCALE, RES_SCALE)
    return jnp.transpose(out.reshape(N, H, W, C), (0, 3, 1, 2))


# ---------------------------------------------------------------------------
# Pure-JAX reference (mirrors the PyTorch ops directly) for self-check
# ---------------------------------------------------------------------------
def ref_forward(x, large, params):
    HI = jax.lax.Precision.HIGHEST
    N, C, H, W = x.shape

    def pw(z, w, b, a):
        y = jnp.einsum('nchw,cd->ndhw', z, w, precision=HI) + b[None, :, None, None]
        return jnp.where(y >= 0.0, y, a * y)

    mb = pw(x, params['mb_w'], params['mb_b'], params['mb_a'])
    km = pw(large, params['cm_w'], params['cm_b'], params['cm_a'])
    vm = pw(large, params['ca_w'], params['ca_b'], params['ca_a'])

    def patches_nchw(z):  # -> (N, L, C, 3, 3), PyTorch unfold ordering
        zp = jnp.pad(z, ((0, 0), (0, 0), (1, 1), (1, 1)))
        ps = []
        for ky in range(KSIZE):
            row = [zp[:, :, ky:ky + z.shape[2], kx:kx + z.shape[3]] for kx in range(KSIZE)]
            ps.append(jnp.stack(row, axis=-1))
        p = jnp.stack(ps, axis=-2)                         # (N, C, H, W, ky, kx)
        return jnp.transpose(p, (0, 2, 3, 1, 4, 5)).reshape(z.shape[0], -1, z.shape[1], 3, 3)

    wi_all, vi_all = patches_nchw(km), patches_nchw(vm)
    outs = []
    for n in range(N):
        wi = jnp.concatenate([wi_all[n]] * LEVEL, axis=0)
        vi = jnp.concatenate([vi_all[n]] * LEVEL, axis=0)
        norm = jnp.maximum(jnp.sqrt(jnp.sum(wi ** 2, axis=(1, 2, 3), keepdims=True)), ESCAPE_NAN)
        wi_n = wi / norm
        yi = jax.lax.conv_general_dilated(mb[n:n + 1], wi_n, (1, 1), ((1, 1), (1, 1)),
                                          dimension_numbers=('NCHW', 'OIHW', 'NCHW'),
                                          precision=HI)
        yi = jax.nn.softmax(yi * SOFTMAX_SCALE, axis=1)
        wT = jnp.transpose(jnp.flip(vi, axis=(2, 3)), (1, 0, 2, 3))
        oi = jax.lax.conv_general_dilated(yi, wT, (1, 1), ((1, 1), (1, 1)),
                                          dimension_numbers=('NCHW', 'OIHW', 'NCHW'),
                                          precision=HI) / 4.0
        outs.append(oi)
    return jnp.concatenate(outs, axis=0) + x * RES_SCALE


def init_params(C, key):
    ks = jax.random.split(key, 6)
    scale = 1.0 / np.sqrt(C)
    p = {}
    for name, kw, kb in (('mb', ks[0], ks[1]), ('cm', ks[2], ks[3]), ('ca', ks[4], ks[5])):
        p[f'{name}_w'] = jax.random.normal(kw, (C, C), jnp.float32) * scale
        p[f'{name}_b'] = jax.random.normal(kb, (C,), jnp.float32) * 0.1
        p[f'{name}_a'] = jnp.float32(0.25)   # PReLU default init
    return p


if __name__ == "__main__":
    key = jax.random.PRNGKey(0)
    k_x, k_l, k_p = jax.random.split(key, 3)

    N, C, H, W = 2, 4, 16, 16        # `input`
    Hl, Wl = 32, 32                  # `large` (larger reference image)
    x = jax.random.normal(k_x, (N, C, H, W), jnp.float32)
    large = jax.random.normal(k_l, (N, C, Hl, Wl), jnp.float32)
    params = init_params(C, k_p)

    fwd = jax.jit(large_pyramid_attention_forward)
    out = jax.block_until_ready(fwd(x, large, params))
    assert out.shape == (N, C, H, W)

    ref = jax.block_until_ready(ref_forward(x, large, params))
    # tolerance reflects the bf16 QK / value / attention-weight MXU path
    np.testing.assert_allclose(np.asarray(out), np.asarray(ref), rtol=6e-2, atol=6e-2)

    print("KERNEL_OK")
</pallas_src>

<mosaic_0001>
module attributes {stable_mosaic.version = 11 : i64} {
  func.func @_pw_prelu_kernel(%arg0: i32, %arg1: i32, %arg2: memref<1x4x512xf32, #tpu.memory_space<vmem>>, %arg3: memref<8x4xf32, #tpu.memory_space<vmem>>, %arg4: memref<8x1xf32, #tpu.memory_space<vmem>>, %arg5: memref<8x1xf32, #tpu.memory_space<vmem>>, %arg6: memref<1x8x512xf32, #tpu.memory_space<vmem>>) attributes {dimension_semantics = [#tpu.dimension_semantics<parallel>, #tpu.dimension_semantics<parallel>], iteration_bounds = array<i64: 2, 2>, scalar_prefetch = 0 : i64, scratch_operands = 0 : i64, tpu.core_type = #tpu.core_type<tc>, window_params = [{transform_indices = @transform_0, window_bounds = array<i64: 1, 4, 512>}, {pipeline_mode = #tpu.pipeline_mode<synchronous>, transform_indices = @transform_1, window_bounds = array<i64: 8, 4>}, {pipeline_mode = #tpu.pipeline_mode<synchronous>, transform_indices = @transform_2, window_bounds = array<i64: 8, 1>}, {pipeline_mode = #tpu.pipeline_mode<synchronous>, transform_indices = @transform_3, window_bounds = array<i64: 8, 1>}, {transform_indices = @transform_4, window_bounds = array<i64: 1, 8, 512>}]} {
    %c0 = arith.constant 0 : index
    %c0_0 = arith.constant 0 : index
    %0 = vector.load %arg3[%c0, %c0_0] : memref<8x4xf32, #tpu.memory_space<vmem>>, vector<8x4xf32>
    %c0_1 = arith.constant 0 : index
    %c0_2 = arith.constant 0 : index
    %c0_3 = arith.constant 0 : index
    %1 = vector.load %arg2[%c0_1, %c0_2, %c0_3] : memref<1x4x512xf32, #tpu.memory_space<vmem>>, vector<1x4x512xf32>
    %2 = vector.shape_cast %1 : vector<1x4x512xf32> to vector<4x512xf32>
    %cst = arith.constant dense<0.000000e+00> : vector<8x512xf32>
    %3 = tpu.matmul %0, %2, %cst {dimension_numbers = #tpu.dot_dimension_numbers<[1], [0], [0], [1], [0, 0, 1, 1], [], []>} : vector<8x4xf32>, vector<4x512xf32>, vector<8x512xf32> -> vector<8x512xf32>
    %c0_4 = arith.constant 0 : index
    %c0_5 = arith.constant 0 : index
    %4 = vector.load %arg4[%c0_4, %c0_5] : memref<8x1xf32, #tpu.memory_space<vmem>>, vector<8x1xf32>
    %5 = vector.broadcast %4 : vector<8x1xf32> to vector<8x512xf32>
    %6 = arith.addf %3, %5 : vector<8x512xf32>
    %cst_6 = arith.constant 0.000000e+00 : f32
    %7 = vector.broadcast %cst_6 : f32 to vector<8x512xf32>
    %8 = arith.cmpf oge, %6, %7 : vector<8x512xf32>
    %c0_7 = arith.constant 0 : index
    %c0_8 = arith.constant 0 : index
    %9 = vector.load %arg5[%c0_7, %c0_8] : memref<8x1xf32, #tpu.memory_space<vmem>>, vector<8x1xf32>
    %10 = vector.broadcast %9 : vector<8x1xf32> to vector<8x512xf32>
    %11 = arith.mulf %10, %6 : vector<8x512xf32>
    %12 = arith.select %8, %6, %11 : vector<8x512xi1>, vector<8x512xf32>
    %c0_9 = arith.constant 0 : index
    %c0_10 = arith.constant 0 : index
    %c0_11 = arith.constant 0 : index
    %13 = vector.load %arg6[%c0_9, %c0_10, %c0_11] : memref<1x8x512xf32, #tpu.memory_space<vmem>>, vector<1x8x512xf32>
    %14 = vector.shape_cast %13 : vector<1x8x512xf32> to vector<8x512xf32>
    %15 = vector.shape_cast %12 : vector<8x512xf32> to vector<1x8x512xf32>
    tpu.vector_store %arg6[%c0_9, %c0_10, %c0_11], %15 {strides = array<i32>} : memref<1x8x512xf32, #tpu.memory_space<vmem>>, vector<1x8x512xf32>,
    return
  }
  func.func @transform_0(%arg0: i32, %arg1: i32) -> (i32, i32, i32) {
    %c0_i32 = arith.constant 0 : i32
    %c0_i32_0 = arith.constant 0 : i32
    return %arg0, %c0_i32, %arg1 : i32, i32, i32
  }
  func.func @transform_1(%arg0: i32, %arg1: i32) -> (i32, i32) {
    %c0_i32 = arith.constant 0 : i32
    %c0_i32_0 = arith.constant 0 : i32
    %c0_i32_1 = arith.constant 0 : i32
    return %c0_i32, %c0_i32_0 : i32, i32
  }
  func.func @transform_2(%arg0: i32, %arg1: i32) -> (i32, i32) {
    %c0_i32 = arith.constant 0 : i32
    %c0_i32_0 = arith.constant 0 : i32
    %c0_i32_1 = arith.constant 0 : i32
    return %c0_i32, %c0_i32_0 : i32, i32
  }
  func.func @transform_3(%arg0: i32, %arg1: i32) -> (i32, i32) {
    %c0_i32 = arith.constant 0 : i32
    %c0_i32_0 = arith.constant 0 : i32
    %c0_i32_1 = arith.constant 0 : i32
    return %c0_i32, %c0_i32_0 : i32, i32
  }
  func.func @transform_4(%arg0: i32, %arg1: i32) -> (i32, i32, i32) {
    %c0_i32 = arith.constant 0 : i32
    %c0_i32_0 = arith.constant 0 : i32
    return %arg0, %c0_i32, %arg1 : i32, i32, i32
  }
}

module attributes {stable_mosaic.version = 11 : i64} {
  func.func @_pw_prelu_kernel(%arg0: i32, %arg1: i32, %arg2: memref<1x4x256xf32, #tpu.memory_space<vmem>>, %arg3: memref<4x4xf32, #tpu.memory_space<vmem>>, %arg4: memref<4x1xf32, #tpu.memory_space<vmem>>, %arg5: memref<4x1xf32, #tpu.memory_space<vmem>>, %arg6: memref<1x4x256xf32, #tpu.memory_space<vmem>>) attributes {dimension_semantics = [#tpu.dimension_semantics<parallel>, #tpu.dimension_semantics<parallel>], iteration_bounds = array<i64: 2, 1>, scalar_prefetch = 0 : i64, scratch_operands = 0 : i64, tpu.core_type = #tpu.core_type<tc>, window_params = [{transform_indices = @transform_0, window_bounds = array<i64: 1, 4, 256>}, {pipeline_mode = #tpu.pipeline_mode<synchronous>, transform_indices = @transform_1, window_bounds = array<i64: 4, 4>}, {pipeline_mode = #tpu.pipeline_mode<synchronous>, transform_indices = @transform_2, window_bounds = array<i64: 4, 1>}, {pipeline_mode = #tpu.pipeline_mode<synchronous>, transform_indices = @transform_3, window_bounds = array<i64: 4, 1>}, {transform_indices = @transform_4, window_bounds = array<i64: 1, 4, 256>}]} {
    %c0 = arith.constant 0 : index
    %c0_0 = arith.constant 0 : index
    %0 = vector.load %arg3[%c0, %c0_0] : memref<4x4xf32, #tpu.memory_space<vmem>>, vector<4x4xf32>
    %c0_1 = arith.constant 0 : index
    %c0_2 = arith.constant 0 : index
    %c0_3 = arith.constant 0 : index
    %1 = vector.load %arg2[%c0_1, %c0_2, %c0_3] : memref<1x4x256xf32, #tpu.memory_space<vmem>>, vector<1x4x256xf32>
    %2 = vector.shape_cast %1 : vector<1x4x256xf32> to vector<4x256xf32>
    %cst = arith.constant dense<0.000000e+00> : vector<4x256xf32>
    %3 = tpu.matmul %0, %2, %cst {dimension_numbers = #tpu.dot_dimension_numbers<[1], [0], [0], [1], [0, 0, 1, 1], [], []>} : vector<4x4xf32>, vector<4x256xf32>, vector<4x256xf32> -> vector<4x256xf32>
    %c0_4 = arith.constant 0 : index
    %c0_5 = arith.constant 0 : index
    %4 = vector.load %arg4[%c0_4, %c0_5] : memref<4x1xf32, #tpu.memory_space<vmem>>, vector<4x1xf32>
    %5 = vector.broadcast %4 : vector<4x1xf32> to vector<4x256xf32>
    %6 = arith.addf %3, %5 : vector<4x256xf32>
    %cst_6 = arith.constant 0.000000e+00 : f32
    %7 = vector.broadcast %cst_6 : f32 to vector<4x256xf32>
    %8 = arith.cmpf oge, %6, %7 : vector<4x256xf32>
    %c0_7 = arith.constant 0 : index
    %c0_8 = arith.constant 0 : index
    %9 = vector.load %arg5[%c0_7, %c0_8] : memref<4x1xf32, #tpu.memory_space<vmem>>, vector<4x1xf32>
    %10 = vector.broadcast %9 : vector<4x1xf32> to vector<4x256xf32>
    %11 = arith.mulf %10, %6 : vector<4x256xf32>
    %12 = arith.select %8, %6, %11 : vector<4x256xi1>, vector<4x256xf32>
    %c0_9 = arith.constant 0 : index
    %c0_10 = arith.constant 0 : index
    %c0_11 = arith.constant 0 : index
    %13 = vector.load %arg6[%c0_9, %c0_10, %c0_11] : memref<1x4x256xf32, #tpu.memory_space<vmem>>, vector<1x4x256xf32>
    %14 = vector.shape_cast %13 : vector<1x4x256xf32> to vector<4x256xf32>
    %15 = vector.shape_cast %12 : vector<4x256xf32> to vector<1x4x256xf32>
    tpu.vector_store %arg6[%c0_9, %c0_10, %c0_11], %15 {strides = array<i32>} : memref<1x4x256xf32, #tpu.memory_space<vmem>>, vector<1x4x256xf32>,
    return
  }
  func.func @transform_0(%arg0: i32, %arg1: i32) -> (i32, i32, i32) {
    %c0_i32 = arith.constant 0 : i32
    %c0_i32_0 = arith.constant 0 : i32
    return %arg0, %c0_i32, %arg1 : i32, i32, i32
  }
  func.func @transform_1(%arg0: i32, %arg1: i32) -> (i32, i32) {
    %c0_i32 = arith.constant 0 : i32
    %c0_i32_0 = arith.constant 0 : i32
    %c0_i32_1 = arith.constant 0 : i32
    return %c0_i32, %c0_i32_0 : i32, i32
  }
  func.func @transform_2(%arg0: i32, %arg1: i32) -> (i32, i32) {
    %c0_i32 = arith.constant 0 : i32
    %c0_i32_0 = arith.constant 0 : i32
    %c0_i32_1 = arith.constant 0 : i32
    return %c0_i32, %c0_i32_0 : i32, i32
  }
  func.func @transform_3(%arg0: i32, %arg1: i32) -> (i32, i32) {
    %c0_i32 = arith.constant 0 : i32
    %c0_i32_0 = arith.constant 0 : i32
    %c0_i32_1 = arith.constant 0 : i32
    return %c0_i32, %c0_i32_0 : i32, i32
  }
  func.func @transform_4(%arg0: i32, %arg1: i32) -> (i32, i32, i32) {
    %c0_i32 = arith.constant 0 : i32
    %c0_i32_0 = arith.constant 0 : i32
    return %arg0, %c0_i32, %arg1 : i32, i32, i32
  }
}

module attributes {stable_mosaic.version = 11 : i64} {
  func.func @_attn_kernel(%arg0: i32, %arg1: i32, %arg2: memref<1x256x36xbf16, #tpu.memory_space<vmem>>, %arg3: memref<1x36x1024xbf16, #tpu.memory_space<vmem>>, %arg4: memref<1x1024x36xbf16, #tpu.memory_space<vmem>>, %arg5: memref<1x256x4xf32, #tpu.memory_space<vmem>>, %arg6: memref<1x256x4xf32, #tpu.memory_space<vmem>>, %arg7: memref<304x4xf32, #tpu.memory_space<vmem>>) attributes {dimension_semantics = [#tpu.dimension_semantics<parallel>, #tpu.dimension_semantics<arbitrary>], iteration_bounds = array<i64: 2, 1>, scalar_prefetch = 0 : i64, scratch_operands = 1 : i64, tpu.core_type = #tpu.core_type<tc>, window_params = [{transform_indices = @transform_0, window_bounds = array<i64: 1, 256, 36>}, {transform_indices = @transform_1, window_bounds = array<i64: 1, 36, 1024>}, {transform_indices = @transform_2, window_bounds = array<i64: 1, 1024, 36>}, {transform_indices = @transform_3, window_bounds = array<i64: 1, 256, 4>}, {transform_indices = @transform_4, window_bounds = array<i64: 1, 256, 4>}]} {
    %c0_i32 = arith.constant 0 : i32
    %0 = arith.cmpi eq, %arg1, %c0_i32 : i32
    %1 = arith.extui %0 : i1 to i32
    %c0_i32_0 = arith.constant 0 : i32
    %2 = arith.cmpi ne, %1, %c0_i32_0 : i32
    scf.if %2 {
      %cst_41 = arith.constant 0.000000e+00 : f32
      %119 = vector.broadcast %cst_41 : f32 to vector<304x4xf32>
      %c0_42 = arith.constant 0 : index
      %c0_43 = arith.constant 0 : index
      %120 = vector.load %arg7[%c0_42, %c0_43] : memref<304x4xf32, #tpu.memory_space<vmem>>, vector<304x4xf32>
      tpu.vector_store %arg7[%c0_42, %c0_43], %119 {strides = array<i32>} : memref<304x4xf32, #tpu.memory_space<vmem>>, vector<304x4xf32>,
    } else {
    }
    %c0 = arith.constant 0 : index
    %c0_1 = arith.constant 0 : index
    %c0_2 = arith.constant 0 : index
    %3 = vector.load %arg2[%c0, %c0_1, %c0_2] : memref<1x256x36xbf16, #tpu.memory_space<vmem>>, vector<1x256x36xbf16>
    %4 = vector.shape_cast %3 : vector<1x256x36xbf16> to vector<256x36xbf16>
    %c0_3 = arith.constant 0 : index
    %c0_4 = arith.constant 0 : index
    %c0_5 = arith.constant 0 : index
    %5 = vector.load %arg3[%c0_3, %c0_4, %c0_5] : memref<1x36x1024xbf16, #tpu.memory_space<vmem>>, vector<1x36x1024xbf16>
    %6 = vector.shape_cast %5 : vector<1x36x1024xbf16> to vector<36x1024xbf16>
    %cst = arith.constant dense<0.000000e+00> : vector<256x1024xf32>
    %7 = tpu.matmul %4, %6, %cst {dimension_numbers = #tpu.dot_dimension_numbers<[1], [0], [0], [1], [0, 0, 1, 1], [], []>} : vector<256x36xbf16>, vector<36x1024xbf16>, vector<256x1024xf32> -> vector<256x1024xf32>
    %cst_6 = arith.constant 1.000000e+01 : f32
    %8 = vector.broadcast %cst_6 : f32 to vector<256x1024xf32>
    %9 = arith.mulf %7, %8 : vector<256x1024xf32>
    %cst_7 = arith.constant dense<0xFF800000> : vector<256xf32>
    %10 = vector.multi_reduction <maximumf>, %9, %cst_7 [1] : vector<256x1024xf32> to vector<256xf32>
    %11 = vector.shape_cast %10 : vector<256xf32> to vector<256x1xf32>
    %12 = vector.broadcast %11 : vector<256x1xf32> to vector<256x1024xf32>
    %13 = arith.subf %9, %12 : vector<256x1024xf32>
    %14 = math.exp %13 : vector<256x1024xf32>
    %cst_8 = arith.constant dense<0.000000e+00> : vector<256xf32>
    %15 = vector.multi_reduction <add>, %14, %cst_8 [1] : vector<256x1024xf32> to vector<256xf32>
    %16 = vector.shape_cast %15 : vector<256xf32> to vector<256x1xf32>
    %17 = tpu.reciprocal %16 {approx = true} : vector<256x1xf32> -> vector<256x1xf32>
    %18 = vector.broadcast %17 : vector<256x1xf32> to vector<256x1024xf32>
    %19 = arith.mulf %14, %18 : vector<256x1024xf32>
    %20 = arith.truncf %19 : vector<256x1024xf32> to vector<256x1024xbf16>
    %c0_9 = arith.constant 0 : index
    %c0_10 = arith.constant 0 : index
    %c0_11 = arith.constant 0 : index
    %21 = vector.load %arg4[%c0_9, %c0_10, %c0_11] : memref<1x1024x36xbf16, #tpu.memory_space<vmem>>, vector<1x1024x36xbf16>
    %22 = vector.shape_cast %21 : vector<1x1024x36xbf16> to vector<1024x36xbf16>
    %cst_12 = arith.constant dense<0.000000e+00> : vector<256x36xf32>
    %23 = tpu.matmul %20, %22, %cst_12 {dimension_numbers = #tpu.dot_dimension_numbers<[1], [0], [0], [1], [0, 0, 1, 1], [], []>} : vector<256x1024xbf16>, vector<1024x36xbf16>, vector<256x36xf32> -> vector<256x36xf32>
    %c256_i32 = arith.constant 256 : i32
    %24 = arith.muli %arg1, %c256_i32 : i32
    %25 = tpu.iota {dimensions = array<i32: 0>} : vector<256x1xi32>
    %26 = vector.broadcast %24 : i32 to vector<256x1xi32>
    %27 = arith.addi %26, %25 : vector<256x1xi32>
    %c16_i32 = arith.constant 16 : i32
    %c0_i32_13 = arith.constant 0 : i32
    %28 = arith.cmpi eq, %c16_i32, %c0_i32_13 : i32
    %c1_i32 = arith.constant 1 : i32
    %29 = arith.select %28, %c1_i32, %c16_i32 : i32
    %30 = vector.broadcast %29 : i32 to vector<256x1xi32>
    %31 = arith.remsi %27, %30 : vector<256x1xi32>
    %c0_i32_14 = arith.constant 0 : i32
    %32 = vector.broadcast %c0_i32_14 : i32 to vector<256x1xi32>
    %33 = arith.cmpi ne, %31, %32 : vector<256x1xi32>
    %c0_i32_15 = arith.constant 0 : i32
    %34 = vector.broadcast %c0_i32_15 : i32 to vector<256x1xi32>
    %35 = arith.cmpi slt, %31, %34 : vector<256x1xi32>
    %c0_i32_16 = arith.constant 0 : i32
    %36 = arith.cmpi slt, %29, %c0_i32_16 : i32
    %37 = vector.broadcast %36 : i1 to vector<256x1xi1>
    %38 = vector.broadcast %37 : vector<256x1xi1> to vector<256x1xi1>
    %39 = arith.xori %35, %38 : vector<256x1xi1>
    %40 = arith.andi %39, %33 : vector<256x1xi1>
    %41 = vector.broadcast %29 : i32 to vector<256x1xi32>
    %42 = arith.addi %31, %41 : vector<256x1xi32>
    %43 = arith.select %40, %42, %31 : vector<256x1xi1>, vector<256x1xi32>
    %c0_i32_17 = arith.constant 0 : i32
    %44 = vector.broadcast %c0_i32_17 : i32 to vector<256x1xi32>
    %45 = arith.cmpi sgt, %43, %44 : vector<256x1xi32>
    %46 = arith.extui %45 : vector<256x1xi1> to vector<256x1xi32>
    %47 = arith.sitofp %46 : vector<256x1xi32> to vector<256x1xf32>
    %c15_i32 = arith.constant 15 : i32
    %48 = vector.broadcast %c15_i32 : i32 to vector<256x1xi32>
    %49 = arith.cmpi slt, %43, %48 : vector<256x1xi32>
    %50 = arith.extui %49 : vector<256x1xi1> to vector<256x1xi32>
    %51 = arith.sitofp %50 : vector<256x1xi32> to vector<256x1xf32>
    %cst_18 = arith.constant 0.000000e+00 : f32
    %52 = vector.broadcast %cst_18 : f32 to vector<304x4xf32>
    %53 = vector.extract_strided_slice %23 {offsets = [0, 0], sizes = [256, 4], strides = [1, 1]} : vector<256x36xf32> to vector<256x4xf32>
    %54 = vector.broadcast %47 : vector<256x1xf32> to vector<256x4xf32>
    %55 = arith.mulf %53, %54 : vector<256x4xf32>
    %cst_19 = arith.constant 0.000000e+00 : f32
    %56 = vector.broadcast %cst_19 : f32 to vector<7x4xf32>
    %cst_20 = arith.constant 0.000000e+00 : f32
    %57 = vector.broadcast %cst_20 : f32 to vector<41x4xf32>
    %58 = tpu.concatenate %56, %55, %57 in 0 : vector<7x4xf32>, vector<256x4xf32>, vector<41x4xf32> -> vector<304x4xf32>
    %59 = arith.addf %52, %58 : vector<304x4xf32>
    %60 = vector.extract_strided_slice %23 {offsets = [0, 4], sizes = [256, 4], strides = [1, 1]} : vector<256x36xf32> to vector<256x4xf32>
    %cst_21 = arith.constant 0.000000e+00 : f32
    %61 = vector.broadcast %cst_21 : f32 to vector<8x4xf32>
    %cst_22 = arith.constant 0.000000e+00 : f32
    %62 = vector.broadcast %cst_22 : f32 to vector<40x4xf32>
    %63 = tpu.concatenate %61, %60, %62 in 0 : vector<8x4xf32>, vector<256x4xf32>, vector<40x4xf32> -> vector<304x4xf32>
    %64 = arith.addf %59, %63 : vector<304x4xf32>
    %65 = vector.extract_strided_slice %23 {offsets = [0, 8], sizes = [256, 4], strides = [1, 1]} : vector<256x36xf32> to vector<256x4xf32>
    %66 = vector.broadcast %51 : vector<256x1xf32> to vector<256x4xf32>
    %67 = arith.mulf %65, %66 : vector<256x4xf32>
    %cst_23 = arith.constant 0.000000e+00 : f32
    %68 = vector.broadcast %cst_23 : f32 to vector<9x4xf32>
    %cst_24 = arith.constant 0.000000e+00 : f32
    %69 = vector.broadcast %cst_24 : f32 to vector<39x4xf32>
    %70 = tpu.concatenate %68, %67, %69 in 0 : vector<9x4xf32>, vector<256x4xf32>, vector<39x4xf32> -> vector<304x4xf32>
    %71 = arith.addf %64, %70 : vector<304x4xf32>
    %72 = vector.extract_strided_slice %23 {offsets = [0, 12], sizes = [256, 4], strides = [1, 1]} : vector<256x36xf32> to vector<256x4xf32>
    %73 = vector.broadcast %47 : vector<256x1xf32> to vector<256x4xf32>
    %74 = arith.mulf %72, %73 : vector<256x4xf32>
    %cst_25 = arith.constant 0.000000e+00 : f32
    %75 = vector.broadcast %cst_25 : f32 to vector<23x4xf32>
    %cst_26 = arith.constant 0.000000e+00 : f32
    %76 = vector.broadcast %cst_26 : f32 to vector<25x4xf32>
    %77 = tpu.concatenate %75, %74, %76 in 0 : vector<23x4xf32>, vector<256x4xf32>, vector<25x4xf32> -> vector<304x4xf32>
    %78 = arith.addf %71, %77 : vector<304x4xf32>
    %79 = vector.extract_strided_slice %23 {offsets = [0, 16], sizes = [256, 4], strides = [1, 1]} : vector<256x36xf32> to vector<256x4xf32>
    %cst_27 = arith.constant 0.000000e+00 : f32
    %80 = vector.broadcast %cst_27 : f32 to vector<24x4xf32>
    %cst_28 = arith.constant 0.000000e+00 : f32
    %81 = vector.broadcast %cst_28 : f32 to vector<24x4xf32>
    %82 = tpu.concatenate %80, %79, %81 in 0 : vector<24x4xf32>, vector<256x4xf32>, vector<24x4xf32> -> vector<304x4xf32>
    %83 = arith.addf %78, %82 : vector<304x4xf32>
    %84 = vector.extract_strided_slice %23 {offsets = [0, 20], sizes = [256, 4], strides = [1, 1]} : vector<256x36xf32> to vector<256x4xf32>
    %85 = vector.broadcast %51 : vector<256x1xf32> to vector<256x4xf32>
    %86 = arith.mulf %84, %85 : vector<256x4xf32>
    %cst_29 = arith.constant 0.000000e+00 : f32
    %87 = vector.broadcast %cst_29 : f32 to vector<25x4xf32>
    %cst_30 = arith.constant 0.000000e+00 : f32
    %88 = vector.broadcast %cst_30 : f32 to vector<23x4xf32>
    %89 = tpu.concatenate %87, %86, %88 in 0 : vector<25x4xf32>, vector<256x4xf32>, vector<23x4xf32> -> vector<304x4xf32>
    %90 = arith.addf %83, %89 : vector<304x4xf32>
    %91 = vector.extract_strided_slice %23 {offsets = [0, 24], sizes = [256, 4], strides = [1, 1]} : vector<256x36xf32> to vector<256x4xf32>
    %92 = vector.broadcast %47 : vector<256x1xf32> to vector<256x4xf32>
    %93 = arith.mulf %91, %92 : vector<256x4xf32>
    %cst_31 = arith.constant 0.000000e+00 : f32
    %94 = vector.broadcast %cst_31 : f32 to vector<39x4xf32>
    %cst_32 = arith.constant 0.000000e+00 : f32
    %95 = vector.broadcast %cst_32 : f32 to vector<9x4xf32>
    %96 = tpu.concatenate %94, %93, %95 in 0 : vector<39x4xf32>, vector<256x4xf32>, vector<9x4xf32> -> vector<304x4xf32>
    %97 = arith.addf %90, %96 : vector<304x4xf32>
    %98 = vector.extract_strided_slice %23 {offsets = [0, 28], sizes = [256, 4], strides = [1, 1]} : vector<256x36xf32> to vector<256x4xf32>
    %cst_33 = arith.constant 0.000000e+00 : f32
    %99 = vector.broadcast %cst_33 : f32 to vector<40x4xf32>
    %cst_34 = arith.constant 0.000000e+00 : f32
    %100 = vector.broadcast %cst_34 : f32 to vector<8x4xf32>
    %101 = tpu.concatenate %99, %98, %100 in 0 : vector<40x4xf32>, vector<256x4xf32>, vector<8x4xf32> -> vector<304x4xf32>
    %102 = arith.addf %97, %101 : vector<304x4xf32>
    %103 = vector.extract_strided_slice %23 {offsets = [0, 32], sizes = [256, 4], strides = [1, 1]} : vector<256x36xf32> to vector<256x4xf32>
    %104 = vector.broadcast %51 : vector<256x1xf32> to vector<256x4xf32>
    %105 = arith.mulf %103, %104 : vector<256x4xf32>
    %cst_35 = arith.constant 0.000000e+00 : f32
    %106 = vector.broadcast %cst_35 : f32 to vector<41x4xf32>
    %cst_36 = arith.constant 0.000000e+00 : f32
    %107 = vector.broadcast %cst_36 : f32 to vector<7x4xf32>
    %108 = tpu.concatenate %106, %105, %107 in 0 : vector<41x4xf32>, vector<256x4xf32>, vector<7x4xf32> -> vector<304x4xf32>
    %109 = arith.addf %102, %108 : vector<304x4xf32>
    %110 = tpu.assume_multiple %24, 256 : i32
    %111 = arith.index_cast %110 : i32 to index
    %c0_37 = arith.constant 0 : index
    %112 = vector.load %arg7[%111, %c0_37] : memref<304x4xf32, #tpu.memory_space<vmem>>, vector<304x4xf32>
    %113 = arith.addf %112, %109 : vector<304x4xf32>
    %114 = arith.index_cast %110 : i32 to index
    %c0_38 = arith.constant 0 : index
    %115 = vector.load %arg7[%114, %c0_38] : memref<304x4xf32, #tpu.memory_space<vmem>>, vector<304x4xf32>
    tpu.vector_store %arg7[%114, %c0_38], %113 {strides = array<i32>} : memref<304x4xf32, #tpu.memory_space<vmem>>, vector<304x4xf32>,
    %c0_i32_39 = arith.constant 0 : i32
    %116 = arith.cmpi eq, %arg1, %c0_i32_39 : i32
    %117 = arith.extui %116 : i1 to i32
    %c0_i32_40 = arith.constant 0 : i32
    %118 = arith.cmpi ne, %117, %c0_i32_40 : i32
    scf.if %118 {
      %c24 = arith.constant 24 : index
      %c0_41 = arith.constant 0 : index
      %119 = vector.load %arg7[%c24, %c0_41] : memref<304x4xf32, #tpu.memory_space<vmem>>, vector<256x4xf32>
      %cst_42 = arith.constant 2.500000e-01 : f32
      %120 = vector.broadcast %cst_42 : f32 to vector<256x4xf32>
      %121 = arith.mulf %119, %120 : vector<256x4xf32>
      %c0_43 = arith.constant 0 : index
      %c0_44 = arith.constant 0 : index
      %c0_45 = arith.constant 0 : index
      %122 = vector.load %arg5[%c0_43, %c0_44, %c0_45] : memref<1x256x4xf32, #tpu.memory_space<vmem>>, vector<1x256x4xf32>
      %123 = vector.shape_cast %122 : vector<1x256x4xf32> to vector<256x4xf32>
      %cst_46 = arith.constant 1.000000e+00 : f32
      %124 = vector.broadcast %cst_46 : f32 to vector<256x4xf32>
      %125 = arith.mulf %123, %124 : vector<256x4xf32>
      %126 = arith.addf %121, %125 : vector<256x4xf32>
      %c0_47 = arith.constant 0 : index
      %c0_48 = arith.constant 0 : index
      %c0_49 = arith.constant 0 : index
      %127 = vector.load %arg6[%c0_47, %c0_48, %c0_49] : memref<1x256x4xf32, #tpu.memory_space<vmem>>, vector<1x256x4xf32>
      %128 = vector.shape_cast %127 : vector<1x256x4xf32> to vector<256x4xf32>
      %129 = vector.shape_cast %126 : vector<256x4xf32> to vector<1x256x4xf32>
      tpu.vector_store %arg6[%c0_47, %c0_48, %c0_49], %129 {strides = array<i32>} : memref<1x256x4xf32, #tpu.memory_space<vmem>>, vector<1x256x4xf32>,
    } else {
    }
    return
  }
  func.func @transform_0(%arg0: i32, %arg1: i32) -> (i32, i32, i32) {
    %c0_i32 = arith.constant 0 : i32
    %c0_i32_0 = arith.constant 0 : i32
    return %arg0, %arg1, %c0_i32 : i32, i32, i32
  }
  func.func @transform_1(%arg0: i32, %arg1: i32) -> (i32, i32, i32) {
    %c0_i32 = arith.constant 0 : i32
    %c0_i32_0 = arith.constant 0 : i32
    %c0_i32_1 = arith.constant 0 : i32
    return %arg0, %c0_i32, %c0_i32_0 : i32, i32, i32
  }
  func.func @transform_2(%arg0: i32, %arg1: i32) -> (i32, i32, i32) {
    %c0_i32 = arith.constant 0 : i32
    %c0_i32_0 = arith.constant 0 : i32
    %c0_i32_1 = arith.constant 0 : i32
    return %arg0, %c0_i32, %c0_i32_0 : i32, i32, i32
  }
  func.func @transform_3(%arg0: i32, %arg1: i32) -> (i32, i32, i32) {
    %c0_i32 = arith.constant 0 : i32
    %c0_i32_0 = arith.constant 0 : i32
    %c0_i32_1 = arith.constant 0 : i32
    return %arg0, %c0_i32, %c0_i32_0 : i32, i32, i32
  }
  func.func @transform_4(%arg0: i32, %arg1: i32) -> (i32, i32, i32) {
    %c0_i32 = arith.constant 0 : i32
    %c0_i32_0 = arith.constant 0 : i32
    %c0_i32_1 = arith.constant 0 : i32
    return %arg0, %c0_i32, %c0_i32_0 : i32, i32, i32
  }
}

</mosaic_0001>

<llo_original>
// kernel: large_pyramid_attention_forward.4
$region0: #{large_pyramid_attention_forward.4}
  #allocation0 [shape = 'u32[]', space=smem, size = 0x4, offset = 0x4, fixed_abs, tag = 'smem constant byte address 0x4 - core index']
  #allocation1 [shape = 'u32[144,128]{1,0:T(1,128)}', space=vmem, size = 0x12000, scoped, tag = 'internal scratch']
  %s0 = inlined_call_operand.vmem [shape: f32[2,4,1024], index: 0, kind: input, shape index: {}]
  %s1 = inlined_call_operand.vmem [shape: f32[8,4], index: 1, kind: input, shape index: {}]
  %s2 = inlined_call_operand.vmem [shape: f32[8,1], index: 2, kind: input, shape index: {}]
  %s3 = inlined_call_operand.vmem [shape: f32[8,1], index: 3, kind: input, shape index: {}]
  %s4 = inlined_call_operand.vmem [shape: f32[2,8,1024], index: 4, kind: output, shape index: {}]
  %s5 = sld [smem:[#allocation0]]
  $region49: #{large_pyramid_attention_forward.4} parent=0
    _
  %s7 = ssub.s32 1, %s5
  %s8 = scalar_select 0, %s7, %s5
  loop: start=0, step=1, limit=6
  $region2: #{large_pyramid_attention_forward.4} parent=0 // loop_pre_header
    _
  $region3: #{large_pyramid_attention_forward.4} parent=0 // loop_header
    %s10 = sphi 0, %s14
    %p11 = scmp.ge.s32.totalorder %s10, 6
    %s17 = sphi 0, %s29
    %s18 = sphi 0, %s25
    %s19 = sphi 0, %s17
    %s20 = sphi 0, %s18
    %s21 = sphi 0, %s19
    %s22 = sphi 0, %s20
    %s34 = sphi 0, %s36
    %s37 = sphi 0, %s34
    %s38 = sphi 0, %s37
    %s54 = sphi 0, %s38
    %s58 = sphi 0, %s58
    %s60 = sphi 0, %s58
    %s61 = sphi 0, %s60
    %s75 = sphi 0, %s61
    %s79 = sphi 0, %s79
    %s81 = sphi 0, %s79
    %s82 = sphi 0, %s81
    %s96 = sphi 0, %s82
    %s100 = sphi 0, %s100
    %s102 = sphi 0, %s100
    %s103 = sphi 0, %s102
    %s117 = sphi 0, %s103
    %s125 = sphi 0, %s127
    %s128 = sphi 0, %s125
    %s129 = sphi 0, %s128
    %s145 = sphi 0, %s129
  $region4: #{large_pyramid_attention_forward.4} parent=0 // loop_header_branch
    %13 = sbr.rel (%p11) target = $region8
  $region5: #{large_pyramid_attention_forward.4} parent=0 // loop_body
    %s15 = ssub.s32 %s10, 1
    %s16 = ssub.s32 %s10, 2
    %s23 = sadd.s32 1, %s18
    %p24 = scmp.ge.s32.totalorder %s23, 2
    %s25 = scalar_select %p24, 0, %s23
    %s26 = sadd.s32 1, %s17
    %s27 = scalar_select %p24, %s26, %s17
    %p28 = scmp.ge.s32.totalorder %s27, 2
    %s29 = scalar_select %p28, 0, %s27
    %s30 = ssub.s32 %s17, %s29
    %s31 = ssub.s32 %s18, %s25
    %s32 = sor.u32 %s30, %s31
    %p33 = scmp.eq.s32.totalorder %s32, 0
    %s35 = sadd.s32 %s34, 1
    %s36 = scalar_select %p33, %s34, %s35
    %p39 = pneg %p33
    %p40 = scmp.eq.s32.totalorder %s10, 3
    %p41 = por %p39, %p40
    %p42 = scmp.ne.s32.totalorder %s34, %s37
    %p43 = scmp.eq.s32.totalorder %s10, 0
    %p44 = por %p42, %p43
    %p45 = scmp.ne.s32.totalorder %s34, %s37
    %p46 = scmp.eq.s32.totalorder %s15, 3
    %p47 = por %p45, %p46
    %p48 = scmp.ne.s32.totalorder %s37, %s38
    %p49 = scmp.eq.s32.totalorder %s15, 0
    %p50 = por %p48, %p49
    %p51 = scmp.ne.s32.totalorder %s37, %s38
    %p52 = scmp.eq.s32.totalorder %s16, 3
    %p53 = por %p51, %p52
    %p55 = scmp.ne.s32.totalorder %s38, %s54
    %p56 = scmp.eq.s32.totalorder %s16, 0
    %p57 = por %p55, %p56
    %s59 = sadd.s32 %s58, 1
    %p62 = scmp.eq.s32.totalorder %s10, 3
    %p63 = scmp.ne.s32.totalorder %s58, %s60
    %p64 = scmp.eq.s32.totalorder %s10, 0
    %p65 = por %p63, %p64
    %p66 = scmp.ne.s32.totalorder %s58, %s60
    %p67 = scmp.eq.s32.totalorder %s15, 3
    %p68 = por %p66, %p67
    %p69 = scmp.ne.s32.totalorder %s60, %s61
    %p70 = scmp.eq.s32.totalorder %s15, 0
    %p71 = por %p69, %p70
    %p72 = scmp.ne.s32.totalorder %s60, %s61
    %p73 = scmp.eq.s32.totalorder %s16, 3
    %p74 = por %p72, %p73
    %p76 = scmp.ne.s32.totalorder %s61, %s75
    %p77 = scmp.eq.s32.totalorder %s16, 0
    %p78 = por %p76, %p77
    %s80 = sadd.s32 %s79, 1
    %p83 = scmp.eq.s32.totalorder %s10, 3
    %p84 = scmp.ne.s32.totalorder %s79, %s81
    %p85 = scmp.eq.s32.totalorder %s10, 0
    %p86 = por %p84, %p85
    %p87 = scmp.ne.s32.totalorder %s79, %s81
    %p88 = scmp.eq.s32.totalorder %s15, 3
    %p89 = por %p87, %p88
    %p90 = scmp.ne.s32.totalorder %s81, %s82
    %p91 = scmp.eq.s32.totalorder %s15, 0
    %p92 = por %p90, %p91
    %p93 = scmp.ne.s32.totalorder %s81, %s82
    %p94 = scmp.eq.s32.totalorder %s16, 3
    %p95 = por %p93, %p94
    %p97 = scmp.ne.s32.totalorder %s82, %s96
    %p98 = scmp.eq.s32.totalorder %s16, 0
    %p99 = por %p97, %p98
    %s101 = sadd.s32 %s100, 1
    %p104 = scmp.eq.s32.totalorder %s10, 3
    %p105 = scmp.ne.s32.totalorder %s100, %s102
    %p106 = scmp.eq.s32.totalorder %s10, 0
    %p107 = por %p105, %p106
    %p108 = scmp.ne.s32.totalorder %s100, %s102
    %p109 = scmp.eq.s32.totalorder %s15, 3
    %p110 = por %p108, %p109
    %p111 = scmp.ne.s32.totalorder %s102, %s103
    %p112 = scmp.eq.s32.totalorder %s15, 0
    %p113 = por %p111, %p112
    %p114 = scmp.ne.s32.totalorder %s102, %s103
    %p115 = scmp.eq.s32.totalorder %s16, 3
    %p116 = por %p114, %p115
    %p118 = scmp.ne.s32.totalorder %s103, %s117
    %p119 = scmp.eq.s32.totalorder %s16, 0
    %p120 = por %p118, %p119
    %s121 = ssub.s32 %s17, %s29
    %s122 = ssub.s32 %s18, %s25
    %s123 = sor.u32 %s121, %s122
    %p124 = scmp.eq.s32.totalorder %s123, 0
    %s126 = sadd.s32 %s125, 1
    %s127 = scalar_select %p124, %s125, %s126
    %p130 = pneg %p124
    %p131 = scmp.eq.s32.totalorder %s10, 3
    %p132 = por %p130, %p131
    %p133 = scmp.ne.s32.totalorder %s125, %s128
    %p134 = scmp.eq.s32.totalorder %s10, 0
    %p135 = por %p133, %p134
    %p136 = scmp.ne.s32.totalorder %s125, %s128
    %p137 = scmp.eq.s32.totalorder %s15, 3
    %p138 = por %p136, %p137
    %p139 = scmp.ne.s32.totalorder %s128, %s129
    %p140 = scmp.eq.s32.totalorder %s15, 0
    %p141 = por %p139, %p140
    %p142 = scmp.ne.s32.totalorder %s128, %s129
    %p143 = scmp.eq.s32.totalorder %s16, 3
    %p144 = por %p142, %p143
    %p146 = scmp.ne.s32.totalorder %s129, %s145
    %p147 = scmp.eq.s32.totalorder %s16, 0
    %p148 = por %p146, %p147
    %p149 = scmp.le.s32.totalorder 1, %s10
    %p150 = scmp.lt.s32.totalorder %s10, 5
    %p151 = pnand %p149, %p150
    %p152 = pneg %p151
    // Predicated region
    $region9: #{large_pyramid_attention_forward.4} parent=5 // pred_check
      _
    $region10: #{large_pyramid_attention_forward.4} parent=5 // pred_check_branch
      %154 = sbr.rel (%p151) target = $region12
    $region11: #{large_pyramid_attention_forward.4} parent=5 // pred_region
      %s155 = ssub.s32 %s10, 1
      // Predicated region
      $region13: #{large_pyramid_attention_forward.4} parent=11 // pred_check
        %p156 = pneg %p71
      $region14: #{large_pyramid_attention_forward.4} parent=11 // pred_check_branch
        %158 = sbr.rel (%p156) target = $region16
      $region15: #{large_pyramid_attention_forward.4} parent=11 // pred_region
        _
      $region16: #{large_pyramid_attention_forward.4} parent=11 // pred_fallthru
        _
      // Predicated region
      $region17: #{large_pyramid_attention_forward.4} parent=11 // pred_check
        %p159 = pneg %p92
      $region18: #{large_pyramid_attention_forward.4} parent=11 // pred_check_branch
        %161 = sbr.rel (%p159) target = $region20
      $region19: #{large_pyramid_attention_forward.4} parent=11 // pred_region
        _
      $region20: #{large_pyramid_attention_forward.4} parent=11 // pred_fallthru
        _
      // Predicated region
      $region21: #{large_pyramid_attention_forward.4} parent=11 // pred_check
        %p162 = pneg %p113
      $region22: #{large_pyramid_attention_forward.4} parent=11 // pred_check_branch
        %164 = sbr.rel (%p162) target = $region24
      $region23: #{large_pyramid_attention_forward.4} parent=11 // pred_region
        _
      $region24: #{large_pyramid_attention_forward.4} parent=11 // pred_fallthru
        _
    $region12: #{large_pyramid_attention_forward.4} parent=5 // pred_fallthru
      _
    %p165 = scmp.lt.s32.totalorder %s10, 4
    // Predicated region
    $region25: #{large_pyramid_attention_forward.4} parent=5 // pred_check
      %p166 = pneg %p165
    $region26: #{large_pyramid_attention_forward.4} parent=5 // pred_check_branch
      %168 = sbr.rel (%p166) target = $region28
    $region27: #{large_pyramid_attention_forward.4} parent=5 // pred_region
      // Predicated region
      $region29: #{large_pyramid_attention_forward.4} parent=27 // pred_check
        %p169 = pneg %p44
      $region30: #{large_pyramid_attention_forward.4} parent=27 // pred_check_branch
        %171 = sbr.rel (%p169) target = $region32
      $region31: #{large_pyramid_attention_forward.4} parent=27 // pred_region
        %s172 = smul.u32 4, %s18
        %p173 = scmp.lt.s32.totalorder %s17, 1
        %s174 = scalar_select %p173, %s17, 1
        %p175 = scmp.lt.s32.totalorder %s172, 7
        %s176 = scalar_select %p175, %s172, 7
        %s177 = smul.addr %s174, 8
        %s178 = sadd.s32 %s176, %s177
        %s179 = smul.addr %s178, 4
        %s180 = scalar_lea.vmem %s0, %s179
        %s181 = smul.u32 4, %s18
      $region32: #{large_pyramid_attention_forward.4} parent=27 // pred_fallthru
        _
    $region28: #{large_pyramid_attention_forward.4} parent=5 // pred_fallthru
      _
    %p182 = scmp.le.s32.totalorder 1, %s10
    %p183 = scmp.lt.s32.totalorder %s10, 5
    %p184 = pnand %p182, %p183
    %p185 = pneg %p184
    // Predicated region
    $region33: #{large_pyramid_attention_forward.4} parent=5 // pred_check
      _
    $region34: #{large_pyramid_attention_forward.4} parent=5 // pred_check_branch
      %187 = sbr.rel (%p184) target = $region36
    $region35: #{large_pyramid_attention_forward.4} parent=5 // pred_region
      %s188 = ssub.s32 %s10, 1
      %s189 = smul.u32 4, %s20
      %p190 = scmp.lt.s32.totalorder %s19, 1
      %s191 = scalar_select %p190, %s19, 1
      %p192 = scmp.lt.s32.totalorder %s189, 7
      %s193 = scalar_select %p192, %s189, 7
      %s194 = smul.addr %s191, 8
      %s195 = sadd.s32 %s193, %s194
      %s196 = smul.addr %s195, 4
      %s197 = scalar_lea.vmem %s0, %s196
      %p198 = pneg %p50
      %p199 = pneg %p47
      %p200 = pneg %p71
      %p201 = pneg %p68
      %p202 = pneg %p92
      %p203 = pneg %p89
      %p204 = pneg %p113
      %p205 = pneg %p110
      %p206 = pneg %p141
      %p207 = pneg %p138
      %s208 = smul.u32 4, %s20
      %p209 = scmp.lt.s32.totalorder %s19, 1
      %s210 = scalar_select %p209, %s19, 1
      %p211 = scmp.lt.s32.totalorder %s208, 7
      %s212 = scalar_select %p211, %s208, 7
      %s213 = smul.addr %s210, 8
      %s214 = sadd.s32 %s212, %s213
      %s215 = smul.addr %s214, 8
      %s216 = scalar_lea.vmem %s4, %s215
      %s217 = smul.u32 4, %s20
      %p218 = scmp.lt.s32.totalorder %s19, 1
      %s219 = scalar_select %p218, %s19, 1
      %p220 = scmp.lt.s32.totalorder %s217, 7
      %s221 = scalar_select %p220, %s217, 7
      %s222 = smul.addr %s219, 8
      %s223 = sadd.s32 %s221, %s222
      %s224 = smul.addr %s223, 4
      %s225 = scalar_lea.vmem %s0, %s224
      %s226 = smul.u32 4, %s20
      %s227 = smul.u32 4, %s20
      %p228 = scmp.lt.s32.totalorder %s19, 1
      %s229 = scalar_select %p228, %s19, 1
      %p230 = scmp.lt.s32.totalorder %s227, 7
      %s231 = scalar_select %p230, %s227, 7
      %s232 = smul.addr %s229, 8
      %s233 = sadd.s32 %s231, %s232
      %s234 = smul.addr %s233, 8
      %s235 = scalar_lea.vmem %s4, %s234
      %s236 = smul.u32 4, %s20
      %v237 = vld [vmem:[%s1] sm:$0xff]
      %v238 = vld [vmem:[%s225] sm:$0xff]
      %v239 = vld [vmem:[%s225 + $0x8] sm:$0xff]
      %v240 = vld [vmem:[%s2] sm:$0xff]
      %242 = vset.pattern.permute.xlu0 0
      %243 = vperm.xlu0 %242, %v240
      %v244 = vpop.permute.xlu0 %243
      %v248 = vcombine.high %v238, %v238
      %v249 = vcombine.high %v239, %v239
      %vm250 = vcmask 31744
      %v252 = vsel %vm250, %v237, 0
      %vm254 = vcmask 1043456
      %v255 = vsel %vm254, %v238, 0
      %v257 = vsel %vm254, %v248, 0
      %v259 = vsel %vm254, %v239, 0
      %v261 = vsel %vm254, %v249, 0
      %263 = vmatprep.subr.mxu0 %v257
      %264 = vmatpush1.msra.mxu0 %v255
      %265 = vmatprep.subr.mxu0 0.0
      %266 = vmatpush1.msra.mxu0 0.0
      %267 = vmatprep.subr.mxu0 0.0
      %268 = vmatpush1.msra.mxu0 0.0
      %269 = vmatprep.subr.mxu0 0.0
      %270 = vmatpush1.msra.mxu0 0.0
      %271 = vmatprep.subr.mxu0 0.0
      %272 = vmatpush1.msra.mxu0 0.0
      %273 = vmatprep.subr.mxu0 0.0
      %274 = vmatpush1.msra.mxu0 0.0
      %275 = vmatprep.subr.mxu0 0.0
      %276 = vmatpush1.msra.mxu0 0.0
      %277 = vmatprep.subr.mxu0 0.0
      %278 = vmatpush1.msra.mxu0 0.0
      %279 = vmatprep.subr.mxu0 0.0
      %280 = vmatpush1.msra.mxu0 0.0
      %281 = vmatprep.subr.mxu0 0.0
      %282 = vmatpush1.msra.mxu0 0.0
      %283 = vmatprep.subr.mxu0 0.0
      %284 = vmatpush1.msra.mxu0 0.0
      %285 = vmatprep.subr.mxu0 0.0
      %286 = vmatpush1.msra.mxu0 0.0
      %287 = vmatprep.subr.mxu0 0.0
      %288 = vmatpush1.msra.mxu0 0.0
      %289 = vmatprep.subr.mxu0 0.0
      %290 = vmatpush1.msra.mxu0 0.0
      %291 = vmatprep.subr.mxu0 0.0
      %292 = vmatpush1.msra.mxu0 0.0
      %293 = vmatprep.subr.mxu0 0.0
      %294 = vmatpush1.msra.mxu0 0.0
      %295 = vmatprep.subr.mxu0 0.0
      %296 = vmatpush1.msra.mxu0 0.0
      %297 = vmatprep.subr.mxu0 0.0
      %298 = vmatpush1.msra.mxu0 0.0
      %299 = vmatprep.subr.mxu0 0.0
      %300 = vmatpush1.msra.mxu0 0.0
      %301 = vmatprep.subr.mxu0 0.0
      %302 = vmatpush1.msra.mxu0 0.0
      %303 = vmatprep.subr.mxu0 0.0
      %304 = vmatpush1.msra.mxu0 0.0
      %305 = vmatprep.subr.mxu0 0.0
      %306 = vmatpush1.msra.mxu0 0.0
      %307 = vmatprep.subr.mxu0 0.0
      %308 = vmatpush1.msra.mxu0 0.0
      %309 = vmatprep.subr.mxu0 0.0
      %310 = vmatpush1.msra.mxu0 0.0
      %311 = vmatprep.subr.mxu0 0.0
      %312 = vmatpush1.msra.mxu0 0.0
      %313 = vmatprep.subr.mxu0 0.0
      %314 = vmatpush1.msra.mxu0 0.0
      %315 = vmatprep.subr.mxu0 0.0
      %316 = vmatpush1.msra.mxu0 0.0
      %317 = vmatprep.subr.mxu0 0.0
      %318 = vmatpush1.msra.mxu0 0.0
      %319 = vmatprep.subr.mxu0 0.0
      %320 = vmatpush1.msra.mxu0 0.0
      %321 = vmatprep.subr.mxu0 0.0
      %322 = vmatpush1.msra.mxu0 0.0
      %323 = vmatprep.subr.mxu0 0.0
      %324 = vmatpush1.msra.mxu0 0.0
      %325 = vmatprep.subr.mxu0 0.0
      %326 = vmatpush1.msra.mxu0 0.0
      %327 = vmatprep.mubr.f32.mxu0 0.0
      %328 = vmatmul.mubr.f32.gmra.mrb[0].mxu0 %v252
      %v329 = vpop.f32.mrb[0].mxu0
      %v330 = vadd.f32 %v244, %v329
      %v331 = vpop.f32.mrb[0].mxu0
      %v332 = vadd.f32 %v244, %v331
      %333 = vdwg.mxu0
      %334 = vmatprep.subr.mxu0 %v261
      %335 = vmatpush1.msra.mxu0 %v259
      %336 = vmatprep.subr.mxu0 0.0
      %337 = vmatpush1.msra.mxu0 0.0
      %338 = vmatprep.subr.mxu0 0.0
      %339 = vmatpush1.msra.mxu0 0.0
      %340 = vmatprep.subr.mxu0 0.0
      %341 = vmatpush1.msra.mxu0 0.0
      %342 = vmatprep.subr.mxu0 0.0
      %343 = vmatpush1.msra.mxu0 0.0
      %344 = vmatprep.subr.mxu0 0.0
      %345 = vmatpush1.msra.mxu0 0.0
      %346 = vmatprep.subr.mxu0 0.0
      %347 = vmatpush1.msra.mxu0 0.0
      %348 = vmatprep.subr.mxu0 0.0
      %349 = vmatpush1.msra.mxu0 0.0
      %350 = vmatprep.subr.mxu0 0.0
      %351 = vmatpush1.msra.mxu0 0.0
      %352 = vmatprep.subr.mxu0 0.0
      %353 = vmatpush1.msra.mxu0 0.0
      %354 = vmatprep.subr.mxu0 0.0
      %355 = vmatpush1.msra.mxu0 0.0
      %356 = vmatprep.subr.mxu0 0.0
      %357 = vmatpush1.msra.mxu0 0.0
      %358 = vmatprep.subr.mxu0 0.0
      %359 = vmatpush1.msra.mxu0 0.0
      %360 = vmatprep.subr.mxu0 0.0
      %361 = vmatpush1.msra.mxu0 0.0
      %362 = vmatprep.subr.mxu0 0.0
      %363 = vmatpush1.msra.mxu0 0.0
      %364 = vmatprep.subr.mxu0 0.0
      %365 = vmatpush1.msra.mxu0 0.0
      %366 = vmatprep.subr.mxu0 0.0
      %367 = vmatpush1.msra.mxu0 0.0
      %368 = vmatprep.subr.mxu0 0.0
      %369 = vmatpush1.msra.mxu0 0.0
      %370 = vmatprep.subr.mxu0 0.0
      %371 = vmatpush1.msra.mxu0 0.0
      %372 = vmatprep.subr.mxu0 0.0
      %373 = vmatpush1.msra.mxu0 0.0
      %374 = vmatprep.subr.mxu0 0.0
      %375 = vmatpush1.msra.mxu0 0.0
      %376 = vmatprep.subr.mxu0 0.0
      %377 = vmatpush1.msra.mxu0 0.0
      %378 = vmatprep.subr.mxu0 0.0
      %379 = vmatpush1.msra.mxu0 0.0
      %380 = vmatprep.subr.mxu0 0.0
      %381 = vmatpush1.msra.mxu0 0.0
      %382 = vmatprep.subr.mxu0 0.0
      %383 = vmatpush1.msra.mxu0 0.0
      %384 = vmatprep.subr.mxu0 0.0
      %385 = vmatpush1.msra.mxu0 0.0
      %386 = vmatprep.subr.mxu0 0.0
      %387 = vmatpush1.msra.mxu0 0.0
      %388 = vmatprep.subr.mxu0 0.0
      %389 = vmatpush1.msra.mxu0 0.0
      %390 = vmatprep.subr.mxu0 0.0
      %391 = vmatpush1.msra.mxu0 0.0
      %392 = vmatprep.subr.mxu0 0.0
      %393 = vmatpush1.msra.mxu0 0.0
      %394 = vmatprep.subr.mxu0 0.0
      %395 = vmatpush1.msra.mxu0 0.0
      %396 = vmatprep.subr.mxu0 0.0
      %397 = vmatpush1.msra.mxu0 0.0
      %398 = vmatprep.mubr.f32.mxu0 0.0
      %399 = vmatmul.mubr.f32.gmra.mrb[0].mxu0 %v252
      %v400 = vpop.f32.mrb[0].mxu0
      %v401 = vadd.f32 %v244, %v400
      %v402 = vpop.f32.mrb[0].mxu0
      %v403 = vadd.f32 %v244, %v402
      %404 = vdwg.mxu0
      %vm405 = vcmp.ge.f32.partialorder %v330, 0.0
      %vm406 = vcmp.ge.f32.partialorder %v332, 0.0
      %vm407 = vcmp.ge.f32.partialorder %v401, 0.0
      %vm408 = vcmp.ge.f32.partialorder %v403, 0.0
      %v409 = vld [vmem:[%s3] sm:$0xff]
      %411 = vset.pattern.permute.xlu0 0
      %412 = vperm.xlu0 %411, %v409
      %v413 = vpop.permute.xlu0 %412
      %v415 = vmul.f32 %v413, %v330
      %v416 = vmul.f32 %v413, %v332
      %v417 = vmul.f32 %v413, %v401
      %v418 = vmul.f32 %v413, %v403
      %v419 = vsel %vm405, %v330, %v415
      %v420 = vsel %vm406, %v332, %v416
      %v421 = vsel %vm407, %v401, %v417
      %v422 = vsel %vm408, %v403, %v418
      %423 = vst [vmem:[%s235] sm:$0xff] %v419
      %424 = vst [vmem:[%s235 + $0x8] sm:$0xff] %v420
      %425 = vst [vmem:[%s235 + $0x10] sm:$0xff] %v421
      %426 = vst [vmem:[%s235 + $0x18] sm:$0xff] %v422
      %s427 = smul.u32 4, %s20
      %p428 = scmp.lt.s32.totalorder %s19, 1
      %s429 = scalar_select %p428, %s19, 1
      %p430 = scmp.lt.s32.totalorder %s427, 7
      %s431 = scalar_select %p430, %s427, 7
      %s432 = smul.addr %s429, 8
      %s433 = sadd.s32 %s431, %s432
      %s434 = smul.addr %s433, 8
      %s435 = scalar_lea.vmem %s4, %s434
      // Predicated region
      $region37: #{large_pyramid_attention_forward.4} parent=35 // pred_check
        %p436 = pneg %p138
      $region38: #{large_pyramid_attention_forward.4} parent=35 // pred_check_branch
        %438 = sbr.rel (%p436) target = $region40
      $region39: #{large_pyramid_attention_forward.4} parent=35 // pred_region
        %s439 = smul.u32 4, %s20
      $region40: #{large_pyramid_attention_forward.4} parent=35 // pred_fallthru
        _
    $region36: #{large_pyramid_attention_forward.4} parent=5 // pred_fallthru
      _
    %p440 = scmp.le.s32.totalorder 2, %s10
    // Predicated region
    $region41: #{large_pyramid_attention_forward.4} parent=5 // pred_check
      %p441 = pneg %p440
    $region42: #{large_pyramid_attention_forward.4} parent=5 // pred_check_branch
      %443 = sbr.rel (%p441) target = $region44
    $region43: #{large_pyramid_attention_forward.4} parent=5 // pred_region
      %s444 = ssub.s32 %s10, 2
      // Predicated region
      $region45: #{large_pyramid_attention_forward.4} parent=43 // pred_check
        %p445 = pneg %p144
      $region46: #{large_pyramid_attention_forward.4} parent=43 // pred_check_branch
        %447 = sbr.rel (%p445) target = $region48
      $region47: #{large_pyramid_attention_forward.4} parent=43 // pred_region
        %s448 = smul.u32 4, %s22
        %p449 = scmp.lt.s32.totalorder %s21, 1
        %s450 = scalar_select %p449, %s21, 1
        %p451 = scmp.lt.s32.totalorder %s448, 7
        %s452 = scalar_select %p451, %s448, 7
        %s453 = smul.addr %s450, 8
        %s454 = sadd.s32 %s452, %s453
        %s455 = smul.addr %s454, 8
        %s456 = scalar_lea.vmem %s4, %s455
      $region48: #{large_pyramid_attention_forward.4} parent=43 // pred_fallthru
        _
    $region44: #{large_pyramid_attention_forward.4} parent=5 // pred_fallthru
      _
  $region6: #{large_pyramid_attention_forward.4} parent=0 // loop_footer
    %s14 = sadd.s32 1, %s10
  $region7: #{large_pyramid_attention_forward.4} parent=0 // loop_footer_branch
    %9 = sbr.rel target = $region3
  $region8: #{large_pyramid_attention_forward.4} parent=0 // loop_exit
    _

// kernel: large_pyramid_attention_forward.3
$region0: #{large_pyramid_attention_forward.3}
  #allocation0 [shape = 'u32[]', space=smem, size = 0x4, offset = 0x4, fixed_abs, tag = 'smem constant byte address 0x4 - core index']
  #allocation1 [shape = 'u32[144,128]{1,0:T(1,128)}', space=vmem, size = 0x12000, scoped, tag = 'internal scratch']
  %s0 = inlined_call_operand.vmem [shape: f32[2,4,256], index: 0, kind: input, shape index: {}]
  %s1 = inlined_call_operand.vmem [shape: f32[4,4], index: 1, kind: input, shape index: {}]
  %s2 = inlined_call_operand.vmem [shape: f32[4,1], index: 2, kind: input, shape index: {}]
  %s3 = inlined_call_operand.vmem [shape: f32[4,1], index: 3, kind: input, shape index: {}]
  %s4 = inlined_call_operand.vmem [shape: f32[2,4,256], index: 4, kind: output, shape index: {}]
  %s5 = sld [smem:[#allocation0]]
  $region49: #{large_pyramid_attention_forward.3} parent=0
    _
  %s7 = ssub.s32 1, %s5
  %s8 = scalar_select 0, %s7, %s5
  loop: start=0, step=1, limit=4
  $region2: #{large_pyramid_attention_forward.3} parent=0 // loop_pre_header
    _
  $region3: #{large_pyramid_attention_forward.3} parent=0 // loop_header
    %s10 = sphi 0, %s14
    %p11 = scmp.ge.s32.totalorder %s10, 4
    %s17 = sphi 0, %s29
    %s18 = sphi 0, %s25
    %s19 = sphi 0, %s17
    %s20 = sphi 0, %s18
    %s21 = sphi 0, %s19
    %s22 = sphi 0, %s20
    %s34 = sphi 0, %s36
    %s37 = sphi 0, %s34
    %s38 = sphi 0, %s37
    %s54 = sphi 0, %s38
    %s58 = sphi 0, %s58
    %s60 = sphi 0, %s58
    %s61 = sphi 0, %s60
    %s75 = sphi 0, %s61
    %s79 = sphi 0, %s79
    %s81 = sphi 0, %s79
    %s82 = sphi 0, %s81
    %s96 = sphi 0, %s82
    %s100 = sphi 0, %s100
    %s102 = sphi 0, %s100
    %s103 = sphi 0, %s102
    %s117 = sphi 0, %s103
    %s125 = sphi 0, %s127
    %s128 = sphi 0, %s125
    %s129 = sphi 0, %s128
    %s145 = sphi 0, %s129
  $region4: #{large_pyramid_attention_forward.3} parent=0 // loop_header_branch
    %13 = sbr.rel (%p11) target = $region8
  $region5: #{large_pyramid_attention_forward.3} parent=0 // loop_body
    %s15 = ssub.s32 %s10, 1
    %s16 = ssub.s32 %s10, 2
    %s23 = sadd.s32 1, %s18
    %p24 = scmp.ge.s32.totalorder %s23, 1
    %s25 = scalar_select %p24, 0, %s23
    %s26 = sadd.s32 1, %s17
    %s27 = scalar_select %p24, %s26, %s17
    %p28 = scmp.ge.s32.totalorder %s27, 2
    %s29 = scalar_select %p28, 0, %s27
    %s30 = ssub.s32 %s17, %s29
    %s31 = ssub.s32 %s18, %s25
    %s32 = sor.u32 %s30, %s31
    %p33 = scmp.eq.s32.totalorder %s32, 0
    %s35 = sadd.s32 %s34, 1
    %s36 = scalar_select %p33, %s34, %s35
    %p39 = pneg %p33
    %p40 = scmp.eq.s32.totalorder %s10, 1
    %p41 = por %p39, %p40
    %p42 = scmp.ne.s32.totalorder %s34, %s37
    %p43 = scmp.eq.s32.totalorder %s10, 0
    %p44 = por %p42, %p43
    %p45 = scmp.ne.s32.totalorder %s34, %s37
    %p46 = scmp.eq.s32.totalorder %s15, 1
    %p47 = por %p45, %p46
    %p48 = scmp.ne.s32.totalorder %s37, %s38
    %p49 = scmp.eq.s32.totalorder %s15, 0
    %p50 = por %p48, %p49
    %p51 = scmp.ne.s32.totalorder %s37, %s38
    %p52 = scmp.eq.s32.totalorder %s16, 1
    %p53 = por %p51, %p52
    %p55 = scmp.ne.s32.totalorder %s38, %s54
    %p56 = scmp.eq.s32.totalorder %s16, 0
    %p57 = por %p55, %p56
    %s59 = sadd.s32 %s58, 1
    %p62 = scmp.eq.s32.totalorder %s10, 1
    %p63 = scmp.ne.s32.totalorder %s58, %s60
    %p64 = scmp.eq.s32.totalorder %s10, 0
    %p65 = por %p63, %p64
    %p66 = scmp.ne.s32.totalorder %s58, %s60
    %p67 = scmp.eq.s32.totalorder %s15, 1
    %p68 = por %p66, %p67
    %p69 = scmp.ne.s32.totalorder %s60, %s61
    %p70 = scmp.eq.s32.totalorder %s15, 0
    %p71 = por %p69, %p70
    %p72 = scmp.ne.s32.totalorder %s60, %s61
    %p73 = scmp.eq.s32.totalorder %s16, 1
    %p74 = por %p72, %p73
    %p76 = scmp.ne.s32.totalorder %s61, %s75
    %p77 = scmp.eq.s32.totalorder %s16, 0
    %p78 = por %p76, %p77
    %s80 = sadd.s32 %s79, 1
    %p83 = scmp.eq.s32.totalorder %s10, 1
    %p84 = scmp.ne.s32.totalorder %s79, %s81
    %p85 = scmp.eq.s32.totalorder %s10, 0
    %p86 = por %p84, %p85
    %p87 = scmp.ne.s32.totalorder %s79, %s81
    %p88 = scmp.eq.s32.totalorder %s15, 1
    %p89 = por %p87, %p88
    %p90 = scmp.ne.s32.totalorder %s81, %s82
    %p91 = scmp.eq.s32.totalorder %s15, 0
    %p92 = por %p90, %p91
    %p93 = scmp.ne.s32.totalorder %s81, %s82
    %p94 = scmp.eq.s32.totalorder %s16, 1
    %p95 = por %p93, %p94
    %p97 = scmp.ne.s32.totalorder %s82, %s96
    %p98 = scmp.eq.s32.totalorder %s16, 0
    %p99 = por %p97, %p98
    %s101 = sadd.s32 %s100, 1
    %p104 = scmp.eq.s32.totalorder %s10, 1
    %p105 = scmp.ne.s32.totalorder %s100, %s102
    %p106 = scmp.eq.s32.totalorder %s10, 0
    %p107 = por %p105, %p106
    %p108 = scmp.ne.s32.totalorder %s100, %s102
    %p109 = scmp.eq.s32.totalorder %s15, 1
    %p110 = por %p108, %p109
    %p111 = scmp.ne.s32.totalorder %s102, %s103
    %p112 = scmp.eq.s32.totalorder %s15, 0
    %p113 = por %p111, %p112
    %p114 = scmp.ne.s32.totalorder %s102, %s103
    %p115 = scmp.eq.s32.totalorder %s16, 1
    %p116 = por %p114, %p115
    %p118 = scmp.ne.s32.totalorder %s103, %s117
    %p119 = scmp.eq.s32.totalorder %s16, 0
    %p120 = por %p118, %p119
    %s121 = ssub.s32 %s17, %s29
    %s122 = ssub.s32 %s18, %s25
    %s123 = sor.u32 %s121, %s122
    %p124 = scmp.eq.s32.totalorder %s123, 0
    %s126 = sadd.s32 %s125, 1
    %s127 = scalar_select %p124, %s125, %s126
    %p130 = pneg %p124
    %p131 = scmp.eq.s32.totalorder %s10, 1
    %p132 = por %p130, %p131
    %p133 = scmp.ne.s32.totalorder %s125, %s128
    %p134 = scmp.eq.s32.totalorder %s10, 0
    %p135 = por %p133, %p134
    %p136 = scmp.ne.s32.totalorder %s125, %s128
    %p137 = scmp.eq.s32.totalorder %s15, 1
    %p138 = por %p136, %p137
    %p139 = scmp.ne.s32.totalorder %s128, %s129
    %p140 = scmp.eq.s32.totalorder %s15, 0
    %p141 = por %p139, %p140
    %p142 = scmp.ne.s32.totalorder %s128, %s129
    %p143 = scmp.eq.s32.totalorder %s16, 1
    %p144 = por %p142, %p143
    %p146 = scmp.ne.s32.totalorder %s129, %s145
    %p147 = scmp.eq.s32.totalorder %s16, 0
    %p148 = por %p146, %p147
    %p149 = scmp.le.s32.totalorder 1, %s10
    %p150 = scmp.lt.s32.totalorder %s10, 3
    %p151 = pnand %p149, %p150
    %p152 = pneg %p151
    // Predicated region
    $region9: #{large_pyramid_attention_forward.3} parent=5 // pred_check
      _
    $region10: #{large_pyramid_attention_forward.3} parent=5 // pred_check_branch
      %154 = sbr.rel (%p151) target = $region12
    $region11: #{large_pyramid_attention_forward.3} parent=5 // pred_region
      %s155 = ssub.s32 %s10, 1
      // Predicated region
      $region13: #{large_pyramid_attention_forward.3} parent=11 // pred_check
        %p156 = pneg %p71
      $region14: #{large_pyramid_attention_forward.3} parent=11 // pred_check_branch
        %158 = sbr.rel (%p156) target = $region16
      $region15: #{large_pyramid_attention_forward.3} parent=11 // pred_region
        _
      $region16: #{large_pyramid_attention_forward.3} parent=11 // pred_fallthru
        _
      // Predicated region
      $region17: #{large_pyramid_attention_forward.3} parent=11 // pred_check
        %p159 = pneg %p92
      $region18: #{large_pyramid_attention_forward.3} parent=11 // pred_check_branch
        %161 = sbr.rel (%p159) target = $region20
      $region19: #{large_pyramid_attention_forward.3} parent=11 // pred_region
        _
      $region20: #{large_pyramid_attention_forward.3} parent=11 // pred_fallthru
        _
      // Predicated region
      $region21: #{large_pyramid_attention_forward.3} parent=11 // pred_check
        %p162 = pneg %p113
      $region22: #{large_pyramid_attention_forward.3} parent=11 // pred_check_branch
        %164 = sbr.rel (%p162) target = $region24
      $region23: #{large_pyramid_attention_forward.3} parent=11 // pred_region
        _
      $region24: #{large_pyramid_attention_forward.3} parent=11 // pred_fallthru
        _
    $region12: #{large_pyramid_attention_forward.3} parent=5 // pred_fallthru
      _
    %p165 = scmp.lt.s32.totalorder %s10, 2
    // Predicated region
    $region25: #{large_pyramid_attention_forward.3} parent=5 // pred_check
      %p166 = pneg %p165
    $region26: #{large_pyramid_attention_forward.3} parent=5 // pred_check_branch
      %168 = sbr.rel (%p166) target = $region28
    $region27: #{large_pyramid_attention_forward.3} parent=5 // pred_region
      // Predicated region
      $region29: #{large_pyramid_attention_forward.3} parent=27 // pred_check
        %p169 = pneg %p44
      $region30: #{large_pyramid_attention_forward.3} parent=27 // pred_check_branch
        %171 = sbr.rel (%p169) target = $region32
      $region31: #{large_pyramid_attention_forward.3} parent=27 // pred_region
        %s172 = smul.u32 2, %s18
        %p173 = scmp.lt.s32.totalorder %s17, 1
        %s174 = scalar_select %p173, %s17, 1
        %p175 = scmp.lt.s32.totalorder %s172, 1
        %s176 = scalar_select %p175, %s172, 1
        %s177 = smul.addr %s174, 2
        %s178 = sadd.s32 %s176, %s177
        %s179 = smul.addr %s178, 4
        %s180 = scalar_lea.vmem %s0, %s179
        %s181 = smul.u32 2, %s18
      $region32: #{large_pyramid_attention_forward.3} parent=27 // pred_fallthru
        _
    $region28: #{large_pyramid_attention_forward.3} parent=5 // pred_fallthru
      _
    %p182 = scmp.le.s32.totalorder 1, %s10
    %p183 = scmp.lt.s32.totalorder %s10, 3
    %p184 = pnand %p182, %p183
    %p185 = pneg %p184
    // Predicated region
    $region33: #{large_pyramid_attention_forward.3} parent=5 // pred_check
      _
    $region34: #{large_pyramid_attention_forward.3} parent=5 // pred_check_branch
      %187 = sbr.rel (%p184) target = $region36
    $region35: #{large_pyramid_attention_forward.3} parent=5 // pred_region
      %s188 = ssub.s32 %s10, 1
      %s189 = smul.u32 2, %s20
      %p190 = scmp.lt.s32.totalorder %s19, 1
      %s191 = scalar_select %p190, %s19, 1
      %p192 = scmp.lt.s32.totalorder %s189, 1
      %s193 = scalar_select %p192, %s189, 1
      %s194 = smul.addr %s191, 2
      %s195 = sadd.s32 %s193, %s194
      %s196 = smul.addr %s195, 4
      %s197 = scalar_lea.vmem %s0, %s196
      %p198 = pneg %p50
      %p199 = pneg %p47
      %p200 = pneg %p71
      %p201 = pneg %p68
      %p202 = pneg %p92
      %p203 = pneg %p89
      %p204 = pneg %p113
      %p205 = pneg %p110
      %p206 = pneg %p141
      %p207 = pneg %p138
      %s208 = smul.u32 2, %s20
      %p209 = scmp.lt.s32.totalorder %s19, 1
      %s210 = scalar_select %p209, %s19, 1
      %p211 = scmp.lt.s32.totalorder %s208, 1
      %s212 = scalar_select %p211, %s208, 1
      %s213 = smul.addr %s210, 2
      %s214 = sadd.s32 %s212, %s213
      %s215 = smul.addr %s214, 4
      %s216 = scalar_lea.vmem %s4, %s215
      %s217 = smul.u32 2, %s20
      %p218 = scmp.lt.s32.totalorder %s19, 1
      %s219 = scalar_select %p218, %s19, 1
      %p220 = scmp.lt.s32.totalorder %s217, 1
      %s221 = scalar_select %p220, %s217, 1
      %s222 = smul.addr %s219, 2
      %s223 = sadd.s32 %s221, %s222
      %s224 = smul.addr %s223, 4
      %s225 = scalar_lea.vmem %s0, %s224
      %s226 = smul.u32 2, %s20
      %s227 = smul.u32 2, %s20
      %p228 = scmp.lt.s32.totalorder %s19, 1
      %s229 = scalar_select %p228, %s19, 1
      %p230 = scmp.lt.s32.totalorder %s227, 1
      %s231 = scalar_select %p230, %s227, 1
      %s232 = smul.addr %s229, 2
      %s233 = sadd.s32 %s231, %s232
      %s234 = smul.addr %s233, 4
      %s235 = scalar_lea.vmem %s4, %s234
      %s236 = smul.u32 2, %s20
      %v237 = vld [vmem:[%s1] sm:$0xf]
      %v238 = vld [vmem:[%s225] sm:$0xff]
      %v239 = vld [vmem:[%s2] sm:$0xf]
      %241 = vset.pattern.permute.xlu0 0
      %242 = vperm.xlu0 %241, %v239
      %v243 = vpop.permute.xlu0 %242
      %v246 = vcombine.high %v238, %v238
      %vm247 = vcmask 31744
      %v249 = vsel %vm247, %v237, 0
      %vm251 = vcmask 1043456
      %v252 = vsel %vm251, %v238, 0
      %v254 = vsel %vm251, %v246, 0
      %256 = vmatprep.subr.mxu0 %v254
      %257 = vmatpush1.msra.mxu0 %v252
      %258 = vmatprep.subr.mxu0 0.0
      %259 = vmatpush1.msra.mxu0 0.0
      %260 = vmatprep.subr.mxu0 0.0
      %261 = vmatpush1.msra.mxu0 0.0
      %262 = vmatprep.subr.mxu0 0.0
      %263 = vmatpush1.msra.mxu0 0.0
      %264 = vmatprep.subr.mxu0 0.0
      %265 = vmatpush1.msra.mxu0 0.0
      %266 = vmatprep.subr.mxu0 0.0
      %267 = vmatpush1.msra.mxu0 0.0
      %268 = vmatprep.subr.mxu0 0.0
      %269 = vmatpush1.msra.mxu0 0.0
      %270 = vmatprep.subr.mxu0 0.0
      %271 = vmatpush1.msra.mxu0 0.0
      %272 = vmatprep.subr.mxu0 0.0
      %273 = vmatpush1.msra.mxu0 0.0
      %274 = vmatprep.subr.mxu0 0.0
      %275 = vmatpush1.msra.mxu0 0.0
      %276 = vmatprep.subr.mxu0 0.0
      %277 = vmatpush1.msra.mxu0 0.0
      %278 = vmatprep.subr.mxu0 0.0
      %279 = vmatpush1.msra.mxu0 0.0
      %280 = vmatprep.subr.mxu0 0.0
      %281 = vmatpush1.msra.mxu0 0.0
      %282 = vmatprep.subr.mxu0 0.0
      %283 = vmatpush1.msra.mxu0 0.0
      %284 = vmatprep.subr.mxu0 0.0
      %285 = vmatpush1.msra.mxu0 0.0
      %286 = vmatprep.subr.mxu0 0.0
      %287 = vmatpush1.msra.mxu0 0.0
      %288 = vmatprep.subr.mxu0 0.0
      %289 = vmatpush1.msra.mxu0 0.0
      %290 = vmatprep.subr.mxu0 0.0
      %291 = vmatpush1.msra.mxu0 0.0
      %292 = vmatprep.subr.mxu0 0.0
      %293 = vmatpush1.msra.mxu0 0.0
      %294 = vmatprep.subr.mxu0 0.0
      %295 = vmatpush1.msra.mxu0 0.0
      %296 = vmatprep.subr.mxu0 0.0
      %297 = vmatpush1.msra.mxu0 0.0
      %298 = vmatprep.subr.mxu0 0.0
      %299 = vmatpush1.msra.mxu0 0.0
      %300 = vmatprep.subr.mxu0 0.0
      %301 = vmatpush1.msra.mxu0 0.0
      %302 = vmatprep.subr.mxu0 0.0
      %303 = vmatpush1.msra.mxu0 0.0
      %304 = vmatprep.subr.mxu0 0.0
      %305 = vmatpush1.msra.mxu0 0.0
      %306 = vmatprep.subr.mxu0 0.0
      %307 = vmatpush1.msra.mxu0 0.0
      %308 = vmatprep.subr.mxu0 0.0
      %309 = vmatpush1.msra.mxu0 0.0
      %310 = vmatprep.subr.mxu0 0.0
      %311 = vmatpush1.msra.mxu0 0.0
      %312 = vmatprep.subr.mxu0 0.0
      %313 = vmatpush1.msra.mxu0 0.0
      %314 = vmatprep.subr.mxu0 0.0
      %315 = vmatpush1.msra.mxu0 0.0
      %316 = vmatprep.subr.mxu0 0.0
      %317 = vmatpush1.msra.mxu0 0.0
      %318 = vmatprep.subr.mxu0 0.0
      %319 = vmatpush1.msra.mxu0 0.0
      %320 = vmatprep.mubr.f32.mxu0 0.0
      %321 = vmatmul.mubr.f32.gmra.mrb[0].mxu0 %v249
      %v322 = vpop.f32.mrb[0].mxu0
      %v323 = vadd.f32 %v243, %v322
      %v324 = vpop.f32.mrb[0].mxu0
      %v325 = vadd.f32 %v243, %v324
      %326 = vdwg.mxu0
      %vm327 = vcmp.ge.f32.partialorder %v323, 0.0
      %vm328 = vcmp.ge.f32.partialorder %v325, 0.0
      %v329 = vld [vmem:[%s3] sm:$0xf]
      %331 = vset.pattern.permute.xlu0 0
      %332 = vperm.xlu0 %331, %v329
      %v333 = vpop.permute.xlu0 %332
      %v335 = vmul.f32 %v333, %v323
      %v336 = vmul.f32 %v333, %v325
      %v337 = vsel %vm327, %v323, %v335
      %v338 = vsel %vm328, %v325, %v336
      %v341 = vcombine.low %v337, %v338
      %343 = vst [vmem:[%s235] sm:$0xff] %v341
      %s344 = smul.u32 2, %s20
      %p345 = scmp.lt.s32.totalorder %s19, 1
      %s346 = scalar_select %p345, %s19, 1
      %p347 = scmp.lt.s32.totalorder %s344, 1
      %s348 = scalar_select %p347, %s344, 1
      %s349 = smul.addr %s346, 2
      %s350 = sadd.s32 %s348, %s349
      %s351 = smul.addr %s350, 4
      %s352 = scalar_lea.vmem %s4, %s351
      // Predicated region
      $region37: #{large_pyramid_attention_forward.3} parent=35 // pred_check
        %p353 = pneg %p138
      $region38: #{large_pyramid_attention_forward.3} parent=35 // pred_check_branch
        %355 = sbr.rel (%p353) target = $region40
      $region39: #{large_pyramid_attention_forward.3} parent=35 // pred_region
        %s356 = smul.u32 2, %s20
      $region40: #{large_pyramid_attention_forward.3} parent=35 // pred_fallthru
        _
    $region36: #{large_pyramid_attention_forward.3} parent=5 // pred_fallthru
      _
    %p357 = scmp.le.s32.totalorder 2, %s10
    // Predicated region
    $region41: #{large_pyramid_attention_forward.3} parent=5 // pred_check
      %p358 = pneg %p357
    $region42: #{large_pyramid_attention_forward.3} parent=5 // pred_check_branch
      %360 = sbr.rel (%p358) target = $region44
    $region43: #{large_pyramid_attention_forward.3} parent=5 // pred_region
      %s361 = ssub.s32 %s10, 2
      // Predicated region
      $region45: #{large_pyramid_attention_forward.3} parent=43 // pred_check
        %p362 = pneg %p144
      $region46: #{large_pyramid_attention_forward.3} parent=43 // pred_check_branch
        %364 = sbr.rel (%p362) target = $region48
      $region47: #{large_pyramid_attention_forward.3} parent=43 // pred_region
        %s365 = smul.u32 2, %s22
        %p366 = scmp.lt.s32.totalorder %s21, 1
        %s367 = scalar_select %p366, %s21, 1
        %p368 = scmp.lt.s32.totalorder %s365, 1
        %s369 = scalar_select %p368, %s365, 1
        %s370 = smul.addr %s367, 2
        %s371 = sadd.s32 %s369, %s370
        %s372 = smul.addr %s371, 4
        %s373 = scalar_lea.vmem %s4, %s372
      $region48: #{large_pyramid_attention_forward.3} parent=43 // pred_fallthru
        _
    $region44: #{large_pyramid_attention_forward.3} parent=5 // pred_fallthru
      _
  $region6: #{large_pyramid_attention_forward.3} parent=0 // loop_footer
    %s14 = sadd.s32 1, %s10
  $region7: #{large_pyramid_attention_forward.3} parent=0 // loop_footer_branch
    %9 = sbr.rel target = $region3
  $region8: #{large_pyramid_attention_forward.3} parent=0 // loop_exit
    _

// kernel: large_pyramid_attention_forward.5
$region0: #{large_pyramid_attention_forward.5}
  #allocation0 [shape = 'u32[]', space=smem, size = 0x4, offset = 0x4, fixed_abs, tag = 'smem constant byte address 0x4 - core index']
  #allocation1 [shape = 'u32[144,128]{1,0:T(1,128)}', space=vmem, size = 0x12000, scoped, tag = 'internal scratch']
  #allocation2 [shape = 'f32[304,4]{1,0:T(8,128)}', space=vmem, size = 0x26000, scoped, tag = 'scratch operand']
  %s0 = inlined_call_operand.vmem [shape: bf16[2,256,36], index: 0, kind: input, shape index: {}]
  %s1 = inlined_call_operand.vmem [shape: bf16[2,36,1024], index: 1, kind: input, shape index: {}]
  %s2 = inlined_call_operand.vmem [shape: bf16[2,1024,36], index: 2, kind: input, shape index: {}]
  %s3 = inlined_call_operand.vmem [shape: f32[2,256,4], index: 3, kind: input, shape index: {}]
  %s4 = inlined_call_operand.vmem [shape: f32[2,256,4], index: 4, kind: output, shape index: {}]
  %s5 = sld [smem:[#allocation0]]
  $region57: #{large_pyramid_attention_forward.5} parent=0
    _
  %s7 = ssub.s32 1, %s5
  %s8 = scalar_select 0, %s7, %s5
  loop: start=0, step=1, limit=4
  $region2: #{large_pyramid_attention_forward.5} parent=0 // loop_pre_header
    _
  $region3: #{large_pyramid_attention_forward.5} parent=0 // loop_header
    %s10 = sphi 0, %s14
    %p11 = scmp.ge.s32.totalorder %s10, 4
    %s17 = sphi 0, %s29
    %s18 = sphi 0, %s25
    %s19 = sphi 0, %s17
    %s20 = sphi 0, %s18
    %s21 = sphi 0, %s19
    %s22 = sphi 0, %s20
    %s34 = sphi 0, %s36
    %s37 = sphi 0, %s34
    %s38 = sphi 0, %s37
    %s54 = sphi 0, %s38
    %s60 = sphi 0, %s62
    %s63 = sphi 0, %s60
    %s64 = sphi 0, %s63
    %s80 = sphi 0, %s64
    %s86 = sphi 0, %s88
    %s89 = sphi 0, %s86
    %s90 = sphi 0, %s89
    %s106 = sphi 0, %s90
    %s112 = sphi 0, %s114
    %s115 = sphi 0, %s112
    %s116 = sphi 0, %s115
    %s132 = sphi 0, %s116
    %s138 = sphi 0, %s140
    %s141 = sphi 0, %s138
    %s142 = sphi 0, %s141
    %s158 = sphi 0, %s142
  $region4: #{large_pyramid_attention_forward.5} parent=0 // loop_header_branch
    %13 = sbr.rel (%p11) target = $region8
  $region5: #{large_pyramid_attention_forward.5} parent=0 // loop_body
    %s15 = ssub.s32 %s10, 1
    %s16 = ssub.s32 %s10, 2
    %s23 = sadd.s32 1, %s18
    %p24 = scmp.ge.s32.totalorder %s23, 1
    %s25 = scalar_select %p24, 0, %s23
    %s26 = sadd.s32 1, %s17
    %s27 = scalar_select %p24, %s26, %s17
    %p28 = scmp.ge.s32.totalorder %s27, 2
    %s29 = scalar_select %p28, 0, %s27
    %s30 = ssub.s32 %s17, %s29
    %s31 = ssub.s32 %s18, %s25
    %s32 = sor.u32 %s30, %s31
    %p33 = scmp.eq.s32.totalorder %s32, 0
    %s35 = sadd.s32 %s34, 1
    %s36 = scalar_select %p33, %s34, %s35
    %p39 = pneg %p33
    %p40 = scmp.eq.s32.totalorder %s10, 1
    %p41 = por %p39, %p40
    %p42 = scmp.ne.s32.totalorder %s34, %s37
    %p43 = scmp.eq.s32.totalorder %s10, 0
    %p44 = por %p42, %p43
    %p45 = scmp.ne.s32.totalorder %s34, %s37
    %p46 = scmp.eq.s32.totalorder %s15, 1
    %p47 = por %p45, %p46
    %p48 = scmp.ne.s32.totalorder %s37, %s38
    %p49 = scmp.eq.s32.totalorder %s15, 0
    %p50 = por %p48, %p49
    %p51 = scmp.ne.s32.totalorder %s37, %s38
    %p52 = scmp.eq.s32.totalorder %s16, 1
    %p53 = por %p51, %p52
    %p55 = scmp.ne.s32.totalorder %s38, %s54
    %p56 = scmp.eq.s32.totalorder %s16, 0
    %p57 = por %p55, %p56
    %s58 = ssub.s32 %s17, %s29
    %p59 = scmp.eq.s32.totalorder %s58, 0
    %s61 = sadd.s32 %s60, 1
    %s62 = scalar_select %p59, %s60, %s61
    %p65 = pneg %p59
    %p66 = scmp.eq.s32.totalorder %s10, 1
    %p67 = por %p65, %p66
    %p68 = scmp.ne.s32.totalorder %s60, %s63
    %p69 = scmp.eq.s32.totalorder %s10, 0
    %p70 = por %p68, %p69
    %p71 = scmp.ne.s32.totalorder %s60, %s63
    %p72 = scmp.eq.s32.totalorder %s15, 1
    %p73 = por %p71, %p72
    %p74 = scmp.ne.s32.totalorder %s63, %s64
    %p75 = scmp.eq.s32.totalorder %s15, 0
    %p76 = por %p74, %p75
    %p77 = scmp.ne.s32.totalorder %s63, %s64
    %p78 = scmp.eq.s32.totalorder %s16, 1
    %p79 = por %p77, %p78
    %p81 = scmp.ne.s32.totalorder %s64, %s80
    %p82 = scmp.eq.s32.totalorder %s16, 0
    %p83 = por %p81, %p82
    %s84 = ssub.s32 %s17, %s29
    %p85 = scmp.eq.s32.totalorder %s84, 0
    %s87 = sadd.s32 %s86, 1
    %s88 = scalar_select %p85, %s86, %s87
    %p91 = pneg %p85
    %p92 = scmp.eq.s32.totalorder %s10, 1
    %p93 = por %p91, %p92
    %p94 = scmp.ne.s32.totalorder %s86, %s89
    %p95 = scmp.eq.s32.totalorder %s10, 0
    %p96 = por %p94, %p95
    %p97 = scmp.ne.s32.totalorder %s86, %s89
    %p98 = scmp.eq.s32.totalorder %s15, 1
    %p99 = por %p97, %p98
    %p100 = scmp.ne.s32.totalorder %s89, %s90
    %p101 = scmp.eq.s32.totalorder %s15, 0
    %p102 = por %p100, %p101
    %p103 = scmp.ne.s32.totalorder %s89, %s90
    %p104 = scmp.eq.s32.totalorder %s16, 1
    %p105 = por %p103, %p104
    %p107 = scmp.ne.s32.totalorder %s90, %s106
    %p108 = scmp.eq.s32.totalorder %s16, 0
    %p109 = por %p107, %p108
    %s110 = ssub.s32 %s17, %s29
    %p111 = scmp.eq.s32.totalorder %s110, 0
    %s113 = sadd.s32 %s112, 1
    %s114 = scalar_select %p111, %s112, %s113
    %p117 = pneg %p111
    %p118 = scmp.eq.s32.totalorder %s10, 1
    %p119 = por %p117, %p118
    %p120 = scmp.ne.s32.totalorder %s112, %s115
    %p121 = scmp.eq.s32.totalorder %s10, 0
    %p122 = por %p120, %p121
    %p123 = scmp.ne.s32.totalorder %s112, %s115
    %p124 = scmp.eq.s32.totalorder %s15, 1
    %p125 = por %p123, %p124
    %p126 = scmp.ne.s32.totalorder %s115, %s116
    %p127 = scmp.eq.s32.totalorder %s15, 0
    %p128 = por %p126, %p127
    %p129 = scmp.ne.s32.totalorder %s115, %s116
    %p130 = scmp.eq.s32.totalorder %s16, 1
    %p131 = por %p129, %p130
    %p133 = scmp.ne.s32.totalorder %s116, %s132
    %p134 = scmp.eq.s32.totalorder %s16, 0
    %p135 = por %p133, %p134
    %s136 = ssub.s32 %s17, %s29
    %p137 = scmp.eq.s32.totalorder %s136, 0
    %s139 = sadd.s32 %s138, 1
    %s140 = scalar_select %p137, %s138, %s139
    %p143 = pneg %p137
    %p144 = scmp.eq.s32.totalorder %s10, 1
    %p145 = por %p143, %p144
    %p146 = scmp.ne.s32.totalorder %s138, %s141
    %p147 = scmp.eq.s32.totalorder %s10, 0
    %p148 = por %p146, %p147
    %p149 = scmp.ne.s32.totalorder %s138, %s141
    %p150 = scmp.eq.s32.totalorder %s15, 1
    %p151 = por %p149, %p150
    %p152 = scmp.ne.s32.totalorder %s141, %s142
    %p153 = scmp.eq.s32.totalorder %s15, 0
    %p154 = por %p152, %p153
    %p155 = scmp.ne.s32.totalorder %s141, %s142
    %p156 = scmp.eq.s32.totalorder %s16, 1
    %p157 = por %p155, %p156
    %p159 = scmp.ne.s32.totalorder %s142, %s158
    %p160 = scmp.eq.s32.totalorder %s16, 0
    %p161 = por %p159, %p160
    %p162 = scmp.le.s32.totalorder 1, %s10
    %p163 = scmp.lt.s32.totalorder %s10, 3
    %p164 = pnand %p162, %p163
    %p165 = pneg %p164
    // Predicated region
    $region9: #{large_pyramid_attention_forward.5} parent=5 // pred_check
      _
    $region10: #{large_pyramid_attention_forward.5} parent=5 // pred_check_branch
      %167 = sbr.rel (%p164) target = $region12
    $region11: #{large_pyramid_attention_forward.5} parent=5 // pred_region
      %s168 = ssub.s32 %s10, 1
    $region12: #{large_pyramid_attention_forward.5} parent=5 // pred_fallthru
      _
    %p169 = scmp.lt.s32.totalorder %s10, 2
    // Predicated region
    $region13: #{large_pyramid_attention_forward.5} parent=5 // pred_check
      %p170 = pneg %p169
    $region14: #{large_pyramid_attention_forward.5} parent=5 // pred_check_branch
      %172 = sbr.rel (%p170) target = $region16
    $region15: #{large_pyramid_attention_forward.5} parent=5 // pred_region
      // Predicated region
      $region17: #{large_pyramid_attention_forward.5} parent=15 // pred_check
        %p173 = pneg %p44
      $region18: #{large_pyramid_attention_forward.5} parent=15 // pred_check_branch
        %175 = sbr.rel (%p173) target = $region20
      $region19: #{large_pyramid_attention_forward.5} parent=15 // pred_region
        %s176 = smul.u32 32, %s18
        %p177 = scmp.lt.s32.totalorder %s17, 1
        %s178 = scalar_select %p177, %s17, 1
        %p179 = scmp.lt.s32.totalorder %s176, 31
        %s180 = scalar_select %p179, %s176, 31
        %s181 = smul.addr %s178, 32
        %s182 = sadd.s32 %s180, %s181
        %s183 = smul.addr %s182, 4
        %s184 = scalar_lea.vmem %s0, %s183
        %s185 = smul.u32 32, %s18
      $region20: #{large_pyramid_attention_forward.5} parent=15 // pred_fallthru
        _
      // Predicated region
      $region21: #{large_pyramid_attention_forward.5} parent=15 // pred_check
        %p186 = pneg %p70
      $region22: #{large_pyramid_attention_forward.5} parent=15 // pred_check_branch
        %188 = sbr.rel (%p186) target = $region24
      $region23: #{large_pyramid_attention_forward.5} parent=15 // pred_region
        %p189 = scmp.lt.s32.totalorder %s17, 1
        %s190 = scalar_select %p189, %s17, 1
        %s191 = smul.addr %s190, 40
        %s192 = smul.addr %s191, 4
        %s193 = scalar_lea.vmem %s1, %s192
      $region24: #{large_pyramid_attention_forward.5} parent=15 // pred_fallthru
        _
      // Predicated region
      $region25: #{large_pyramid_attention_forward.5} parent=15 // pred_check
        %p194 = pneg %p96
      $region26: #{large_pyramid_attention_forward.5} parent=15 // pred_check_branch
        %196 = sbr.rel (%p194) target = $region28
      $region27: #{large_pyramid_attention_forward.5} parent=15 // pred_region
        %p197 = scmp.lt.s32.totalorder %s17, 1
        %s198 = scalar_select %p197, %s17, 1
        %s199 = smul.addr %s198, 128
        %s200 = smul.addr %s199, 4
        %s201 = scalar_lea.vmem %s2, %s200
      $region28: #{large_pyramid_attention_forward.5} parent=15 // pred_fallthru
        _
      // Predicated region
      $region29: #{large_pyramid_attention_forward.5} parent=15 // pred_check
        %p202 = pneg %p122
      $region30: #{large_pyramid_attention_forward.5} parent=15 // pred_check_branch
        %204 = sbr.rel (%p202) target = $region32
      $region31: #{large_pyramid_attention_forward.5} parent=15 // pred_region
        %p205 = scmp.lt.s32.totalorder %s17, 1
        %s206 = scalar_select %p205, %s17, 1
        %s207 = smul.addr %s206, 32
        %s208 = smul.addr %s207, 8
        %s209 = scalar_lea.vmem %s3, %s208
      $region32: #{large_pyramid_attention_forward.5} parent=15 // pred_fallthru
        _
    $region16: #{large_pyramid_attention_forward.5} parent=5 // pred_fallthru
      _
    %p210 = scmp.le.s32.totalorder 1, %s10
    %p211 = scmp.lt.s32.totalorder %s10, 3
    %p212 = pnand %p210, %p211
    %p213 = pneg %p212
    // Predicated region
    $region33: #{large_pyramid_attention_forward.5} parent=5 // pred_check
      _
    $region34: #{large_pyramid_attention_forward.5} parent=5 // pred_check_branch
      %215 = sbr.rel (%p212) target = $region36
    $region35: #{large_pyramid_attention_forward.5} parent=5 // pred_region
      %s216 = ssub.s32 %s10, 1
      %s217 = smul.u32 32, %s20
      %p218 = scmp.lt.s32.totalorder %s19, 1
      %s219 = scalar_select %p218, %s19, 1
      %p220 = scmp.lt.s32.totalorder %s217, 31
      %s221 = scalar_select %p220, %s217, 31
      %s222 = smul.addr %s219, 32
      %s223 = sadd.s32 %s221, %s222
      %s224 = smul.addr %s223, 4
      %s225 = scalar_lea.vmem %s0, %s224
      %p226 = pneg %p50
      %p227 = pneg %p47
      %p228 = scmp.lt.s32.totalorder %s19, 1
      %s229 = scalar_select %p228, %s19, 1
      %s230 = smul.addr %s229, 40
      %s231 = smul.addr %s230, 4
      %s232 = scalar_lea.vmem %s1, %s231
      %p233 = pneg %p76
      %p234 = pneg %p73
      %p235 = scmp.lt.s32.totalorder %s19, 1
      %s236 = scalar_select %p235, %s19, 1
      %s237 = smul.addr %s236, 128
      %s238 = smul.addr %s237, 4
      %s239 = scalar_lea.vmem %s2, %s238
      %p240 = pneg %p102
      %p241 = pneg %p99
      %p242 = scmp.lt.s32.totalorder %s19, 1
      %s243 = scalar_select %p242, %s19, 1
      %s244 = smul.addr %s243, 32
      %s245 = smul.addr %s244, 8
      %s246 = scalar_lea.vmem %s3, %s245
      %p247 = pneg %p128
      %p248 = pneg %p125
      %p249 = pneg %p154
      %p250 = pneg %p151
      %p251 = scmp.lt.s32.totalorder %s19, 1
      %s252 = scalar_select %p251, %s19, 1
      %s253 = smul.addr %s252, 32
      %s254 = smul.addr %s253, 8
      %s255 = scalar_lea.vmem %s4, %s254
      %s256 = smul.u32 32, %s20
      %p257 = scmp.lt.s32.totalorder %s19, 1
      %s258 = scalar_select %p257, %s19, 1
      %p259 = scmp.lt.s32.totalorder %s256, 31
      %s260 = scalar_select %p259, %s256, 31
      %s261 = smul.addr %s258, 32
      %s262 = sadd.s32 %s260, %s261
      %s263 = smul.addr %s262, 4
      %s264 = scalar_lea.vmem %s0, %s263
      %s265 = smul.u32 32, %s20
      %p266 = scmp.lt.s32.totalorder %s19, 1
      %s267 = scalar_select %p266, %s19, 1
      %s268 = smul.addr %s267, 40
      %s269 = smul.addr %s268, 4
      %s270 = scalar_lea.vmem %s1, %s269
      %p271 = scmp.lt.s32.totalorder %s19, 1
      %s272 = scalar_select %p271, %s19, 1
      %s273 = smul.addr %s272, 128
      %s274 = smul.addr %s273, 4
      %s275 = scalar_lea.vmem %s2, %s274
      %p276 = scmp.lt.s32.totalorder %s19, 1
      %s277 = scalar_select %p276, %s19, 1
      %s278 = smul.addr %s277, 32
      %s279 = smul.addr %s278, 8
      %s280 = scalar_lea.vmem %s3, %s279
      %p281 = scmp.lt.s32.totalorder %s19, 1
      %s282 = scalar_select %p281, %s19, 1
      %s283 = smul.addr %s282, 32
      %s284 = smul.addr %s283, 8
      %s285 = scalar_lea.vmem %s4, %s284
      %p287 = scmp.eq.s32.totalorder %s20, 0
      // Predicated region
      $region37: #{large_pyramid_attention_forward.5} parent=35 // pred_check
        %p288 = pneg %p287
      $region38: #{large_pyramid_attention_forward.5} parent=35 // pred_check_branch
        %290 = sbr.rel (%p288) target = $region40
      $region39: #{large_pyramid_attention_forward.5} parent=35 // pred_region
        %vm291 = vcmask 31744
        %292 = vst.msk [vmem:[#allocation2] sm:$0xff] %vm291, 0.0
        %293 = vst.msk [vmem:[#allocation2 + $0x8] sm:$0xff] %vm291, 0.0
        %294 = vst.msk [vmem:[#allocation2 + $0x10] sm:$0xff] %vm291, 0.0
        %295 = vst.msk [vmem:[#allocation2 + $0x18] sm:$0xff] %vm291, 0.0
        %296 = vst.msk [vmem:[#allocation2 + $0x20] sm:$0xff] %vm291, 0.0
        %297 = vst.msk [vmem:[#allocation2 + $0x28] sm:$0xff] %vm291, 0.0
        %298 = vst.msk [vmem:[#allocation2 + $0x30] sm:$0xff] %vm291, 0.0
        %299 = vst.msk [vmem:[#allocation2 + $0x38] sm:$0xff] %vm291, 0.0
        %300 = vst.msk [vmem:[#allocation2 + $0x40] sm:$0xff] %vm291, 0.0
        %301 = vst.msk [vmem:[#allocation2 + $0x48] sm:$0xff] %vm291, 0.0
        %302 = vst.msk [vmem:[#allocation2 + $0x50] sm:$0xff] %vm291, 0.0
        %303 = vst.msk [vmem:[#allocation2 + $0x58] sm:$0xff] %vm291, 0.0
        %304 = vst.msk [vmem:[#allocation2 + $0x60] sm:$0xff] %vm291, 0.0
        %305 = vst.msk [vmem:[#allocation2 + $0x68] sm:$0xff] %vm291, 0.0
        %306 = vst.msk [vmem:[#allocation2 + $0x70] sm:$0xff] %vm291, 0.0
        %307 = vst.msk [vmem:[#allocation2 + $0x78] sm:$0xff] %vm291, 0.0
        %308 = vst.msk [vmem:[#allocation2 + $0x80] sm:$0xff] %vm291, 0.0
        %309 = vst.msk [vmem:[#allocation2 + $0x88] sm:$0xff] %vm291, 0.0
        %310 = vst.msk [vmem:[#allocation2 + $0x90] sm:$0xff] %vm291, 0.0
        %311 = vst.msk [vmem:[#allocation2 + $0x98] sm:$0xff] %vm291, 0.0
        %312 = vst.msk [vmem:[#allocation2 + $0xa0] sm:$0xff] %vm291, 0.0
        %313 = vst.msk [vmem:[#allocation2 + $0xa8] sm:$0xff] %vm291, 0.0
        %314 = vst.msk [vmem:[#allocation2 + $0xb0] sm:$0xff] %vm291, 0.0
        %315 = vst.msk [vmem:[#allocation2 + $0xb8] sm:$0xff] %vm291, 0.0
        %316 = vst.msk [vmem:[#allocation2 + $0xc0] sm:$0xff] %vm291, 0.0
        %317 = vst.msk [vmem:[#allocation2 + $0xc8] sm:$0xff] %vm291, 0.0
        %318 = vst.msk [vmem:[#allocation2 + $0xd0] sm:$0xff] %vm291, 0.0
        %319 = vst.msk [vmem:[#allocation2 + $0xd8] sm:$0xff] %vm291, 0.0
        %320 = vst.msk [vmem:[#allocation2 + $0xe0] sm:$0xff] %vm291, 0.0
        %321 = vst.msk [vmem:[#allocation2 + $0xe8] sm:$0xff] %vm291, 0.0
        %322 = vst.msk [vmem:[#allocation2 + $0xf0] sm:$0xff] %vm291, 0.0
        %323 = vst.msk [vmem:[#allocation2 + $0xf8] sm:$0xff] %vm291, 0.0
        %324 = vst.msk [vmem:[#allocation2 + $0x100] sm:$0xff] %vm291, 0.0
        %325 = vst.msk [vmem:[#allocation2 + $0x108] sm:$0xff] %vm291, 0.0
        %326 = vst.msk [vmem:[#allocation2 + $0x110] sm:$0xff] %vm291, 0.0
        %327 = vst.msk [vmem:[#allocation2 + $0x118] sm:$0xff] %vm291, 0.0
        %328 = vst.msk [vmem:[#allocation2 + $0x120] sm:$0xff] %vm291, 0.0
        %329 = vst.msk [vmem:[#allocation2 + $0x128] sm:$0xff] %vm291, 0.0
      $region40: #{large_pyramid_attention_forward.5} parent=35 // pred_fallthru
        _
      %v330 = vld [vmem:[%s264] sm:$0xf]
      %v331 = vld [vmem:[%s264 + $0x4] sm:$0xf]
      %v332 = vld [vmem:[%s264 + $0x8] sm:$0xf]
      %v333 = vld [vmem:[%s264 + $0xc] sm:$0xf]
      %v334 = vld [vmem:[%s264 + $0x10] sm:$0xf]
      %v335 = vld [vmem:[%s264 + $0x14] sm:$0xf]
      %v336 = vld [vmem:[%s264 + $0x18] sm:$0xf]
      %v337 = vld [vmem:[%s264 + $0x1c] sm:$0xf]
      %v338 = vld [vmem:[%s264 + $0x20] sm:$0xf]
      %v339 = vld [vmem:[%s264 + $0x24] sm:$0xf]
      %v340 = vld [vmem:[%s264 + $0x28] sm:$0xf]
      %v341 = vld [vmem:[%s264 + $0x2c] sm:$0xf]
      %v342 = vld [vmem:[%s264 + $0x30] sm:$0xf]
      %v343 = vld [vmem:[%s264 + $0x34] sm:$0xf]
      %v344 = vld [vmem:[%s264 + $0x38] sm:$0xf]
      %v345 = vld [vmem:[%s264 + $0x3c] sm:$0xf]
      %v346 = vld [vmem:[%s264 + $0x40] sm:$0xf]
      %v347 = vld [vmem:[%s264 + $0x44] sm:$0xf]
      %v348 = vld [vmem:[%s264 + $0x48] sm:$0xf]
      %v349 = vld [vmem:[%s264 + $0x4c] sm:$0xf]
      %v350 = vld [vmem:[%s264 + $0x50] sm:$0xf]
      %v351 = vld [vmem:[%s264 + $0x54] sm:$0xf]
      %v352 = vld [vmem:[%s264 + $0x58] sm:$0xf]
      %v353 = vld [vmem:[%s264 + $0x5c] sm:$0xf]
      %v354 = vld [vmem:[%s264 + $0x60] sm:$0xf]
      %v355 = vld [vmem:[%s264 + $0x64] sm:$0xf]
      %v356 = vld [vmem:[%s264 + $0x68] sm:$0xf]
      %v357 = vld [vmem:[%s264 + $0x6c] sm:$0xf]
      %v358 = vld [vmem:[%s264 + $0x70] sm:$0xf]
      %v359 = vld [vmem:[%s264 + $0x74] sm:$0xf]
      %v360 = vld [vmem:[%s264 + $0x78] sm:$0xf]
      %v361 = vld [vmem:[%s264 + $0x7c] sm:$0xf]
      %v362 = vld [vmem:[%s270] sm:$0xff]
      %v363 = vld [vmem:[%s270 + $0x8] sm:$0xff]
      %v364 = vld [vmem:[%s270 + $0x10] sm:$0xff]
      %v365 = vld [vmem:[%s270 + $0x18] sm:$0xff]
      %v366 = vld [vmem:[%s270 + $0x20] sm:$0xff]
      %v367 = vld [vmem:[%s270 + $0x28] sm:$0xff]
      %v368 = vld [vmem:[%s270 + $0x30] sm:$0xff]
      %v369 = vld [vmem:[%s270 + $0x38] sm:$0xff]
      %v370 = vld [vmem:[%s270 + $0x40] sm:$0xff]
      %v371 = vld [vmem:[%s270 + $0x48] sm:$0xff]
      %v372 = vld [vmem:[%s270 + $0x50] sm:$0xff]
      %v373 = vld [vmem:[%s270 + $0x58] sm:$0xff]
      %v374 = vld [vmem:[%s270 + $0x60] sm:$0xff]
      %v375 = vld [vmem:[%s270 + $0x68] sm:$0xff]
      %v376 = vld [vmem:[%s270 + $0x70] sm:$0xff]
      %v377 = vld [vmem:[%s270 + $0x78] sm:$0xff]
      %v378 = vld [vmem:[%s270 + $0x80] sm:$0x33]
      %v379 = vld [vmem:[%s270 + $0x88] sm:$0x33]
      %v380 = vld [vmem:[%s270 + $0x90] sm:$0x33]
      %v381 = vld [vmem:[%s270 + $0x98] sm:$0x33]
      %v414 = vunpack.c.l.b16 %v330
      %v415 = vunpack.c.l.b16 %v331
      %v416 = vunpack.c.l.b16 %v332
      %v417 = vunpack.c.l.b16 %v333
      %v418 = vunpack.c.l.b16 %v334
      %v419 = vunpack.c.l.b16 %v335
      %v420 = vunpack.c.l.b16 %v336
      %v421 = vunpack.c.l.b16 %v337
      %v422 = vunpack.c.l.b16 %v338
      %v423 = vunpack.c.l.b16 %v339
      %v424 = vunpack.c.l.b16 %v340
      %v425 = vunpack.c.l.b16 %v341
      %v426 = vunpack.c.l.b16 %v342
      %v427 = vunpack.c.l.b16 %v343
      %v428 = vunpack.c.l.b16 %v344
      %v429 = vunpack.c.l.b16 %v345
      %v430 = vunpack.c.l.b16 %v346
      %v431 = vunpack.c.l.b16 %v347
      %v432 = vunpack.c.l.b16 %v348
      %v433 = vunpack.c.l.b16 %v349
      %v434 = vunpack.c.l.b16 %v350
      %v435 = vunpack.c.l.b16 %v351
      %v436 = vunpack.c.l.b16 %v352
      %v437 = vunpack.c.l.b16 %v353
      %v438 = vunpack.c.l.b16 %v354
      %v439 = vunpack.c.l.b16 %v355
      %v440 = vunpack.c.l.b16 %v356
      %v441 = vunpack.c.l.b16 %v357
      %v442 = vunpack.c.l.b16 %v358
      %v443 = vunpack.c.l.b16 %v359
      %v444 = vunpack.c.l.b16 %v360
      %v445 = vunpack.c.l.b16 %v361
      %v446 = vpack.c.b16 %v415, %v414
      %v447 = vpack.c.b16 %v417, %v416
      %v448 = vpack.c.b16 %v419, %v418
      %v449 = vpack.c.b16 %v421, %v420
      %v450 = vpack.c.b16 %v423, %v422
      %v451 = vpack.c.b16 %v425, %v424
      %v452 = vpack.c.b16 %v427, %v426
      %v453 = vpack.c.b16 %v429, %v428
      %v454 = vpack.c.b16 %v431, %v430
      %v455 = vpack.c.b16 %v433, %v432
      %v456 = vpack.c.b16 %v435, %v434
      %v457 = vpack.c.b16 %v437, %v436
      %v458 = vpack.c.b16 %v439, %v438
      %v459 = vpack.c.b16 %v441, %v440
      %v460 = vpack.c.b16 %v443, %v442
      %v461 = vpack.c.b16 %v445, %v444
      %v482 = vunpack.c.l.b16 %v362
      %v483 = vunpack.c.h.b16 %v362
      %v484 = vunpack.c.l.b16 %v363
      %v485 = vunpack.c.h.b16 %v363
      %v486 = vunpack.c.l.b16 %v364
      %v487 = vunpack.c.h.b16 %v364
      %v488 = vunpack.c.l.b16 %v365
      %v489 = vunpack.c.h.b16 %v365
      %v490 = vunpack.c.l.b16 %v366
      %v491 = vunpack.c.h.b16 %v366
      %v492 = vunpack.c.l.b16 %v367
      %v493 = vunpack.c.h.b16 %v367
      %v494 = vunpack.c.l.b16 %v368
      %v495 = vunpack.c.h.b16 %v368
      %v496 = vunpack.c.l.b16 %v369
      %v497 = vunpack.c.h.b16 %v369
      %v498 = vunpack.c.l.b16 %v370
      %v499 = vunpack.c.h.b16 %v370
      %v500 = vunpack.c.l.b16 %v371
      %v501 = vunpack.c.h.b16 %v371
      %v502 = vunpack.c.l.b16 %v372
      %v503 = vunpack.c.h.b16 %v372
      %v504 = vunpack.c.l.b16 %v373
      %v505 = vunpack.c.h.b16 %v373
      %v506 = vunpack.c.l.b16 %v374
      %v507 = vunpack.c.h.b16 %v374
      %v508 = vunpack.c.l.b16 %v375
      %v509 = vunpack.c.h.b16 %v375
      %v510 = vunpack.c.l.b16 %v376
      %v511 = vunpack.c.h.b16 %v376
      %v512 = vunpack.c.l.b16 %v377
      %v513 = vunpack.c.h.b16 %v377
      %v514 = vunpack.c.l.b16 %v378
      %v515 = vunpack.c.h.b16 %v378
      %v516 = vunpack.c.l.b16 %v379
      %v517 = vunpack.c.h.b16 %v379
      %v518 = vunpack.c.l.b16 %v380
      %v519 = vunpack.c.h.b16 %v380
      %v520 = vunpack.c.l.b16 %v381
      %v521 = vunpack.c.h.b16 %v381
      %v522 = vpack.c.b16 %v490, %v482
      %v523 = vpack.c.b16 %v491, %v483
      %v524 = vpack.c.b16 %v492, %v484
      %v525 = vpack.c.b16 %v493, %v485
      %v526 = vpack.c.b16 %v494, %v486
      %v527 = vpack.c.b16 %v495, %v487
      %v528 = vpack.c.b16 %v496, %v488
      %v529 = vpack.c.b16 %v497, %v489
      %v530 = vpack.c.b16 %v506, %v498
      %v531 = vpack.c.b16 %v507, %v499
      %v532 = vpack.c.b16 %v508, %v500
      %v533 = vpack.c.b16 %v509, %v501
      %v534 = vpack.c.b16 %v510, %v502
      %v535 = vpack.c.b16 %v511, %v503
      %v536 = vpack.c.b16 %v512, %v504
      %v537 = vpack.c.b16 %v513, %v505
      %v538 = vpack.c.b16 %v514, %v514
      %v539 = vpack.c.b16 %v515, %v515
      %v540 = vpack.c.b16 %v516, %v516
      %v541 = vpack.c.b16 %v517, %v517
      %v542 = vpack.c.b16 %v518, %v518
      %v543 = vpack.c.b16 %v519, %v519
      %v544 = vpack.c.b16 %v520, %v520
      %v545 = vpack.c.b16 %v521, %v521
      %vm562 = vcmask 293888
      %v564 = vsel %vm562, %v446, 0
      %v567 = vsel %vm562, %v447, 0
      %v570 = vsel %vm562, %v448, 0
      %v573 = vsel %vm562, %v449, 0
      %v576 = vsel %vm562, %v450, 0
      %v579 = vsel %vm562, %v451, 0
      %v582 = vsel %vm562, %v452, 0
      %v585 = vsel %vm562, %v453, 0
      %v588 = vsel %vm562, %v454, 0
      %v591 = vsel %vm562, %v455, 0
      %v594 = vsel %vm562, %v456, 0
      %v597 = vsel %vm562, %v457, 0
      %v600 = vsel %vm562, %v458, 0
      %v603 = vsel %vm562, %v459, 0
      %v606 = vsel %vm562, %v460, 0
      %v609 = vsel %vm562, %v461, 0
      %vm611 = vcmask 1041408
      %v613 = vsel %vm611, %v538, 0
      %v616 = vsel %vm611, %v539, 0
      %v619 = vsel %vm611, %v540, 0
      %v622 = vsel %vm611, %v541, 0
      %v625 = vsel %vm611, %v542, 0
      %v628 = vsel %vm611, %v543, 0
      %v631 = vsel %vm611, %v544, 0
      %v634 = vsel %vm611, %v545, 0
      %636 = vmatprep.subr.bf16.mxu0 %v523
      %637 = vmatpush1.bf16.msra.mxu0 %v522
      %638 = vmatprep.subr.bf16.mxu0 %v531
      %639 = vmatpush1.bf16.msra.mxu0 %v530
      %640 = vmatprep.subr.bf16.mxu0 %v616
      %641 = vmatpush1.bf16.msra.mxu0 %v613
      %642 = vmatprep.subr.bf16.mxu0 0
      %643 = vmatpush1.bf16.msra.mxu0 0
      %644 = vmatprep.subr.bf16.mxu0 0
      %645 = vmatpush1.bf16.msra.mxu0 0
      %646 = vmatprep.subr.bf16.mxu0 0
      %647 = vmatpush1.bf16.msra.mxu0 0
      %648 = vmatprep.subr.bf16.mxu0 0
      %649 = vmatpush1.bf16.msra.mxu0 0
      %650 = vmatprep.subr.bf16.mxu0 0
      %651 = vmatpush1.bf16.msra.mxu0 0
      %652 = vmatprep.subr.bf16.mxu0 0
      %653 = vmatpush1.bf16.msra.mxu0 0
      %654 = vmatprep.subr.bf16.mxu0 0
      %655 = vmatpush1.bf16.msra.mxu0 0
      %656 = vmatprep.subr.bf16.mxu0 0
      %657 = vmatpush1.bf16.msra.mxu0 0
      %658 = vmatprep.subr.bf16.mxu0 0
      %659 = vmatpush1.bf16.msra.mxu0 0
      %660 = vmatprep.subr.bf16.mxu0 0
      %661 = vmatpush1.bf16.msra.mxu0 0
      %662 = vmatprep.subr.bf16.mxu0 0
      %663 = vmatpush1.bf16.msra.mxu0 0
      %664 = vmatprep.subr.bf16.mxu0 0
      %665 = vmatpush1.bf16.msra.mxu0 0
      %666 = vmatprep.subr.bf16.mxu0 0
      %667 = vmatpush1.bf16.msra.mxu0 0
      %668 = vmatprep.mubr.bf16.mxu0 0
      %669 = vmatmul.mubr.bf16.gmra.mrb[0].mxu0 %v564
      %v670 = vpop.f32.mrb[0].mxu0
      %v671 = vadd.f32 0.0, %v670
      %v672 = vpop.f32.mrb[0].mxu0
      %v673 = vadd.f32 0.0, %v672
      %v674 = vpop.f32.mrb[0].mxu0
      %v675 = vadd.f32 0.0, %v674
      %v676 = vpop.f32.mrb[0].mxu0
      %v677 = vadd.f32 0.0, %v676
      %678 = vmatprep.mubr.bf16.mxu0 0
      %679 = vmatmul.mubr.bf16.gmra.mrb[0].mxu0 %v567
      %v680 = vpop.f32.mrb[0].mxu0
      %v681 = vadd.f32 0.0, %v680
      %v682 = vpop.f32.mrb[0].mxu0
      %v683 = vadd.f32 0.0, %v682
      %v684 = vpop.f32.mrb[0].mxu0
      %v685 = vadd.f32 0.0, %v684
      %v686 = vpop.f32.mrb[0].mxu0
      %v687 = vadd.f32 0.0, %v686
      %688 = vmatprep.mubr.bf16.mxu0 0
      %689 = vmatmul.mubr.bf16.gmra.mrb[0].mxu0 %v570
      %v690 = vpop.f32.mrb[0].mxu0
      %v691 = vadd.f32 0.0, %v690
      %v692 = vpop.f32.mrb[0].mxu0
      %v693 = vadd.f32 0.0, %v692
      %v694 = vpop.f32.mrb[0].mxu0
      %v695 = vadd.f32 0.0, %v694
      %v696 = vpop.f32.mrb[0].mxu0
      %v697 = vadd.f32 0.0, %v696
      %698 = vmatprep.mubr.bf16.mxu0 0
      %699 = vmatmul.mubr.bf16.gmra.mrb[0].mxu0 %v573
      %v700 = vpop.f32.mrb[0].mxu0
      %v701 = vadd.f32 0.0, %v700
      %v702 = vpop.f32.mrb[0].mxu0
      %v703 = vadd.f32 0.0, %v702
      %v704 = vpop.f32.mrb[0].mxu0
      %v705 = vadd.f32 0.0, %v704
      %v706 = vpop.f32.mrb[0].mxu0
      %v707 = vadd.f32 0.0, %v706
      %708 = vmatprep.mubr.bf16.mxu0 0
      %709 = vmatmul.mubr.bf16.gmra.mrb[0].mxu0 %v576
      %v710 = vpop.f32.mrb[0].mxu0
      %v711 = vadd.f32 0.0, %v710
      %v712 = vpop.f32.mrb[0].mxu0
      %v713 = vadd.f32 0.0, %v712
      %v714 = vpop.f32.mrb[0].mxu0
      %v715 = vadd.f32 0.0, %v714
      %v716 = vpop.f32.mrb[0].mxu0
      %v717 = vadd.f32 0.0, %v716
      %718 = vmatprep.mubr.bf16.mxu0 0
      %719 = vmatmul.mubr.bf16.gmra.mrb[0].mxu0 %v579
      %v720 = vpop.f32.mrb[0].mxu0
      %v721 = vadd.f32 0.0, %v720
      %v722 = vpop.f32.mrb[0].mxu0
      %v723 = vadd.f32 0.0, %v722
      %v724 = vpop.f32.mrb[0].mxu0
      %v725 = vadd.f32 0.0, %v724
      %v726 = vpop.f32.mrb[0].mxu0
      %v727 = vadd.f32 0.0, %v726
      %728 = vmatprep.mubr.bf16.mxu0 0
      %729 = vmatmul.mubr.bf16.gmra.mrb[0].mxu0 %v582
      %v730 = vpop.f32.mrb[0].mxu0
      %v731 = vadd.f32 0.0, %v730
      %v732 = vpop.f32.mrb[0].mxu0
      %v733 = vadd.f32 0.0, %v732
      %v734 = vpop.f32.mrb[0].mxu0
      %v735 = vadd.f32 0.0, %v734
      %v736 = vpop.f32.mrb[0].mxu0
      %v737 = vadd.f32 0.0, %v736
      %738 = vmatprep.mubr.bf16.mxu0 0
      %739 = vmatmul.mubr.bf16.gmra.mrb[0].mxu0 %v585
      %v740 = vpop.f32.mrb[0].mxu0
      %v741 = vadd.f32 0.0, %v740
      %v742 = vpop.f32.mrb[0].mxu0
      %v743 = vadd.f32 0.0, %v742
      %v744 = vpop.f32.mrb[0].mxu0
      %v745 = vadd.f32 0.0, %v744
      %v746 = vpop.f32.mrb[0].mxu0
      %v747 = vadd.f32 0.0, %v746
      %748 = vmatprep.mubr.bf16.mxu0 0
      %749 = vmatmul.mubr.bf16.gmra.mrb[0].mxu0 %v588
      %v750 = vpop.f32.mrb[0].mxu0
      %v751 = vadd.f32 0.0, %v750
      %v752 = vpop.f32.mrb[0].mxu0
      %v753 = vadd.f32 0.0, %v752
      %v754 = vpop.f32.mrb[0].mxu0
      %v755 = vadd.f32 0.0, %v754
      %v756 = vpop.f32.mrb[0].mxu0
      %v757 = vadd.f32 0.0, %v756
      %758 = vmatprep.mubr.bf16.mxu0 0
      %759 = vmatmul.mubr.bf16.gmra.mrb[0].mxu0 %v591
      %v760 = vpop.f32.mrb[0].mxu0
      %v761 = vadd.f32 0.0, %v760
      %v762 = vpop.f32.mrb[0].mxu0
      %v763 = vadd.f32 0.0, %v762
      %v764 = vpop.f32.mrb[0].mxu0
      %v765 = vadd.f32 0.0, %v764
      %v766 = vpop.f32.mrb[0].mxu0
      %v767 = vadd.f32 0.0, %v766
      %768 = vmatprep.mubr.bf16.mxu0 0
      %769 = vmatmul.mubr.bf16.gmra.mrb[0].mxu0 %v594
      %v770 = vpop.f32.mrb[0].mxu0
      %v771 = vadd.f32 0.0, %v770
      %v772 = vpop.f32.mrb[0].mxu0
      %v773 = vadd.f32 0.0, %v772
      %v774 = vpop.f32.mrb[0].mxu0
      %v775 = vadd.f32 0.0, %v774
      %v776 = vpop.f32.mrb[0].mxu0
      %v777 = vadd.f32 0.0, %v776
      %778 = vmatprep.mubr.bf16.mxu0 0
      %779 = vmatmul.mubr.bf16.gmra.mrb[0].mxu0 %v597
      %v780 = vpop.f32.mrb[0].mxu0
      %v781 = vadd.f32 0.0, %v780
      %v782 = vpop.f32.mrb[0].mxu0
      %v783 = vadd.f32 0.0, %v782
      %v784 = vpop.f32.mrb[0].mxu0
      %v785 = vadd.f32 0.0, %v784
      %v786 = vpop.f32.mrb[0].mxu0
      %v787 = vadd.f32 0.0, %v786
      %788 = vmatprep.mubr.bf16.mxu0 0
      %789 = vmatmul.mubr.bf16.gmra.mrb[0].mxu0 %v600
      %v790 = vpop.f32.mrb[0].mxu0
      %v791 = vadd.f32 0.0, %v790
      %v792 = vpop.f32.mrb[0].mxu0
      %v793 = vadd.f32 0.0, %v792
      %v794 = vpop.f32.mrb[0].mxu0
      %v795 = vadd.f32 0.0, %v794
      %v796 = vpop.f32.mrb[0].mxu0
      %v797 = vadd.f32 0.0, %v796
      %798 = vmatprep.mubr.bf16.mxu0 0
      %799 = vmatmul.mubr.bf16.gmra.mrb[0].mxu0 %v603
      %v800 = vpop.f32.mrb[0].mxu0
      %v801 = vadd.f32 0.0, %v800
      %v802 = vpop.f32.mrb[0].mxu0
      %v803 = vadd.f32 0.0, %v802
      %v804 = vpop.f32.mrb[0].mxu0
      %v805 = vadd.f32 0.0, %v804
      %v806 = vpop.f32.mrb[0].mxu0
      %v807 = vadd.f32 0.0, %v806
      %808 = vmatprep.mubr.bf16.mxu0 0
      %809 = vmatmul.mubr.bf16.gmra.mrb[0].mxu0 %v606
      %v810 = vpop.f32.mrb[0].mxu0
      %v811 = vadd.f32 0.0, %v810
      %v812 = vpop.f32.mrb[0].mxu0
      %v813 = vadd.f32 0.0, %v812
      %v814 = vpop.f32.mrb[0].mxu0
      %v815 = vadd.f32 0.0, %v814
      %v816 = vpop.f32.mrb[0].mxu0
      %v817 = vadd.f32 0.0, %v816
      %818 = vmatprep.mubr.bf16.mxu0 0
      %819 = vmatmul.mubr.bf16.gmra.mrb[0].mxu0 %v609
      %v820 = vpop.f32.mrb[0].mxu0
      %v821 = vadd.f32 0.0, %v820
      %v822 = vpop.f32.mrb[0].mxu0
      %v823 = vadd.f32 0.0, %v822
      %v824 = vpop.f32.mrb[0].mxu0
      %v825 = vadd.f32 0.0, %v824
      %v826 = vpop.f32.mrb[0].mxu0
      %v827 = vadd.f32 0.0, %v826
      %828 = vdwg.mxu0
      %829 = vmatprep.subr.bf16.mxu0 %v525
      %830 = vmatpush1.bf16.msra.mxu0 %v524
      %831 = vmatprep.subr.bf16.mxu0 %v533
      %832 = vmatpush1.bf16.msra.mxu0 %v532
      %833 = vmatprep.subr.bf16.mxu0 %v622
      %834 = vmatpush1.bf16.msra.mxu0 %v619
      %835 = vmatprep.subr.bf16.mxu0 0
      %836 = vmatpush1.bf16.msra.mxu0 0
      %837 = vmatprep.subr.bf16.mxu0 0
      %838 = vmatpush1.bf16.msra.mxu0 0
      %839 = vmatprep.subr.bf16.mxu0 0
      %840 = vmatpush1.bf16.msra.mxu0 0
      %841 = vmatprep.subr.bf16.mxu0 0
      %842 = vmatpush1.bf16.msra.mxu0 0
      %843 = vmatprep.subr.bf16.mxu0 0
      %844 = vmatpush1.bf16.msra.mxu0 0
      %845 = vmatprep.subr.bf16.mxu0 0
      %846 = vmatpush1.bf16.msra.mxu0 0
      %847 = vmatprep.subr.bf16.mxu0 0
      %848 = vmatpush1.bf16.msra.mxu0 0
      %849 = vmatprep.subr.bf16.mxu0 0
      %850 = vmatpush1.bf16.msra.mxu0 0
      %851 = vmatprep.subr.bf16.mxu0 0
      %852 = vmatpush1.bf16.msra.mxu0 0
      %853 = vmatprep.subr.bf16.mxu0 0
      %854 = vmatpush1.bf16.msra.mxu0 0
      %855 = vmatprep.subr.bf16.mxu0 0
      %856 = vmatpush1.bf16.msra.mxu0 0
      %857 = vmatprep.subr.bf16.mxu0 0
      %858 = vmatpush1.bf16.msra.mxu0 0
      %859 = vmatprep.subr.bf16.mxu0 0
      %860 = vmatpush1.bf16.msra.mxu0 0
      %861 = vmatprep.mubr.bf16.mxu0 0
      %862 = vmatmul.mubr.bf16.gmra.mrb[0].mxu0 %v564
      %v863 = vpop.f32.mrb[0].mxu0
      %v864 = vadd.f32 0.0, %v863
      %v865 = vpop.f32.mrb[0].mxu0
      %v866 = vadd.f32 0.0, %v865
      %v867 = vpop.f32.mrb[0].mxu0
      %v868 = vadd.f32 0.0, %v867
      %v869 = vpop.f32.mrb[0].mxu0
      %v870 = vadd.f32 0.0, %v869
      %871 = vmatprep.mubr.bf16.mxu0 0
      %872 = vmatmul.mubr.bf16.gmra.mrb[0].mxu0 %v567
      %v873 = vpop.f32.mrb[0].mxu0
      %v874 = vadd.f32 0.0, %v873
      %v875 = vpop.f32.mrb[0].mxu0
      %v876 = vadd.f32 0.0, %v875
      %v877 = vpop.f32.mrb[0].mxu0
      %v878 = vadd.f32 0.0, %v877
      %v879 = vpop.f32.mrb[0].mxu0
      %v880 = vadd.f32 0.0, %v879
      %881 = vmatprep.mubr.bf16.mxu0 0
      %882 = vmatmul.mubr.bf16.gmra.mrb[0].mxu0 %v570
      %v883 = vpop.f32.mrb[0].mxu0
      %v884 = vadd.f32 0.0, %v883
      %v885 = vpop.f32.mrb[0].mxu0
      %v886 = vadd.f32 0.0, %v885
      %v887 = vpop.f32.mrb[0].mxu0
      %v888 = vadd.f32 0.0, %v887
      %v889 = vpop.f32.mrb[0].mxu0
      %v890 = vadd.f32 0.0, %v889
      %891 = vmatprep.mubr.bf16.mxu0 0
      %892 = vmatmul.mubr.bf16.gmra.mrb[0].mxu0 %v573
      %v893 = vpop.f32.mrb[0].mxu0
      %v894 = vadd.f32 0.0, %v893
      %v895 = vpop.f32.mrb[0].mxu0
      %v896 = vadd.f32 0.0, %v895
      %v897 = vpop.f32.mrb[0].mxu0
      %v898 = vadd.f32 0.0, %v897
      %v899 = vpop.f32.mrb[0].mxu0
      %v900 = vadd.f32 0.0, %v899
      %901 = vmatprep.mubr.bf16.mxu0 0
      %902 = vmatmul.mubr.bf16.gmra.mrb[0].mxu0 %v576
      %v903 = vpop.f32.mrb[0].mxu0
      %v904 = vadd.f32 0.0, %v903
      %v905 = vpop.f32.mrb[0].mxu0
      %v906 = vadd.f32 0.0, %v905
      %v907 = vpop.f32.mrb[0].mxu0
      %v908 = vadd.f32 0.0, %v907
      %v909 = vpop.f32.mrb[0].mxu0
      %v910 = vadd.f32 0.0, %v909
      %911 = vmatprep.mubr.bf16.mxu0 0
      %912 = vmatmul.mubr.bf16.gmra.mrb[0].mxu0 %v579
      %v913 = vpop.f32.mrb[0].mxu0
      %v914 = vadd.f32 0.0, %v913
      %v915 = vpop.f32.mrb[0].mxu0
      %v916 = vadd.f32 0.0, %v915
      %v917 = vpop.f32.mrb[0].mxu0
      %v918 = vadd.f32 0.0, %v917
      %v919 = vpop.f32.mrb[0].mxu0
      %v920 = vadd.f32 0.0, %v919
      %921 = vmatprep.mubr.bf16.mxu0 0
      %922 = vmatmul.mubr.bf16.gmra.mrb[0].mxu0 %v582
      %v923 = vpop.f32.mrb[0].mxu0
      %v924 = vadd.f32 0.0, %v923
      %v925 = vpop.f32.mrb[0].mxu0
      %v926 = vadd.f32 0.0, %v925
      %v927 = vpop.f32.mrb[0].mxu0
      %v928 = vadd.f32 0.0, %v927
      %v929 = vpop.f32.mrb[0].mxu0
      %v930 = vadd.f32 0.0, %v929
      %931 = vmatprep.mubr.bf16.mxu0 0
      %932 = vmatmul.mubr.bf16.gmra.mrb[0].mxu0 %v585
      %v933 = vpop.f32.mrb[0].mxu0
      %v934 = vadd.f32 0.0, %v933
      %v935 = vpop.f32.mrb[0].mxu0
      %v936 = vadd.f32 0.0, %v935
      %v937 = vpop.f32.mrb[0].mxu0
      %v938 = vadd.f32 0.0, %v937
      %v939 = vpop.f32.mrb[0].mxu0
      %v940 = vadd.f32 0.0, %v939
      %941 = vmatprep.mubr.bf16.mxu0 0
      %942 = vmatmul.mubr.bf16.gmra.mrb[0].mxu0 %v588
      %v943 = vpop.f32.mrb[0].mxu0
      %v944 = vadd.f32 0.0, %v943
      %v945 = vpop.f32.mrb[0].mxu0
      %v946 = vadd.f32 0.0, %v945
      %v947 = vpop.f32.mrb[0].mxu0
      %v948 = vadd.f32 0.0, %v947
      %v949 = vpop.f32.mrb[0].mxu0
      %v950 = vadd.f32 0.0, %v949
      %951 = vmatprep.mubr.bf16.mxu0 0
      %952 = vmatmul.mubr.bf16.gmra.mrb[0].mxu0 %v591
      %v953 = vpop.f32.mrb[0].mxu0
      %v954 = vadd.f32 0.0, %v953
      %v955 = vpop.f32.mrb[0].mxu0
      %v956 = vadd.f32 0.0, %v955
      %v957 = vpop.f32.mrb[0].mxu0
      %v958 = vadd.f32 0.0, %v957
      %v959 = vpop.f32.mrb[0].mxu0
      %v960 = vadd.f32 0.0, %v959
      %961 = vmatprep.mubr.bf16.mxu0 0
      %962 = vmatmul.mubr.bf16.gmra.mrb[0].mxu0 %v594
      %v963 = vpop.f32.mrb[0].mxu0
      %v964 = vadd.f32 0.0, %v963
      %v965 = vpop.f32.mrb[0].mxu0
      %v966 = vadd.f32 0.0, %v965
      %v967 = vpop.f32.mrb[0].mxu0
      %v968 = vadd.f32 0.0, %v967
      %v969 = vpop.f32.mrb[0].mxu0
      %v970 = vadd.f32 0.0, %v969
      %971 = vmatprep.mubr.bf16.mxu0 0
      %972 = vmatmul.mubr.bf16.gmra.mrb[0].mxu0 %v597
      %v973 = vpop.f32.mrb[0].mxu0
      %v974 = vadd.f32 0.0, %v973
      %v975 = vpop.f32.mrb[0].mxu0
      %v976 = vadd.f32 0.0, %v975
      %v977 = vpop.f32.mrb[0].mxu0
      %v978 = vadd.f32 0.0, %v977
      %v979 = vpop.f32.mrb[0].mxu0
      %v980 = vadd.f32 0.0, %v979
      %981 = vmatprep.mubr.bf16.mxu0 0
      %982 = vmatmul.mubr.bf16.gmra.mrb[0].mxu0 %v600
      %v983 = vpop.f32.mrb[0].mxu0
      %v984 = vadd.f32 0.0, %v983
      %v985 = vpop.f32.mrb[0].mxu0
      %v986 = vadd.f32 0.0, %v985
      %v987 = vpop.f32.mrb[0].mxu0
      %v988 = vadd.f32 0.0, %v987
      %v989 = vpop.f32.mrb[0].mxu0
      %v990 = vadd.f32 0.0, %v989
      %991 = vmatprep.mubr.bf16.mxu0 0
      %992 = vmatmul.mubr.bf16.gmra.mrb[0].mxu0 %v603
      %v993 = vpop.f32.mrb[0].mxu0
      %v994 = vadd.f32 0.0, %v993
      %v995 = vpop.f32.mrb[0].mxu0
      %v996 = vadd.f32 0.0, %v995
      %v997 = vpop.f32.mrb[0].mxu0
      %v998 = vadd.f32 0.0, %v997
      %v999 = vpop.f32.mrb[0].mxu0
      %v1000 = vadd.f32 0.0, %v999
      %1001 = vmatprep.mubr.bf16.mxu0 0
      %1002 = vmatmul.mubr.bf16.gmra.mrb[0].mxu0 %v606
      %v1003 = vpop.f32.mrb[0].mxu0
      %v1004 = vadd.f32 0.0, %v1003
      %v1005 = vpop.f32.mrb[0].mxu0
      %v1006 = vadd.f32 0.0, %v1005
      %v1007 = vpop.f32.mrb[0].mxu0
      %v1008 = vadd.f32 0.0, %v1007
      %v1009 = vpop.f32.mrb[0].mxu0
      %v1010 = vadd.f32 0.0, %v1009
      %1011 = vmatprep.mubr.bf16.mxu0 0
      %1012 = vmatmul.mubr.bf16.gmra.mrb[0].mxu0 %v609
      %v1013 = vpop.f32.mrb[0].mxu0
      %v1014 = vadd.f32 0.0, %v1013
      %v1015 = vpop.f32.mrb[0].mxu0
      %v1016 = vadd.f32 0.0, %v1015
      %v1017 = vpop.f32.mrb[0].mxu0
      %v1018 = vadd.f32 0.0, %v1017
      %v1019 = vpop.f32.mrb[0].mxu0
      %v1020 = vadd.f32 0.0, %v1019
      %1021 = vdwg.mxu0
      %1022 = vmatprep.subr.bf16.mxu0 %v527
      %1023 = vmatpush1.bf16.msra.mxu0 %v526
      %1024 = vmatprep.subr.bf16.mxu0 %v535
      %1025 = vmatpush1.bf16.msra.mxu0 %v534
      %1026 = vmatprep.subr.bf16.mxu0 %v628
      %1027 = vmatpush1.bf16.msra.mxu0 %v625
      %1028 = vmatprep.subr.bf16.mxu0 0
      %1029 = vmatpush1.bf16.msra.mxu0 0
      %1030 = vmatprep.subr.bf16.mxu0 0
      %1031 = vmatpush1.bf16.msra.mxu0 0
      %1032 = vmatprep.subr.bf16.mxu0 0
      %1033 = vmatpush1.bf16.msra.mxu0 0
      %1034 = vmatprep.subr.bf16.mxu0 0
      %1035 = vmatpush1.bf16.msra.mxu0 0
      %1036 = vmatprep.subr.bf16.mxu0 0
      %1037 = vmatpush1.bf16.msra.mxu0 0
      %1038 = vmatprep.subr.bf16.mxu0 0
      %1039 = vmatpush1.bf16.msra.mxu0 0
      %1040 = vmatprep.subr.bf16.mxu0 0
      %1041 = vmatpush1.bf16.msra.mxu0 0
      %1042 = vmatprep.subr.bf16.mxu0 0
      %1043 = vmatpush1.bf16.msra.mxu0 0
      %1044 = vmatprep.subr.bf16.mxu0 0
      %1045 = vmatpush1.bf16.msra.mxu0 0
      %1046 = vmatprep.subr.bf16.mxu0 0
      %1047 = vmatpush1.bf16.msra.mxu0 0
      %1048 = vmatprep.subr.bf16.mxu0 0
      %1049 = vmatpush1.bf16.msra.mxu0 0
      %1050 = vmatprep.subr.bf16.mxu0 0
      %1051 = vmatpush1.bf16.msra.mxu0 0
      %1052 = vmatprep.subr.bf16.mxu0 0
      %1053 = vmatpush1.bf16.msra.mxu0 0
      %1054 = vmatprep.mubr.bf16.mxu0 0
      %1055 = vmatmul.mubr.bf16.gmra.mrb[0].mxu0 %v564
      %v1056 = vpop.f32.mrb[0].mxu0
      %v1057 = vadd.f32 0.0, %v1056
      %v1058 = vpop.f32.mrb[0].mxu0
      %v1059 = vadd.f32 0.0, %v1058
      %v1060 = vpop.f32.mrb[0].mxu0
      %v1061 = vadd.f32 0.0, %v1060
      %v1062 = vpop.f32.mrb[0].mxu0
      %v1063 = vadd.f32 0.0, %v1062
      %1064 = vmatprep.mubr.bf16.mxu0 0
      %1065 = vmatmul.mubr.bf16.gmra.mrb[0].mxu0 %v567
      %v1066 = vpop.f32.mrb[0].mxu0
      %v1067 = vadd.f32 0.0, %v1066
      %v1068 = vpop.f32.mrb[0].mxu0
      %v1069 = vadd.f32 0.0, %v1068
      %v1070 = vpop.f32.mrb[0].mxu0
      %v1071 = vadd.f32 0.0, %v1070
      %v1072 = vpop.f32.mrb[0].mxu0
      %v1073 = vadd.f32 0.0, %v1072
      %1074 = vmatprep.mubr.bf16.mxu0 0
      %1075 = vmatmul.mubr.bf16.gmra.mrb[0].mxu0 %v570
      %v1076 = vpop.f32.mrb[0].mxu0
      %v1077 = vadd.f32 0.0, %v1076
      %v1078 = vpop.f32.mrb[0].mxu0
      %v1079 = vadd.f32 0.0, %v1078
      %v1080 = vpop.f32.mrb[0].mxu0
      %v1081 = vadd.f32 0.0, %v1080
      %v1082 = vpop.f32.mrb[0].mxu0
      %v1083 = vadd.f32 0.0, %v1082
      %1084 = vmatprep.mubr.bf16.mxu0 0
      %1085 = vmatmul.mubr.bf16.gmra.mrb[0].mxu0 %v573
      %v1086 = vpop.f32.mrb[0].mxu0
      %v1087 = vadd.f32 0.0, %v1086
      %v1088 = vpop.f32.mrb[0].mxu0
      %v1089 = vadd.f32 0.0, %v1088
      %v1090 = vpop.f32.mrb[0].mxu0
      %v1091 = vadd.f32 0.0, %v1090
      %v1092 = vpop.f32.mrb[0].mxu0
      %v1093 = vadd.f32 0.0, %v1092
      %1094 = vmatprep.mubr.bf16.mxu0 0
      %1095 = vmatmul.mubr.bf16.gmra.mrb[0].mxu0 %v576
      %v1096 = vpop.f32.mrb[0].mxu0
      %v1097 = vadd.f32 0.0, %v1096
      %v1098 = vpop.f32.mrb[0].mxu0
      %v1099 = vadd.f32 0.0, %v1098
      %v1100 = vpop.f32.mrb[0].mxu0
      %v1101 = vadd.f32 0.0, %v1100
      %v1102 = vpop.f32.mrb[0].mxu0
      %v1103 = vadd.f32 0.0, %v1102
      %1104 = vmatprep.mubr.bf16.mxu0 0
      %1105 = vmatmul.mubr.bf16.gmra.mrb[0].mxu0 %v579
      %v1106 = vpop.f32.mrb[0].mxu0
      %v1107 = vadd.f32 0.0, %v1106
      %v1108 = vpop.f32.mrb[0].mxu0
      %v1109 = vadd.f32 0.0, %v1108
      %v1110 = vpop.f32.mrb[0].mxu0
      %v1111 = vadd.f32 0.0, %v1110
      %v1112 = vpop.f32.mrb[0].mxu0
      %v1113 = vadd.f32 0.0, %v1112
      %1114 = vmatprep.mubr.bf16.mxu0 0
      %1115 = vmatmul.mubr.bf16.gmra.mrb[0].mxu0 %v582
      %v1116 = vpop.f32.mrb[0].mxu0
      %v1117 = vadd.f32 0.0, %v1116
      %v1118 = vpop.f32.mrb[0].mxu0
      %v1119 = vadd.f32 0.0, %v1118
      %v1120 = vpop.f32.mrb[0].mxu0
      %v1121 = vadd.f32 0.0, %v1120
      %v1122 = vpop.f32.mrb[0].mxu0
      %v1123 = vadd.f32 0.0, %v1122
      %1124 = vmatprep.mubr.bf16.mxu0 0
      %1125 = vmatmul.mubr.bf16.gmra.mrb[0].mxu0 %v585
      %v1126 = vpop.f32.mrb[0].mxu0
      %v1127 = vadd.f32 0.0, %v1126
      %v1128 = vpop.f32.mrb[0].mxu0
      %v1129 = vadd.f32 0.0, %v1128
      %v1130 = vpop.f32.mrb[0].mxu0
      %v1131 = vadd.f32 0.0, %v1130
      %v1132 = vpop.f32.mrb[0].mxu0
      %v1133 = vadd.f32 0.0, %v1132
      %1134 = vmatprep.mubr.bf16.mxu0 0
      %1135 = vmatmul.mubr.bf16.gmra.mrb[0].mxu0 %v588
      %v1136 = vpop.f32.mrb[0].mxu0
      %v1137 = vadd.f32 0.0, %v1136
      %v1138 = vpop.f32.mrb[0].mxu0
      %v1139 = vadd.f32 0.0, %v1138
      %v1140 = vpop.f32.mrb[0].mxu0
      %v1141 = vadd.f32 0.0, %v1140
      %v1142 = vpop.f32.mrb[0].mxu0
      %v1143 = vadd.f32 0.0, %v1142
      %1144 = vmatprep.mubr.bf16.mxu0 0
      %1145 = vmatmul.mubr.bf16.gmra.mrb[0].mxu0 %v591
      %v1146 = vpop.f32.mrb[0].mxu0
      %v1147 = vadd.f32 0.0, %v1146
      %v1148 = vpop.f32.mrb[0].mxu0
      %v1149 = vadd.f32 0.0, %v1148
      %v1150 = vpop.f32.mrb[0].mxu0
      %v1151 = vadd.f32 0.0, %v1150
      %v1152 = vpop.f32.mrb[0].mxu0
      %v1153 = vadd.f32 0.0, %v1152
      %1154 = vmatprep.mubr.bf16.mxu0 0
      %1155 = vmatmul.mubr.bf16.gmra.mrb[0].mxu0 %v594
      %v1156 = vpop.f32.mrb[0].mxu0
      %v1157 = vadd.f32 0.0, %v1156
      %v1158 = vpop.f32.mrb[0].mxu0
      %v1159 = vadd.f32 0.0, %v1158
      %v1160 = vpop.f32.mrb[0].mxu0
      %v1161 = vadd.f32 0.0, %v1160
      %v1162 = vpop.f32.mrb[0].mxu0
      %v1163 = vadd.f32 0.0, %v1162
      %1164 = vmatprep.mubr.bf16.mxu0 0
      %1165 = vmatmul.mubr.bf16.gmra.mrb[0].mxu0 %v597
      %v1166 = vpop.f32.mrb[0].mxu0
      %v1167 = vadd.f32 0.0, %v1166
      %v1168 = vpop.f32.mrb[0].mxu0
      %v1169 = vadd.f32 0.0, %v1168
      %v1170 = vpop.f32.mrb[0].mxu0
      %v1171 = vadd.f32 0.0, %v1170
      %v1172 = vpop.f32.mrb[0].mxu0
      %v1173 = vadd.f32 0.0, %v1172
      %1174 = vmatprep.mubr.bf16.mxu0 0
      %1175 = vmatmul.mubr.bf16.gmra.mrb[0].mxu0 %v600
      %v1176 = vpop.f32.mrb[0].mxu0
      %v1177 = vadd.f32 0.0, %v1176
      %v1178 = vpop.f32.mrb[0].mxu0
      %v1179 = vadd.f32 0.0, %v1178
      %v1180 = vpop.f32.mrb[0].mxu0
      %v1181 = vadd.f32 0.0, %v1180
      %v1182 = vpop.f32.mrb[0].mxu0
      %v1183 = vadd.f32 0.0, %v1182
      %1184 = vmatprep.mubr.bf16.mxu0 0
      %1185 = vmatmul.mubr.bf16.gmra.mrb[0].mxu0 %v603
      %v1186 = vpop.f32.mrb[0].mxu0
      %v1187 = vadd.f32 0.0, %v1186
      %v1188 = vpop.f32.mrb[0].mxu0
      %v1189 = vadd.f32 0.0, %v1188
      %v1190 = vpop.f32.mrb[0].mxu0
      %v1191 = vadd.f32 0.0, %v1190
      %v1192 = vpop.f32.mrb[0].mxu0
      %v1193 = vadd.f32 0.0, %v1192
      %1194 = vmatprep.mubr.bf16.mxu0 0
      %1195 = vmatmul.mubr.bf16.gmra.mrb[0].mxu0 %v606
      %v1196 = vpop.f32.mrb[0].mxu0
      %v1197 = vadd.f32 0.0, %v1196
      %v1198 = vpop.f32.mrb[0].mxu0
      %v1199 = vadd.f32 0.0, %v1198
      %v1200 = vpop.f32.mrb[0].mxu0
      %v1201 = vadd.f32 0.0, %v1200
      %v1202 = vpop.f32.mrb[0].mxu0
      %v1203 = vadd.f32 0.0, %v1202
      %1204 = vmatprep.mubr.bf16.mxu0 0
      %1205 = vmatmul.mubr.bf16.gmra.mrb[0].mxu0 %v609
      %v1206 = vpop.f32.mrb[0].mxu0
      %v1207 = vadd.f32 0.0, %v1206
      %v1208 = vpop.f32.mrb[0].mxu0
      %v1209 = vadd.f32 0.0, %v1208
      %v1210 = vpop.f32.mrb[0].mxu0
      %v1211 = vadd.f32 0.0, %v1210
      %v1212 = vpop.f32.mrb[0].mxu0
      %v1213 = vadd.f32 0.0, %v1212
      %1214 = vdwg.mxu0
      %1215 = vmatprep.subr.bf16.mxu0 %v529
      %1216 = vmatpush1.bf16.msra.mxu0 %v528
      %1217 = vmatprep.subr.bf16.mxu0 %v537
      %1218 = vmatpush1.bf16.msra.mxu0 %v536
      %1219 = vmatprep.subr.bf16.mxu0 %v634
      %1220 = vmatpush1.bf16.msra.mxu0 %v631
      %1221 = vmatprep.subr.bf16.mxu0 0
      %1222 = vmatpush1.bf16.msra.mxu0 0
      %1223 = vmatprep.subr.bf16.mxu0 0
      %1224 = vmatpush1.bf16.msra.mxu0 0
      %1225 = vmatprep.subr.bf16.mxu0 0
      %1226 = vmatpush1.bf16.msra.mxu0 0
      %1227 = vmatprep.subr.bf16.mxu0 0
      %1228 = vmatpush1.bf16.msra.mxu0 0
      %1229 = vmatprep.subr.bf16.mxu0 0
      %1230 = vmatpush1.bf16.msra.mxu0 0
      %1231 = vmatprep.subr.bf16.mxu0 0
      %1232 = vmatpush1.bf16.msra.mxu0 0
      %1233 = vmatprep.subr.bf16.mxu0 0
      %1234 = vmatpush1.bf16.msra.mxu0 0
      %1235 = vmatprep.subr.bf16.mxu0 0
      %1236 = vmatpush1.bf16.msra.mxu0 0
      %1237 = vmatprep.subr.bf16.mxu0 0
      %1238 = vmatpush1.bf16.msra.mxu0 0
      %1239 = vmatprep.subr.bf16.mxu0 0
      %1240 = vmatpush1.bf16.msra.mxu0 0
      %1241 = vmatprep.subr.bf16.mxu0 0
      %1242 = vmatpush1.bf16.msra.mxu0 0
      %1243 = vmatprep.subr.bf16.mxu0 0
      %1244 = vmatpush1.bf16.msra.mxu0 0
      %1245 = vmatprep.subr.bf16.mxu0 0
      %1246 = vmatpush1.bf16.msra.mxu0 0
      %1247 = vmatprep.mubr.bf16.mxu0 0
      %1248 = vmatmul.mubr.bf16.gmra.mrb[0].mxu0 %v564
      %v1249 = vpop.f32.mrb[0].mxu0
      %v1250 = vadd.f32 0.0, %v1249
      %v1251 = vpop.f32.mrb[0].mxu0
      %v1252 = vadd.f32 0.0, %v1251
      %v1253 = vpop.f32.mrb[0].mxu0
      %v1254 = vadd.f32 0.0, %v1253
      %v1255 = vpop.f32.mrb[0].mxu0
      %v1256 = vadd.f32 0.0, %v1255
      %1257 = vmatprep.mubr.bf16.mxu0 0
      %1258 = vmatmul.mubr.bf16.gmra.mrb[0].mxu0 %v567
      %v1259 = vpop.f32.mrb[0].mxu0
      %v1260 = vadd.f32 0.0, %v1259
      %v1261 = vpop.f32.mrb[0].mxu0
      %v1262 = vadd.f32 0.0, %v1261
      %v1263 = vpop.f32.mrb[0].mxu0
      %v1264 = vadd.f32 0.0, %v1263
      %v1265 = vpop.f32.mrb[0].mxu0
      %v1266 = vadd.f32 0.0, %v1265
      %1267 = vmatprep.mubr.bf16.mxu0 0
      %1268 = vmatmul.mubr.bf16.gmra.mrb[0].mxu0 %v570
      %v1269 = vpop.f32.mrb[0].mxu0
      %v1270 = vadd.f32 0.0, %v1269
      %v1271 = vpop.f32.mrb[0].mxu0
      %v1272 = vadd.f32 0.0, %v1271
      %v1273 = vpop.f32.mrb[0].mxu0
      %v1274 = vadd.f32 0.0, %v1273
      %v1275 = vpop.f32.mrb[0].mxu0
      %v1276 = vadd.f32 0.0, %v1275
      %1277 = vmatprep.mubr.bf16.mxu0 0
      %1278 = vmatmul.mubr.bf16.gmra.mrb[0].mxu0 %v573
      %v1279 = vpop.f32.mrb[0].mxu0
      %v1280 = vadd.f32 0.0, %v1279
      %v1281 = vpop.f32.mrb[0].mxu0
      %v1282 = vadd.f32 0.0, %v1281
      %v1283 = vpop.f32.mrb[0].mxu0
      %v1284 = vadd.f32 0.0, %v1283
      %v1285 = vpop.f32.mrb[0].mxu0
      %v1286 = vadd.f32 0.0, %v1285
      %1287 = vmatprep.mubr.bf16.mxu0 0
      %1288 = vmatmul.mubr.bf16.gmra.mrb[0].mxu0 %v576
      %v1289 = vpop.f32.mrb[0].mxu0
      %v1290 = vadd.f32 0.0, %v1289
      %v1291 = vpop.f32.mrb[0].mxu0
      %v1292 = vadd.f32 0.0, %v1291
      %v1293 = vpop.f32.mrb[0].mxu0
      %v1294 = vadd.f32 0.0, %v1293
      %v1295 = vpop.f32.mrb[0].mxu0
      %v1296 = vadd.f32 0.0, %v1295
      %1297 = vmatprep.mubr.bf16.mxu0 0
      %1298 = vmatmul.mubr.bf16.gmra.mrb[0].mxu0 %v579
      %v1299 = vpop.f32.mrb[0].mxu0
      %v1300 = vadd.f32 0.0, %v1299
      %v1301 = vpop.f32.mrb[0].mxu0
      %v1302 = vadd.f32 0.0, %v1301
      %v1303 = vpop.f32.mrb[0].mxu0
      %v1304 = vadd.f32 0.0, %v1303
      %v1305 = vpop.f32.mrb[0].mxu0
      %v1306 = vadd.f32 0.0, %v1305
      %1307 = vmatprep.mubr.bf16.mxu0 0
      %1308 = vmatmul.mubr.bf16.gmra.mrb[0].mxu0 %v582
      %v1309 = vpop.f32.mrb[0].mxu0
      %v1310 = vadd.f32 0.0, %v1309
      %v1311 = vpop.f32.mrb[0].mxu0
      %v1312 = vadd.f32 0.0, %v1311
      %v1313 = vpop.f32.mrb[0].mxu0
      %v1314 = vadd.f32 0.0, %v1313
      %v1315 = vpop.f32.mrb[0].mxu0
      %v1316 = vadd.f32 0.0, %v1315
      %1317 = vmatprep.mubr.bf16.mxu0 0
      %1318 = vmatmul.mubr.bf16.gmra.mrb[0].mxu0 %v585
      %v1319 = vpop.f32.mrb[0].mxu0
      %v1320 = vadd.f32 0.0, %v1319
      %v1321 = vpop.f32.mrb[0].mxu0
      %v1322 = vadd.f32 0.0, %v1321
      %v1323 = vpop.f32.mrb[0].mxu0
      %v1324 = vadd.f32 0.0, %v1323
      %v1325 = vpop.f32.mrb[0].mxu0
      %v1326 = vadd.f32 0.0, %v1325
      %1327 = vmatprep.mubr.bf16.mxu0 0
      %1328 = vmatmul.mubr.bf16.gmra.mrb[0].mxu0 %v588
      %v1329 = vpop.f32.mrb[0].mxu0
      %v1330 = vadd.f32 0.0, %v1329
      %v1331 = vpop.f32.mrb[0].mxu0
      %v1332 = vadd.f32 0.0, %v1331
      %v1333 = vpop.f32.mrb[0].mxu0
      %v1334 = vadd.f32 0.0, %v1333
      %v1335 = vpop.f32.mrb[0].mxu0
      %v1336 = vadd.f32 0.0, %v1335
      %1337 = vmatprep.mubr.bf16.mxu0 0
      %1338 = vmatmul.mubr.bf16.gmra.mrb[0].mxu0 %v591
      %v1339 = vpop.f32.mrb[0].mxu0
      %v1340 = vadd.f32 0.0, %v1339
      %v1341 = vpop.f32.mrb[0].mxu0
      %v1342 = vadd.f32 0.0, %v1341
      %v1343 = vpop.f32.mrb[0].mxu0
      %v1344 = vadd.f32 0.0, %v1343
      %v1345 = vpop.f32.mrb[0].mxu0
      %v1346 = vadd.f32 0.0, %v1345
      %1347 = vmatprep.mubr.bf16.mxu0 0
      %1348 = vmatmul.mubr.bf16.gmra.mrb[0].mxu0 %v594
      %v1349 = vpop.f32.mrb[0].mxu0
      %v1350 = vadd.f32 0.0, %v1349
      %v1351 = vpop.f32.mrb[0].mxu0
      %v1352 = vadd.f32 0.0, %v1351
      %v1353 = vpop.f32.mrb[0].mxu0
      %v1354 = vadd.f32 0.0, %v1353
      %v1355 = vpop.f32.mrb[0].mxu0
      %v1356 = vadd.f32 0.0, %v1355
      %1357 = vmatprep.mubr.bf16.mxu0 0
      %1358 = vmatmul.mubr.bf16.gmra.mrb[0].mxu0 %v597
      %v1359 = vpop.f32.mrb[0].mxu0
      %v1360 = vadd.f32 0.0, %v1359
      %v1361 = vpop.f32.mrb[0].mxu0
      %v1362 = vadd.f32 0.0, %v1361
      %v1363 = vpop.f32.mrb[0].mxu0
      %v1364 = vadd.f32 0.0, %v1363
      %v1365 = vpop.f32.mrb[0].mxu0
      %v1366 = vadd.f32 0.0, %v1365
      %1367 = vmatprep.mubr.bf16.mxu0 0
      %1368 = vmatmul.mubr.bf16.gmra.mrb[0].mxu0 %v600
      %v1369 = vpop.f32.mrb[0].mxu0
      %v1370 = vadd.f32 0.0, %v1369
      %v1371 = vpop.f32.mrb[0].mxu0
      %v1372 = vadd.f32 0.0, %v1371
      %v1373 = vpop.f32.mrb[0].mxu0
      %v1374 = vadd.f32 0.0, %v1373
      %v1375 = vpop.f32.mrb[0].mxu0
      %v1376 = vadd.f32 0.0, %v1375
      %1377 = vmatprep.mubr.bf16.mxu0 0
      %1378 = vmatmul.mubr.bf16.gmra.mrb[0].mxu0 %v603
      %v1379 = vpop.f32.mrb[0].mxu0
      %v1380 = vadd.f32 0.0, %v1379
      %v1381 = vpop.f32.mrb[0].mxu0
      %v1382 = vadd.f32 0.0, %v1381
      %v1383 = vpop.f32.mrb[0].mxu0
      %v1384 = vadd.f32 0.0, %v1383
      %v1385 = vpop.f32.mrb[0].mxu0
      %v1386 = vadd.f32 0.0, %v1385
      %1387 = vmatprep.mubr.bf16.mxu0 0
      %1388 = vmatmul.mubr.bf16.gmra.mrb[0].mxu0 %v606
      %v1389 = vpop.f32.mrb[0].mxu0
      %v1390 = vadd.f32 0.0, %v1389
      %v1391 = vpop.f32.mrb[0].mxu0
      %v1392 = vadd.f32 0.0, %v1391
      %v1393 = vpop.f32.mrb[0].mxu0
      %v1394 = vadd.f32 0.0, %v1393
      %v1395 = vpop.f32.mrb[0].mxu0
      %v1396 = vadd.f32 0.0, %v1395
      %1397 = vmatprep.mubr.bf16.mxu0 0
      %1398 = vmatmul.mubr.bf16.gmra.mrb[0].mxu0 %v609
      %v1399 = vpop.f32.mrb[0].mxu0
      %v1400 = vadd.f32 0.0, %v1399
      %v1401 = vpop.f32.mrb[0].mxu0
      %v1402 = vadd.f32 0.0, %v1401
      %v1403 = vpop.f32.mrb[0].mxu0
      %v1404 = vadd.f32 0.0, %v1403
      %v1405 = vpop.f32.mrb[0].mxu0
      %v1406 = vadd.f32 0.0, %v1405
      %1407 = vdwg.mxu0
      %v1408 = vmul.f32 %v671, 10.0
      %v1409 = vmul.f32 %v673, 10.0
      %v1410 = vmul.f32 %v864, 10.0
      %v1411 = vmul.f32 %v866, 10.0
      %v1412 = vmul.f32 %v1057, 10.0
      %v1413 = vmul.f32 %v1059, 10.0
      %v1414 = vmul.f32 %v1250, 10.0
      %v1415 = vmul.f32 %v1252, 10.0
      %v1416 = vmul.f32 %v675, 10.0
      %v1417 = vmul.f32 %v677, 10.0
      %v1418 = vmul.f32 %v868, 10.0
      %v1419 = vmul.f32 %v870, 10.0
      %v1420 = vmul.f32 %v1061, 10.0
      %v1421 = vmul.f32 %v1063, 10.0
      %v1422 = vmul.f32 %v1254, 10.0
      %v1423 = vmul.f32 %v1256, 10.0
      %v1424 = vmul.f32 %v681, 10.0
      %v1425 = vmul.f32 %v683, 10.0
      %v1426 = vmul.f32 %v874, 10.0
      %v1427 = vmul.f32 %v876, 10.0
      %v1428 = vmul.f32 %v1067, 10.0
      %v1429 = vmul.f32 %v1069, 10.0
      %v1430 = vmul.f32 %v1260, 10.0
      %v1431 = vmul.f32 %v1262, 10.0
      %v1432 = vmul.f32 %v685, 10.0
      %v1433 = vmul.f32 %v687, 10.0
      %v1434 = vmul.f32 %v878, 10.0
      %v1435 = vmul.f32 %v880, 10.0
      %v1436 = vmul.f32 %v1071, 10.0
      %v1437 = vmul.f32 %v1073, 10.0
      %v1438 = vmul.f32 %v1264, 10.0
      %v1439 = vmul.f32 %v1266, 10.0
      %v1440 = vmul.f32 %v691, 10.0
      %v1441 = vmul.f32 %v693, 10.0
      %v1442 = vmul.f32 %v884, 10.0
      %v1443 = vmul.f32 %v886, 10.0
      %v1444 = vmul.f32 %v1077, 10.0
      %v1445 = vmul.f32 %v1079, 10.0
      %v1446 = vmul.f32 %v1270, 10.0
      %v1447 = vmul.f32 %v1272, 10.0
      %v1448 = vmul.f32 %v695, 10.0
      %v1449 = vmul.f32 %v697, 10.0
      %v1450 = vmul.f32 %v888, 10.0
      %v1451 = vmul.f32 %v890, 10.0
      %v1452 = vmul.f32 %v1081, 10.0
      %v1453 = vmul.f32 %v1083, 10.0
      %v1454 = vmul.f32 %v1274, 10.0
      %v1455 = vmul.f32 %v1276, 10.0
      %v1456 = vmul.f32 %v701, 10.0
      %v1457 = vmul.f32 %v703, 10.0
      %v1458 = vmul.f32 %v894, 10.0
      %v1459 = vmul.f32 %v896, 10.0
      %v1460 = vmul.f32 %v1087, 10.0
      %v1461 = vmul.f32 %v1089, 10.0
      %v1462 = vmul.f32 %v1280, 10.0
      %v1463 = vmul.f32 %v1282, 10.0
      %v1464 = vmul.f32 %v705, 10.0
      %v1465 = vmul.f32 %v707, 10.0
      %v1466 = vmul.f32 %v898, 10.0
      %v1467 = vmul.f32 %v900, 10.0
      %v1468 = vmul.f32 %v1091, 10.0
      %v1469 = vmul.f32 %v1093, 10.0
      %v1470 = vmul.f32 %v1284, 10.0
      %v1471 = vmul.f32 %v1286, 10.0
      %v1472 = vmul.f32 %v711, 10.0
      %v1473 = vmul.f32 %v713, 10.0
      %v1474 = vmul.f32 %v904, 10.0
      %v1475 = vmul.f32 %v906, 10.0
      %v1476 = vmul.f32 %v1097, 10.0
      %v1477 = vmul.f32 %v1099, 10.0
      %v1478 = vmul.f32 %v1290, 10.0
      %v1479 = vmul.f32 %v1292, 10.0
      %v1480 = vmul.f32 %v715, 10.0
      %v1481 = vmul.f32 %v717, 10.0
      %v1482 = vmul.f32 %v908, 10.0
      %v1483 = vmul.f32 %v910, 10.0
      %v1484 = vmul.f32 %v1101, 10.0
      %v1485 = vmul.f32 %v1103, 10.0
      %v1486 = vmul.f32 %v1294, 10.0
      %v1487 = vmul.f32 %v1296, 10.0
      %v1488 = vmul.f32 %v721, 10.0
      %v1489 = vmul.f32 %v723, 10.0
      %v1490 = vmul.f32 %v914, 10.0
      %v1491 = vmul.f32 %v916, 10.0
      %v1492 = vmul.f32 %v1107, 10.0
      %v1493 = vmul.f32 %v1109, 10.0
      %v1494 = vmul.f32 %v1300, 10.0
      %v1495 = vmul.f32 %v1302, 10.0
      %v1496 = vmul.f32 %v725, 10.0
      %v1497 = vmul.f32 %v727, 10.0
      %v1498 = vmul.f32 %v918, 10.0
      %v1499 = vmul.f32 %v920, 10.0
      %v1500 = vmul.f32 %v1111, 10.0
      %v1501 = vmul.f32 %v1113, 10.0
      %v1502 = vmul.f32 %v1304, 10.0
      %v1503 = vmul.f32 %v1306, 10.0
      %v1504 = vmul.f32 %v731, 10.0
      %v1505 = vmul.f32 %v733, 10.0
      %v1506 = vmul.f32 %v924, 10.0
      %v1507 = vmul.f32 %v926, 10.0
      %v1508 = vmul.f32 %v1117, 10.0
      %v1509 = vmul.f32 %v1119, 10.0
      %v1510 = vmul.f32 %v1310, 10.0
      %v1511 = vmul.f32 %v1312, 10.0
      %v1512 = vmul.f32 %v735, 10.0
      %v1513 = vmul.f32 %v737, 10.0
      %v1514 = vmul.f32 %v928, 10.0
      %v1515 = vmul.f32 %v930, 10.0
      %v1516 = vmul.f32 %v1121, 10.0
      %v1517 = vmul.f32 %v1123, 10.0
      %v1518 = vmul.f32 %v1314, 10.0
      %v1519 = vmul.f32 %v1316, 10.0
      %v1520 = vmul.f32 %v741, 10.0
      %v1521 = vmul.f32 %v743, 10.0
      %v1522 = vmul.f32 %v934, 10.0
      %v1523 = vmul.f32 %v936, 10.0
      %v1524 = vmul.f32 %v1127, 10.0
      %v1525 = vmul.f32 %v1129, 10.0
      %v1526 = vmul.f32 %v1320, 10.0
      %v1527 = vmul.f32 %v1322, 10.0
      %v1528 = vmul.f32 %v745, 10.0
      %v1529 = vmul.f32 %v747, 10.0
      %v1530 = vmul.f32 %v938, 10.0
      %v1531 = vmul.f32 %v940, 10.0
      %v1532 = vmul.f32 %v1131, 10.0
      %v1533 = vmul.f32 %v1133, 10.0
      %v1534 = vmul.f32 %v1324, 10.0
      %v1535 = vmul.f32 %v1326, 10.0
      %v1536 = vmul.f32 %v751, 10.0
      %v1537 = vmul.f32 %v753, 10.0
      %v1538 = vmul.f32 %v944, 10.0
      %v1539 = vmul.f32 %v946, 10.0
      %v1540 = vmul.f32 %v1137, 10.0
      %v1541 = vmul.f32 %v1139, 10.0
      %v1542 = vmul.f32 %v1330, 10.0
      %v1543 = vmul.f32 %v1332, 10.0
      %v1544 = vmul.f32 %v755, 10.0
      %v1545 = vmul.f32 %v757, 10.0
      %v1546 = vmul.f32 %v948, 10.0
      %v1547 = vmul.f32 %v950, 10.0
      %v1548 = vmul.f32 %v1141, 10.0
      %v1549 = vmul.f32 %v1143, 10.0
      %v1550 = vmul.f32 %v1334, 10.0
      %v1551 = vmul.f32 %v1336, 10.0
      %v1552 = vmul.f32 %v761, 10.0
      %v1553 = vmul.f32 %v763, 10.0
      %v1554 = vmul.f32 %v954, 10.0
      %v1555 = vmul.f32 %v956, 10.0
      %v1556 = vmul.f32 %v1147, 10.0
      %v1557 = vmul.f32 %v1149, 10.0
      %v1558 = vmul.f32 %v1340, 10.0
      %v1559 = vmul.f32 %v1342, 10.0
      %v1560 = vmul.f32 %v765, 10.0
      %v1561 = vmul.f32 %v767, 10.0
      %v1562 = vmul.f32 %v958, 10.0
      %v1563 = vmul.f32 %v960, 10.0
      %v1564 = vmul.f32 %v1151, 10.0
      %v1565 = vmul.f32 %v1153, 10.0
      %v1566 = vmul.f32 %v1344, 10.0
      %v1567 = vmul.f32 %v1346, 10.0
      %v1568 = vmul.f32 %v771, 10.0
      %v1569 = vmul.f32 %v773, 10.0
      %v1570 = vmul.f32 %v964, 10.0
      %v1571 = vmul.f32 %v966, 10.0
      %v1572 = vmul.f32 %v1157, 10.0
      %v1573 = vmul.f32 %v1159, 10.0
      %v1574 = vmul.f32 %v1350, 10.0
      %v1575 = vmul.f32 %v1352, 10.0
      %v1576 = vmul.f32 %v775, 10.0
      %v1577 = vmul.f32 %v777, 10.0
      %v1578 = vmul.f32 %v968, 10.0
      %v1579 = vmul.f32 %v970, 10.0
      %v1580 = vmul.f32 %v1161, 10.0
      %v1581 = vmul.f32 %v1163, 10.0
      %v1582 = vmul.f32 %v1354, 10.0
      %v1583 = vmul.f32 %v1356, 10.0
      %v1584 = vmul.f32 %v781, 10.0
      %v1585 = vmul.f32 %v783, 10.0
      %v1586 = vmul.f32 %v974, 10.0
      %v1587 = vmul.f32 %v976, 10.0
      %v1588 = vmul.f32 %v1167, 10.0
      %v1589 = vmul.f32 %v1169, 10.0
      %v1590 = vmul.f32 %v1360, 10.0
      %v1591 = vmul.f32 %v1362, 10.0
      %v1592 = vmul.f32 %v785, 10.0
      %v1593 = vmul.f32 %v787, 10.0
      %v1594 = vmul.f32 %v978, 10.0
      %v1595 = vmul.f32 %v980, 10.0
      %v1596 = vmul.f32 %v1171, 10.0
      %v1597 = vmul.f32 %v1173, 10.0
      %v1598 = vmul.f32 %v1364, 10.0
      %v1599 = vmul.f32 %v1366, 10.0
      %v1600 = vmul.f32 %v791, 10.0
      %v1601 = vmul.f32 %v793, 10.0
      %v1602 = vmul.f32 %v984, 10.0
      %v1603 = vmul.f32 %v986, 10.0
      %v1604 = vmul.f32 %v1177, 10.0
      %v1605 = vmul.f32 %v1179, 10.0
      %v1606 = vmul.f32 %v1370, 10.0
      %v1607 = vmul.f32 %v1372, 10.0
      %v1608 = vmul.f32 %v795, 10.0
      %v1609 = vmul.f32 %v797, 10.0
      %v1610 = vmul.f32 %v988, 10.0
      %v1611 = vmul.f32 %v990, 10.0
      %v1612 = vmul.f32 %v1181, 10.0
      %v1613 = vmul.f32 %v1183, 10.0
      %v1614 = vmul.f32 %v1374, 10.0
      %v1615 = vmul.f32 %v1376, 10.0
      %v1616 = vmul.f32 %v801, 10.0
      %v1617 = vmul.f32 %v803, 10.0
      %v1618 = vmul.f32 %v994, 10.0
      %v1619 = vmul.f32 %v996, 10.0
      %v1620 = vmul.f32 %v1187, 10.0
      %v1621 = vmul.f32 %v1189, 10.0
      %v1622 = vmul.f32 %v1380, 10.0
      %v1623 = vmul.f32 %v1382, 10.0
      %v1624 = vmul.f32 %v805, 10.0
      %v1625 = vmul.f32 %v807, 10.0
      %v1626 = vmul.f32 %v998, 10.0
      %v1627 = vmul.f32 %v1000, 10.0
      %v1628 = vmul.f32 %v1191, 10.0
      %v1629 = vmul.f32 %v1193, 10.0
      %v1630 = vmul.f32 %v1384, 10.0
      %v1631 = vmul.f32 %v1386, 10.0
      %v1632 = vmul.f32 %v811, 10.0
      %v1633 = vmul.f32 %v813, 10.0
      %v1634 = vmul.f32 %v1004, 10.0
      %v1635 = vmul.f32 %v1006, 10.0
      %v1636 = vmul.f32 %v1197, 10.0
      %v1637 = vmul.f32 %v1199, 10.0
      %v1638 = vmul.f32 %v1390, 10.0
      %v1639 = vmul.f32 %v1392, 10.0
      %v1640 = vmul.f32 %v815, 10.0
      %v1641 = vmul.f32 %v817, 10.0
      %v1642 = vmul.f32 %v1008, 10.0
      %v1643 = vmul.f32 %v1010, 10.0
      %v1644 = vmul.f32 %v1201, 10.0
      %v1645 = vmul.f32 %v1203, 10.0
      %v1646 = vmul.f32 %v1394, 10.0
      %v1647 = vmul.f32 %v1396, 10.0
      %v1648 = vmul.f32 %v821, 10.0
      %v1649 = vmul.f32 %v823, 10.0
      %v1650 = vmul.f32 %v1014, 10.0
      %v1651 = vmul.f32 %v1016, 10.0
      %v1652 = vmul.f32 %v1207, 10.0
      %v1653 = vmul.f32 %v1209, 10.0
      %v1654 = vmul.f32 %v1400, 10.0
      %v1655 = vmul.f32 %v1402, 10.0
      %v1656 = vmul.f32 %v825, 10.0
      %v1657 = vmul.f32 %v827, 10.0
      %v1658 = vmul.f32 %v1018, 10.0
      %v1659 = vmul.f32 %v1020, 10.0
      %v1660 = vmul.f32 %v1211, 10.0
      %v1661 = vmul.f32 %v1213, 10.0
      %v1662 = vmul.f32 %v1404, 10.0
      %v1663 = vmul.f32 %v1406, 10.0
      %v1664 = vmax.f32 %v1408, %v1409
      %v1665 = vmax.f32 %v1664, %v1410
      %v1666 = vmax.f32 %v1665, %v1411
      %v1667 = vmax.f32 %v1666, %v1412
      %v1668 = vmax.f32 %v1667, %v1413
      %v1669 = vmax.f32 %v1668, %v1414
      %v1670 = vmax.f32 %v1669, %v1415
      %1671 = vmax.xlane.f32.xlu0 %v1670
      %v1672 = vpop.xlane.xlu0 %1671
      %v1673 = vmax.f32 %v1416, %v1417
      %v1674 = vmax.f32 %v1673, %v1418
      %v1675 = vmax.f32 %v1674, %v1419
      %v1676 = vmax.f32 %v1675, %v1420
      %v1677 = vmax.f32 %v1676, %v1421
      %v1678 = vmax.f32 %v1677, %v1422
      %v1679 = vmax.f32 %v1678, %v1423
      %1680 = vmax.xlane.f32.xlu0 %v1679
      %v1681 = vpop.xlane.xlu0 %1680
      %v1682 = vmax.f32 %v1424, %v1425
      %v1683 = vmax.f32 %v1682, %v1426
      %v1684 = vmax.f32 %v1683, %v1427
      %v1685 = vmax.f32 %v1684, %v1428
      %v1686 = vmax.f32 %v1685, %v1429
      %v1687 = vmax.f32 %v1686, %v1430
      %v1688 = vmax.f32 %v1687, %v1431
      %1689 = vmax.xlane.f32.xlu0 %v1688
      %v1690 = vpop.xlane.xlu0 %1689
      %v1691 = vmax.f32 %v1432, %v1433
      %v1692 = vmax.f32 %v1691, %v1434
      %v1693 = vmax.f32 %v1692, %v1435
      %v1694 = vmax.f32 %v1693, %v1436
      %v1695 = vmax.f32 %v1694, %v1437
      %v1696 = vmax.f32 %v1695, %v1438
      %v1697 = vmax.f32 %v1696, %v1439
      %1698 = vmax.xlane.f32.xlu0 %v1697
      %v1699 = vpop.xlane.xlu0 %1698
      %v1700 = vmax.f32 %v1440, %v1441
      %v1701 = vmax.f32 %v1700, %v1442
      %v1702 = vmax.f32 %v1701, %v1443
      %v1703 = vmax.f32 %v1702, %v1444
      %v1704 = vmax.f32 %v1703, %v1445
      %v1705 = vmax.f32 %v1704, %v1446
      %v1706 = vmax.f32 %v1705, %v1447
      %1707 = vmax.xlane.f32.xlu0 %v1706
      %v1708 = vpop.xlane.xlu0 %1707
      %v1709 = vmax.f32 %v1448, %v1449
      %v1710 = vmax.f32 %v1709, %v1450
      %v1711 = vmax.f32 %v1710, %v1451
      %v1712 = vmax.f32 %v1711, %v1452
      %v1713 = vmax.f32 %v1712, %v1453
      %v1714 = vmax.f32 %v1713, %v1454
      %v1715 = vmax.f32 %v1714, %v1455
      %1716 = vmax.xlane.f32.xlu0 %v1715
      %v1717 = vpop.xlane.xlu0 %1716
      %v1718 = vmax.f32 %v1456, %v1457
      %v1719 = vmax.f32 %v1718, %v1458
      %v1720 = vmax.f32 %v1719, %v1459
      %v1721 = vmax.f32 %v1720, %v1460
      %v1722 = vmax.f32 %v1721, %v1461
      %v1723 = vmax.f32 %v1722, %v1462
      %v1724 = vmax.f32 %v1723, %v1463
      %1725 = vmax.xlane.f32.xlu0 %v1724
      %v1726 = vpop.xlane.xlu0 %1725
      %v1727 = vmax.f32 %v1464, %v1465
      %v1728 = vmax.f32 %v1727, %v1466
      %v1729 = vmax.f32 %v1728, %v1467
      %v1730 = vmax.f32 %v1729, %v1468
      %v1731 = vmax.f32 %v1730, %v1469
      %v1732 = vmax.f32 %v1731, %v1470
      %v1733 = vmax.f32 %v1732, %v1471
      %1734 = vmax.xlane.f32.xlu0 %v1733
      %v1735 = vpop.xlane.xlu0 %1734
      %v1736 = vmax.f32 %v1472, %v1473
      %v1737 = vmax.f32 %v1736, %v1474
      %v1738 = vmax.f32 %v1737, %v1475
      %v1739 = vmax.f32 %v1738, %v1476
      %v1740 = vmax.f32 %v1739, %v1477
      %v1741 = vmax.f32 %v1740, %v1478
      %v1742 = vmax.f32 %v1741, %v1479
      %1743 = vmax.xlane.f32.xlu0 %v1742
      %v1744 = vpop.xlane.xlu0 %1743
      %v1745 = vmax.f32 %v1480, %v1481
      %v1746 = vmax.f32 %v1745, %v1482
      %v1747 = vmax.f32 %v1746, %v1483
      %v1748 = vmax.f32 %v1747, %v1484
      %v1749 = vmax.f32 %v1748, %v1485
      %v1750 = vmax.f32 %v1749, %v1486
      %v1751 = vmax.f32 %v1750, %v1487
      %1752 = vmax.xlane.f32.xlu0 %v1751
      %v1753 = vpop.xlane.xlu0 %1752
      %v1754 = vmax.f32 %v1488, %v1489
      %v1755 = vmax.f32 %v1754, %v1490
      %v1756 = vmax.f32 %v1755, %v1491
      %v1757 = vmax.f32 %v1756, %v1492
      %v1758 = vmax.f32 %v1757, %v1493
      %v1759 = vmax.f32 %v1758, %v1494
      %v1760 = vmax.f32 %v1759, %v1495
      %1761 = vmax.xlane.f32.xlu0 %v1760
      %v1762 = vpop.xlane.xlu0 %1761
      %v1763 = vmax.f32 %v1496, %v1497
      %v1764 = vmax.f32 %v1763, %v1498
      %v1765 = vmax.f32 %v1764, %v1499
      %v1766 = vmax.f32 %v1765, %v1500
      %v1767 = vmax.f32 %v1766, %v1501
      %v1768 = vmax.f32 %v1767, %v1502
      %v1769 = vmax.f32 %v1768, %v1503
      %1770 = vmax.xlane.f32.xlu0 %v1769
      %v1771 = vpop.xlane.xlu0 %1770
      %v1772 = vmax.f32 %v1504, %v1505
      %v1773 = vmax.f32 %v1772, %v1506
      %v1774 = vmax.f32 %v1773, %v1507
      %v1775 = vmax.f32 %v1774, %v1508
      %v1776 = vmax.f32 %v1775, %v1509
      %v1777 = vmax.f32 %v1776, %v1510
      %v1778 = vmax.f32 %v1777, %v1511
      %1779 = vmax.xlane.f32.xlu0 %v1778
      %v1780 = vpop.xlane.xlu0 %1779
      %v1781 = vmax.f32 %v1512, %v1513
      %v1782 = vmax.f32 %v1781, %v1514
      %v1783 = vmax.f32 %v1782, %v1515
      %v1784 = vmax.f32 %v1783, %v1516
      %v1785 = vmax.f32 %v1784, %v1517
      %v1786 = vmax.f32 %v1785, %v1518
      %v1787 = vmax.f32 %v1786, %v1519
      %1788 = vmax.xlane.f32.xlu0 %v1787
      %v1789 = vpop.xlane.xlu0 %1788
      %v1790 = vmax.f32 %v1520, %v1521
      %v1791 = vmax.f32 %v1790, %v1522
      %v1792 = vmax.f32 %v1791, %v1523
      %v1793 = vmax.f32 %v1792, %v1524
      %v1794 = vmax.f32 %v1793, %v1525
      %v1795 = vmax.f32 %v1794, %v1526
      %v1796 = vmax.f32 %v1795, %v1527
      %1797 = vmax.xlane.f32.xlu0 %v1796
      %v1798 = vpop.xlane.xlu0 %1797
      %v1799 = vmax.f32 %v1528, %v1529
      %v1800 = vmax.f32 %v1799, %v1530
      %v1801 = vmax.f32 %v1800, %v1531
      %v1802 = vmax.f32 %v1801, %v1532
      %v1803 = vmax.f32 %v1802, %v1533
      %v1804 = vmax.f32 %v1803, %v1534
      %v1805 = vmax.f32 %v1804, %v1535
      %1806 = vmax.xlane.f32.xlu0 %v1805
      %v1807 = vpop.xlane.xlu0 %1806
      %v1808 = vmax.f32 %v1536, %v1537
      %v1809 = vmax.f32 %v1808, %v1538
      %v1810 = vmax.f32 %v1809, %v1539
      %v1811 = vmax.f32 %v1810, %v1540
      %v1812 = vmax.f32 %v1811, %v1541
      %v1813 = vmax.f32 %v1812, %v1542
      %v1814 = vmax.f32 %v1813, %v1543
      %1815 = vmax.xlane.f32.xlu0 %v1814
      %v1816 = vpop.xlane.xlu0 %1815
      %v1817 = vmax.f32 %v1544, %v1545
      %v1818 = vmax.f32 %v1817, %v1546
      %v1819 = vmax.f32 %v1818, %v1547
      %v1820 = vmax.f32 %v1819, %v1548
      %v1821 = vmax.f32 %v1820, %v1549
      %v1822 = vmax.f32 %v1821, %v1550
      %v1823 = vmax.f32 %v1822, %v1551
      %1824 = vmax.xlane.f32.xlu0 %v1823
      %v1825 = vpop.xlane.xlu0 %1824
      %v1826 = vmax.f32 %v1552, %v1553
      %v1827 = vmax.f32 %v1826, %v1554
      %v1828 = vmax.f32 %v1827, %v1555
      %v1829 = vmax.f32 %v1828, %v1556
      %v1830 = vmax.f32 %v1829, %v1557
      %v1831 = vmax.f32 %v1830, %v1558
      %v1832 = vmax.f32 %v1831, %v1559
      %1833 = vmax.xlane.f32.xlu0 %v1832
      %v1834 = vpop.xlane.xlu0 %1833
      %v1835 = vmax.f32 %v1560, %v1561
      %v1836 = vmax.f32 %v1835, %v1562
      %v1837 = vmax.f32 %v1836, %v1563
      %v1838 = vmax.f32 %v1837, %v1564
      %v1839 = vmax.f32 %v1838, %v1565
      %v1840 = vmax.f32 %v1839, %v1566
      %v1841 = vmax.f32 %v1840, %v1567
      %1842 = vmax.xlane.f32.xlu0 %v1841
      %v1843 = vpop.xlane.xlu0 %1842
      %v1844 = vmax.f32 %v1568, %v1569
      %v1845 = vmax.f32 %v1844, %v1570
      %v1846 = vmax.f32 %v1845, %v1571
      %v1847 = vmax.f32 %v1846, %v1572
      %v1848 = vmax.f32 %v1847, %v1573
      %v1849 = vmax.f32 %v1848, %v1574
      %v1850 = vmax.f32 %v1849, %v1575
      %1851 = vmax.xlane.f32.xlu0 %v1850
      %v1852 = vpop.xlane.xlu0 %1851
      %v1853 = vmax.f32 %v1576, %v1577
      %v1854 = vmax.f32 %v1853, %v1578
      %v1855 = vmax.f32 %v1854, %v1579
      %v1856 = vmax.f32 %v1855, %v1580
      %v1857 = vmax.f32 %v1856, %v1581
      %v1858 = vmax.f32 %v1857, %v1582
      %v1859 = vmax.f32 %v1858, %v1583
      %1860 = vmax.xlane.f32.xlu0 %v1859
      %v1861 = vpop.xlane.xlu0 %1860
      %v1862 = vmax.f32 %v1584, %v1585
      %v1863 = vmax.f32 %v1862, %v1586
      %v1864 = vmax.f32 %v1863, %v1587
      %v1865 = vmax.f32 %v1864, %v1588
      %v1866 = vmax.f32 %v1865, %v1589
      %v1867 = vmax.f32 %v1866, %v1590
      %v1868 = vmax.f32 %v1867, %v1591
      %1869 = vmax.xlane.f32.xlu0 %v1868
      %v1870 = vpop.xlane.xlu0 %1869
      %v1871 = vmax.f32 %v1592, %v1593
      %v1872 = vmax.f32 %v1871, %v1594
      %v1873 = vmax.f32 %v1872, %v1595
      %v1874 = vmax.f32 %v1873, %v1596
      %v1875 = vmax.f32 %v1874, %v1597
      %v1876 = vmax.f32 %v1875, %v1598
      %v1877 = vmax.f32 %v1876, %v1599
      %1878 = vmax.xlane.f32.xlu0 %v1877
      %v1879 = vpop.xlane.xlu0 %1878
      %v1880 = vmax.f32 %v1600, %v1601
      %v1881 = vmax.f32 %v1880, %v1602
      %v1882 = vmax.f32 %v1881, %v1603
      %v1883 = vmax.f32 %v1882, %v1604
      %v1884 = vmax.f32 %v1883, %v1605
      %v1885 = vmax.f32 %v1884, %v1606
      %v1886 = vmax.f32 %v1885, %v1607
      %1887 = vmax.xlane.f32.xlu0 %v1886
      %v1888 = vpop.xlane.xlu0 %1887
      %v1889 = vmax.f32 %v1608, %v1609
      %v1890 = vmax.f32 %v1889, %v1610
      %v1891 = vmax.f32 %v1890, %v1611
      %v1892 = vmax.f32 %v1891, %v1612
      %v1893 = vmax.f32 %v1892, %v1613
      %v1894 = vmax.f32 %v1893, %v1614
      %v1895 = vmax.f32 %v1894, %v1615
      %1896 = vmax.xlane.f32.xlu0 %v1895
      %v1897 = vpop.xlane.xlu0 %1896
      %v1898 = vmax.f32 %v1616, %v1617
      %v1899 = vmax.f32 %v1898, %v1618
      %v1900 = vmax.f32 %v1899, %v1619
      %v1901 = vmax.f32 %v1900, %v1620
      %v1902 = vmax.f32 %v1901, %v1621
      %v1903 = vmax.f32 %v1902, %v1622
      %v1904 = vmax.f32 %v1903, %v1623
      %1905 = vmax.xlane.f32.xlu0 %v1904
      %v1906 = vpop.xlane.xlu0 %1905
      %v1907 = vmax.f32 %v1624, %v1625
      %v1908 = vmax.f32 %v1907, %v1626
      %v1909 = vmax.f32 %v1908, %v1627
      %v1910 = vmax.f32 %v1909, %v1628
      %v1911 = vmax.f32 %v1910, %v1629
      %v1912 = vmax.f32 %v1911, %v1630
      %v1913 = vmax.f32 %v1912, %v1631
      %1914 = vmax.xlane.f32.xlu0 %v1913
      %v1915 = vpop.xlane.xlu0 %1914
      %v1916 = vmax.f32 %v1632, %v1633
      %v1917 = vmax.f32 %v1916, %v1634
      %v1918 = vmax.f32 %v1917, %v1635
      %v1919 = vmax.f32 %v1918, %v1636
      %v1920 = vmax.f32 %v1919, %v1637
      %v1921 = vmax.f32 %v1920, %v1638
      %v1922 = vmax.f32 %v1921, %v1639
      %1923 = vmax.xlane.f32.xlu0 %v1922
      %v1924 = vpop.xlane.xlu0 %1923
      %v1925 = vmax.f32 %v1640, %v1641
      %v1926 = vmax.f32 %v1925, %v1642
      %v1927 = vmax.f32 %v1926, %v1643
      %v1928 = vmax.f32 %v1927, %v1644
      %v1929 = vmax.f32 %v1928, %v1645
      %v1930 = vmax.f32 %v1929, %v1646
      %v1931 = vmax.f32 %v1930, %v1647
      %1932 = vmax.xlane.f32.xlu0 %v1931
      %v1933 = vpop.xlane.xlu0 %1932
      %v1934 = vmax.f32 %v1648, %v1649
      %v1935 = vmax.f32 %v1934, %v1650
      %v1936 = vmax.f32 %v1935, %v1651
      %v1937 = vmax.f32 %v1936, %v1652
      %v1938 = vmax.f32 %v1937, %v1653
      %v1939 = vmax.f32 %v1938, %v1654
      %v1940 = vmax.f32 %v1939, %v1655
      %1941 = vmax.xlane.f32.xlu0 %v1940
      %v1942 = vpop.xlane.xlu0 %1941
      %v1943 = vmax.f32 %v1656, %v1657
      %v1944 = vmax.f32 %v1943, %v1658
      %v1945 = vmax.f32 %v1944, %v1659
      %v1946 = vmax.f32 %v1945, %v1660
      %v1947 = vmax.f32 %v1946, %v1661
      %v1948 = vmax.f32 %v1947, %v1662
      %v1949 = vmax.f32 %v1948, %v1663
      %1950 = vmax.xlane.f32.xlu0 %v1949
      %v1951 = vpop.xlane.xlu0 %1950
      %v1952 = vsub.f32 %v1408, %v1672
      %v1953 = vsub.f32 %v1409, %v1672
      %v1954 = vsub.f32 %v1410, %v1672
      %v1955 = vsub.f32 %v1411, %v1672
      %v1956 = vsub.f32 %v1412, %v1672
      %v1957 = vsub.f32 %v1413, %v1672
      %v1958 = vsub.f32 %v1414, %v1672
      %v1959 = vsub.f32 %v1415, %v1672
      %v1960 = vsub.f32 %v1416, %v1681
      %v1961 = vsub.f32 %v1417, %v1681
      %v1962 = vsub.f32 %v1418, %v1681
      %v1963 = vsub.f32 %v1419, %v1681
      %v1964 = vsub.f32 %v1420, %v1681
      %v1965 = vsub.f32 %v1421, %v1681
      %v1966 = vsub.f32 %v1422, %v1681
      %v1967 = vsub.f32 %v1423, %v1681
      %v1968 = vsub.f32 %v1424, %v1690
      %v1969 = vsub.f32 %v1425, %v1690
      %v1970 = vsub.f32 %v1426, %v1690
      %v1971 = vsub.f32 %v1427, %v1690
      %v1972 = vsub.f32 %v1428, %v1690
      %v1973 = vsub.f32 %v1429, %v1690
      %v1974 = vsub.f32 %v1430, %v1690
      %v1975 = vsub.f32 %v1431, %v1690
      %v1976 = vsub.f32 %v1432, %v1699
      %v1977 = vsub.f32 %v1433, %v1699
      %v1978 = vsub.f32 %v1434, %v1699
      %v1979 = vsub.f32 %v1435, %v1699
      %v1980 = vsub.f32 %v1436, %v1699
      %v1981 = vsub.f32 %v1437, %v1699
      %v1982 = vsub.f32 %v1438, %v1699
      %v1983 = vsub.f32 %v1439, %v1699
      %v1984 = vsub.f32 %v1440, %v1708
      %v1985 = vsub.f32 %v1441, %v1708
      %v1986 = vsub.f32 %v1442, %v1708
      %v1987 = vsub.f32 %v1443, %v1708
      %v1988 = vsub.f32 %v1444, %v1708
      %v1989 = vsub.f32 %v1445, %v1708
      %v1990 = vsub.f32 %v1446, %v1708
      %v1991 = vsub.f32 %v1447, %v1708
      %v1992 = vsub.f32 %v1448, %v1717
      %v1993 = vsub.f32 %v1449, %v1717
      %v1994 = vsub.f32 %v1450, %v1717
      %v1995 = vsub.f32 %v1451, %v1717
      %v1996 = vsub.f32 %v1452, %v1717
      %v1997 = vsub.f32 %v1453, %v1717
      %v1998 = vsub.f32 %v1454, %v1717
      %v1999 = vsub.f32 %v1455, %v1717
      %v2000 = vsub.f32 %v1456, %v1726
      %v2001 = vsub.f32 %v1457, %v1726
      %v2002 = vsub.f32 %v1458, %v1726
      %v2003 = vsub.f32 %v1459, %v1726
      %v2004 = vsub.f32 %v1460, %v1726
      %v2005 = vsub.f32 %v1461, %v1726
      %v2006 = vsub.f32 %v1462, %v1726
      %v2007 = vsub.f32 %v1463, %v1726
      %v2008 = vsub.f32 %v1464, %v1735
      %v2009 = vsub.f32 %v1465, %v1735
      %v2010 = vsub.f32 %v1466, %v1735
      %v2011 = vsub.f32 %v1467, %v1735
      %v2012 = vsub.f32 %v1468, %v1735
      %v2013 = vsub.f32 %v1469, %v1735
      %v2014 = vsub.f32 %v1470, %v1735
      %v2015 = vsub.f32 %v1471, %v1735
      %v2016 = vsub.f32 %v1472, %v1744
      %v2017 = vsub.f32 %v1473, %v1744
      %v2018 = vsub.f32 %v1474, %v1744
      %v2019 = vsub.f32 %v1475, %v1744
      %v2020 = vsub.f32 %v1476, %v1744
      %v2021 = vsub.f32 %v1477, %v1744
      %v2022 = vsub.f32 %v1478, %v1744
      %v2023 = vsub.f32 %v1479, %v1744
      %v2024 = vsub.f32 %v1480, %v1753
      %v2025 = vsub.f32 %v1481, %v1753
      %v2026 = vsub.f32 %v1482, %v1753
      %v2027 = vsub.f32 %v1483, %v1753
      %v2028 = vsub.f32 %v1484, %v1753
      %v2029 = vsub.f32 %v1485, %v1753
      %v2030 = vsub.f32 %v1486, %v1753
      %v2031 = vsub.f32 %v1487, %v1753
      %v2032 = vsub.f32 %v1488, %v1762
      %v2033 = vsub.f32 %v1489, %v1762
      %v2034 = vsub.f32 %v1490, %v1762
      %v2035 = vsub.f32 %v1491, %v1762
      %v2036 = vsub.f32 %v1492, %v1762
      %v2037 = vsub.f32 %v1493, %v1762
      %v2038 = vsub.f32 %v1494, %v1762
      %v2039 = vsub.f32 %v1495, %v1762
      %v2040 = vsub.f32 %v1496, %v1771
      %v2041 = vsub.f32 %v1497, %v1771
      %v2042 = vsub.f32 %v1498, %v1771
      %v2043 = vsub.f32 %v1499, %v1771
      %v2044 = vsub.f32 %v1500, %v1771
      %v2045 = vsub.f32 %v1501, %v1771
      %v2046 = vsub.f32 %v1502, %v1771
      %v2047 = vsub.f32 %v1503, %v1771
      %v2048 = vsub.f32 %v1504, %v1780
      %v2049 = vsub.f32 %v1505, %v1780
      %v2050 = vsub.f32 %v1506, %v1780
      %v2051 = vsub.f32 %v1507, %v1780
      %v2052 = vsub.f32 %v1508, %v1780
      %v2053 = vsub.f32 %v1509, %v1780
      %v2054 = vsub.f32 %v1510, %v1780
      %v2055 = vsub.f32 %v1511, %v1780
      %v2056 = vsub.f32 %v1512, %v1789
      %v2057 = vsub.f32 %v1513, %v1789
      %v2058 = vsub.f32 %v1514, %v1789
      %v2059 = vsub.f32 %v1515, %v1789
      %v2060 = vsub.f32 %v1516, %v1789
      %v2061 = vsub.f32 %v1517, %v1789
      %v2062 = vsub.f32 %v1518, %v1789
      %v2063 = vsub.f32 %v1519, %v1789
      %v2064 = vsub.f32 %v1520, %v1798
      %v2065 = vsub.f32 %v1521, %v1798
      %v2066 = vsub.f32 %v1522, %v1798
      %v2067 = vsub.f32 %v1523, %v1798
      %v2068 = vsub.f32 %v1524, %v1798
      %v2069 = vsub.f32 %v1525, %v1798
      %v2070 = vsub.f32 %v1526, %v1798
      %v2071 = vsub.f32 %v1527, %v1798
      %v2072 = vsub.f32 %v1528, %v1807
      %v2073 = vsub.f32 %v1529, %v1807
      %v2074 = vsub.f32 %v1530, %v1807
      %v2075 = vsub.f32 %v1531, %v1807
      %v2076 = vsub.f32 %v1532, %v1807
      %v2077 = vsub.f32 %v1533, %v1807
      %v2078 = vsub.f32 %v1534, %v1807
      %v2079 = vsub.f32 %v1535, %v1807
      %v2080 = vsub.f32 %v1536, %v1816
      %v2081 = vsub.f32 %v1537, %v1816
      %v2082 = vsub.f32 %v1538, %v1816
      %v2083 = vsub.f32 %v1539, %v1816
      %v2084 = vsub.f32 %v1540, %v1816
      %v2085 = vsub.f32 %v1541, %v1816
      %v2086 = vsub.f32 %v1542, %v1816
      %v2087 = vsub.f32 %v1543, %v1816
      %v2088 = vsub.f32 %v1544, %v1825
      %v2089 = vsub.f32 %v1545, %v1825
      %v2090 = vsub.f32 %v1546, %v1825
      %v2091 = vsub.f32 %v1547, %v1825
      %v2092 = vsub.f32 %v1548, %v1825
      %v2093 = vsub.f32 %v1549, %v1825
      %v2094 = vsub.f32 %v1550, %v1825
      %v2095 = vsub.f32 %v1551, %v1825
      %v2096 = vsub.f32 %v1552, %v1834
      %v2097 = vsub.f32 %v1553, %v1834
      %v2098 = vsub.f32 %v1554, %v1834
      %v2099 = vsub.f32 %v1555, %v1834
      %v2100 = vsub.f32 %v1556, %v1834
      %v2101 = vsub.f32 %v1557, %v1834
      %v2102 = vsub.f32 %v1558, %v1834
      %v2103 = vsub.f32 %v1559, %v1834
      %v2104 = vsub.f32 %v1560, %v1843
      %v2105 = vsub.f32 %v1561, %v1843
      %v2106 = vsub.f32 %v1562, %v1843
      %v2107 = vsub.f32 %v1563, %v1843
      %v2108 = vsub.f32 %v1564, %v1843
      %v2109 = vsub.f32 %v1565, %v1843
      %v2110 = vsub.f32 %v1566, %v1843
      %v2111 = vsub.f32 %v1567, %v1843
      %v2112 = vsub.f32 %v1568, %v1852
      %v2113 = vsub.f32 %v1569, %v1852
      %v2114 = vsub.f32 %v1570, %v1852
      %v2115 = vsub.f32 %v1571, %v1852
      %v2116 = vsub.f32 %v1572, %v1852
      %v2117 = vsub.f32 %v1573, %v1852
      %v2118 = vsub.f32 %v1574, %v1852
      %v2119 = vsub.f32 %v1575, %v1852
      %v2120 = vsub.f32 %v1576, %v1861
      %v2121 = vsub.f32 %v1577, %v1861
      %v2122 = vsub.f32 %v1578, %v1861
      %v2123 = vsub.f32 %v1579, %v1861
      %v2124 = vsub.f32 %v1580, %v1861
      %v2125 = vsub.f32 %v1581, %v1861
      %v2126 = vsub.f32 %v1582, %v1861
      %v2127 = vsub.f32 %v1583, %v1861
      %v2128 = vsub.f32 %v1584, %v1870
      %v2129 = vsub.f32 %v1585, %v1870
      %v2130 = vsub.f32 %v1586, %v1870
      %v2131 = vsub.f32 %v1587, %v1870
      %v2132 = vsub.f32 %v1588, %v1870
      %v2133 = vsub.f32 %v1589, %v1870
      %v2134 = vsub.f32 %v1590, %v1870
      %v2135 = vsub.f32 %v1591, %v1870
      %v2136 = vsub.f32 %v1592, %v1879
      %v2137 = vsub.f32 %v1593, %v1879
      %v2138 = vsub.f32 %v1594, %v1879
      %v2139 = vsub.f32 %v1595, %v1879
      %v2140 = vsub.f32 %v1596, %v1879
      %v2141 = vsub.f32 %v1597, %v1879
      %v2142 = vsub.f32 %v1598, %v1879
      %v2143 = vsub.f32 %v1599, %v1879
      %v2144 = vsub.f32 %v1600, %v1888
      %v2145 = vsub.f32 %v1601, %v1888
      %v2146 = vsub.f32 %v1602, %v1888
      %v2147 = vsub.f32 %v1603, %v1888
      %v2148 = vsub.f32 %v1604, %v1888
      %v2149 = vsub.f32 %v1605, %v1888
      %v2150 = vsub.f32 %v1606, %v1888
      %v2151 = vsub.f32 %v1607, %v1888
      %v2152 = vsub.f32 %v1608, %v1897
      %v2153 = vsub.f32 %v1609, %v1897
      %v2154 = vsub.f32 %v1610, %v1897
      %v2155 = vsub.f32 %v1611, %v1897
      %v2156 = vsub.f32 %v1612, %v1897
      %v2157 = vsub.f32 %v1613, %v1897
      %v2158 = vsub.f32 %v1614, %v1897
      %v2159 = vsub.f32 %v1615, %v1897
      %v2160 = vsub.f32 %v1616, %v1906
      %v2161 = vsub.f32 %v1617, %v1906
      %v2162 = vsub.f32 %v1618, %v1906
      %v2163 = vsub.f32 %v1619, %v1906
      %v2164 = vsub.f32 %v1620, %v1906
      %v2165 = vsub.f32 %v1621, %v1906
      %v2166 = vsub.f32 %v1622, %v1906
      %v2167 = vsub.f32 %v1623, %v1906
      %v2168 = vsub.f32 %v1624, %v1915
      %v2169 = vsub.f32 %v1625, %v1915
      %v2170 = vsub.f32 %v1626, %v1915
      %v2171 = vsub.f32 %v1627, %v1915
      %v2172 = vsub.f32 %v1628, %v1915
      %v2173 = vsub.f32 %v1629, %v1915
      %v2174 = vsub.f32 %v1630, %v1915
      %v2175 = vsub.f32 %v1631, %v1915
      %v2176 = vsub.f32 %v1632, %v1924
      %v2177 = vsub.f32 %v1633, %v1924
      %v2178 = vsub.f32 %v1634, %v1924
      %v2179 = vsub.f32 %v1635, %v1924
      %v2180 = vsub.f32 %v1636, %v1924
      %v2181 = vsub.f32 %v1637, %v1924
      %v2182 = vsub.f32 %v1638, %v1924
      %v2183 = vsub.f32 %v1639, %v1924
      %v2184 = vsub.f32 %v1640, %v1933
      %v2185 = vsub.f32 %v1641, %v1933
      %v2186 = vsub.f32 %v1642, %v1933
      %v2187 = vsub.f32 %v1643, %v1933
      %v2188 = vsub.f32 %v1644, %v1933
      %v2189 = vsub.f32 %v1645, %v1933
      %v2190 = vsub.f32 %v1646, %v1933
      %v2191 = vsub.f32 %v1647, %v1933
      %v2192 = vsub.f32 %v1648, %v1942
      %v2193 = vsub.f32 %v1649, %v1942
      %v2194 = vsub.f32 %v1650, %v1942
      %v2195 = vsub.f32 %v1651, %v1942
      %v2196 = vsub.f32 %v1652, %v1942
      %v2197 = vsub.f32 %v1653, %v1942
      %v2198 = vsub.f32 %v1654, %v1942
      %v2199 = vsub.f32 %v1655, %v1942
      %v2200 = vsub.f32 %v1656, %v1951
      %v2201 = vsub.f32 %v1657, %v1951
      %v2202 = vsub.f32 %v1658, %v1951
      %v2203 = vsub.f32 %v1659, %v1951
      %v2204 = vsub.f32 %v1660, %v1951
      %v2205 = vsub.f32 %v1661, %v1951
      %v2206 = vsub.f32 %v1662, %v1951
      %v2207 = vsub.f32 %v1663, %v1951
      %v2208 = vmul.f32 %v1952, 1.442695
      %v2209 = vpow.pop %v2208
      %v2210 = vmul.f32 %v1953, 1.442695
      %v2211 = vpow.pop %v2210
      %v2212 = vmul.f32 %v1954, 1.442695
      %v2213 = vpow.pop %v2212
      %v2214 = vmul.f32 %v1955, 1.442695
      %v2215 = vpow.pop %v2214
      %v2216 = vmul.f32 %v1956, 1.442695
      %v2217 = vpow.pop %v2216
      %v2218 = vmul.f32 %v1957, 1.442695
      %v2219 = vpow.pop %v2218
      %v2220 = vmul.f32 %v1958, 1.442695
      %v2221 = vpow.pop %v2220
      %v2222 = vmul.f32 %v1959, 1.442695
      %v2223 = vpow.pop %v2222
      %v2224 = vmul.f32 %v1960, 1.442695
      %v2225 = vpow.pop %v2224
      %v2226 = vmul.f32 %v1961, 1.442695
      %v2227 = vpow.pop %v2226
      %v2228 = vmul.f32 %v1962, 1.442695
      %v2229 = vpow.pop %v2228
      %v2230 = vmul.f32 %v1963, 1.442695
      %v2231 = vpow.pop %v2230
      %v2232 = vmul.f32 %v1964, 1.442695
      %v2233 = vpow.pop %v2232
      %v2234 = vmul.f32 %v1965, 1.442695
      %v2235 = vpow.pop %v2234
      %v2236 = vmul.f32 %v1966, 1.442695
      %v2237 = vpow.pop %v2236
      %v2238 = vmul.f32 %v1967, 1.442695
      %v2239 = vpow.pop %v2238
      %v2240 = vmul.f32 %v1968, 1.442695
      %v2241 = vpow.pop %v2240
      %v2242 = vmul.f32 %v1969, 1.442695
      %v2243 = vpow.pop %v2242
      %v2244 = vmul.f32 %v1970, 1.442695
      %v2245 = vpow.pop %v2244
      %v2246 = vmul.f32 %v1971, 1.442695
      %v2247 = vpow.pop %v2246
      %v2248 = vmul.f32 %v1972, 1.442695
      %v2249 = vpow.pop %v2248
      %v2250 = vmul.f32 %v1973, 1.442695
      %v2251 = vpow.pop %v2250
      %v2252 = vmul.f32 %v1974, 1.442695
      %v2253 = vpow.pop %v2252
      %v2254 = vmul.f32 %v1975, 1.442695
      %v2255 = vpow.pop %v2254
      %v2256 = vmul.f32 %v1976, 1.442695
      %v2257 = vpow.pop %v2256
      %v2258 = vmul.f32 %v1977, 1.442695
      %v2259 = vpow.pop %v2258
      %v2260 = vmul.f32 %v1978, 1.442695
      %v2261 = vpow.pop %v2260
      %v2262 = vmul.f32 %v1979, 1.442695
      %v2263 = vpow.pop %v2262
      %v2264 = vmul.f32 %v1980, 1.442695
      %v2265 = vpow.pop %v2264
      %v2266 = vmul.f32 %v1981, 1.442695
      %v2267 = vpow.pop %v2266
      %v2268 = vmul.f32 %v1982, 1.442695
      %v2269 = vpow.pop %v2268
      %v2270 = vmul.f32 %v1983, 1.442695
      %v2271 = vpow.pop %v2270
      %v2272 = vmul.f32 %v1984, 1.442695
      %v2273 = vpow.pop %v2272
      %v2274 = vmul.f32 %v1985, 1.442695
      %v2275 = vpow.pop %v2274
      %v2276 = vmul.f32 %v1986, 1.442695
      %v2277 = vpow.pop %v2276
      %v2278 = vmul.f32 %v1987, 1.442695
      %v2279 = vpow.pop %v2278
      %v2280 = vmul.f32 %v1988, 1.442695
      %v2281 = vpow.pop %v2280
      %v2282 = vmul.f32 %v1989, 1.442695
      %v2283 = vpow.pop %v2282
      %v2284 = vmul.f32 %v1990, 1.442695
      %v2285 = vpow.pop %v2284
      %v2286 = vmul.f32 %v1991, 1.442695
      %v2287 = vpow.pop %v2286
      %v2288 = vmul.f32 %v1992, 1.442695
      %v2289 = vpow.pop %v2288
      %v2290 = vmul.f32 %v1993, 1.442695
      %v2291 = vpow.pop %v2290
      %v2292 = vmul.f32 %v1994, 1.442695
      %v2293 = vpow.pop %v2292
      %v2294 = vmul.f32 %v1995, 1.442695
      %v2295 = vpow.pop %v2294
      %v2296 = vmul.f32 %v1996, 1.442695
      %v2297 = vpow.pop %v2296
      %v2298 = vmul.f32 %v1997, 1.442695
      %v2299 = vpow.pop %v2298
      %v2300 = vmul.f32 %v1998, 1.442695
      %v2301 = vpow.pop %v2300
      %v2302 = vmul.f32 %v1999, 1.442695
      %v2303 = vpow.pop %v2302
      %v2304 = vmul.f32 %v2000, 1.442695
      %v2305 = vpow.pop %v2304
      %v2306 = vmul.f32 %v2001, 1.442695
      %v2307 = vpow.pop %v2306
      %v2308 = vmul.f32 %v2002, 1.442695
      %v2309 = vpow.pop %v2308
      %v2310 = vmul.f32 %v2003, 1.442695
      %v2311 = vpow.pop %v2310
      %v2312 = vmul.f32 %v2004, 1.442695
      %v2313 = vpow.pop %v2312
      %v2314 = vmul.f32 %v2005, 1.442695
      %v2315 = vpow.pop %v2314
      %v2316 = vmul.f32 %v2006, 1.442695
      %v2317 = vpow.pop %v2316
      %v2318 = vmul.f32 %v2007, 1.442695
      %v2319 = vpow.pop %v2318
      %v2320 = vmul.f32 %v2008, 1.442695
      %v2321 = vpow.pop %v2320
      %v2322 = vmul.f32 %v2009, 1.442695
      %v2323 = vpow.pop %v2322
      %v2324 = vmul.f32 %v2010, 1.442695
      %v2325 = vpow.pop %v2324
      %v2326 = vmul.f32 %v2011, 1.442695
      %v2327 = vpow.pop %v2326
      %v2328 = vmul.f32 %v2012, 1.442695
      %v2329 = vpow.pop %v2328
      %v2330 = vmul.f32 %v2013, 1.442695
      %v2331 = vpow.pop %v2330
      %v2332 = vmul.f32 %v2014, 1.442695
      %v2333 = vpow.pop %v2332
      %v2334 = vmul.f32 %v2015, 1.442695
      %v2335 = vpow.pop %v2334
      %v2336 = vmul.f32 %v2016, 1.442695
      %v2337 = vpow.pop %v2336
      %v2338 = vmul.f32 %v2017, 1.442695
      %v2339 = vpow.pop %v2338
      %v2340 = vmul.f32 %v2018, 1.442695
      %v2341 = vpow.pop %v2340
      %v2342 = vmul.f32 %v2019, 1.442695
      %v2343 = vpow.pop %v2342
      %v2344 = vmul.f32 %v2020, 1.442695
      %v2345 = vpow.pop %v2344
      %v2346 = vmul.f32 %v2021, 1.442695
      %v2347 = vpow.pop %v2346
      %v2348 = vmul.f32 %v2022, 1.442695
      %v2349 = vpow.pop %v2348
      %v2350 = vmul.f32 %v2023, 1.442695
      %v2351 = vpow.pop %v2350
      %v2352 = vmul.f32 %v2024, 1.442695
      %v2353 = vpow.pop %v2352
      %v2354 = vmul.f32 %v2025, 1.442695
      %v2355 = vpow.pop %v2354
      %v2356 = vmul.f32 %v2026, 1.442695
      %v2357 = vpow.pop %v2356
      %v2358 = vmul.f32 %v2027, 1.442695
      %v2359 = vpow.pop %v2358
      %v2360 = vmul.f32 %v2028, 1.442695
      %v2361 = vpow.pop %v2360
      %v2362 = vmul.f32 %v2029, 1.442695
      %v2363 = vpow.pop %v2362
      %v2364 = vmul.f32 %v2030, 1.442695
      %v2365 = vpow.pop %v2364
      %v2366 = vmul.f32 %v2031, 1.442695
      %v2367 = vpow.pop %v2366
      %v2368 = vmul.f32 %v2032, 1.442695
      %v2369 = vpow.pop %v2368
      %v2370 = vmul.f32 %v2033, 1.442695
      %v2371 = vpow.pop %v2370
      %v2372 = vmul.f32 %v2034, 1.442695
      %v2373 = vpow.pop %v2372
      %v2374 = vmul.f32 %v2035, 1.442695
      %v2375 = vpow.pop %v2374
      %v2376 = vmul.f32 %v2036, 1.442695
      %v2377 = vpow.pop %v2376
      %v2378 = vmul.f32 %v2037, 1.442695
      %v2379 = vpow.pop %v2378
      %v2380 = vmul.f32 %v2038, 1.442695
      %v2381 = vpow.pop %v2380
      %v2382 = vmul.f32 %v2039, 1.442695
      %v2383 = vpow.pop %v2382
      %v2384 = vmul.f32 %v2040, 1.442695
      %v2385 = vpow.pop %v2384
      %v2386 = vmul.f32 %v2041, 1.442695
      %v2387 = vpow.pop %v2386
      %v2388 = vmul.f32 %v2042, 1.442695
      %v2389 = vpow.pop %v2388
      %v2390 = vmul.f32 %v2043, 1.442695
      %v2391 = vpow.pop %v2390
      %v2392 = vmul.f32 %v2044, 1.442695
      %v2393 = vpow.pop %v2392
      %v2394 = vmul.f32 %v2045, 1.442695
      %v2395 = vpow.pop %v2394
      %v2396 = vmul.f32 %v2046, 1.442695
      %v2397 = vpow.pop %v2396
      %v2398 = vmul.f32 %v2047, 1.442695
      %v2399 = vpow.pop %v2398
      %v2400 = vmul.f32 %v2048, 1.442695
      %v2401 = vpow.pop %v2400
      %v2402 = vmul.f32 %v2049, 1.442695
      %v2403 = vpow.pop %v2402
      %v2404 = vmul.f32 %v2050, 1.442695
      %v2405 = vpow.pop %v2404
      %v2406 = vmul.f32 %v2051, 1.442695
      %v2407 = vpow.pop %v2406
      %v2408 = vmul.f32 %v2052, 1.442695
      %v2409 = vpow.pop %v2408
      %v2410 = vmul.f32 %v2053, 1.442695
      %v2411 = vpow.pop %v2410
      %v2412 = vmul.f32 %v2054, 1.442695
      %v2413 = vpow.pop %v2412
      %v2414 = vmul.f32 %v2055, 1.442695
      %v2415 = vpow.pop %v2414
      %v2416 = vmul.f32 %v2056, 1.442695
      %v2417 = vpow.pop %v2416
      %v2418 = vmul.f32 %v2057, 1.442695
      %v2419 = vpow.pop %v2418
      %v2420 = vmul.f32 %v2058, 1.442695
      %v2421 = vpow.pop %v2420
      %v2422 = vmul.f32 %v2059, 1.442695
      %v2423 = vpow.pop %v2422
      %v2424 = vmul.f32 %v2060, 1.442695
      %v2425 = vpow.pop %v2424
      %v2426 = vmul.f32 %v2061, 1.442695
      %v2427 = vpow.pop %v2426
      %v2428 = vmul.f32 %v2062, 1.442695
      %v2429 = vpow.pop %v2428
      %v2430 = vmul.f32 %v2063, 1.442695
      %v2431 = vpow.pop %v2430
      %v2432 = vmul.f32 %v2064, 1.442695
      %v2433 = vpow.pop %v2432
      %v2434 = vmul.f32 %v2065, 1.442695
      %v2435 = vpow.pop %v2434
      %v2436 = vmul.f32 %v2066, 1.442695
      %v2437 = vpow.pop %v2436
      %v2438 = vmul.f32 %v2067, 1.442695
      %v2439 = vpow.pop %v2438
      %v2440 = vmul.f32 %v2068, 1.442695
      %v2441 = vpow.pop %v2440
      %v2442 = vmul.f32 %v2069, 1.442695
      %v2443 = vpow.pop %v2442
      %v2444 = vmul.f32 %v2070, 1.442695
      %v2445 = vpow.pop %v2444
      %v2446 = vmul.f32 %v2071, 1.442695
      %v2447 = vpow.pop %v2446
      %v2448 = vmul.f32 %v2072, 1.442695
      %v2449 = vpow.pop %v2448
      %v2450 = vmul.f32 %v2073, 1.442695
      %v2451 = vpow.pop %v2450
      %v2452 = vmul.f32 %v2074, 1.442695
      %v2453 = vpow.pop %v2452
      %v2454 = vmul.f32 %v2075, 1.442695
      %v2455 = vpow.pop %v2454
      %v2456 = vmul.f32 %v2076, 1.442695
      %v2457 = vpow.pop %v2456
      %v2458 = vmul.f32 %v2077, 1.442695
      %v2459 = vpow.pop %v2458
      %v2460 = vmul.f32 %v2078, 1.442695
      %v2461 = vpow.pop %v2460
      %v2462 = vmul.f32 %v2079, 1.442695
      %v2463 = vpow.pop %v2462
      %v2464 = vmul.f32 %v2080, 1.442695
      %v2465 = vpow.pop %v2464
      %v2466 = vmul.f32 %v2081, 1.442695
      %v2467 = vpow.pop %v2466
      %v2468 = vmul.f32 %v2082, 1.442695
      %v2469 = vpow.pop %v2468
      %v2470 = vmul.f32 %v2083, 1.442695
      %v2471 = vpow.pop %v2470
      %v2472 = vmul.f32 %v2084, 1.442695
      %v2473 = vpow.pop %v2472
      %v2474 = vmul.f32 %v2085, 1.442695
      %v2475 = vpow.pop %v2474
      %v2476 = vmul.f32 %v2086, 1.442695
      %v2477 = vpow.pop %v2476
      %v2478 = vmul.f32 %v2087, 1.442695
      %v2479 = vpow.pop %v2478
      %v2480 = vmul.f32 %v2088, 1.442695
      %v2481 = vpow.pop %v2480
      %v2482 = vmul.f32 %v2089, 1.442695
      %v2483 = vpow.pop %v2482
      %v2484 = vmul.f32 %v2090, 1.442695
      %v2485 = vpow.pop %v2484
      %v2486 = vmul.f32 %v2091, 1.442695
      %v2487 = vpow.pop %v2486
      %v2488 = vmul.f32 %v2092, 1.442695
      %v2489 = vpow.pop %v2488
      %v2490 = vmul.f32 %v2093, 1.442695
      %v2491 = vpow.pop %v2490
      %v2492 = vmul.f32 %v2094, 1.442695
      %v2493 = vpow.pop %v2492
      %v2494 = vmul.f32 %v2095, 1.442695
      %v2495 = vpow.pop %v2494
      %v2496 = vmul.f32 %v2096, 1.442695
      %v2497 = vpow.pop %v2496
      %v2498 = vmul.f32 %v2097, 1.442695
      %v2499 = vpow.pop %v2498
      %v2500 = vmul.f32 %v2098, 1.442695
      %v2501 = vpow.pop %v2500
      %v2502 = vmul.f32 %v2099, 1.442695
      %v2503 = vpow.pop %v2502
      %v2504 = vmul.f32 %v2100, 1.442695
      %v2505 = vpow.pop %v2504
      %v2506 = vmul.f32 %v2101, 1.442695
      %v2507 = vpow.pop %v2506
      %v2508 = vmul.f32 %v2102, 1.442695
      %v2509 = vpow.pop %v2508
      %v2510 = vmul.f32 %v2103, 1.442695
      %v2511 = vpow.pop %v2510
      %v2512 = vmul.f32 %v2104, 1.442695
      %v2513 = vpow.pop %v2512
      %v2514 = vmul.f32 %v2105, 1.442695
      %v2515 = vpow.pop %v2514
      %v2516 = vmul.f32 %v2106, 1.442695
      %v2517 = vpow.pop %v2516
      %v2518 = vmul.f32 %v2107, 1.442695
      %v2519 = vpow.pop %v2518
      %v2520 = vmul.f32 %v2108, 1.442695
      %v2521 = vpow.pop %v2520
      %v2522 = vmul.f32 %v2109, 1.442695
      %v2523 = vpow.pop %v2522
      %v2524 = vmul.f32 %v2110, 1.442695
      %v2525 = vpow.pop %v2524
      %v2526 = vmul.f32 %v2111, 1.442695
      %v2527 = vpow.pop %v2526
      %v2528 = vmul.f32 %v2112, 1.442695
      %v2529 = vpow.pop %v2528
      %v2530 = vmul.f32 %v2113, 1.442695
      %v2531 = vpow.pop %v2530
      %v2532 = vmul.f32 %v2114, 1.442695
      %v2533 = vpow.pop %v2532
      %v2534 = vmul.f32 %v2115, 1.442695
      %v2535 = vpow.pop %v2534
      %v2536 = vmul.f32 %v2116, 1.442695
      %v2537 = vpow.pop %v2536
      %v2538 = vmul.f32 %v2117, 1.442695
      %v2539 = vpow.pop %v2538
      %v2540 = vmul.f32 %v2118, 1.442695
      %v2541 = vpow.pop %v2540
      %v2542 = vmul.f32 %v2119, 1.442695
      %v2543 = vpow.pop %v2542
      %v2544 = vmul.f32 %v2120, 1.442695
      %v2545 = vpow.pop %v2544
      %v2546 = vmul.f32 %v2121, 1.442695
      %v2547 = vpow.pop %v2546
      %v2548 = vmul.f32 %v2122, 1.442695
      %v2549 = vpow.pop %v2548
      %v2550 = vmul.f32 %v2123, 1.442695
      %v2551 = vpow.pop %v2550
      %v2552 = vmul.f32 %v2124, 1.442695
      %v2553 = vpow.pop %v2552
      %v2554 = vmul.f32 %v2125, 1.442695
      %v2555 = vpow.pop %v2554
      %v2556 = vmul.f32 %v2126, 1.442695
      %v2557 = vpow.pop %v2556
      %v2558 = vmul.f32 %v2127, 1.442695
      %v2559 = vpow.pop %v2558
      %v2560 = vmul.f32 %v2128, 1.442695
      %v2561 = vpow.pop %v2560
      %v2562 = vmul.f32 %v2129, 1.442695
      %v2563 = vpow.pop %v2562
      %v2564 = vmul.f32 %v2130, 1.442695
      %v2565 = vpow.pop %v2564
      %v2566 = vmul.f32 %v2131, 1.442695
      %v2567 = vpow.pop %v2566
      %v2568 = vmul.f32 %v2132, 1.442695
      %v2569 = vpow.pop %v2568
      %v2570 = vmul.f32 %v2133, 1.442695
      %v2571 = vpow.pop %v2570
      %v2572 = vmul.f32 %v2134, 1.442695
      %v2573 = vpow.pop %v2572
      %v2574 = vmul.f32 %v2135, 1.442695
      %v2575 = vpow.pop %v2574
      %v2576 = vmul.f32 %v2136, 1.442695
      %v2577 = vpow.pop %v2576
      %v2578 = vmul.f32 %v2137, 1.442695
      %v2579 = vpow.pop %v2578
      %v2580 = vmul.f32 %v2138, 1.442695
      %v2581 = vpow.pop %v2580
      %v2582 = vmul.f32 %v2139, 1.442695
      %v2583 = vpow.pop %v2582
      %v2584 = vmul.f32 %v2140, 1.442695
      %v2585 = vpow.pop %v2584
      %v2586 = vmul.f32 %v2141, 1.442695
      %v2587 = vpow.pop %v2586
      %v2588 = vmul.f32 %v2142, 1.442695
      %v2589 = vpow.pop %v2588
      %v2590 = vmul.f32 %v2143, 1.442695
      %v2591 = vpow.pop %v2590
      %v2592 = vmul.f32 %v2144, 1.442695
      %v2593 = vpow.pop %v2592
      %v2594 = vmul.f32 %v2145, 1.442695
      %v2595 = vpow.pop %v2594
      %v2596 = vmul.f32 %v2146, 1.442695
      %v2597 = vpow.pop %v2596
      %v2598 = vmul.f32 %v2147, 1.442695
      %v2599 = vpow.pop %v2598
      %v2600 = vmul.f32 %v2148, 1.442695
      %v2601 = vpow.pop %v2600
      %v2602 = vmul.f32 %v2149, 1.442695
      %v2603 = vpow.pop %v2602
      %v2604 = vmul.f32 %v2150, 1.442695
      %v2605 = vpow.pop %v2604
      %v2606 = vmul.f32 %v2151, 1.442695
      %v2607 = vpow.pop %v2606
      %v2608 = vmul.f32 %v2152, 1.442695
      %v2609 = vpow.pop %v2608
      %v2610 = vmul.f32 %v2153, 1.442695
      %v2611 = vpow.pop %v2610
      %v2612 = vmul.f32 %v2154, 1.442695
      %v2613 = vpow.pop %v2612
      %v2614 = vmul.f32 %v2155, 1.442695
      %v2615 = vpow.pop %v2614
      %v2616 = vmul.f32 %v2156, 1.442695
      %v2617 = vpow.pop %v2616
      %v2618 = vmul.f32 %v2157, 1.442695
      %v2619 = vpow.pop %v2618
      %v2620 = vmul.f32 %v2158, 1.442695
      %v2621 = vpow.pop %v2620
      %v2622 = vmul.f32 %v2159, 1.442695
      %v2623 = vpow.pop %v2622
      %v2624 = vmul.f32 %v2160, 1.442695
      %v2625 = vpow.pop %v2624
      %v2626 = vmul.f32 %v2161, 1.442695
      %v2627 = vpow.pop %v2626
      %v2628 = vmul.f32 %v2162, 1.442695
      %v2629 = vpow.pop %v2628
      %v2630 = vmul.f32 %v2163, 1.442695
      %v2631 = vpow.pop %v2630
      %v2632 = vmul.f32 %v2164, 1.442695
      %v2633 = vpow.pop %v2632
      %v2634 = vmul.f32 %v2165, 1.442695
      %v2635 = vpow.pop %v2634
      %v2636 = vmul.f32 %v2166, 1.442695
      %v2637 = vpow.pop %v2636
      %v2638 = vmul.f32 %v2167, 1.442695
      %v2639 = vpow.pop %v2638
      %v2640 = vmul.f32 %v2168, 1.442695
      %v2641 = vpow.pop %v2640
      %v2642 = vmul.f32 %v2169, 1.442695
      %v2643 = vpow.pop %v2642
      %v2644 = vmul.f32 %v2170, 1.442695
      %v2645 = vpow.pop %v2644
      %v2646 = vmul.f32 %v2171, 1.442695
      %v2647 = vpow.pop %v2646
      %v2648 = vmul.f32 %v2172, 1.442695
      %v2649 = vpow.pop %v2648
      %v2650 = vmul.f32 %v2173, 1.442695
      %v2651 = vpow.pop %v2650
      %v2652 = vmul.f32 %v2174, 1.442695
      %v2653 = vpow.pop %v2652
      %v2654 = vmul.f32 %v2175, 1.442695
      %v2655 = vpow.pop %v2654
      %v2656 = vmul.f32 %v2176, 1.442695
      %v2657 = vpow.pop %v2656
      %v2658 = vmul.f32 %v2177, 1.442695
      %v2659 = vpow.pop %v2658
      %v2660 = vmul.f32 %v2178, 1.442695
      %v2661 = vpow.pop %v2660
      %v2662 = vmul.f32 %v2179, 1.442695
      %v2663 = vpow.pop %v2662
      %v2664 = vmul.f32 %v2180, 1.442695
      %v2665 = vpow.pop %v2664
      %v2666 = vmul.f32 %v2181, 1.442695
      %v2667 = vpow.pop %v2666
      %v2668 = vmul.f32 %v2182, 1.442695
      %v2669 = vpow.pop %v2668
      %v2670 = vmul.f32 %v2183, 1.442695
      %v2671 = vpow.pop %v2670
      %v2672 = vmul.f32 %v2184, 1.442695
      %v2673 = vpow.pop %v2672
      %v2674 = vmul.f32 %v2185, 1.442695
      %v2675 = vpow.pop %v2674
      %v2676 = vmul.f32 %v2186, 1.442695
      %v2677 = vpow.pop %v2676
      %v2678 = vmul.f32 %v2187, 1.442695
      %v2679 = vpow.pop %v2678
      %v2680 = vmul.f32 %v2188, 1.442695
      %v2681 = vpow.pop %v2680
      %v2682 = vmul.f32 %v2189, 1.442695
      %v2683 = vpow.pop %v2682
      %v2684 = vmul.f32 %v2190, 1.442695
      %v2685 = vpow.pop %v2684
      %v2686 = vmul.f32 %v2191, 1.442695
      %v2687 = vpow.pop %v2686
      %v2688 = vmul.f32 %v2192, 1.442695
      %v2689 = vpow.pop %v2688
      %v2690 = vmul.f32 %v2193, 1.442695
      %v2691 = vpow.pop %v2690
      %v2692 = vmul.f32 %v2194, 1.442695
      %v2693 = vpow.pop %v2692
      %v2694 = vmul.f32 %v2195, 1.442695
      %v2695 = vpow.pop %v2694
      %v2696 = vmul.f32 %v2196, 1.442695
      %v2697 = vpow.pop %v2696
      %v2698 = vmul.f32 %v2197, 1.442695
      %v2699 = vpow.pop %v2698
      %v2700 = vmul.f32 %v2198, 1.442695
      %v2701 = vpow.pop %v2700
      %v2702 = vmul.f32 %v2199, 1.442695
      %v2703 = vpow.pop %v2702
      %v2704 = vmul.f32 %v2200, 1.442695
      %v2705 = vpow.pop %v2704
      %v2706 = vmul.f32 %v2201, 1.442695
      %v2707 = vpow.pop %v2706
      %v2708 = vmul.f32 %v2202, 1.442695
      %v2709 = vpow.pop %v2708
      %v2710 = vmul.f32 %v2203, 1.442695
      %v2711 = vpow.pop %v2710
      %v2712 = vmul.f32 %v2204, 1.442695
      %v2713 = vpow.pop %v2712
      %v2714 = vmul.f32 %v2205, 1.442695
      %v2715 = vpow.pop %v2714
      %v2716 = vmul.f32 %v2206, 1.442695
      %v2717 = vpow.pop %v2716
      %v2718 = vmul.f32 %v2207, 1.442695
      %v2719 = vpow.pop %v2718
      %v2720 = vadd.f32 %v2209, %v2211
      %v2721 = vadd.f32 %v2720, %v2213
      %v2722 = vadd.f32 %v2721, %v2215
      %v2723 = vadd.f32 %v2722, %v2217
      %v2724 = vadd.f32 %v2723, %v2219
      %v2725 = vadd.f32 %v2724, %v2221
      %v2726 = vadd.f32 %v2725, %v2223
      %2727 = vadd.xlane.f32.xlu0 %v2726
      %v2728 = vpop.xlane.xlu0 %2727
      %v2729 = vadd.f32 %v2225, %v2227
      %v2730 = vadd.f32 %v2729, %v2229
      %v2731 = vadd.f32 %v2730, %v2231
      %v2732 = vadd.f32 %v2731, %v2233
      %v2733 = vadd.f32 %v2732, %v2235
      %v2734 = vadd.f32 %v2733, %v2237
      %v2735 = vadd.f32 %v2734, %v2239
      %2736 = vadd.xlane.f32.xlu0 %v2735
      %v2737 = vpop.xlane.xlu0 %2736
      %v2738 = vadd.f32 %v2241, %v2243
      %v2739 = vadd.f32 %v2738, %v2245
      %v2740 = vadd.f32 %v2739, %v2247
      %v2741 = vadd.f32 %v2740, %v2249
      %v2742 = vadd.f32 %v2741, %v2251
      %v2743 = vadd.f32 %v2742, %v2253
      %v2744 = vadd.f32 %v2743, %v2255
      %2745 = vadd.xlane.f32.xlu0 %v2744
      %v2746 = vpop.xlane.xlu0 %2745
      %v2747 = vadd.f32 %v2257, %v2259
      %v2748 = vadd.f32 %v2747, %v2261
      %v2749 = vadd.f32 %v2748, %v2263
      %v2750 = vadd.f32 %v2749, %v2265
      %v2751 = vadd.f32 %v2750, %v2267
      %v2752 = vadd.f32 %v2751, %v2269
      %v2753 = vadd.f32 %v2752, %v2271
      %2754 = vadd.xlane.f32.xlu0 %v2753
      %v2755 = vpop.xlane.xlu0 %2754
      %v2756 = vadd.f32 %v2273, %v2275
      %v2757 = vadd.f32 %v2756, %v2277
      %v2758 = vadd.f32 %v2757, %v2279
      %v2759 = vadd.f32 %v2758, %v2281
      %v2760 = vadd.f32 %v2759, %v2283
      %v2761 = vadd.f32 %v2760, %v2285
      %v2762 = vadd.f32 %v2761, %v2287
      %2763 = vadd.xlane.f32.xlu0 %v2762
      %v2764 = vpop.xlane.xlu0 %2763
      %v2765 = vadd.f32 %v2289, %v2291
      %v2766 = vadd.f32 %v2765, %v2293
      %v2767 = vadd.f32 %v2766, %v2295
      %v2768 = vadd.f32 %v2767, %v2297
      %v2769 = vadd.f32 %v2768, %v2299
      %v2770 = vadd.f32 %v2769, %v2301
      %v2771 = vadd.f32 %v2770, %v2303
      %2772 = vadd.xlane.f32.xlu0 %v2771
      %v2773 = vpop.xlane.xlu0 %2772
      %v2774 = vadd.f32 %v2305, %v2307
      %v2775 = vadd.f32 %v2774, %v2309
      %v2776 = vadd.f32 %v2775, %v2311
      %v2777 = vadd.f32 %v2776, %v2313
      %v2778 = vadd.f32 %v2777, %v2315
      %v2779 = vadd.f32 %v2778, %v2317
      %v2780 = vadd.f32 %v2779, %v2319
      %2781 = vadd.xlane.f32.xlu0 %v2780
      %v2782 = vpop.xlane.xlu0 %2781
      %v2783 = vadd.f32 %v2321, %v2323
      %v2784 = vadd.f32 %v2783, %v2325
      %v2785 = vadd.f32 %v2784, %v2327
      %v2786 = vadd.f32 %v2785, %v2329
      %v2787 = vadd.f32 %v2786, %v2331
      %v2788 = vadd.f32 %v2787, %v2333
      %v2789 = vadd.f32 %v2788, %v2335
      %2790 = vadd.xlane.f32.xlu0 %v2789
      %v2791 = vpop.xlane.xlu0 %2790
      %v2792 = vadd.f32 %v2337, %v2339
      %v2793 = vadd.f32 %v2792, %v2341
      %v2794 = vadd.f32 %v2793, %v2343
      %v2795 = vadd.f32 %v2794, %v2345
      %v2796 = vadd.f32 %v2795, %v2347
      %v2797 = vadd.f32 %v2796, %v2349
      %v2798 = vadd.f32 %v2797, %v2351
      %2799 = vadd.xlane.f32.xlu0 %v2798
      %v2800 = vpop.xlane.xlu0 %2799
      %v2801 = vadd.f32 %v2353, %v2355
      %v2802 = vadd.f32 %v2801, %v2357
      %v2803 = vadd.f32 %v2802, %v2359
      %v2804 = vadd.f32 %v2803, %v2361
      %v2805 = vadd.f32 %v2804, %v2363
      %v2806 = vadd.f32 %v2805, %v2365
      %v2807 = vadd.f32 %v2806, %v2367
      %2808 = vadd.xlane.f32.xlu0 %v2807
      %v2809 = vpop.xlane.xlu0 %2808
      %v2810 = vadd.f32 %v2369, %v2371
      %v2811 = vadd.f32 %v2810, %v2373
      %v2812 = vadd.f32 %v2811, %v2375
      %v2813 = vadd.f32 %v2812, %v2377
      %v2814 = vadd.f32 %v2813, %v2379
      %v2815 = vadd.f32 %v2814, %v2381
      %v2816 = vadd.f32 %v2815, %v2383
      %2817 = vadd.xlane.f32.xlu0 %v2816
      %v2818 = vpop.xlane.xlu0 %2817
      %v2819 = vadd.f32 %v2385, %v2387
      %v2820 = vadd.f32 %v2819, %v2389
      %v2821 = vadd.f32 %v2820, %v2391
      %v2822 = vadd.f32 %v2821, %v2393
      %v2823 = vadd.f32 %v2822, %v2395
      %v2824 = vadd.f32 %v2823, %v2397
      %v2825 = vadd.f32 %v2824, %v2399
      %2826 = vadd.xlane.f32.xlu0 %v2825
      %v2827 = vpop.xlane.xlu0 %2826
      %v2828 = vadd.f32 %v2401, %v2403
      %v2829 = vadd.f32 %v2828, %v2405
      %v2830 = vadd.f32 %v2829, %v2407
      %v2831 = vadd.f32 %v2830, %v2409
      %v2832 = vadd.f32 %v2831, %v2411
      %v2833 = vadd.f32 %v2832, %v2413
      %v2834 = vadd.f32 %v2833, %v2415
      %2835 = vadd.xlane.f32.xlu0 %v2834
      %v2836 = vpop.xlane.xlu0 %2835
      %v2837 = vadd.f32 %v2417, %v2419
      %v2838 = vadd.f32 %v2837, %v2421
      %v2839 = vadd.f32 %v2838, %v2423
      %v2840 = vadd.f32 %v2839, %v2425
      %v2841 = vadd.f32 %v2840, %v2427
      %v2842 = vadd.f32 %v2841, %v2429
      %v2843 = vadd.f32 %v2842, %v2431
      %2844 = vadd.xlane.f32.xlu0 %v2843
      %v2845 = vpop.xlane.xlu0 %2844
      %v2846 = vadd.f32 %v2433, %v2435
      %v2847 = vadd.f32 %v2846, %v2437
      %v2848 = vadd.f32 %v2847, %v2439
      %v2849 = vadd.f32 %v2848, %v2441
      %v2850 = vadd.f32 %v2849, %v2443
      %v2851 = vadd.f32 %v2850, %v2445
      %v2852 = vadd.f32 %v2851, %v2447
      %2853 = vadd.xlane.f32.xlu0 %v2852
      %v2854 = vpop.xlane.xlu0 %2853
      %v2855 = vadd.f32 %v2449, %v2451
      %v2856 = vadd.f32 %v2855, %v2453
      %v2857 = vadd.f32 %v2856, %v2455
      %v2858 = vadd.f32 %v2857, %v2457
      %v2859 = vadd.f32 %v2858, %v2459
      %v2860 = vadd.f32 %v2859, %v2461
      %v2861 = vadd.f32 %v2860, %v2463
      %2862 = vadd.xlane.f32.xlu0 %v2861
      %v2863 = vpop.xlane.xlu0 %2862
      %v2864 = vadd.f32 %v2465, %v2467
      %v2865 = vadd.f32 %v2864, %v2469
      %v2866 = vadd.f32 %v2865, %v2471
      %v2867 = vadd.f32 %v2866, %v2473
      %v2868 = vadd.f32 %v2867, %v2475
      %v2869 = vadd.f32 %v2868, %v2477
      %v2870 = vadd.f32 %v2869, %v2479
      %2871 = vadd.xlane.f32.xlu0 %v2870
      %v2872 = vpop.xlane.xlu0 %2871
      %v2873 = vadd.f32 %v2481, %v2483
      %v2874 = vadd.f32 %v2873, %v2485
      %v2875 = vadd.f32 %v2874, %v2487
      %v2876 = vadd.f32 %v2875, %v2489
      %v2877 = vadd.f32 %v2876, %v2491
      %v2878 = vadd.f32 %v2877, %v2493
      %v2879 = vadd.f32 %v2878, %v2495
      %2880 = vadd.xlane.f32.xlu0 %v2879
      %v2881 = vpop.xlane.xlu0 %2880
      %v2882 = vadd.f32 %v2497, %v2499
      %v2883 = vadd.f32 %v2882, %v2501
      %v2884 = vadd.f32 %v2883, %v2503
      %v2885 = vadd.f32 %v2884, %v2505
      %v2886 = vadd.f32 %v2885, %v2507
      %v2887 = vadd.f32 %v2886, %v2509
      %v2888 = vadd.f32 %v2887, %v2511
      %2889 = vadd.xlane.f32.xlu0 %v2888
      %v2890 = vpop.xlane.xlu0 %2889
      %v2891 = vadd.f32 %v2513, %v2515
      %v2892 = vadd.f32 %v2891, %v2517
      %v2893 = vadd.f32 %v2892, %v2519
      %v2894 = vadd.f32 %v2893, %v2521
      %v2895 = vadd.f32 %v2894, %v2523
      %v2896 = vadd.f32 %v2895, %v2525
      %v2897 = vadd.f32 %v2896, %v2527
      %2898 = vadd.xlane.f32.xlu0 %v2897
      %v2899 = vpop.xlane.xlu0 %2898
      %v2900 = vadd.f32 %v2529, %v2531
      %v2901 = vadd.f32 %v2900, %v2533
      %v2902 = vadd.f32 %v2901, %v2535
      %v2903 = vadd.f32 %v2902, %v2537
      %v2904 = vadd.f32 %v2903, %v2539
      %v2905 = vadd.f32 %v2904, %v2541
      %v2906 = vadd.f32 %v2905, %v2543
      %2907 = vadd.xlane.f32.xlu0 %v2906
      %v2908 = vpop.xlane.xlu0 %2907
      %v2909 = vadd.f32 %v2545, %v2547
      %v2910 = vadd.f32 %v2909, %v2549
      %v2911 = vadd.f32 %v2910, %v2551
      %v2912 = vadd.f32 %v2911, %v2553
      %v2913 = vadd.f32 %v2912, %v2555
      %v2914 = vadd.f32 %v2913, %v2557
      %v2915 = vadd.f32 %v2914, %v2559
      %2916 = vadd.xlane.f32.xlu0 %v2915
      %v2917 = vpop.xlane.xlu0 %2916
      %v2918 = vadd.f32 %v2561, %v2563
      %v2919 = vadd.f32 %v2918, %v2565
      %v2920 = vadd.f32 %v2919, %v2567
      %v2921 = vadd.f32 %v2920, %v2569
      %v2922 = vadd.f32 %v2921, %v2571
      %v2923 = vadd.f32 %v2922, %v2573
      %v2924 = vadd.f32 %v2923, %v2575
      %2925 = vadd.xlane.f32.xlu0 %v2924
      %v2926 = vpop.xlane.xlu0 %2925
      %v2927 = vadd.f32 %v2577, %v2579
      %v2928 = vadd.f32 %v2927, %v2581
      %v2929 = vadd.f32 %v2928, %v2583
      %v2930 = vadd.f32 %v2929, %v2585
      %v2931 = vadd.f32 %v2930, %v2587
      %v2932 = vadd.f32 %v2931, %v2589
      %v2933 = vadd.f32 %v2932, %v2591
      %2934 = vadd.xlane.f32.xlu0 %v2933
      %v2935 = vpop.xlane.xlu0 %2934
      %v2936 = vadd.f32 %v2593, %v2595
      %v2937 = vadd.f32 %v2936, %v2597
      %v2938 = vadd.f32 %v2937, %v2599
      %v2939 = vadd.f32 %v2938, %v2601
      %v2940 = vadd.f32 %v2939, %v2603
      %v2941 = vadd.f32 %v2940, %v2605
      %v2942 = vadd.f32 %v2941, %v2607
      %2943 = vadd.xlane.f32.xlu0 %v2942
      %v2944 = vpop.xlane.xlu0 %2943
      %v2945 = vadd.f32 %v2609, %v2611
      %v2946 = vadd.f32 %v2945, %v2613
      %v2947 = vadd.f32 %v2946, %v2615
      %v2948 = vadd.f32 %v2947, %v2617
      %v2949 = vadd.f32 %v2948, %v2619
      %v2950 = vadd.f32 %v2949, %v2621
      %v2951 = vadd.f32 %v2950, %v2623
      %2952 = vadd.xlane.f32.xlu0 %v2951
      %v2953 = vpop.xlane.xlu0 %2952
      %v2954 = vadd.f32 %v2625, %v2627
      %v2955 = vadd.f32 %v2954, %v2629
      %v2956 = vadd.f32 %v2955, %v2631
      %v2957 = vadd.f32 %v2956, %v2633
      %v2958 = vadd.f32 %v2957, %v2635
      %v2959 = vadd.f32 %v2958, %v2637
      %v2960 = vadd.f32 %v2959, %v2639
      %2961 = vadd.xlane.f32.xlu0 %v2960
      %v2962 = vpop.xlane.xlu0 %2961
      %v2963 = vadd.f32 %v2641, %v2643
      %v2964 = vadd.f32 %v2963, %v2645
      %v2965 = vadd.f32 %v2964, %v2647
      %v2966 = vadd.f32 %v2965, %v2649
      %v2967 = vadd.f32 %v2966, %v2651
      %v2968 = vadd.f32 %v2967, %v2653
      %v2969 = vadd.f32 %v2968, %v2655
      %2970 = vadd.xlane.f32.xlu0 %v2969
      %v2971 = vpop.xlane.xlu0 %2970
      %v2972 = vadd.f32 %v2657, %v2659
      %v2973 = vadd.f32 %v2972, %v2661
      %v2974 = vadd.f32 %v2973, %v2663
      %v2975 = vadd.f32 %v2974, %v2665
      %v2976 = vadd.f32 %v2975, %v2667
      %v2977 = vadd.f32 %v2976, %v2669
      %v2978 = vadd.f32 %v2977, %v2671
      %2979 = vadd.xlane.f32.xlu0 %v2978
      %v2980 = vpop.xlane.xlu0 %2979
      %v2981 = vadd.f32 %v2673, %v2675
      %v2982 = vadd.f32 %v2981, %v2677
      %v2983 = vadd.f32 %v2982, %v2679
      %v2984 = vadd.f32 %v2983, %v2681
      %v2985 = vadd.f32 %v2984, %v2683
      %v2986 = vadd.f32 %v2985, %v2685
      %v2987 = vadd.f32 %v2986, %v2687
      %2988 = vadd.xlane.f32.xlu0 %v2987
      %v2989 = vpop.xlane.xlu0 %2988
      %v2990 = vadd.f32 %v2689, %v2691
      %v2991 = vadd.f32 %v2990, %v2693
      %v2992 = vadd.f32 %v2991, %v2695
      %v2993 = vadd.f32 %v2992, %v2697
      %v2994 = vadd.f32 %v2993, %v2699
      %v2995 = vadd.f32 %v2994, %v2701
      %v2996 = vadd.f32 %v2995, %v2703
      %2997 = vadd.xlane.f32.xlu0 %v2996
      %v2998 = vpop.xlane.xlu0 %2997
      %v2999 = vadd.f32 %v2705, %v2707
      %v3000 = vadd.f32 %v2999, %v2709
      %v3001 = vadd.f32 %v3000, %v2711
      %v3002 = vadd.f32 %v3001, %v2713
      %v3003 = vadd.f32 %v3002, %v2715
      %v3004 = vadd.f32 %v3003, %v2717
      %v3005 = vadd.f32 %v3004, %v2719
      %3006 = vadd.xlane.f32.xlu0 %v3005
      %v3007 = vpop.xlane.xlu0 %3006
      %v3008 = vrcp.pop %v2728
      %v3009 = vrcp.pop %v2737
      %v3010 = vrcp.pop %v2746
      %v3011 = vrcp.pop %v2755
      %v3012 = vrcp.pop %v2764
      %v3013 = vrcp.pop %v2773
      %v3014 = vrcp.pop %v2782
      %v3015 = vrcp.pop %v2791
      %v3016 = vrcp.pop %v2800
      %v3017 = vrcp.pop %v2809
      %v3018 = vrcp.pop %v2818
      %v3019 = vrcp.pop %v2827
      %v3020 = vrcp.pop %v2836
      %v3021 = vrcp.pop %v2845
      %v3022 = vrcp.pop %v2854
      %v3023 = vrcp.pop %v2863
      %v3024 = vrcp.pop %v2872
      %v3025 = vrcp.pop %v2881
      %v3026 = vrcp.pop %v2890
      %v3027 = vrcp.pop %v2899
      %v3028 = vrcp.pop %v2908
      %v3029 = vrcp.pop %v2917
      %v3030 = vrcp.pop %v2926
      %v3031 = vrcp.pop %v2935
      %v3032 = vrcp.pop %v2944
      %v3033 = vrcp.pop %v2953
      %v3034 = vrcp.pop %v2962
      %v3035 = vrcp.pop %v2971
      %v3036 = vrcp.pop %v2980
      %v3037 = vrcp.pop %v2989
      %v3038 = vrcp.pop %v2998
      %v3039 = vrcp.pop %v3007
      %v3040 = vmul.f32 %v2209, %v3008
      %v3041 = vmul.f32 %v2211, %v3008
      %v3042 = vmul.f32 %v2213, %v3008
      %v3043 = vmul.f32 %v2215, %v3008
      %v3044 = vmul.f32 %v2217, %v3008
      %v3045 = vmul.f32 %v2219, %v3008
      %v3046 = vmul.f32 %v2221, %v3008
      %v3047 = vmul.f32 %v2223, %v3008
      %v3048 = vmul.f32 %v2225, %v3009
      %v3049 = vmul.f32 %v2227, %v3009
      %v3050 = vmul.f32 %v2229, %v3009
      %v3051 = vmul.f32 %v2231, %v3009
      %v3052 = vmul.f32 %v2233, %v3009
      %v3053 = vmul.f32 %v2235, %v3009
      %v3054 = vmul.f32 %v2237, %v3009
      %v3055 = vmul.f32 %v2239, %v3009
      %v3056 = vmul.f32 %v2241, %v3010
      %v3057 = vmul.f32 %v2243, %v3010
      %v3058 = vmul.f32 %v2245, %v3010
      %v3059 = vmul.f32 %v2247, %v3010
      %v3060 = vmul.f32 %v2249, %v3010
      %v3061 = vmul.f32 %v2251, %v3010
      %v3062 = vmul.f32 %v2253, %v3010
      %v3063 = vmul.f32 %v2255, %v3010
      %v3064 = vmul.f32 %v2257, %v3011
      %v3065 = vmul.f32 %v2259, %v3011
      %v3066 = vmul.f32 %v2261, %v3011
      %v3067 = vmul.f32 %v2263, %v3011
      %v3068 = vmul.f32 %v2265, %v3011
      %v3069 = vmul.f32 %v2267, %v3011
      %v3070 = vmul.f32 %v2269, %v3011
      %v3071 = vmul.f32 %v2271, %v3011
      %v3072 = vmul.f32 %v2273, %v3012
      %v3073 = vmul.f32 %v2275, %v3012
      %v3074 = vmul.f32 %v2277, %v3012
      %v3075 = vmul.f32 %v2279, %v3012
      %v3076 = vmul.f32 %v2281, %v3012
      %v3077 = vmul.f32 %v2283, %v3012
      %v3078 = vmul.f32 %v2285, %v3012
      %v3079 = vmul.f32 %v2287, %v3012
      %v3080 = vmul.f32 %v2289, %v3013
      %v3081 = vmul.f32 %v2291, %v3013
      %v3082 = vmul.f32 %v2293, %v3013
      %v3083 = vmul.f32 %v2295, %v3013
      %v3084 = vmul.f32 %v2297, %v3013
      %v3085 = vmul.f32 %v2299, %v3013
      %v3086 = vmul.f32 %v2301, %v3013
      %v3087 = vmul.f32 %v2303, %v3013
      %v3088 = vmul.f32 %v2305, %v3014
      %v3089 = vmul.f32 %v2307, %v3014
      %v3090 = vmul.f32 %v2309, %v3014
      %v3091 = vmul.f32 %v2311, %v3014
      %v3092 = vmul.f32 %v2313, %v3014
      %v3093 = vmul.f32 %v2315, %v3014
      %v3094 = vmul.f32 %v2317, %v3014
      %v3095 = vmul.f32 %v2319, %v3014
      %v3096 = vmul.f32 %v2321, %v3015
      %v3097 = vmul.f32 %v2323, %v3015
      %v3098 = vmul.f32 %v2325, %v3015
      %v3099 = vmul.f32 %v2327, %v3015
      %v3100 = vmul.f32 %v2329, %v3015
      %v3101 = vmul.f32 %v2331, %v3015
      %v3102 = vmul.f32 %v2333, %v3015
      %v3103 = vmul.f32 %v2335, %v3015
      %v3104 = vmul.f32 %v2337, %v3016
      %v3105 = vmul.f32 %v2339, %v3016
      %v3106 = vmul.f32 %v2341, %v3016
      %v3107 = vmul.f32 %v2343, %v3016
      %v3108 = vmul.f32 %v2345, %v3016
      %v3109 = vmul.f32 %v2347, %v3016
      %v3110 = vmul.f32 %v2349, %v3016
      %v3111 = vmul.f32 %v2351, %v3016
      %v3112 = vmul.f32 %v2353, %v3017
      %v3113 = vmul.f32 %v2355, %v3017
      %v3114 = vmul.f32 %v2357, %v3017
      %v3115 = vmul.f32 %v2359, %v3017
      %v3116 = vmul.f32 %v2361, %v3017
      %v3117 = vmul.f32 %v2363, %v3017
      %v3118 = vmul.f32 %v2365, %v3017
      %v3119 = vmul.f32 %v2367, %v3017
      %v3120 = vmul.f32 %v2369, %v3018
      %v3121 = vmul.f32 %v2371, %v3018
      %v3122 = vmul.f32 %v2373, %v3018
      %v3123 = vmul.f32 %v2375, %v3018
      %v3124 = vmul.f32 %v2377, %v3018
      %v3125 = vmul.f32 %v2379, %v3018
      %v3126 = vmul.f32 %v2381, %v3018
      %v3127 = vmul.f32 %v2383, %v3018
      %v3128 = vmul.f32 %v2385, %v3019
      %v3129 = vmul.f32 %v2387, %v3019
      %v3130 = vmul.f32 %v2389, %v3019
      %v3131 = vmul.f32 %v2391, %v3019
      %v3132 = vmul.f32 %v2393, %v3019
      %v3133 = vmul.f32 %v2395, %v3019
      %v3134 = vmul.f32 %v2397, %v3019
      %v3135 = vmul.f32 %v2399, %v3019
      %v3136 = vmul.f32 %v2401, %v3020
      %v3137 = vmul.f32 %v2403, %v3020
      %v3138 = vmul.f32 %v2405, %v3020
      %v3139 = vmul.f32 %v2407, %v3020
      %v3140 = vmul.f32 %v2409, %v3020
      %v3141 = vmul.f32 %v2411, %v3020
      %v3142 = vmul.f32 %v2413, %v3020
      %v3143 = vmul.f32 %v2415, %v3020
      %v3144 = vmul.f32 %v2417, %v3021
      %v3145 = vmul.f32 %v2419, %v3021
      %v3146 = vmul.f32 %v2421, %v3021
      %v3147 = vmul.f32 %v2423, %v3021
      %v3148 = vmul.f32 %v2425, %v3021
      %v3149 = vmul.f32 %v2427, %v3021
      %v3150 = vmul.f32 %v2429, %v3021
      %v3151 = vmul.f32 %v2431, %v3021
      %v3152 = vmul.f32 %v2433, %v3022
      %v3153 = vmul.f32 %v2435, %v3022
      %v3154 = vmul.f32 %v2437, %v3022
      %v3155 = vmul.f32 %v2439, %v3022
      %v3156 = vmul.f32 %v2441, %v3022
      %v3157 = vmul.f32 %v2443, %v3022
      %v3158 = vmul.f32 %v2445, %v3022
      %v3159 = vmul.f32 %v2447, %v3022
      %v3160 = vmul.f32 %v2449, %v3023
      %v3161 = vmul.f32 %v2451, %v3023
      %v3162 = vmul.f32 %v2453, %v3023
      %v3163 = vmul.f32 %v2455, %v3023
      %v3164 = vmul.f32 %v2457, %v3023
      %v3165 = vmul.f32 %v2459, %v3023
      %v3166 = vmul.f32 %v2461, %v3023
      %v3167 = vmul.f32 %v2463, %v3023
      %v3168 = vmul.f32 %v2465, %v3024
      %v3169 = vmul.f32 %v2467, %v3024
      %v3170 = vmul.f32 %v2469, %v3024
      %v3171 = vmul.f32 %v2471, %v3024
      %v3172 = vmul.f32 %v2473, %v3024
      %v3173 = vmul.f32 %v2475, %v3024
      %v3174 = vmul.f32 %v2477, %v3024
      %v3175 = vmul.f32 %v2479, %v3024
      %v3176 = vmul.f32 %v2481, %v3025
      %v3177 = vmul.f32 %v2483, %v3025
      %v3178 = vmul.f32 %v2485, %v3025
      %v3179 = vmul.f32 %v2487, %v3025
      %v3180 = vmul.f32 %v2489, %v3025
      %v3181 = vmul.f32 %v2491, %v3025
      %v3182 = vmul.f32 %v2493, %v3025
      %v3183 = vmul.f32 %v2495, %v3025
      %v3184 = vmul.f32 %v2497, %v3026
      %v3185 = vmul.f32 %v2499, %v3026
      %v3186 = vmul.f32 %v2501, %v3026
      %v3187 = vmul.f32 %v2503, %v3026
      %v3188 = vmul.f32 %v2505, %v3026
      %v3189 = vmul.f32 %v2507, %v3026
      %v3190 = vmul.f32 %v2509, %v3026
      %v3191 = vmul.f32 %v2511, %v3026
      %v3192 = vmul.f32 %v2513, %v3027
      %v3193 = vmul.f32 %v2515, %v3027
      %v3194 = vmul.f32 %v2517, %v3027
      %v3195 = vmul.f32 %v2519, %v3027
      %v3196 = vmul.f32 %v2521, %v3027
      %v3197 = vmul.f32 %v2523, %v3027
      %v3198 = vmul.f32 %v2525, %v3027
      %v3199 = vmul.f32 %v2527, %v3027
      %v3200 = vmul.f32 %v2529, %v3028
      %v3201 = vmul.f32 %v2531, %v3028
      %v3202 = vmul.f32 %v2533, %v3028
      %v3203 = vmul.f32 %v2535, %v3028
      %v3204 = vmul.f32 %v2537, %v3028
      %v3205 = vmul.f32 %v2539, %v3028
      %v3206 = vmul.f32 %v2541, %v3028
      %v3207 = vmul.f32 %v2543, %v3028
      %v3208 = vmul.f32 %v2545, %v3029
      %v3209 = vmul.f32 %v2547, %v3029
      %v3210 = vmul.f32 %v2549, %v3029
      %v3211 = vmul.f32 %v2551, %v3029
      %v3212 = vmul.f32 %v2553, %v3029
      %v3213 = vmul.f32 %v2555, %v3029
      %v3214 = vmul.f32 %v2557, %v3029
      %v3215 = vmul.f32 %v2559, %v3029
      %v3216 = vmul.f32 %v2561, %v3030
      %v3217 = vmul.f32 %v2563, %v3030
      %v3218 = vmul.f32 %v2565, %v3030
      %v3219 = vmul.f32 %v2567, %v3030
      %v3220 = vmul.f32 %v2569, %v3030
      %v3221 = vmul.f32 %v2571, %v3030
      %v3222 = vmul.f32 %v2573, %v3030
      %v3223 = vmul.f32 %v2575, %v3030
      %v3224 = vmul.f32 %v2577, %v3031
      %v3225 = vmul.f32 %v2579, %v3031
      %v3226 = vmul.f32 %v2581, %v3031
      %v3227 = vmul.f32 %v2583, %v3031
      %v3228 = vmul.f32 %v2585, %v3031
      %v3229 = vmul.f32 %v2587, %v3031
      %v3230 = vmul.f32 %v2589, %v3031
      %v3231 = vmul.f32 %v2591, %v3031
      %v3232 = vmul.f32 %v2593, %v3032
      %v3233 = vmul.f32 %v2595, %v3032
      %v3234 = vmul.f32 %v2597, %v3032
      %v3235 = vmul.f32 %v2599, %v3032
      %v3236 = vmul.f32 %v2601, %v3032
      %v3237 = vmul.f32 %v2603, %v3032
      %v3238 = vmul.f32 %v2605, %v3032
      %v3239 = vmul.f32 %v2607, %v3032
      %v3240 = vmul.f32 %v2609, %v3033
      %v3241 = vmul.f32 %v2611, %v3033
      %v3242 = vmul.f32 %v2613, %v3033
      %v3243 = vmul.f32 %v2615, %v3033
      %v3244 = vmul.f32 %v2617, %v3033
      %v3245 = vmul.f32 %v2619, %v3033
      %v3246 = vmul.f32 %v2621, %v3033
      %v3247 = vmul.f32 %v2623, %v3033
      %v3248 = vmul.f32 %v2625, %v3034
      %v3249 = vmul.f32 %v2627, %v3034
      %v3250 = vmul.f32 %v2629, %v3034
      %v3251 = vmul.f32 %v2631, %v3034
      %v3252 = vmul.f32 %v2633, %v3034
      %v3253 = vmul.f32 %v2635, %v3034
      %v3254 = vmul.f32 %v2637, %v3034
      %v3255 = vmul.f32 %v2639, %v3034
      %v3256 = vmul.f32 %v2641, %v3035
      %v3257 = vmul.f32 %v2643, %v3035
      %v3258 = vmul.f32 %v2645, %v3035
      %v3259 = vmul.f32 %v2647, %v3035
      %v3260 = vmul.f32 %v2649, %v3035
      %v3261 = vmul.f32 %v2651, %v3035
      %v3262 = vmul.f32 %v2653, %v3035
      %v3263 = vmul.f32 %v2655, %v3035
      %v3264 = vmul.f32 %v2657, %v3036
      %v3265 = vmul.f32 %v2659, %v3036
      %v3266 = vmul.f32 %v2661, %v3036
      %v3267 = vmul.f32 %v2663, %v3036
      %v3268 = vmul.f32 %v2665, %v3036
      %v3269 = vmul.f32 %v2667, %v3036
      %v3270 = vmul.f32 %v2669, %v3036
      %v3271 = vmul.f32 %v2671, %v3036
      %v3272 = vmul.f32 %v2673, %v3037
      %v3273 = vmul.f32 %v2675, %v3037
      %v3274 = vmul.f32 %v2677, %v3037
      %v3275 = vmul.f32 %v2679, %v3037
      %v3276 = vmul.f32 %v2681, %v3037
      %v3277 = vmul.f32 %v2683, %v3037
      %v3278 = vmul.f32 %v2685, %v3037
      %v3279 = vmul.f32 %v2687, %v3037
      %v3280 = vmul.f32 %v2689, %v3038
      %v3281 = vmul.f32 %v2691, %v3038
      %v3282 = vmul.f32 %v2693, %v3038
      %v3283 = vmul.f32 %v2695, %v3038
      %v3284 = vmul.f32 %v2697, %v3038
      %v3285 = vmul.f32 %v2699, %v3038
      %v3286 = vmul.f32 %v2701, %v3038
      %v3287 = vmul.f32 %v2703, %v3038
      %v3288 = vmul.f32 %v2705, %v3039
      %v3289 = vmul.f32 %v2707, %v3039
      %v3290 = vmul.f32 %v2709, %v3039
      %v3291 = vmul.f32 %v2711, %v3039
      %v3292 = vmul.f32 %v2713, %v3039
      %v3293 = vmul.f32 %v2715, %v3039
      %v3294 = vmul.f32 %v2717, %v3039
      %v3295 = vmul.f32 %v2719, %v3039
      %v3296 = vpack.c.bf16 %v3048, %v3040
      %v3297 = vpack.c.bf16 %v3049, %v3041
      %v3298 = vpack.c.bf16 %v3050, %v3042
      %v3299 = vpack.c.bf16 %v3051, %v3043
      %v3300 = vpack.c.bf16 %v3052, %v3044
      %v3301 = vpack.c.bf16 %v3053, %v3045
      %v3302 = vpack.c.bf16 %v3054, %v3046
      %v3303 = vpack.c.bf16 %v3055, %v3047
      %v3304 = vpack.c.bf16 %v3064, %v3056
      %v3305 = vpack.c.bf16 %v3065, %v3057
      %v3306 = vpack.c.bf16 %v3066, %v3058
      %v3307 = vpack.c.bf16 %v3067, %v3059
      %v3308 = vpack.c.bf16 %v3068, %v3060
      %v3309 = vpack.c.bf16 %v3069, %v3061
      %v3310 = vpack.c.bf16 %v3070, %v3062
      %v3311 = vpack.c.bf16 %v3071, %v3063
      %v3312 = vpack.c.bf16 %v3080, %v3072
      %v3313 = vpack.c.bf16 %v3081, %v3073
      %v3314 = vpack.c.bf16 %v3082, %v3074
      %v3315 = vpack.c.bf16 %v3083, %v3075
      %v3316 = vpack.c.bf16 %v3084, %v3076
      %v3317 = vpack.c.bf16 %v3085, %v3077
      %v3318 = vpack.c.bf16 %v3086, %v3078
      %v3319 = vpack.c.bf16 %v3087, %v3079
      %v3320 = vpack.c.bf16 %v3096, %v3088
      %v3321 = vpack.c.bf16 %v3097, %v3089
      %v3322 = vpack.c.bf16 %v3098, %v3090
      %v3323 = vpack.c.bf16 %v3099, %v3091
      %v3324 = vpack.c.bf16 %v3100, %v3092
      %v3325 = vpack.c.bf16 %v3101, %v3093
      %v3326 = vpack.c.bf16 %v3102, %v3094
      %v3327 = vpack.c.bf16 %v3103, %v3095
      %v3328 = vpack.c.bf16 %v3112, %v3104
      %v3329 = vpack.c.bf16 %v3113, %v3105
      %v3330 = vpack.c.bf16 %v3114, %v3106
      %v3331 = vpack.c.bf16 %v3115, %v3107
      %v3332 = vpack.c.bf16 %v3116, %v3108
      %v3333 = vpack.c.bf16 %v3117, %v3109
      %v3334 = vpack.c.bf16 %v3118, %v3110
      %v3335 = vpack.c.bf16 %v3119, %v3111
      %v3336 = vpack.c.bf16 %v3128, %v3120
      %v3337 = vpack.c.bf16 %v3129, %v3121
      %v3338 = vpack.c.bf16 %v3130, %v3122
      %v3339 = vpack.c.bf16 %v3131, %v3123
      %v3340 = vpack.c.bf16 %v3132, %v3124
      %v3341 = vpack.c.bf16 %v3133, %v3125
      %v3342 = vpack.c.bf16 %v3134, %v3126
      %v3343 = vpack.c.bf16 %v3135, %v3127
      %v3344 = vpack.c.bf16 %v3144, %v3136
      %v3345 = vpack.c.bf16 %v3145, %v3137
      %v3346 = vpack.c.bf16 %v3146, %v3138
      %v3347 = vpack.c.bf16 %v3147, %v3139
      %v3348 = vpack.c.bf16 %v3148, %v3140
      %v3349 = vpack.c.bf16 %v3149, %v3141
      %v3350 = vpack.c.bf16 %v3150, %v3142
      %v3351 = vpack.c.bf16 %v3151, %v3143
      %v3352 = vpack.c.bf16 %v3160, %v3152
      %v3353 = vpack.c.bf16 %v3161, %v3153
      %v3354 = vpack.c.bf16 %v3162, %v3154
      %v3355 = vpack.c.bf16 %v3163, %v3155
      %v3356 = vpack.c.bf16 %v3164, %v3156
      %v3357 = vpack.c.bf16 %v3165, %v3157
      %v3358 = vpack.c.bf16 %v3166, %v3158
      %v3359 = vpack.c.bf16 %v3167, %v3159
      %v3360 = vpack.c.bf16 %v3176, %v3168
      %v3361 = vpack.c.bf16 %v3177, %v3169
      %v3362 = vpack.c.bf16 %v3178, %v3170
      %v3363 = vpack.c.bf16 %v3179, %v3171
      %v3364 = vpack.c.bf16 %v3180, %v3172
      %v3365 = vpack.c.bf16 %v3181, %v3173
      %v3366 = vpack.c.bf16 %v3182, %v3174
      %v3367 = vpack.c.bf16 %v3183, %v3175
      %v3368 = vpack.c.bf16 %v3192, %v3184
      %v3369 = vpack.c.bf16 %v3193, %v3185
      %v3370 = vpack.c.bf16 %v3194, %v3186
      %v3371 = vpack.c.bf16 %v3195, %v3187
      %v3372 = vpack.c.bf16 %v3196, %v3188
      %v3373 = vpack.c.bf16 %v3197, %v3189
      %v3374 = vpack.c.bf16 %v3198, %v3190
      %v3375 = vpack.c.bf16 %v3199, %v3191
      %v3376 = vpack.c.bf16 %v3208, %v3200
      %v3377 = vpack.c.bf16 %v3209, %v3201
      %v3378 = vpack.c.bf16 %v3210, %v3202
      %v3379 = vpack.c.bf16 %v3211, %v3203
      %v3380 = vpack.c.bf16 %v3212, %v3204
      %v3381 = vpack.c.bf16 %v3213, %v3205
      %v3382 = vpack.c.bf16 %v3214, %v3206
      %v3383 = vpack.c.bf16 %v3215, %v3207
      %v3384 = vpack.c.bf16 %v3224, %v3216
      %v3385 = vpack.c.bf16 %v3225, %v3217
      %v3386 = vpack.c.bf16 %v3226, %v3218
      %v3387 = vpack.c.bf16 %v3227, %v3219
      %v3388 = vpack.c.bf16 %v3228, %v3220
      %v3389 = vpack.c.bf16 %v3229, %v3221
      %v3390 = vpack.c.bf16 %v3230, %v3222
      %v3391 = vpack.c.bf16 %v3231, %v3223
      %v3392 = vpack.c.bf16 %v3240, %v3232
      %v3393 = vpack.c.bf16 %v3241, %v3233
      %v3394 = vpack.c.bf16 %v3242, %v3234
      %v3395 = vpack.c.bf16 %v3243, %v3235
      %v3396 = vpack.c.bf16 %v3244, %v3236
      %v3397 = vpack.c.bf16 %v3245, %v3237
      %v3398 = vpack.c.bf16 %v3246, %v3238
      %v3399 = vpack.c.bf16 %v3247, %v3239
      %v3400 = vpack.c.bf16 %v3256, %v3248
      %v3401 = vpack.c.bf16 %v3257, %v3249
      %v3402 = vpack.c.bf16 %v3258, %v3250
      %v3403 = vpack.c.bf16 %v3259, %v3251
      %v3404 = vpack.c.bf16 %v3260, %v3252
      %v3405 = vpack.c.bf16 %v3261, %v3253
      %v3406 = vpack.c.bf16 %v3262, %v3254
      %v3407 = vpack.c.bf16 %v3263, %v3255
      %v3408 = vpack.c.bf16 %v3272, %v3264
      %v3409 = vpack.c.bf16 %v3273, %v3265
      %v3410 = vpack.c.bf16 %v3274, %v3266
      %v3411 = vpack.c.bf16 %v3275, %v3267
      %v3412 = vpack.c.bf16 %v3276, %v3268
      %v3413 = vpack.c.bf16 %v3277, %v3269
      %v3414 = vpack.c.bf16 %v3278, %v3270
      %v3415 = vpack.c.bf16 %v3279, %v3271
      %v3416 = vpack.c.bf16 %v3288, %v3280
      %v3417 = vpack.c.bf16 %v3289, %v3281
      %v3418 = vpack.c.bf16 %v3290, %v3282
      %v3419 = vpack.c.bf16 %v3291, %v3283
      %v3420 = vpack.c.bf16 %v3292, %v3284
      %v3421 = vpack.c.bf16 %v3293, %v3285
      %v3422 = vpack.c.bf16 %v3294, %v3286
      %v3423 = vpack.c.bf16 %v3295, %v3287
      %v3424 = vld [vmem:[%s275] sm:$0xf]
      %v3425 = vld [vmem:[%s275 + $0x4] sm:$0xf]
      %v3426 = vld [vmem:[%s275 + $0x8] sm:$0xf]
      %v3427 = vld [vmem:[%s275 + $0xc] sm:$0xf]
      %v3428 = vld [vmem:[%s275 + $0x10] sm:$0xf]
      %v3429 = vld [vmem:[%s275 + $0x14] sm:$0xf]
      %v3430 = vld [vmem:[%s275 + $0x18] sm:$0xf]
      %v3431 = vld [vmem:[%s275 + $0x1c] sm:$0xf]
      %v3432 = vld [vmem:[%s275 + $0x20] sm:$0xf]
      %v3433 = vld [vmem:[%s275 + $0x24] sm:$0xf]
      %v3434 = vld [vmem:[%s275 + $0x28] sm:$0xf]
      %v3435 = vld [vmem:[%s275 + $0x2c] sm:$0xf]
      %v3436 = vld [vmem:[%s275 + $0x30] sm:$0xf]
      %v3437 = vld [vmem:[%s275 + $0x34] sm:$0xf]
      %v3438 = vld [vmem:[%s275 + $0x38] sm:$0xf]
      %v3439 = vld [vmem:[%s275 + $0x3c] sm:$0xf]
      %v3440 = vld [vmem:[%s275 + $0x40] sm:$0xf]
      %v3441 = vld [vmem:[%s275 + $0x44] sm:$0xf]
      %v3442 = vld [vmem:[%s275 + $0x48] sm:$0xf]
      %v3443 = vld [vmem:[%s275 + $0x4c] sm:$0xf]
      %v3444 = vld [vmem:[%s275 + $0x50] sm:$0xf]
      %v3445 = vld [vmem:[%s275 + $0x54] sm:$0xf]
      %v3446 = vld [vmem:[%s275 + $0x58] sm:$0xf]
      %v3447 = vld [vmem:[%s275 + $0x5c] sm:$0xf]
      %v3448 = vld [vmem:[%s275 + $0x60] sm:$0xf]
      %v3449 = vld [vmem:[%s275 + $0x64] sm:$0xf]
      %v3450 = vld [vmem:[%s275 + $0x68] sm:$0xf]
      %v3451 = vld [vmem:[%s275 + $0x6c] sm:$0xf]
      %v3452 = vld [vmem:[%s275 + $0x70] sm:$0xf]
      %v3453 = vld [vmem:[%s275 + $0x74] sm:$0xf]
      %v3454 = vld [vmem:[%s275 + $0x78] sm:$0xf]
      %v3455 = vld [vmem:[%s275 + $0x7c] sm:$0xf]
      %v3456 = vld [vmem:[%s275 + $0x80] sm:$0xf]
      %v3457 = vld [vmem:[%s275 + $0x84] sm:$0xf]
      %v3458 = vld [vmem:[%s275 + $0x88] sm:$0xf]
      %v3459 = vld [vmem:[%s275 + $0x8c] sm:$0xf]
      %v3460 = vld [vmem:[%s275 + $0x90] sm:$0xf]
      %v3461 = vld [vmem:[%s275 + $0x94] sm:$0xf]
      %v3462 = vld [vmem:[%s275 + $0x98] sm:$0xf]
      %v3463 = vld [vmem:[%s275 + $0x9c] sm:$0xf]
      %v3464 = vld [vmem:[%s275 + $0xa0] sm:$0xf]
      %v3465 = vld [vmem:[%s275 + $0xa4] sm:$0xf]
      %v3466 = vld [vmem:[%s275 + $0xa8] sm:$0xf]
      %v3467 = vld [vmem:[%s275 + $0xac] sm:$0xf]
      %v3468 = vld [vmem:[%s275 + $0xb0] sm:$0xf]
      %v3469 = vld [vmem:[%s275 + $0xb4] sm:$0xf]
      %v3470 = vld [vmem:[%s275 + $0xb8] sm:$0xf]
      %v3471 = vld [vmem:[%s275 + $0xbc] sm:$0xf]
      %v3472 = vld [vmem:[%s275 + $0xc0] sm:$0xf]
      %v3473 = vld [vmem:[%s275 + $0xc4] sm:$0xf]
      %v3474 = vld [vmem:[%s275 + $0xc8] sm:$0xf]
      %v3475 = vld [vmem:[%s275 + $0xcc] sm:$0xf]
      %v3476 = vld [vmem:[%s275 + $0xd0] sm:$0xf]
      %v3477 = vld [vmem:[%s275 + $0xd4] sm:$0xf]
      %v3478 = vld [vmem:[%s275 + $0xd8] sm:$0xf]
      %v3479 = vld [vmem:[%s275 + $0xdc] sm:$0xf]
      %v3480 = vld [vmem:[%s275 + $0xe0] sm:$0xf]
      %v3481 = vld [vmem:[%s275 + $0xe4] sm:$0xf]
      %v3482 = vld [vmem:[%s275 + $0xe8] sm:$0xf]
      %v3483 = vld [vmem:[%s275 + $0xec] sm:$0xf]
      %v3484 = vld [vmem:[%s275 + $0xf0] sm:$0xf]
      %v3485 = vld [vmem:[%s275 + $0xf4] sm:$0xf]
      %v3486 = vld [vmem:[%s275 + $0xf8] sm:$0xf]
      %v3487 = vld [vmem:[%s275 + $0xfc] sm:$0xf]
      %v3488 = vld [vmem:[%s275 + $0x100] sm:$0xf]
      %v3489 = vld [vmem:[%s275 + $0x104] sm:$0xf]
      %v3490 = vld [vmem:[%s275 + $0x108] sm:$0xf]
      %v3491 = vld [vmem:[%s275 + $0x10c] sm:$0xf]
      %v3492 = vld [vmem:[%s275 + $0x110] sm:$0xf]
      %v3493 = vld [vmem:[%s275 + $0x114] sm:$0xf]
      %v3494 = vld [vmem:[%s275 + $0x118] sm:$0xf]
      %v3495 = vld [vmem:[%s275 + $0x11c] sm:$0xf]
      %v3496 = vld [vmem:[%s275 + $0x120] sm:$0xf]
      %v3497 = vld [vmem:[%s275 + $0x124] sm:$0xf]
      %v3498 = vld [vmem:[%s275 + $0x128] sm:$0xf]
      %v3499 = vld [vmem:[%s275 + $0x12c] sm:$0xf]
      %v3500 = vld [vmem:[%s275 + $0x130] sm:$0xf]
      %v3501 = vld [vmem:[%s275 + $0x134] sm:$0xf]
      %v3502 = vld [vmem:[%s275 + $0x138] sm:$0xf]
      %v3503 = vld [vmem:[%s275 + $0x13c] sm:$0xf]
      %v3504 = vld [vmem:[%s275 + $0x140] sm:$0xf]
      %v3505 = vld [vmem:[%s275 + $0x144] sm:$0xf]
      %v3506 = vld [vmem:[%s275 + $0x148] sm:$0xf]
      %v3507 = vld [vmem:[%s275 + $0x14c] sm:$0xf]
      %v3508 = vld [vmem:[%s275 + $0x150] sm:$0xf]
      %v3509 = vld [vmem:[%s275 + $0x154] sm:$0xf]
      %v3510 = vld [vmem:[%s275 + $0x158] sm:$0xf]
      %v3511 = vld [vmem:[%s275 + $0x15c] sm:$0xf]
      %v3512 = vld [vmem:[%s275 + $0x160] sm:$0xf]
      %v3513 = vld [vmem:[%s275 + $0x164] sm:$0xf]
      %v3514 = vld [vmem:[%s275 + $0x168] sm:$0xf]
      %v3515 = vld [vmem:[%s275 + $0x16c] sm:$0xf]
      %v3516 = vld [vmem:[%s275 + $0x170] sm:$0xf]
      %v3517 = vld [vmem:[%s275 + $0x174] sm:$0xf]
      %v3518 = vld [vmem:[%s275 + $0x178] sm:$0xf]
      %v3519 = vld [vmem:[%s275 + $0x17c] sm:$0xf]
      %v3520 = vld [vmem:[%s275 + $0x180] sm:$0xf]
      %v3521 = vld [vmem:[%s275 + $0x184] sm:$0xf]
      %v3522 = vld [vmem:[%s275 + $0x188] sm:$0xf]
      %v3523 = vld [vmem:[%s275 + $0x18c] sm:$0xf]
      %v3524 = vld [vmem:[%s275 + $0x190] sm:$0xf]
      %v3525 = vld [vmem:[%s275 + $0x194] sm:$0xf]
      %v3526 = vld [vmem:[%s275 + $0x198] sm:$0xf]
      %v3527 = vld [vmem:[%s275 + $0x19c] sm:$0xf]
      %v3528 = vld [vmem:[%s275 + $0x1a0] sm:$0xf]
      %v3529 = vld [vmem:[%s275 + $0x1a4] sm:$0xf]
      %v3530 = vld [vmem:[%s275 + $0x1a8] sm:$0xf]
      %v3531 = vld [vmem:[%s275 + $0x1ac] sm:$0xf]
      %v3532 = vld [vmem:[%s275 + $0x1b0] sm:$0xf]
      %v3533 = vld [vmem:[%s275 + $0x1b4] sm:$0xf]
      %v3534 = vld [vmem:[%s275 + $0x1b8] sm:$0xf]
      %v3535 = vld [vmem:[%s275 + $0x1bc] sm:$0xf]
      %v3536 = vld [vmem:[%s275 + $0x1c0] sm:$0xf]
      %v3537 = vld [vmem:[%s275 + $0x1c4] sm:$0xf]
      %v3538 = vld [vmem:[%s275 + $0x1c8] sm:$0xf]
      %v3539 = vld [vmem:[%s275 + $0x1cc] sm:$0xf]
      %v3540 = vld [vmem:[%s275 + $0x1d0] sm:$0xf]
      %v3541 = vld [vmem:[%s275 + $0x1d4] sm:$0xf]
      %v3542 = vld [vmem:[%s275 + $0x1d8] sm:$0xf]
      %v3543 = vld [vmem:[%s275 + $0x1dc] sm:$0xf]
      %v3544 = vld [vmem:[%s275 + $0x1e0] sm:$0xf]
      %v3545 = vld [vmem:[%s275 + $0x1e4] sm:$0xf]
      %v3546 = vld [vmem:[%s275 + $0x1e8] sm:$0xf]
      %v3547 = vld [vmem:[%s275 + $0x1ec] sm:$0xf]
      %v3548 = vld [vmem:[%s275 + $0x1f0] sm:$0xf]
      %v3549 = vld [vmem:[%s275 + $0x1f4] sm:$0xf]
      %v3550 = vld [vmem:[%s275 + $0x1f8] sm:$0xf]
      %v3551 = vld [vmem:[%s275 + $0x1fc] sm:$0xf]
      %v3680 = vunpack.c.l.b16 %v3424
      %v3681 = vunpack.c.l.b16 %v3425
      %v3682 = vunpack.c.l.b16 %v3426
      %v3683 = vunpack.c.l.b16 %v3427
      %v3684 = vunpack.c.l.b16 %v3428
      %v3685 = vunpack.c.l.b16 %v3429
      %v3686 = vunpack.c.l.b16 %v3430
      %v3687 = vunpack.c.l.b16 %v3431
      %v3688 = vunpack.c.l.b16 %v3432
      %v3689 = vunpack.c.l.b16 %v3433
      %v3690 = vunpack.c.l.b16 %v3434
      %v3691 = vunpack.c.l.b16 %v3435
      %v3692 = vunpack.c.l.b16 %v3436
      %v3693 = vunpack.c.l.b16 %v3437
      %v3694 = vunpack.c.l.b16 %v3438
      %v3695 = vunpack.c.l.b16 %v3439
      %v3696 = vunpack.c.l.b16 %v3440
      %v3697 = vunpack.c.l.b16 %v3441
      %v3698 = vunpack.c.l.b16 %v3442
      %v3699 = vunpack.c.l.b16 %v3443
      %v3700 = vunpack.c.l.b16 %v3444
      %v3701 = vunpack.c.l.b16 %v3445
      %v3702 = vunpack.c.l.b16 %v3446
      %v3703 = vunpack.c.l.b16 %v3447
      %v3704 = vunpack.c.l.b16 %v3448
      %v3705 = vunpack.c.l.b16 %v3449
      %v3706 = vunpack.c.l.b16 %v3450
      %v3707 = vunpack.c.l.b16 %v3451
      %v3708 = vunpack.c.l.b16 %v3452
      %v3709 = vunpack.c.l.b16 %v3453
      %v3710 = vunpack.c.l.b16 %v3454
      %v3711 = vunpack.c.l.b16 %v3455
      %v3712 = vunpack.c.l.b16 %v3456
      %v3713 = vunpack.c.l.b16 %v3457
      %v3714 = vunpack.c.l.b16 %v3458
      %v3715 = vunpack.c.l.b16 %v3459
      %v3716 = vunpack.c.l.b16 %v3460
      %v3717 = vunpack.c.l.b16 %v3461
      %v3718 = vunpack.c.l.b16 %v3462
      %v3719 = vunpack.c.l.b16 %v3463
      %v3720 = vunpack.c.l.b16 %v3464
      %v3721 = vunpack.c.l.b16 %v3465
      %v3722 = vunpack.c.l.b16 %v3466
      %v3723 = vunpack.c.l.b16 %v3467
      %v3724 = vunpack.c.l.b16 %v3468
      %v3725 = vunpack.c.l.b16 %v3469
      %v3726 = vunpack.c.l.b16 %v3470
      %v3727 = vunpack.c.l.b16 %v3471
      %v3728 = vunpack.c.l.b16 %v3472
      %v3729 = vunpack.c.l.b16 %v3473
      %v3730 = vunpack.c.l.b16 %v3474
      %v3731 = vunpack.c.l.b16 %v3475
      %v3732 = vunpack.c.l.b16 %v3476
      %v3733 = vunpack.c.l.b16 %v3477
      %v3734 = vunpack.c.l.b16 %v3478
      %v3735 = vunpack.c.l.b16 %v3479
      %v3736 = vunpack.c.l.b16 %v3480
      %v3737 = vunpack.c.l.b16 %v3481
      %v3738 = vunpack.c.l.b16 %v3482
      %v3739 = vunpack.c.l.b16 %v3483
      %v3740 = vunpack.c.l.b16 %v3484
      %v3741 = vunpack.c.l.b16 %v3485
      %v3742 = vunpack.c.l.b16 %v3486
      %v3743 = vunpack.c.l.b16 %v3487
      %v3744 = vunpack.c.l.b16 %v3488
      %v3745 = vunpack.c.l.b16 %v3489
      %v3746 = vunpack.c.l.b16 %v3490
      %v3747 = vunpack.c.l.b16 %v3491
      %v3748 = vunpack.c.l.b16 %v3492
      %v3749 = vunpack.c.l.b16 %v3493
      %v3750 = vunpack.c.l.b16 %v3494
      %v3751 = vunpack.c.l.b16 %v3495
      %v3752 = vunpack.c.l.b16 %v3496
      %v3753 = vunpack.c.l.b16 %v3497
      %v3754 = vunpack.c.l.b16 %v3498
      %v3755 = vunpack.c.l.b16 %v3499
      %v3756 = vunpack.c.l.b16 %v3500
      %v3757 = vunpack.c.l.b16 %v3501
      %v3758 = vunpack.c.l.b16 %v3502
      %v3759 = vunpack.c.l.b16 %v3503
      %v3760 = vunpack.c.l.b16 %v3504
      %v3761 = vunpack.c.l.b16 %v3505
      %v3762 = vunpack.c.l.b16 %v3506
      %v3763 = vunpack.c.l.b16 %v3507
      %v3764 = vunpack.c.l.b16 %v3508
      %v3765 = vunpack.c.l.b16 %v3509
      %v3766 = vunpack.c.l.b16 %v3510
      %v3767 = vunpack.c.l.b16 %v3511
      %v3768 = vunpack.c.l.b16 %v3512
      %v3769 = vunpack.c.l.b16 %v3513
      %v3770 = vunpack.c.l.b16 %v3514
      %v3771 = vunpack.c.l.b16 %v3515
      %v3772 = vunpack.c.l.b16 %v3516
      %v3773 = vunpack.c.l.b16 %v3517
      %v3774 = vunpack.c.l.b16 %v3518
      %v3775 = vunpack.c.l.b16 %v3519
      %v3776 = vunpack.c.l.b16 %v3520
      %v3777 = vunpack.c.l.b16 %v3521
      %v3778 = vunpack.c.l.b16 %v3522
      %v3779 = vunpack.c.l.b16 %v3523
      %v3780 = vunpack.c.l.b16 %v3524
      %v3781 = vunpack.c.l.b16 %v3525
      %v3782 = vunpack.c.l.b16 %v3526
      %v3783 = vunpack.c.l.b16 %v3527
      %v3784 = vunpack.c.l.b16 %v3528
      %v3785 = vunpack.c.l.b16 %v3529
      %v3786 = vunpack.c.l.b16 %v3530
      %v3787 = vunpack.c.l.b16 %v3531
      %v3788 = vunpack.c.l.b16 %v3532
      %v3789 = vunpack.c.l.b16 %v3533
      %v3790 = vunpack.c.l.b16 %v3534
      %v3791 = vunpack.c.l.b16 %v3535
      %v3792 = vunpack.c.l.b16 %v3536
      %v3793 = vunpack.c.l.b16 %v3537
      %v3794 = vunpack.c.l.b16 %v3538
      %v3795 = vunpack.c.l.b16 %v3539
      %v3796 = vunpack.c.l.b16 %v3540
      %v3797 = vunpack.c.l.b16 %v3541
      %v3798 = vunpack.c.l.b16 %v3542
      %v3799 = vunpack.c.l.b16 %v3543
      %v3800 = vunpack.c.l.b16 %v3544
      %v3801 = vunpack.c.l.b16 %v3545
      %v3802 = vunpack.c.l.b16 %v3546
      %v3803 = vunpack.c.l.b16 %v3547
      %v3804 = vunpack.c.l.b16 %v3548
      %v3805 = vunpack.c.l.b16 %v3549
      %v3806 = vunpack.c.l.b16 %v3550
      %v3807 = vunpack.c.l.b16 %v3551
      %v3808 = vpack.c.b16 %v3681, %v3680
      %v3809 = vpack.c.b16 %v3683, %v3682
      %v3810 = vpack.c.b16 %v3685, %v3684
      %v3811 = vpack.c.b16 %v3687, %v3686
      %v3812 = vpack.c.b16 %v3689, %v3688
      %v3813 = vpack.c.b16 %v3691, %v3690
      %v3814 = vpack.c.b16 %v3693, %v3692
      %v3815 = vpack.c.b16 %v3695, %v3694
      %v3816 = vpack.c.b16 %v3697, %v3696
      %v3817 = vpack.c.b16 %v3699, %v3698
      %v3818 = vpack.c.b16 %v3701, %v3700
      %v3819 = vpack.c.b16 %v3703, %v3702
      %v3820 = vpack.c.b16 %v3705, %v3704
      %v3821 = vpack.c.b16 %v3707, %v3706
      %v3822 = vpack.c.b16 %v3709, %v3708
      %v3823 = vpack.c.b16 %v3711, %v3710
      %v3824 = vpack.c.b16 %v3713, %v3712
      %v3825 = vpack.c.b16 %v3715, %v3714
      %v3826 = vpack.c.b16 %v3717, %v3716
      %v3827 = vpack.c.b16 %v3719, %v3718
      %v3828 = vpack.c.b16 %v3721, %v3720
      %v3829 = vpack.c.b16 %v3723, %v3722
      %v3830 = vpack.c.b16 %v3725, %v3724
      %v3831 = vpack.c.b16 %v3727, %v3726
      %v3832 = vpack.c.b16 %v3729, %v3728
      %v3833 = vpack.c.b16 %v3731, %v3730
      %v3834 = vpack.c.b16 %v3733, %v3732
      %v3835 = vpack.c.b16 %v3735, %v3734
      %v3836 = vpack.c.b16 %v3737, %v3736
      %v3837 = vpack.c.b16 %v3739, %v3738
      %v3838 = vpack.c.b16 %v3741, %v3740
      %v3839 = vpack.c.b16 %v3743, %v3742
      %v3840 = vpack.c.b16 %v3745, %v3744
      %v3841 = vpack.c.b16 %v3747, %v3746
      %v3842 = vpack.c.b16 %v3749, %v3748
      %v3843 = vpack.c.b16 %v3751, %v3750
      %v3844 = vpack.c.b16 %v3753, %v3752
      %v3845 = vpack.c.b16 %v3755, %v3754
      %v3846 = vpack.c.b16 %v3757, %v3756
      %v3847 = vpack.c.b16 %v3759, %v3758
      %v3848 = vpack.c.b16 %v3761, %v3760
      %v3849 = vpack.c.b16 %v3763, %v3762
      %v3850 = vpack.c.b16 %v3765, %v3764
      %v3851 = vpack.c.b16 %v3767, %v3766
      %v3852 = vpack.c.b16 %v3769, %v3768
      %v3853 = vpack.c.b16 %v3771, %v3770
      %v3854 = vpack.c.b16 %v3773, %v3772
      %v3855 = vpack.c.b16 %v3775, %v3774
      %v3856 = vpack.c.b16 %v3777, %v3776
      %v3857 = vpack.c.b16 %v3779, %v3778
      %v3858 = vpack.c.b16 %v3781, %v3780
      %v3859 = vpack.c.b16 %v3783, %v3782
      %v3860 = vpack.c.b16 %v3785, %v3784
      %v3861 = vpack.c.b16 %v3787, %v3786
      %v3862 = vpack.c.b16 %v3789, %v3788
      %v3863 = vpack.c.b16 %v3791, %v3790
      %v3864 = vpack.c.b16 %v3793, %v3792
      %v3865 = vpack.c.b16 %v3795, %v3794
      %v3866 = vpack.c.b16 %v3797, %v3796
      %v3867 = vpack.c.b16 %v3799, %v3798
      %v3868 = vpack.c.b16 %v3801, %v3800
      %v3869 = vpack.c.b16 %v3803, %v3802
      %v3870 = vpack.c.b16 %v3805, %v3804
      %v3871 = vpack.c.b16 %v3807, %v3806
      %3936 = vmatprep.subr.bf16.mxu0 0
      %3937 = vmatpush1.bf16.msra.mxu0 %v3808
      %3938 = vmatprep.subr.bf16.mxu0 0
      %3939 = vmatpush1.bf16.msra.mxu0 %v3809
      %3940 = vmatprep.subr.bf16.mxu0 0
      %3941 = vmatpush1.bf16.msra.mxu0 %v3810
      %3942 = vmatprep.subr.bf16.mxu0 0
      %3943 = vmatpush1.bf16.msra.mxu0 %v3811
      %3944 = vmatprep.subr.bf16.mxu0 0
      %3945 = vmatpush1.bf16.msra.mxu0 %v3812
      %3946 = vmatprep.subr.bf16.mxu0 0
      %3947 = vmatpush1.bf16.msra.mxu0 %v3813
      %3948 = vmatprep.subr.bf16.mxu0 0
      %3949 = vmatpush1.bf16.msra.mxu0 %v3814
      %3950 = vmatprep.subr.bf16.mxu0 0
      %3951 = vmatpush1.bf16.msra.mxu0 %v3815
      %3952 = vmatprep.subr.bf16.mxu0 0
      %3953 = vmatpush1.bf16.msra.mxu0 %v3816
      %3954 = vmatprep.subr.bf16.mxu0 0
      %3955 = vmatpush1.bf16.msra.mxu0 %v3817
      %3956 = vmatprep.subr.bf16.mxu0 0
      %3957 = vmatpush1.bf16.msra.mxu0 %v3818
      %3958 = vmatprep.subr.bf16.mxu0 0
      %3959 = vmatpush1.bf16.msra.mxu0 %v3819
      %3960 = vmatprep.subr.bf16.mxu0 0
      %3961 = vmatpush1.bf16.msra.mxu0 %v3820
      %3962 = vmatprep.subr.bf16.mxu0 0
      %3963 = vmatpush1.bf16.msra.mxu0 %v3821
      %3964 = vmatprep.subr.bf16.mxu0 0
      %3965 = vmatpush1.bf16.msra.mxu0 %v3822
      %3966 = vmatprep.subr.bf16.mxu0 0
      %3967 = vmatpush1.bf16.msra.mxu0 %v3823
      %3968 = vmatprep.mubr.bf16.mxu0 %v3297
      %3969 = vmatmul.mubr.bf16.gmra.mrb[0].mxu0 %v3296
      %v3970 = vpop.f32.mrb[0].mxu0
      %v3971 = vadd.f32 0.0, %v3970
      %v3972 = vpop.f32.mrb[0].mxu0
      %v3973 = vpop.f32.mrb[0].mxu0
      %v3974 = vadd.f32 0.0, %v3973
      %v3975 = vpop.f32.mrb[0].mxu0
      %3976 = vmatprep.mubr.bf16.mxu0 %v3305
      %3977 = vmatmul.mubr.bf16.gmra.mrb[0].mxu0 %v3304
      %v3978 = vpop.f32.mrb[0].mxu0
      %v3979 = vadd.f32 0.0, %v3978
      %v3980 = vpop.f32.mrb[0].mxu0
      %v3981 = vpop.f32.mrb[0].mxu0
      %v3982 = vadd.f32 0.0, %v3981
      %v3983 = vpop.f32.mrb[0].mxu0
      %3984 = vmatprep.mubr.bf16.mxu0 %v3313
      %3985 = vmatmul.mubr.bf16.gmra.mrb[0].mxu0 %v3312
      %v3986 = vpop.f32.mrb[0].mxu0
      %v3987 = vadd.f32 0.0, %v3986
      %v3988 = vpop.f32.mrb[0].mxu0
      %v3989 = vpop.f32.mrb[0].mxu0
      %v3990 = vadd.f32 0.0, %v3989
      %v3991 = vpop.f32.mrb[0].mxu0
      %3992 = vmatprep.mubr.bf16.mxu0 %v3321
      %3993 = vmatmul.mubr.bf16.gmra.mrb[0].mxu0 %v3320
      %v3994 = vpop.f32.mrb[0].mxu0
      %v3995 = vadd.f32 0.0, %v3994
      %v3996 = vpop.f32.mrb[0].mxu0
      %v3997 = vpop.f32.mrb[0].mxu0
      %v3998 = vadd.f32 0.0, %v3997
      %v3999 = vpop.f32.mrb[0].mxu0
      %4000 = vmatprep.mubr.bf16.mxu0 %v3329
      %4001 = vmatmul.mubr.bf16.gmra.mrb[0].mxu0 %v3328
      %v4002 = vpop.f32.mrb[0].mxu0
      %v4003 = vadd.f32 0.0, %v4002
      %v4004 = vpop.f32.mrb[0].mxu0
      %v4005 = vpop.f32.mrb[0].mxu0
      %v4006 = vadd.f32 0.0, %v4005
      %v4007 = vpop.f32.mrb[0].mxu0
      %4008 = vmatprep.mubr.bf16.mxu0 %v3337
      %4009 = vmatmul.mubr.bf16.gmra.mrb[0].mxu0 %v3336
      %v4010 = vpop.f32.mrb[0].mxu0
      %v4011 = vadd.f32 0.0, %v4010
      %v4012 = vpop.f32.mrb[0].mxu0
      %v4013 = vpop.f32.mrb[0].mxu0
      %v4014 = vadd.f32 0.0, %v4013
      %v4015 = vpop.f32.mrb[0].mxu0
      %4016 = vmatprep.mubr.bf16.mxu0 %v3345
      %4017 = vmatmul.mubr.bf16.gmra.mrb[0].mxu0 %v3344
      %v4018 = vpop.f32.mrb[0].mxu0
      %v4019 = vadd.f32 0.0, %v4018
      %v4020 = vpop.f32.mrb[0].mxu0
      %v4021 = vpop.f32.mrb[0].mxu0
      %v4022 = vadd.f32 0.0, %v4021
      %v4023 = vpop.f32.mrb[0].mxu0
      %4024 = vmatprep.mubr.bf16.mxu0 %v3353
      %4025 = vmatmul.mubr.bf16.gmra.mrb[0].mxu0 %v3352
      %v4026 = vpop.f32.mrb[0].mxu0
      %v4027 = vadd.f32 0.0, %v4026
      %v4028 = vpop.f32.mrb[0].mxu0
      %v4029 = vpop.f32.mrb[0].mxu0
      %v4030 = vadd.f32 0.0, %v4029
      %v4031 = vpop.f32.mrb[0].mxu0
      %4032 = vmatprep.mubr.bf16.mxu0 %v3361
      %4033 = vmatmul.mubr.bf16.gmra.mrb[0].mxu0 %v3360
      %v4034 = vpop.f32.mrb[0].mxu0
      %v4035 = vadd.f32 0.0, %v4034
      %v4036 = vpop.f32.mrb[0].mxu0
      %v4037 = vpop.f32.mrb[0].mxu0
      %v4038 = vadd.f32 0.0, %v4037
      %v4039 = vpop.f32.mrb[0].mxu0
      %4040 = vmatprep.mubr.bf16.mxu0 %v3369
      %4041 = vmatmul.mubr.bf16.gmra.mrb[0].mxu0 %v3368
      %v4042 = vpop.f32.mrb[0].mxu0
      %v4043 = vadd.f32 0.0, %v4042
      %v4044 = vpop.f32.mrb[0].mxu0
      %v4045 = vpop.f32.mrb[0].mxu0
      %v4046 = vadd.f32 0.0, %v4045
      %v4047 = vpop.f32.mrb[0].mxu0
      %4048 = vmatprep.mubr.bf16.mxu0 %v3377
      %4049 = vmatmul.mubr.bf16.gmra.mrb[0].mxu0 %v3376
      %v4050 = vpop.f32.mrb[0].mxu0
      %v4051 = vadd.f32 0.0, %v4050
      %v4052 = vpop.f32.mrb[0].mxu0
      %v4053 = vpop.f32.mrb[0].mxu0
      %v4054 = vadd.f32 0.0, %v4053
      %v4055 = vpop.f32.mrb[0].mxu0
      %4056 = vmatprep.mubr.bf16.mxu0 %v3385
      %4057 = vmatmul.mubr.bf16.gmra.mrb[0].mxu0 %v3384
      %v4058 = vpop.f32.mrb[0].mxu0
      %v4059 = vadd.f32 0.0, %v4058
      %v4060 = vpop.f32.mrb[0].mxu0
      %v4061 = vpop.f32.mrb[0].mxu0
      %v4062 = vadd.f32 0.0, %v4061
      %v4063 = vpop.f32.mrb[0].mxu0
      %4064 = vmatprep.mubr.bf16.mxu0 %v3393
      %4065 = vmatmul.mubr.bf16.gmra.mrb[0].mxu0 %v3392
      %v4066 = vpop.f32.mrb[0].mxu0
      %v4067 = vadd.f32 0.0, %v4066
      %v4068 = vpop.f32.mrb[0].mxu0
      %v4069 = vpop.f32.mrb[0].mxu0
      %v4070 = vadd.f32 0.0, %v4069
      %v4071 = vpop.f32.mrb[0].mxu0
      %4072 = vmatprep.mubr.bf16.mxu0 %v3401
      %4073 = vmatmul.mubr.bf16.gmra.mrb[0].mxu0 %v3400
      %v4074 = vpop.f32.mrb[0].mxu0
      %v4075 = vadd.f32 0.0, %v4074
      %v4076 = vpop.f32.mrb[0].mxu0
      %v4077 = vpop.f32.mrb[0].mxu0
      %v4078 = vadd.f32 0.0, %v4077
      %v4079 = vpop.f32.mrb[0].mxu0
      %4080 = vmatprep.mubr.bf16.mxu0 %v3409
      %4081 = vmatmul.mubr.bf16.gmra.mrb[0].mxu0 %v3408
      %v4082 = vpop.f32.mrb[0].mxu0
      %v4083 = vadd.f32 0.0, %v4082
      %v4084 = vpop.f32.mrb[0].mxu0
      %v4085 = vpop.f32.mrb[0].mxu0
      %v4086 = vadd.f32 0.0, %v4085
      %v4087 = vpop.f32.mrb[0].mxu0
      %4088 = vmatprep.mubr.bf16.mxu0 %v3417
      %4089 = vmatmul.mubr.bf16.gmra.mrb[0].mxu0 %v3416
      %v4090 = vpop.f32.mrb[0].mxu0
      %v4091 = vadd.f32 0.0, %v4090
      %v4092 = vpop.f32.mrb[0].mxu0
      %v4093 = vpop.f32.mrb[0].mxu0
      %v4094 = vadd.f32 0.0, %v4093
      %v4095 = vpop.f32.mrb[0].mxu0
      %4096 = vdwg.mxu0
      %4097 = vmatprep.subr.bf16.mxu0 0
      %4098 = vmatpush1.bf16.msra.mxu0 %v3824
      %4099 = vmatprep.subr.bf16.mxu0 0
      %4100 = vmatpush1.bf16.msra.mxu0 %v3825
      %4101 = vmatprep.subr.bf16.mxu0 0
      %4102 = vmatpush1.bf16.msra.mxu0 %v3826
      %4103 = vmatprep.subr.bf16.mxu0 0
      %4104 = vmatpush1.bf16.msra.mxu0 %v3827
      %4105 = vmatprep.subr.bf16.mxu0 0
      %4106 = vmatpush1.bf16.msra.mxu0 %v3828
      %4107 = vmatprep.subr.bf16.mxu0 0
      %4108 = vmatpush1.bf16.msra.mxu0 %v3829
      %4109 = vmatprep.subr.bf16.mxu0 0
      %4110 = vmatpush1.bf16.msra.mxu0 %v3830
      %4111 = vmatprep.subr.bf16.mxu0 0
      %4112 = vmatpush1.bf16.msra.mxu0 %v3831
      %4113 = vmatprep.subr.bf16.mxu0 0
      %4114 = vmatpush1.bf16.msra.mxu0 %v3832
      %4115 = vmatprep.subr.bf16.mxu0 0
      %4116 = vmatpush1.bf16.msra.mxu0 %v3833
      %4117 = vmatprep.subr.bf16.mxu0 0
      %4118 = vmatpush1.bf16.msra.mxu0 %v3834
      %4119 = vmatprep.subr.bf16.mxu0 0
      %4120 = vmatpush1.bf16.msra.mxu0 %v3835
      %4121 = vmatprep.subr.bf16.mxu0 0
      %4122 = vmatpush1.bf16.msra.mxu0 %v3836
      %4123 = vmatprep.subr.bf16.mxu0 0
      %4124 = vmatpush1.bf16.msra.mxu0 %v3837
      %4125 = vmatprep.subr.bf16.mxu0 0
      %4126 = vmatpush1.bf16.msra.mxu0 %v3838
      %4127 = vmatprep.subr.bf16.mxu0 0
      %4128 = vmatpush1.bf16.msra.mxu0 %v3839
      %4129 = vmatprep.mubr.bf16.mxu0 %v3299
      %4130 = vmatmul.mubr.bf16.gmra.mrb[0].mxu0 %v3298
      %v4131 = vpop.f32.mrb[0].mxu0
      %v4132 = vadd.f32 %v3971, %v4131
      %v4133 = vpop.f32.mrb[0].mxu0
      %v4134 = vpop.f32.mrb[0].mxu0
      %v4135 = vadd.f32 %v3974, %v4134
      %v4136 = vpop.f32.mrb[0].mxu0
      %4137 = vmatprep.mubr.bf16.mxu0 %v3307
      %4138 = vmatmul.mubr.bf16.gmra.mrb[0].mxu0 %v3306
      %v4139 = vpop.f32.mrb[0].mxu0
      %v4140 = vadd.f32 %v3979, %v4139
      %v4141 = vpop.f32.mrb[0].mxu0
      %v4142 = vpop.f32.mrb[0].mxu0
      %v4143 = vadd.f32 %v3982, %v4142
      %v4144 = vpop.f32.mrb[0].mxu0
      %4145 = vmatprep.mubr.bf16.mxu0 %v3315
      %4146 = vmatmul.mubr.bf16.gmra.mrb[0].mxu0 %v3314
      %v4147 = vpop.f32.mrb[0].mxu0
      %v4148 = vadd.f32 %v3987, %v4147
      %v4149 = vpop.f32.mrb[0].mxu0
      %v4150 = vpop.f32.mrb[0].mxu0
      %v4151 = vadd.f32 %v3990, %v4150
      %v4152 = vpop.f32.mrb[0].mxu0
      %4153 = vmatprep.mubr.bf16.mxu0 %v3323
      %4154 = vmatmul.mubr.bf16.gmra.mrb[0].mxu0 %v3322
      %v4155 = vpop.f32.mrb[0].mxu0
      %v4156 = vadd.f32 %v3995, %v4155
      %v4157 = vpop.f32.mrb[0].mxu0
      %v4158 = vpop.f32.mrb[0].mxu0
      %v4159 = vadd.f32 %v3998, %v4158
      %v4160 = vpop.f32.mrb[0].mxu0
      %4161 = vmatprep.mubr.bf16.mxu0 %v3331
      %4162 = vmatmul.mubr.bf16.gmra.mrb[0].mxu0 %v3330
      %v4163 = vpop.f32.mrb[0].mxu0
      %v4164 = vadd.f32 %v4003, %v4163
      %v4165 = vpop.f32.mrb[0].mxu0
      %v4166 = vpop.f32.mrb[0].mxu0
      %v4167 = vadd.f32 %v4006, %v4166
      %v4168 = vpop.f32.mrb[0].mxu0
      %4169 = vmatprep.mubr.bf16.mxu0 %v3339
      %4170 = vmatmul.mubr.bf16.gmra.mrb[0].mxu0 %v3338
      %v4171 = vpop.f32.mrb[0].mxu0
      %v4172 = vadd.f32 %v4011, %v4171
      %v4173 = vpop.f32.mrb[0].mxu0
      %v4174 = vpop.f32.mrb[0].mxu0
      %v4175 = vadd.f32 %v4014, %v4174
      %v4176 = vpop.f32.mrb[0].mxu0
      %4177 = vmatprep.mubr.bf16.mxu0 %v3347
      %4178 = vmatmul.mubr.bf16.gmra.mrb[0].mxu0 %v3346
      %v4179 = vpop.f32.mrb[0].mxu0
      %v4180 = vadd.f32 %v4019, %v4179
      %v4181 = vpop.f32.mrb[0].mxu0
      %v4182 = vpop.f32.mrb[0].mxu0
      %v4183 = vadd.f32 %v4022, %v4182
      %v4184 = vpop.f32.mrb[0].mxu0
      %4185 = vmatprep.mubr.bf16.mxu0 %v3355
      %4186 = vmatmul.mubr.bf16.gmra.mrb[0].mxu0 %v3354
      %v4187 = vpop.f32.mrb[0].mxu0
      %v4188 = vadd.f32 %v4027, %v4187
      %v4189 = vpop.f32.mrb[0].mxu0
      %v4190 = vpop.f32.mrb[0].mxu0
      %v4191 = vadd.f32 %v4030, %v4190
      %v4192 = vpop.f32.mrb[0].mxu0
      %4193 = vmatprep.mubr.bf16.mxu0 %v3363
      %4194 = vmatmul.mubr.bf16.gmra.mrb[0].mxu0 %v3362
      %v4195 = vpop.f32.mrb[0].mxu0
      %v4196 = vadd.f32 %v4035, %v4195
      %v4197 = vpop.f32.mrb[0].mxu0
      %v4198 = vpop.f32.mrb[0].mxu0
      %v4199 = vadd.f32 %v4038, %v4198
      %v4200 = vpop.f32.mrb[0].mxu0
      %4201 = vmatprep.mubr.bf16.mxu0 %v3371
      %4202 = vmatmul.mubr.bf16.gmra.mrb[0].mxu0 %v3370
      %v4203 = vpop.f32.mrb[0].mxu0
      %v4204 = vadd.f32 %v4043, %v4203
      %v4205 = vpop.f32.mrb[0].mxu0
      %v4206 = vpop.f32.mrb[0].mxu0
      %v4207 = vadd.f32 %v4046, %v4206
      %v4208 = vpop.f32.mrb[0].mxu0
      %4209 = vmatprep.mubr.bf16.mxu0 %v3379
      %4210 = vmatmul.mubr.bf16.gmra.mrb[0].mxu0 %v3378
      %v4211 = vpop.f32.mrb[0].mxu0
      %v4212 = vadd.f32 %v4051, %v4211
      %v4213 = vpop.f32.mrb[0].mxu0
      %v4214 = vpop.f32.mrb[0].mxu0
      %v4215 = vadd.f32 %v4054, %v4214
      %v4216 = vpop.f32.mrb[0].mxu0
      %4217 = vmatprep.mubr.bf16.mxu0 %v3387
      %4218 = vmatmul.mubr.bf16.gmra.mrb[0].mxu0 %v3386
      %v4219 = vpop.f32.mrb[0].mxu0
      %v4220 = vadd.f32 %v4059, %v4219
      %v4221 = vpop.f32.mrb[0].mxu0
      %v4222 = vpop.f32.mrb[0].mxu0
      %v4223 = vadd.f32 %v4062, %v4222
      %v4224 = vpop.f32.mrb[0].mxu0
      %4225 = vmatprep.mubr.bf16.mxu0 %v3395
      %4226 = vmatmul.mubr.bf16.gmra.mrb[0].mxu0 %v3394
      %v4227 = vpop.f32.mrb[0].mxu0
      %v4228 = vadd.f32 %v4067, %v4227
      %v4229 = vpop.f32.mrb[0].mxu0
      %v4230 = vpop.f32.mrb[0].mxu0
      %v4231 = vadd.f32 %v4070, %v4230
      %v4232 = vpop.f32.mrb[0].mxu0
      %4233 = vmatprep.mubr.bf16.mxu0 %v3403
      %4234 = vmatmul.mubr.bf16.gmra.mrb[0].mxu0 %v3402
      %v4235 = vpop.f32.mrb[0].mxu0
      %v4236 = vadd.f32 %v4075, %v4235
      %v4237 = vpop.f32.mrb[0].mxu0
      %v4238 = vpop.f32.mrb[0].mxu0
      %v4239 = vadd.f32 %v4078, %v4238
      %v4240 = vpop.f32.mrb[0].mxu0
      %4241 = vmatprep.mubr.bf16.mxu0 %v3411
      %4242 = vmatmul.mubr.bf16.gmra.mrb[0].mxu0 %v3410
      %v4243 = vpop.f32.mrb[0].mxu0
      %v4244 = vadd.f32 %v4083, %v4243
      %v4245 = vpop.f32.mrb[0].mxu0
      %v4246 = vpop.f32.mrb[0].mxu0
      %v4247 = vadd.f32 %v4086, %v4246
      %v4248 = vpop.f32.mrb[0].mxu0
      %4249 = vmatprep.mubr.bf16.mxu0 %v3419
      %4250 = vmatmul.mubr.bf16.gmra.mrb[0].mxu0 %v3418
      %v4251 = vpop.f32.mrb[0].mxu0
      %v4252 = vadd.f32 %v4091, %v4251
      %v4253 = vpop.f32.mrb[0].mxu0
      %v4254 = vpop.f32.mrb[0].mxu0
      %v4255 = vadd.f32 %v4094, %v4254
      %v4256 = vpop.f32.mrb[0].mxu0
      %4257 = vdwg.mxu0
      %4258 = vmatprep.subr.bf16.mxu0 0
      %4259 = vmatpush1.bf16.msra.mxu0 %v3840
      %4260 = vmatprep.subr.bf16.mxu0 0
      %4261 = vmatpush1.bf16.msra.mxu0 %v3841
      %4262 = vmatprep.subr.bf16.mxu0 0
      %4263 = vmatpush1.bf16.msra.mxu0 %v3842
      %4264 = vmatprep.subr.bf16.mxu0 0
      %4265 = vmatpush1.bf16.msra.mxu0 %v3843
      %4266 = vmatprep.subr.bf16.mxu0 0
      %4267 = vmatpush1.bf16.msra.mxu0 %v3844
      %4268 = vmatprep.subr.bf16.mxu0 0
      %4269 = vmatpush1.bf16.msra.mxu0 %v3845
      %4270 = vmatprep.subr.bf16.mxu0 0
      %4271 = vmatpush1.bf16.msra.mxu0 %v3846
      %4272 = vmatprep.subr.bf16.mxu0 0
      %4273 = vmatpush1.bf16.msra.mxu0 %v3847
      %4274 = vmatprep.subr.bf16.mxu0 0
      %4275 = vmatpush1.bf16.msra.mxu0 %v3848
      %4276 = vmatprep.subr.bf16.mxu0 0
      %4277 = vmatpush1.bf16.msra.mxu0 %v3849
      %4278 = vmatprep.subr.bf16.mxu0 0
      %4279 = vmatpush1.bf16.msra.mxu0 %v3850
      %4280 = vmatprep.subr.bf16.mxu0 0
      %4281 = vmatpush1.bf16.msra.mxu0 %v3851
      %4282 = vmatprep.subr.bf16.mxu0 0
      %4283 = vmatpush1.bf16.msra.mxu0 %v3852
      %4284 = vmatprep.subr.bf16.mxu0 0
      %4285 = vmatpush1.bf16.msra.mxu0 %v3853
      %4286 = vmatprep.subr.bf16.mxu0 0
      %4287 = vmatpush1.bf16.msra.mxu0 %v3854
      %4288 = vmatprep.subr.bf16.mxu0 0
      %4289 = vmatpush1.bf16.msra.mxu0 %v3855
      %4290 = vmatprep.mubr.bf16.mxu0 %v3301
      %4291 = vmatmul.mubr.bf16.gmra.mrb[0].mxu0 %v3300
      %v4292 = vpop.f32.mrb[0].mxu0
      %v4293 = vadd.f32 %v4132, %v4292
      %v4294 = vpop.f32.mrb[0].mxu0
      %v4295 = vpop.f32.mrb[0].mxu0
      %v4296 = vadd.f32 %v4135, %v4295
      %v4297 = vpop.f32.mrb[0].mxu0
      %4298 = vmatprep.mubr.bf16.mxu0 %v3309
      %4299 = vmatmul.mubr.bf16.gmra.mrb[0].mxu0 %v3308
      %v4300 = vpop.f32.mrb[0].mxu0
      %v4301 = vadd.f32 %v4140, %v4300
      %v4302 = vpop.f32.mrb[0].mxu0
      %v4303 = vpop.f32.mrb[0].mxu0
      %v4304 = vadd.f32 %v4143, %v4303
      %v4305 = vpop.f32.mrb[0].mxu0
      %4306 = vmatprep.mubr.bf16.mxu0 %v3317
      %4307 = vmatmul.mubr.bf16.gmra.mrb[0].mxu0 %v3316
      %v4308 = vpop.f32.mrb[0].mxu0
      %v4309 = vadd.f32 %v4148, %v4308
      %v4310 = vpop.f32.mrb[0].mxu0
      %v4311 = vpop.f32.mrb[0].mxu0
      %v4312 = vadd.f32 %v4151, %v4311
      %v4313 = vpop.f32.mrb[0].mxu0
      %4314 = vmatprep.mubr.bf16.mxu0 %v3325
      %4315 = vmatmul.mubr.bf16.gmra.mrb[0].mxu0 %v3324
      %v4316 = vpop.f32.mrb[0].mxu0
      %v4317 = vadd.f32 %v4156, %v4316
      %v4318 = vpop.f32.mrb[0].mxu0
      %v4319 = vpop.f32.mrb[0].mxu0
      %v4320 = vadd.f32 %v4159, %v4319
      %v4321 = vpop.f32.mrb[0].mxu0
      %4322 = vmatprep.mubr.bf16.mxu0 %v3333
      %4323 = vmatmul.mubr.bf16.gmra.mrb[0].mxu0 %v3332
      %v4324 = vpop.f32.mrb[0].mxu0
      %v4325 = vadd.f32 %v4164, %v4324
      %v4326 = vpop.f32.mrb[0].mxu0
      %v4327 = vpop.f32.mrb[0].mxu0
      %v4328 = vadd.f32 %v4167, %v4327
      %v4329 = vpop.f32.mrb[0].mxu0
      %4330 = vmatprep.mubr.bf16.mxu0 %v3341
      %4331 = vmatmul.mubr.bf16.gmra.mrb[0].mxu0 %v3340
      %v4332 = vpop.f32.mrb[0].mxu0
      %v4333 = vadd.f32 %v4172, %v4332
      %v4334 = vpop.f32.mrb[0].mxu0
      %v4335 = vpop.f32.mrb[0].mxu0
      %v4336 = vadd.f32 %v4175, %v4335
      %v4337 = vpop.f32.mrb[0].mxu0
      %4338 = vmatprep.mubr.bf16.mxu0 %v3349
      %4339 = vmatmul.mubr.bf16.gmra.mrb[0].mxu0 %v3348
      %v4340 = vpop.f32.mrb[0].mxu0
      %v4341 = vadd.f32 %v4180, %v4340
      %v4342 = vpop.f32.mrb[0].mxu0
      %v4343 = vpop.f32.mrb[0].mxu0
      %v4344 = vadd.f32 %v4183, %v4343
      %v4345 = vpop.f32.mrb[0].mxu0
      %4346 = vmatprep.mubr.bf16.mxu0 %v3357
      %4347 = vmatmul.mubr.bf16.gmra.mrb[0].mxu0 %v3356
      %v4348 = vpop.f32.mrb[0].mxu0
      %v4349 = vadd.f32 %v4188, %v4348
      %v4350 = vpop.f32.mrb[0].mxu0
      %v4351 = vpop.f32.mrb[0].mxu0
      %v4352 = vadd.f32 %v4191, %v4351
      %v4353 = vpop.f32.mrb[0].mxu0
      %4354 = vmatprep.mubr.bf16.mxu0 %v3365
      %4355 = vmatmul.mubr.bf16.gmra.mrb[0].mxu0 %v3364
      %v4356 = vpop.f32.mrb[0].mxu0
      %v4357 = vadd.f32 %v4196, %v4356
      %v4358 = vpop.f32.mrb[0].mxu0
      %v4359 = vpop.f32.mrb[0].mxu0
      %v4360 = vadd.f32 %v4199, %v4359
      %v4361 = vpop.f32.mrb[0].mxu0
      %4362 = vmatprep.mubr.bf16.mxu0 %v3373
      %4363 = vmatmul.mubr.bf16.gmra.mrb[0].mxu0 %v3372
      %v4364 = vpop.f32.mrb[0].mxu0
      %v4365 = vadd.f32 %v4204, %v4364
      %v4366 = vpop.f32.mrb[0].mxu0
      %v4367 = vpop.f32.mrb[0].mxu0
      %v4368 = vadd.f32 %v4207, %v4367
      %v4369 = vpop.f32.mrb[0].mxu0
      %4370 = vmatprep.mubr.bf16.mxu0 %v3381
      %4371 = vmatmul.mubr.bf16.gmra.mrb[0].mxu0 %v3380
      %v4372 = vpop.f32.mrb[0].mxu0
      %v4373 = vadd.f32 %v4212, %v4372
      %v4374 = vpop.f32.mrb[0].mxu0
      %v4375 = vpop.f32.mrb[0].mxu0
      %v4376 = vadd.f32 %v4215, %v4375
      %v4377 = vpop.f32.mrb[0].mxu0
      %4378 = vmatprep.mubr.bf16.mxu0 %v3389
      %4379 = vmatmul.mubr.bf16.gmra.mrb[0].mxu0 %v3388
      %v4380 = vpop.f32.mrb[0].mxu0
      %v4381 = vadd.f32 %v4220, %v4380
      %v4382 = vpop.f32.mrb[0].mxu0
      %v4383 = vpop.f32.mrb[0].mxu0
      %v4384 = vadd.f32 %v4223, %v4383
      %v4385 = vpop.f32.mrb[0].mxu0
      %4386 = vmatprep.mubr.bf16.mxu0 %v3397
      %4387 = vmatmul.mubr.bf16.gmra.mrb[0].mxu0 %v3396
      %v4388 = vpop.f32.mrb[0].mxu0
      %v4389 = vadd.f32 %v4228, %v4388
      %v4390 = vpop.f32.mrb[0].mxu0
      %v4391 = vpop.f32.mrb[0].mxu0
      %v4392 = vadd.f32 %v4231, %v4391
      %v4393 = vpop.f32.mrb[0].mxu0
      %4394 = vmatprep.mubr.bf16.mxu0 %v3405
      %4395 = vmatmul.mubr.bf16.gmra.mrb[0].mxu0 %v3404
      %v4396 = vpop.f32.mrb[0].mxu0
      %v4397 = vadd.f32 %v4236, %v4396
      %v4398 = vpop.f32.mrb[0].mxu0
      %v4399 = vpop.f32.mrb[0].mxu0
      %v4400 = vadd.f32 %v4239, %v4399
      %v4401 = vpop.f32.mrb[0].mxu0
      %4402 = vmatprep.mubr.bf16.mxu0 %v3413
      %4403 = vmatmul.mubr.bf16.gmra.mrb[0].mxu0 %v3412
      %v4404 = vpop.f32.mrb[0].mxu0
      %v4405 = vadd.f32 %v4244, %v4404
      %v4406 = vpop.f32.mrb[0].mxu0
      %v4407 = vpop.f32.mrb[0].mxu0
      %v4408 = vadd.f32 %v4247, %v4407
      %v4409 = vpop.f32.mrb[0].mxu0
      %4410 = vmatprep.mubr.bf16.mxu0 %v3421
      %4411 = vmatmul.mubr.bf16.gmra.mrb[0].mxu0 %v3420
      %v4412 = vpop.f32.mrb[0].mxu0
      %v4413 = vadd.f32 %v4252, %v4412
      %v4414 = vpop.f32.mrb[0].mxu0
      %v4415 = vpop.f32.mrb[0].mxu0
      %v4416 = vadd.f32 %v4255, %v4415
      %v4417 = vpop.f32.mrb[0].mxu0
      %4418 = vdwg.mxu0
      %4419 = vmatprep.subr.bf16.mxu0 0
      %4420 = vmatpush1.bf16.msra.mxu0 %v3856
      %4421 = vmatprep.subr.bf16.mxu0 0
      %4422 = vmatpush1.bf16.msra.mxu0 %v3857
      %4423 = vmatprep.subr.bf16.mxu0 0
      %4424 = vmatpush1.bf16.msra.mxu0 %v3858
      %4425 = vmatprep.subr.bf16.mxu0 0
      %4426 = vmatpush1.bf16.msra.mxu0 %v3859
      %4427 = vmatprep.subr.bf16.mxu0 0
      %4428 = vmatpush1.bf16.msra.mxu0 %v3860
      %4429 = vmatprep.subr.bf16.mxu0 0
      %4430 = vmatpush1.bf16.msra.mxu0 %v3861
      %4431 = vmatprep.subr.bf16.mxu0 0
      %4432 = vmatpush1.bf16.msra.mxu0 %v3862
      %4433 = vmatprep.subr.bf16.mxu0 0
      %4434 = vmatpush1.bf16.msra.mxu0 %v3863
      %4435 = vmatprep.subr.bf16.mxu0 0
      %4436 = vmatpush1.bf16.msra.mxu0 %v3864
      %4437 = vmatprep.subr.bf16.mxu0 0
      %4438 = vmatpush1.bf16.msra.mxu0 %v3865
      %4439 = vmatprep.subr.bf16.mxu0 0
      %4440 = vmatpush1.bf16.msra.mxu0 %v3866
      %4441 = vmatprep.subr.bf16.mxu0 0
      %4442 = vmatpush1.bf16.msra.mxu0 %v3867
      %4443 = vmatprep.subr.bf16.mxu0 0
      %4444 = vmatpush1.bf16.msra.mxu0 %v3868
      %4445 = vmatprep.subr.bf16.mxu0 0
      %4446 = vmatpush1.bf16.msra.mxu0 %v3869
      %4447 = vmatprep.subr.bf16.mxu0 0
      %4448 = vmatpush1.bf16.msra.mxu0 %v3870
      %4449 = vmatprep.subr.bf16.mxu0 0
      %4450 = vmatpush1.bf16.msra.mxu0 %v3871
      %4451 = vmatprep.mubr.bf16.mxu0 %v3303
      %4452 = vmatmul.mubr.bf16.gmra.mrb[0].mxu0 %v3302
      %v4453 = vpop.f32.mrb[0].mxu0
      %v4454 = vadd.f32 %v4293, %v4453
      %v4455 = vpop.f32.mrb[0].mxu0
      %v4456 = vpop.f32.mrb[0].mxu0
      %v4457 = vadd.f32 %v4296, %v4456
      %v4458 = vpop.f32.mrb[0].mxu0
      %4459 = vmatprep.mubr.bf16.mxu0 %v3311
      %4460 = vmatmul.mubr.bf16.gmra.mrb[0].mxu0 %v3310
      %v4461 = vpop.f32.mrb[0].mxu0
      %v4462 = vadd.f32 %v4301, %v4461
      %v4463 = vpop.f32.mrb[0].mxu0
      %v4464 = vpop.f32.mrb[0].mxu0
      %v4465 = vadd.f32 %v4304, %v4464
      %v4466 = vpop.f32.mrb[0].mxu0
      %4467 = vmatprep.mubr.bf16.mxu0 %v3319
      %4468 = vmatmul.mubr.bf16.gmra.mrb[0].mxu0 %v3318
      %v4469 = vpop.f32.mrb[0].mxu0
      %v4470 = vadd.f32 %v4309, %v4469
      %v4471 = vpop.f32.mrb[0].mxu0
      %v4472 = vpop.f32.mrb[0].mxu0
      %v4473 = vadd.f32 %v4312, %v4472
      %v4474 = vpop.f32.mrb[0].mxu0
      %4475 = vmatprep.mubr.bf16.mxu0 %v3327
      %4476 = vmatmul.mubr.bf16.gmra.mrb[0].mxu0 %v3326
      %v4477 = vpop.f32.mrb[0].mxu0
      %v4478 = vadd.f32 %v4317, %v4477
      %v4479 = vpop.f32.mrb[0].mxu0
      %v4480 = vpop.f32.mrb[0].mxu0
      %v4481 = vadd.f32 %v4320, %v4480
      %v4482 = vpop.f32.mrb[0].mxu0
      %4483 = vmatprep.mubr.bf16.mxu0 %v3335
      %4484 = vmatmul.mubr.bf16.gmra.mrb[0].mxu0 %v3334
      %v4485 = vpop.f32.mrb[0].mxu0
      %v4486 = vadd.f32 %v4325, %v4485
      %v4487 = vpop.f32.mrb[0].mxu0
      %v4488 = vpop.f32.mrb[0].mxu0
      %v4489 = vadd.f32 %v4328, %v4488
      %v4490 = vpop.f32.mrb[0].mxu0
      %4491 = vmatprep.mubr.bf16.mxu0 %v3343
      %4492 = vmatmul.mubr.bf16.gmra.mrb[0].mxu0 %v3342
      %v4493 = vpop.f32.mrb[0].mxu0
      %v4494 = vadd.f32 %v4333, %v4493
      %v4495 = vpop.f32.mrb[0].mxu0
      %v4496 = vpop.f32.mrb[0].mxu0
      %v4497 = vadd.f32 %v4336, %v4496
      %v4498 = vpop.f32.mrb[0].mxu0
      %4499 = vmatprep.mubr.bf16.mxu0 %v3351
      %4500 = vmatmul.mubr.bf16.gmra.mrb[0].mxu0 %v3350
      %v4501 = vpop.f32.mrb[0].mxu0
      %v4502 = vadd.f32 %v4341, %v4501
      %v4503 = vpop.f32.mrb[0].mxu0
      %v4504 = vpop.f32.mrb[0].mxu0
      %v4505 = vadd.f32 %v4344, %v4504
      %v4506 = vpop.f32.mrb[0].mxu0
      %4507 = vmatprep.mubr.bf16.mxu0 %v3359
      %4508 = vmatmul.mubr.bf16.gmra.mrb[0].mxu0 %v3358
      %v4509 = vpop.f32.mrb[0].mxu0
      %v4510 = vadd.f32 %v4349, %v4509
      %v4511 = vpop.f32.mrb[0].mxu0
      %v4512 = vpop.f32.mrb[0].mxu0
      %v4513 = vadd.f32 %v4352, %v4512
      %v4514 = vpop.f32.mrb[0].mxu0
      %4515 = vmatprep.mubr.bf16.mxu0 %v3367
      %4516 = vmatmul.mubr.bf16.gmra.mrb[0].mxu0 %v3366
      %v4517 = vpop.f32.mrb[0].mxu0
      %v4518 = vadd.f32 %v4357, %v4517
      %v4519 = vpop.f32.mrb[0].mxu0
      %v4520 = vpop.f32.mrb[0].mxu0
      %v4521 = vadd.f32 %v4360, %v4520
      %v4522 = vpop.f32.mrb[0].mxu0
      %4523 = vmatprep.mubr.bf16.mxu0 %v3375
      %4524 = vmatmul.mubr.bf16.gmra.mrb[0].mxu0 %v3374
      %v4525 = vpop.f32.mrb[0].mxu0
      %v4526 = vadd.f32 %v4365, %v4525
      %v4527 = vpop.f32.mrb[0].mxu0
      %v4528 = vpop.f32.mrb[0].mxu0
      %v4529 = vadd.f32 %v4368, %v4528
      %v4530 = vpop.f32.mrb[0].mxu0
      %4531 = vmatprep.mubr.bf16.mxu0 %v3383
      %4532 = vmatmul.mubr.bf16.gmra.mrb[0].mxu0 %v3382
      %v4533 = vpop.f32.mrb[0].mxu0
      %v4534 = vadd.f32 %v4373, %v4533
      %v4535 = vpop.f32.mrb[0].mxu0
      %v4536 = vpop.f32.mrb[0].mxu0
      %v4537 = vadd.f32 %v4376, %v4536
      %v4538 = vpop.f32.mrb[0].mxu0
      %4539 = vmatprep.mubr.bf16.mxu0 %v3391
      %4540 = vmatmul.mubr.bf16.gmra.mrb[0].mxu0 %v3390
      %v4541 = vpop.f32.mrb[0].mxu0
      %v4542 = vadd.f32 %v4381, %v4541
      %v4543 = vpop.f32.mrb[0].mxu0
      %v4544 = vpop.f32.mrb[0].mxu0
      %v4545 = vadd.f32 %v4384, %v4544
      %v4546 = vpop.f32.mrb[0].mxu0
      %4547 = vmatprep.mubr.bf16.mxu0 %v3399
      %4548 = vmatmul.mubr.bf16.gmra.mrb[0].mxu0 %v3398
      %v4549 = vpop.f32.mrb[0].mxu0
      %v4550 = vadd.f32 %v4389, %v4549
      %v4551 = vpop.f32.mrb[0].mxu0
      %v4552 = vpop.f32.mrb[0].mxu0
      %v4553 = vadd.f32 %v4392, %v4552
      %v4554 = vpop.f32.mrb[0].mxu0
      %4555 = vmatprep.mubr.bf16.mxu0 %v3407
      %4556 = vmatmul.mubr.bf16.gmra.mrb[0].mxu0 %v3406
      %v4557 = vpop.f32.mrb[0].mxu0
      %v4558 = vadd.f32 %v4397, %v4557
      %v4559 = vpop.f32.mrb[0].mxu0
      %v4560 = vpop.f32.mrb[0].mxu0
      %v4561 = vadd.f32 %v4400, %v4560
      %v4562 = vpop.f32.mrb[0].mxu0
      %4563 = vmatprep.mubr.bf16.mxu0 %v3415
      %4564 = vmatmul.mubr.bf16.gmra.mrb[0].mxu0 %v3414
      %v4565 = vpop.f32.mrb[0].mxu0
      %v4566 = vadd.f32 %v4405, %v4565
      %v4567 = vpop.f32.mrb[0].mxu0
      %v4568 = vpop.f32.mrb[0].mxu0
      %v4569 = vadd.f32 %v4408, %v4568
      %v4570 = vpop.f32.mrb[0].mxu0
      %4571 = vmatprep.mubr.bf16.mxu0 %v3423
      %4572 = vmatmul.mubr.bf16.gmra.mrb[0].mxu0 %v3422
      %v4573 = vpop.f32.mrb[0].mxu0
      %v4574 = vadd.f32 %v4413, %v4573
      %v4575 = vpop.f32.mrb[0].mxu0
      %v4576 = vpop.f32.mrb[0].mxu0
      %v4577 = vadd.f32 %v4416, %v4576
      %v4578 = vpop.f32.mrb[0].mxu0
      %4579 = vdwg.mxu0
      %s4580 = smul.u32 %s20, 256
      %v4581 = vlaneseq
      %v4582 = vshrl.u32 %v4581, 7
      %v4583 = vadd.s32 %v4582, 8
      %v4584 = vadd.s32 %v4582, 16
      %v4585 = vadd.s32 %v4582, 24
      %v4586 = vadd.s32 %v4582, 32
      %v4587 = vadd.s32 %v4582, 40
      %v4588 = vadd.s32 %v4582, 48
      %v4589 = vadd.s32 %v4582, 56
      %v4590 = vadd.s32 %v4582, 64
      %v4591 = vadd.s32 %v4582, 72
      %v4592 = vadd.s32 %v4582, 80
      %v4593 = vadd.s32 %v4582, 88
      %v4594 = vadd.s32 %v4582, 96
      %v4595 = vadd.s32 %v4582, 104
      %v4596 = vadd.s32 %v4582, 112
      %v4597 = vadd.s32 %v4582, 120
      %v4598 = vadd.s32 %v4582, 128
      %v4599 = vadd.s32 %v4582, 136
      %v4600 = vadd.s32 %v4582, 144
      %v4601 = vadd.s32 %v4582, 152
      %v4602 = vadd.s32 %v4582, 160
      %v4603 = vadd.s32 %v4582, 168
      %v4604 = vadd.s32 %v4582, 176
      %v4605 = vadd.s32 %v4582, 184
      %v4606 = vadd.s32 %v4582, 192
      %v4607 = vadd.s32 %v4582, 200
      %v4608 = vadd.s32 %v4582, 208
      %v4609 = vadd.s32 %v4582, 216
      %v4610 = vadd.s32 %v4582, 224
      %v4611 = vadd.s32 %v4582, 232
      %v4612 = vadd.s32 %v4582, 240
      %v4613 = vadd.s32 %v4582, 248
      %v4614 = vstv %s4580
      %v4615 = vadd.s32 %v4614, %v4582
      %v4616 = vadd.s32 %v4614, %v4583
      %v4617 = vadd.s32 %v4614, %v4584
      %v4618 = vadd.s32 %v4614, %v4585
      %v4619 = vadd.s32 %v4614, %v4586
      %v4620 = vadd.s32 %v4614, %v4587
      %v4621 = vadd.s32 %v4614, %v4588
      %v4622 = vadd.s32 %v4614, %v4589
      %v4623 = vadd.s32 %v4614, %v4590
      %v4624 = vadd.s32 %v4614, %v4591
      %v4625 = vadd.s32 %v4614, %v4592
      %v4626 = vadd.s32 %v4614, %v4593
      %v4627 = vadd.s32 %v4614, %v4594
      %v4628 = vadd.s32 %v4614, %v4595
      %v4629 = vadd.s32 %v4614, %v4596
      %v4630 = vadd.s32 %v4614, %v4597
      %v4631 = vadd.s32 %v4614, %v4598
      %v4632 = vadd.s32 %v4614, %v4599
      %v4633 = vadd.s32 %v4614, %v4600
      %v4634 = vadd.s32 %v4614, %v4601
      %v4635 = vadd.s32 %v4614, %v4602
      %v4636 = vadd.s32 %v4614, %v4603
      %v4637 = vadd.s32 %v4614, %v4604
      %v4638 = vadd.s32 %v4614, %v4605
      %v4639 = vadd.s32 %v4614, %v4606
      %v4640 = vadd.s32 %v4614, %v4607
      %v4641 = vadd.s32 %v4614, %v4608
      %v4642 = vadd.s32 %v4614, %v4609
      %v4643 = vadd.s32 %v4614, %v4610
      %v4644 = vadd.s32 %v4614, %v4611
      %v4645 = vadd.s32 %v4614, %v4612
      %v4646 = vadd.s32 %v4614, %v4613
      %vm4647 = vcmp.lt.s32.totalorder %v4615, 0
      %v4648 = vsub.s32 0, %v4615
      %v4649 = vsel %vm4647, %v4648, %v4615
      %v4650 = vshrl.u32 %v4649, 4
      %v4651 = vand.u32 %v4649, 15
      %v4652 = vsub.s32 0, %v4651
      %v4653 = vsel %vm4647, %v4652, %v4651
      %vm4654 = vcmp.lt.s32.totalorder %v4616, 0
      %v4655 = vsub.s32 0, %v4616
      %v4656 = vsel %vm4654, %v4655, %v4616
      %v4657 = vshrl.u32 %v4656, 4
      %v4658 = vand.u32 %v4656, 15
      %v4659 = vsub.s32 0, %v4658
      %v4660 = vsel %vm4654, %v4659, %v4658
      %vm4661 = vcmp.lt.s32.totalorder %v4617, 0
      %v4662 = vsub.s32 0, %v4617
      %v4663 = vsel %vm4661, %v4662, %v4617
      %v4664 = vshrl.u32 %v4663, 4
      %v4665 = vand.u32 %v4663, 15
      %v4666 = vsub.s32 0, %v4665
      %v4667 = vsel %vm4661, %v4666, %v4665
      %vm4668 = vcmp.lt.s32.totalorder %v4618, 0
      %v4669 = vsub.s32 0, %v4618
      %v4670 = vsel %vm4668, %v4669, %v4618
      %v4671 = vshrl.u32 %v4670, 4
      %v4672 = vand.u32 %v4670, 15
      %v4673 = vsub.s32 0, %v4672
      %v4674 = vsel %vm4668, %v4673, %v4672
      %vm4675 = vcmp.lt.s32.totalorder %v4619, 0
      %v4676 = vsub.s32 0, %v4619
      %v4677 = vsel %vm4675, %v4676, %v4619
      %v4678 = vshrl.u32 %v4677, 4
      %v4679 = vand.u32 %v4677, 15
      %v4680 = vsub.s32 0, %v4679
      %v4681 = vsel %vm4675, %v4680, %v4679
      %vm4682 = vcmp.lt.s32.totalorder %v4620, 0
      %v4683 = vsub.s32 0, %v4620
      %v4684 = vsel %vm4682, %v4683, %v4620
      %v4685 = vshrl.u32 %v4684, 4
      %v4686 = vand.u32 %v4684, 15
      %v4687 = vsub.s32 0, %v4686
      %v4688 = vsel %vm4682, %v4687, %v4686
      %vm4689 = vcmp.lt.s32.totalorder %v4621, 0
      %v4690 = vsub.s32 0, %v4621
      %v4691 = vsel %vm4689, %v4690, %v4621
      %v4692 = vshrl.u32 %v4691, 4
      %v4693 = vand.u32 %v4691, 15
      %v4694 = vsub.s32 0, %v4693
      %v4695 = vsel %vm4689, %v4694, %v4693
      %vm4696 = vcmp.lt.s32.totalorder %v4622, 0
      %v4697 = vsub.s32 0, %v4622
      %v4698 = vsel %vm4696, %v4697, %v4622
      %v4699 = vshrl.u32 %v4698, 4
      %v4700 = vand.u32 %v4698, 15
      %v4701 = vsub.s32 0, %v4700
      %v4702 = vsel %vm4696, %v4701, %v4700
      %vm4703 = vcmp.lt.s32.totalorder %v4623, 0
      %v4704 = vsub.s32 0, %v4623
      %v4705 = vsel %vm4703, %v4704, %v4623
      %v4706 = vshrl.u32 %v4705, 4
      %v4707 = vand.u32 %v4705, 15
      %v4708 = vsub.s32 0, %v4707
      %v4709 = vsel %vm4703, %v4708, %v4707
      %vm4710 = vcmp.lt.s32.totalorder %v4624, 0
      %v4711 = vsub.s32 0, %v4624
      %v4712 = vsel %vm4710, %v4711, %v4624
      %v4713 = vshrl.u32 %v4712, 4
      %v4714 = vand.u32 %v4712, 15
      %v4715 = vsub.s32 0, %v4714
      %v4716 = vsel %vm4710, %v4715, %v4714
      %vm4717 = vcmp.lt.s32.totalorder %v4625, 0
      %v4718 = vsub.s32 0, %v4625
      %v4719 = vsel %vm4717, %v4718, %v4625
      %v4720 = vshrl.u32 %v4719, 4
      %v4721 = vand.u32 %v4719, 15
      %v4722 = vsub.s32 0, %v4721
      %v4723 = vsel %vm4717, %v4722, %v4721
      %vm4724 = vcmp.lt.s32.totalorder %v4626, 0
      %v4725 = vsub.s32 0, %v4626
      %v4726 = vsel %vm4724, %v4725, %v4626
      %v4727 = vshrl.u32 %v4726, 4
      %v4728 = vand.u32 %v4726, 15
      %v4729 = vsub.s32 0, %v4728
      %v4730 = vsel %vm4724, %v4729, %v4728
      %vm4731 = vcmp.lt.s32.totalorder %v4627, 0
      %v4732 = vsub.s32 0, %v4627
      %v4733 = vsel %vm4731, %v4732, %v4627
      %v4734 = vshrl.u32 %v4733, 4
      %v4735 = vand.u32 %v4733, 15
      %v4736 = vsub.s32 0, %v4735
      %v4737 = vsel %vm4731, %v4736, %v4735
      %vm4738 = vcmp.lt.s32.totalorder %v4628, 0
      %v4739 = vsub.s32 0, %v4628
      %v4740 = vsel %vm4738, %v4739, %v4628
      %v4741 = vshrl.u32 %v4740, 4
      %v4742 = vand.u32 %v4740, 15
      %v4743 = vsub.s32 0, %v4742
      %v4744 = vsel %vm4738, %v4743, %v4742
      %vm4745 = vcmp.lt.s32.totalorder %v4629, 0
      %v4746 = vsub.s32 0, %v4629
      %v4747 = vsel %vm4745, %v4746, %v4629
      %v4748 = vshrl.u32 %v4747, 4
      %v4749 = vand.u32 %v4747, 15
      %v4750 = vsub.s32 0, %v4749
      %v4751 = vsel %vm4745, %v4750, %v4749
      %vm4752 = vcmp.lt.s32.totalorder %v4630, 0
      %v4753 = vsub.s32 0, %v4630
      %v4754 = vsel %vm4752, %v4753, %v4630
      %v4755 = vshrl.u32 %v4754, 4
      %v4756 = vand.u32 %v4754, 15
      %v4757 = vsub.s32 0, %v4756
      %v4758 = vsel %vm4752, %v4757, %v4756
      %vm4759 = vcmp.lt.s32.totalorder %v4631, 0
      %v4760 = vsub.s32 0, %v4631
      %v4761 = vsel %vm4759, %v4760, %v4631
      %v4762 = vshrl.u32 %v4761, 4
      %v4763 = vand.u32 %v4761, 15
      %v4764 = vsub.s32 0, %v4763
      %v4765 = vsel %vm4759, %v4764, %v4763
      %vm4766 = vcmp.lt.s32.totalorder %v4632, 0
      %v4767 = vsub.s32 0, %v4632
      %v4768 = vsel %vm4766, %v4767, %v4632
      %v4769 = vshrl.u32 %v4768, 4
      %v4770 = vand.u32 %v4768, 15
      %v4771 = vsub.s32 0, %v4770
      %v4772 = vsel %vm4766, %v4771, %v4770
      %vm4773 = vcmp.lt.s32.totalorder %v4633, 0
      %v4774 = vsub.s32 0, %v4633
      %v4775 = vsel %vm4773, %v4774, %v4633
      %v4776 = vshrl.u32 %v4775, 4
      %v4777 = vand.u32 %v4775, 15
      %v4778 = vsub.s32 0, %v4777
      %v4779 = vsel %vm4773, %v4778, %v4777
      %vm4780 = vcmp.lt.s32.totalorder %v4634, 0
      %v4781 = vsub.s32 0, %v4634
      %v4782 = vsel %vm4780, %v4781, %v4634
      %v4783 = vshrl.u32 %v4782, 4
      %v4784 = vand.u32 %v4782, 15
      %v4785 = vsub.s32 0, %v4784
      %v4786 = vsel %vm4780, %v4785, %v4784
      %vm4787 = vcmp.lt.s32.totalorder %v4635, 0
      %v4788 = vsub.s32 0, %v4635
      %v4789 = vsel %vm4787, %v4788, %v4635
      %v4790 = vshrl.u32 %v4789, 4
      %v4791 = vand.u32 %v4789, 15
      %v4792 = vsub.s32 0, %v4791
      %v4793 = vsel %vm4787, %v4792, %v4791
      %vm4794 = vcmp.lt.s32.totalorder %v4636, 0
      %v4795 = vsub.s32 0, %v4636
      %v4796 = vsel %vm4794, %v4795, %v4636
      %v4797 = vshrl.u32 %v4796, 4
      %v4798 = vand.u32 %v4796, 15
      %v4799 = vsub.s32 0, %v4798
      %v4800 = vsel %vm4794, %v4799, %v4798
      %vm4801 = vcmp.lt.s32.totalorder %v4637, 0
      %v4802 = vsub.s32 0, %v4637
      %v4803 = vsel %vm4801, %v4802, %v4637
      %v4804 = vshrl.u32 %v4803, 4
      %v4805 = vand.u32 %v4803, 15
      %v4806 = vsub.s32 0, %v4805
      %v4807 = vsel %vm4801, %v4806, %v4805
      %vm4808 = vcmp.lt.s32.totalorder %v4638, 0
      %v4809 = vsub.s32 0, %v4638
      %v4810 = vsel %vm4808, %v4809, %v4638
      %v4811 = vshrl.u32 %v4810, 4
      %v4812 = vand.u32 %v4810, 15
      %v4813 = vsub.s32 0, %v4812
      %v4814 = vsel %vm4808, %v4813, %v4812
      %vm4815 = vcmp.lt.s32.totalorder %v4639, 0
      %v4816 = vsub.s32 0, %v4639
      %v4817 = vsel %vm4815, %v4816, %v4639
      %v4818 = vshrl.u32 %v4817, 4
      %v4819 = vand.u32 %v4817, 15
      %v4820 = vsub.s32 0, %v4819
      %v4821 = vsel %vm4815, %v4820, %v4819
      %vm4822 = vcmp.lt.s32.totalorder %v4640, 0
      %v4823 = vsub.s32 0, %v4640
      %v4824 = vsel %vm4822, %v4823, %v4640
      %v4825 = vshrl.u32 %v4824, 4
      %v4826 = vand.u32 %v4824, 15
      %v4827 = vsub.s32 0, %v4826
      %v4828 = vsel %vm4822, %v4827, %v4826
      %vm4829 = vcmp.lt.s32.totalorder %v4641, 0
      %v4830 = vsub.s32 0, %v4641
      %v4831 = vsel %vm4829, %v4830, %v4641
      %v4832 = vshrl.u32 %v4831, 4
      %v4833 = vand.u32 %v4831, 15
      %v4834 = vsub.s32 0, %v4833
      %v4835 = vsel %vm4829, %v4834, %v4833
      %vm4836 = vcmp.lt.s32.totalorder %v4642, 0
      %v4837 = vsub.s32 0, %v4642
      %v4838 = vsel %vm4836, %v4837, %v4642
      %v4839 = vshrl.u32 %v4838, 4
      %v4840 = vand.u32 %v4838, 15
      %v4841 = vsub.s32 0, %v4840
      %v4842 = vsel %vm4836, %v4841, %v4840
      %vm4843 = vcmp.lt.s32.totalorder %v4643, 0
      %v4844 = vsub.s32 0, %v4643
      %v4845 = vsel %vm4843, %v4844, %v4643
      %v4846 = vshrl.u32 %v4845, 4
      %v4847 = vand.u32 %v4845, 15
      %v4848 = vsub.s32 0, %v4847
      %v4849 = vsel %vm4843, %v4848, %v4847
      %vm4850 = vcmp.lt.s32.totalorder %v4644, 0
      %v4851 = vsub.s32 0, %v4644
      %v4852 = vsel %vm4850, %v4851, %v4644
      %v4853 = vshrl.u32 %v4852, 4
      %v4854 = vand.u32 %v4852, 15
      %v4855 = vsub.s32 0, %v4854
      %v4856 = vsel %vm4850, %v4855, %v4854
      %vm4857 = vcmp.lt.s32.totalorder %v4645, 0
      %v4858 = vsub.s32 0, %v4645
      %v4859 = vsel %vm4857, %v4858, %v4645
      %v4860 = vshrl.u32 %v4859, 4
      %v4861 = vand.u32 %v4859, 15
      %v4862 = vsub.s32 0, %v4861
      %v4863 = vsel %vm4857, %v4862, %v4861
      %vm4864 = vcmp.lt.s32.totalorder %v4646, 0
      %v4865 = vsub.s32 0, %v4646
      %v4866 = vsel %vm4864, %v4865, %v4646
      %v4867 = vshrl.u32 %v4866, 4
      %v4868 = vand.u32 %v4866, 15
      %v4869 = vsub.s32 0, %v4868
      %v4870 = vsel %vm4864, %v4869, %v4868
      %vm4871 = vcmp.ne.s32.totalorder %v4653, 0
      %vm4872 = vcmp.ne.s32.totalorder %v4660, 0
      %vm4873 = vcmp.ne.s32.totalorder %v4667, 0
      %vm4874 = vcmp.ne.s32.totalorder %v4674, 0
      %vm4875 = vcmp.ne.s32.totalorder %v4681, 0
      %vm4876 = vcmp.ne.s32.totalorder %v4688, 0
      %vm4877 = vcmp.ne.s32.totalorder %v4695, 0
      %vm4878 = vcmp.ne.s32.totalorder %v4702, 0
      %vm4879 = vcmp.ne.s32.totalorder %v4709, 0
      %vm4880 = vcmp.ne.s32.totalorder %v4716, 0
      %vm4881 = vcmp.ne.s32.totalorder %v4723, 0
      %vm4882 = vcmp.ne.s32.totalorder %v4730, 0
      %vm4883 = vcmp.ne.s32.totalorder %v4737, 0
      %vm4884 = vcmp.ne.s32.totalorder %v4744, 0
      %vm4885 = vcmp.ne.s32.totalorder %v4751, 0
      %vm4886 = vcmp.ne.s32.totalorder %v4758, 0
      %vm4887 = vcmp.ne.s32.totalorder %v4765, 0
      %vm4888 = vcmp.ne.s32.totalorder %v4772, 0
      %vm4889 = vcmp.ne.s32.totalorder %v4779, 0
      %vm4890 = vcmp.ne.s32.totalorder %v4786, 0
      %vm4891 = vcmp.ne.s32.totalorder %v4793, 0
      %vm4892 = vcmp.ne.s32.totalorder %v4800, 0
      %vm4893 = vcmp.ne.s32.totalorder %v4807, 0
      %vm4894 = vcmp.ne.s32.totalorder %v4814, 0
      %vm4895 = vcmp.ne.s32.totalorder %v4821, 0
      %vm4896 = vcmp.ne.s32.totalorder %v4828, 0
      %vm4897 = vcmp.ne.s32.totalorder %v4835, 0
      %vm4898 = vcmp.ne.s32.totalorder %v4842, 0
      %vm4899 = vcmp.ne.s32.totalorder %v4849, 0
      %vm4900 = vcmp.ne.s32.totalorder %v4856, 0
      %vm4901 = vcmp.ne.s32.totalorder %v4863, 0
      %vm4902 = vcmp.ne.s32.totalorder %v4870, 0
      %vm4903 = vcmp.lt.s32.totalorder %v4653, 0
      %vm4904 = vcmp.lt.s32.totalorder %v4660, 0
      %vm4905 = vcmp.lt.s32.totalorder %v4667, 0
      %vm4906 = vcmp.lt.s32.totalorder %v4674, 0
      %vm4907 = vcmp.lt.s32.totalorder %v4681, 0
      %vm4908 = vcmp.lt.s32.totalorder %v4688, 0
      %vm4909 = vcmp.lt.s32.totalorder %v4695, 0
      %vm4910 = vcmp.lt.s32.totalorder %v4702, 0
      %vm4911 = vcmp.lt.s32.totalorder %v4709, 0
      %vm4912 = vcmp.lt.s32.totalorder %v4716, 0
      %vm4913 = vcmp.lt.s32.totalorder %v4723, 0
      %vm4914 = vcmp.lt.s32.totalorder %v4730, 0
      %vm4915 = vcmp.lt.s32.totalorder %v4737, 0
      %vm4916 = vcmp.lt.s32.totalorder %v4744, 0
      %vm4917 = vcmp.lt.s32.totalorder %v4751, 0
      %vm4918 = vcmp.lt.s32.totalorder %v4758, 0
      %vm4919 = vcmp.lt.s32.totalorder %v4765, 0
      %vm4920 = vcmp.lt.s32.totalorder %v4772, 0
      %vm4921 = vcmp.lt.s32.totalorder %v4779, 0
      %vm4922 = vcmp.lt.s32.totalorder %v4786, 0
      %vm4923 = vcmp.lt.s32.totalorder %v4793, 0
      %vm4924 = vcmp.lt.s32.totalorder %v4800, 0
      %vm4925 = vcmp.lt.s32.totalorder %v4807, 0
      %vm4926 = vcmp.lt.s32.totalorder %v4814, 0
      %vm4927 = vcmp.lt.s32.totalorder %v4821, 0
      %vm4928 = vcmp.lt.s32.totalorder %v4828, 0
      %vm4929 = vcmp.lt.s32.totalorder %v4835, 0
      %vm4930 = vcmp.lt.s32.totalorder %v4842, 0
      %vm4931 = vcmp.lt.s32.totalorder %v4849, 0
      %vm4932 = vcmp.lt.s32.totalorder %v4856, 0
      %vm4933 = vcmp.lt.s32.totalorder %v4863, 0
      %vm4934 = vcmp.lt.s32.totalorder %v4870, 0
      %vm4935 = vmand %vm4903, %vm4871
      %vm4936 = vmand %vm4904, %vm4872
      %vm4937 = vmand %vm4905, %vm4873
      %vm4938 = vmand %vm4906, %vm4874
      %vm4939 = vmand %vm4907, %vm4875
      %vm4940 = vmand %vm4908, %vm4876
      %vm4941 = vmand %vm4909, %vm4877
      %vm4942 = vmand %vm4910, %vm4878
      %vm4943 = vmand %vm4911, %vm4879
      %vm4944 = vmand %vm4912, %vm4880
      %vm4945 = vmand %vm4913, %vm4881
      %vm4946 = vmand %vm4914, %vm4882
      %vm4947 = vmand %vm4915, %vm4883
      %vm4948 = vmand %vm4916, %vm4884
      %vm4949 = vmand %vm4917, %vm4885
      %vm4950 = vmand %vm4918, %vm4886
      %vm4951 = vmand %vm4919, %vm4887
      %vm4952 = vmand %vm4920, %vm4888
      %vm4953 = vmand %vm4921, %vm4889
      %vm4954 = vmand %vm4922, %vm4890
      %vm4955 = vmand %vm4923, %vm4891
      %vm4956 = vmand %vm4924, %vm4892
      %vm4957 = vmand %vm4925, %vm4893
      %vm4958 = vmand %vm4926, %vm4894
      %vm4959 = vmand %vm4927, %vm4895
      %vm4960 = vmand %vm4928, %vm4896
      %vm4961 = vmand %vm4929, %vm4897
      %vm4962 = vmand %vm4930, %vm4898
      %vm4963 = vmand %vm4931, %vm4899
      %vm4964 = vmand %vm4932, %vm4900
      %vm4965 = vmand %vm4933, %vm4901
      %vm4966 = vmand %vm4934, %vm4902
      %v4967 = vadd.s32 %v4653, 16
      %v4968 = vadd.s32 %v4660, 16
      %v4969 = vadd.s32 %v4667, 16
      %v4970 = vadd.s32 %v4674, 16
      %v4971 = vadd.s32 %v4681, 16
      %v4972 = vadd.s32 %v4688, 16
      %v4973 = vadd.s32 %v4695, 16
      %v4974 = vadd.s32 %v4702, 16
      %v4975 = vadd.s32 %v4709, 16
      %v4976 = vadd.s32 %v4716, 16
      %v4977 = vadd.s32 %v4723, 16
      %v4978 = vadd.s32 %v4730, 16
      %v4979 = vadd.s32 %v4737, 16
      %v4980 = vadd.s32 %v4744, 16
      %v4981 = vadd.s32 %v4751, 16
      %v4982 = vadd.s32 %v4758, 16
      %v4983 = vadd.s32 %v4765, 16
      %v4984 = vadd.s32 %v4772, 16
      %v4985 = vadd.s32 %v4779, 16
      %v4986 = vadd.s32 %v4786, 16
      %v4987 = vadd.s32 %v4793, 16
      %v4988 = vadd.s32 %v4800, 16
      %v4989 = vadd.s32 %v4807, 16
      %v4990 = vadd.s32 %v4814, 16
      %v4991 = vadd.s32 %v4821, 16
      %v4992 = vadd.s32 %v4828, 16
      %v4993 = vadd.s32 %v4835, 16
      %v4994 = vadd.s32 %v4842, 16
      %v4995 = vadd.s32 %v4849, 16
      %v4996 = vadd.s32 %v4856, 16
      %v4997 = vadd.s32 %v4863, 16
      %v4998 = vadd.s32 %v4870, 16
      %v4999 = vsel %vm4935, %v4967, %v4653
      %v5000 = vsel %vm4936, %v4968, %v4660
      %v5001 = vsel %vm4937, %v4969, %v4667
      %v5002 = vsel %vm4938, %v4970, %v4674
      %v5003 = vsel %vm4939, %v4971, %v4681
      %v5004 = vsel %vm4940, %v4972, %v4688
      %v5005 = vsel %vm4941, %v4973, %v4695
      %v5006 = vsel %vm4942, %v4974, %v4702
      %v5007 = vsel %vm4943, %v4975, %v4709
      %v5008 = vsel %vm4944, %v4976, %v4716
      %v5009 = vsel %vm4945, %v4977, %v4723
      %v5010 = vsel %vm4946, %v4978, %v4730
      %v5011 = vsel %vm4947, %v4979, %v4737
      %v5012 = vsel %vm4948, %v4980, %v4744
      %v5013 = vsel %vm4949, %v4981, %v4751
      %v5014 = vsel %vm4950, %v4982, %v4758
      %v5015 = vsel %vm4951, %v4983, %v4765
      %v5016 = vsel %vm4952, %v4984, %v4772
      %v5017 = vsel %vm4953, %v4985, %v4779
      %v5018 = vsel %vm4954, %v4986, %v4786
      %v5019 = vsel %vm4955, %v4987, %v4793
      %v5020 = vsel %vm4956, %v4988, %v4800
      %v5021 = vsel %vm4957, %v4989, %v4807
      %v5022 = vsel %vm4958, %v4990, %v4814
      %v5023 = vsel %vm4959, %v4991, %v4821
      %v5024 = vsel %vm4960, %v4992, %v4828
      %v5025 = vsel %vm4961, %v4993, %v4835
      %v5026 = vsel %vm4962, %v4994, %v4842
      %v5027 = vsel %vm4963, %v4995, %v4849
      %v5028 = vsel %vm4964, %v4996, %v4856
      %v5029 = vsel %vm4965, %v4997, %v4863
      %v5030 = vsel %vm4966, %v4998, %v4870
      %vm5031 = vcmp.gt.s32.totalorder %v4999, 0
      %vm5032 = vcmp.gt.s32.totalorder %v5000, 0
      %vm5033 = vcmp.gt.s32.totalorder %v5001, 0
      %vm5034 = vcmp.gt.s32.totalorder %v5002, 0
      %vm5035 = vcmp.gt.s32.totalorder %v5003, 0
      %vm5036 = vcmp.gt.s32.totalorder %v5004, 0
      %vm5037 = vcmp.gt.s32.totalorder %v5005, 0
      %vm5038 = vcmp.gt.s32.totalorder %v5006, 0
      %vm5039 = vcmp.gt.s32.totalorder %v5007, 0
      %vm5040 = vcmp.gt.s32.totalorder %v5008, 0
      %vm5041 = vcmp.gt.s32.totalorder %v5009, 0
      %vm5042 = vcmp.gt.s32.totalorder %v5010, 0
      %vm5043 = vcmp.gt.s32.totalorder %v5011, 0
      %vm5044 = vcmp.gt.s32.totalorder %v5012, 0
      %vm5045 = vcmp.gt.s32.totalorder %v5013, 0
      %vm5046 = vcmp.gt.s32.totalorder %v5014, 0
      %vm5047 = vcmp.gt.s32.totalorder %v5015, 0
      %vm5048 = vcmp.gt.s32.totalorder %v5016, 0
      %vm5049 = vcmp.gt.s32.totalorder %v5017, 0
      %vm5050 = vcmp.gt.s32.totalorder %v5018, 0
      %vm5051 = vcmp.gt.s32.totalorder %v5019, 0
      %vm5052 = vcmp.gt.s32.totalorder %v5020, 0
      %vm5053 = vcmp.gt.s32.totalorder %v5021, 0
      %vm5054 = vcmp.gt.s32.totalorder %v5022, 0
      %vm5055 = vcmp.gt.s32.totalorder %v5023, 0
      %vm5056 = vcmp.gt.s32.totalorder %v5024, 0
      %vm5057 = vcmp.gt.s32.totalorder %v5025, 0
      %vm5058 = vcmp.gt.s32.totalorder %v5026, 0
      %vm5059 = vcmp.gt.s32.totalorder %v5027, 0
      %vm5060 = vcmp.gt.s32.totalorder %v5028, 0
      %vm5061 = vcmp.gt.s32.totalorder %v5029, 0
      %vm5062 = vcmp.gt.s32.totalorder %v5030, 0
      %v5063 = vsel %vm5031, 1, 0
      %v5064 = vsel %vm5032, 1, 0
      %v5065 = vsel %vm5033, 1, 0
      %v5066 = vsel %vm5034, 1, 0
      %v5067 = vsel %vm5035, 1, 0
      %v5068 = vsel %vm5036, 1, 0
      %v5069 = vsel %vm5037, 1, 0
      %v5070 = vsel %vm5038, 1, 0
      %v5071 = vsel %vm5039, 1, 0
      %v5072 = vsel %vm5040, 1, 0
      %v5073 = vsel %vm5041, 1, 0
      %v5074 = vsel %vm5042, 1, 0
      %v5075 = vsel %vm5043, 1, 0
      %v5076 = vsel %vm5044, 1, 0
      %v5077 = vsel %vm5045, 1, 0
      %v5078 = vsel %vm5046, 1, 0
      %v5079 = vsel %vm5047, 1, 0
      %v5080 = vsel %vm5048, 1, 0
      %v5081 = vsel %vm5049, 1, 0
      %v5082 = vsel %vm5050, 1, 0
      %v5083 = vsel %vm5051, 1, 0
      %v5084 = vsel %vm5052, 1, 0
      %v5085 = vsel %vm5053, 1, 0
      %v5086 = vsel %vm5054, 1, 0
      %v5087 = vsel %vm5055, 1, 0
      %v5088 = vsel %vm5056, 1, 0
      %v5089 = vsel %vm5057, 1, 0
      %v5090 = vsel %vm5058, 1, 0
      %v5091 = vsel %vm5059, 1, 0
      %v5092 = vsel %vm5060, 1, 0
      %v5093 = vsel %vm5061, 1, 0
      %v5094 = vsel %vm5062, 1, 0
      %v5095 = vcvt.s32.f32 %v5063
      %v5096 = vcvt.s32.f32 %v5064
      %v5097 = vcvt.s32.f32 %v5065
      %v5098 = vcvt.s32.f32 %v5066
      %v5099 = vcvt.s32.f32 %v5067
      %v5100 = vcvt.s32.f32 %v5068
      %v5101 = vcvt.s32.f32 %v5069
      %v5102 = vcvt.s32.f32 %v5070
      %v5103 = vcvt.s32.f32 %v5071
      %v5104 = vcvt.s32.f32 %v5072
      %v5105 = vcvt.s32.f32 %v5073
      %v5106 = vcvt.s32.f32 %v5074
      %v5107 = vcvt.s32.f32 %v5075
      %v5108 = vcvt.s32.f32 %v5076
      %v5109 = vcvt.s32.f32 %v5077
      %v5110 = vcvt.s32.f32 %v5078
      %v5111 = vcvt.s32.f32 %v5079
      %v5112 = vcvt.s32.f32 %v5080
      %v5113 = vcvt.s32.f32 %v5081
      %v5114 = vcvt.s32.f32 %v5082
      %v5115 = vcvt.s32.f32 %v5083
      %v5116 = vcvt.s32.f32 %v5084
      %v5117 = vcvt.s32.f32 %v5085
      %v5118 = vcvt.s32.f32 %v5086
      %v5119 = vcvt.s32.f32 %v5087
      %v5120 = vcvt.s32.f32 %v5088
      %v5121 = vcvt.s32.f32 %v5089
      %v5122 = vcvt.s32.f32 %v5090
      %v5123 = vcvt.s32.f32 %v5091
      %v5124 = vcvt.s32.f32 %v5092
      %v5125 = vcvt.s32.f32 %v5093
      %v5126 = vcvt.s32.f32 %v5094
      %vm5127 = vcmp.lt.s32.totalorder %v4999, 15
      %vm5128 = vcmp.lt.s32.totalorder %v5000, 15
      %vm5129 = vcmp.lt.s32.totalorder %v5001, 15
      %vm5130 = vcmp.lt.s32.totalorder %v5002, 15
      %vm5131 = vcmp.lt.s32.totalorder %v5003, 15
      %vm5132 = vcmp.lt.s32.totalorder %v5004, 15
      %vm5133 = vcmp.lt.s32.totalorder %v5005, 15
      %vm5134 = vcmp.lt.s32.totalorder %v5006, 15
      %vm5135 = vcmp.lt.s32.totalorder %v5007, 15
      %vm5136 = vcmp.lt.s32.totalorder %v5008, 15
      %vm5137 = vcmp.lt.s32.totalorder %v5009, 15
      %vm5138 = vcmp.lt.s32.totalorder %v5010, 15
      %vm5139 = vcmp.lt.s32.totalorder %v5011, 15
      %vm5140 = vcmp.lt.s32.totalorder %v5012, 15
      %vm5141 = vcmp.lt.s32.totalorder %v5013, 15
      %vm5142 = vcmp.lt.s32.totalorder %v5014, 15
      %vm5143 = vcmp.lt.s32.totalorder %v5015, 15
      %vm5144 = vcmp.lt.s32.totalorder %v5016, 15
      %vm5145 = vcmp.lt.s32.totalorder %v5017, 15
      %vm5146 = vcmp.lt.s32.totalorder %v5018, 15
      %vm5147 = vcmp.lt.s32.totalorder %v5019, 15
      %vm5148 = vcmp.lt.s32.totalorder %v5020, 15
      %vm5149 = vcmp.lt.s32.totalorder %v5021, 15
      %vm5150 = vcmp.lt.s32.totalorder %v5022, 15
      %vm5151 = vcmp.lt.s32.totalorder %v5023, 15
      %vm5152 = vcmp.lt.s32.totalorder %v5024, 15
      %vm5153 = vcmp.lt.s32.totalorder %v5025, 15
      %vm5154 = vcmp.lt.s32.totalorder %v5026, 15
      %vm5155 = vcmp.lt.s32.totalorder %v5027, 15
      %vm5156 = vcmp.lt.s32.totalorder %v5028, 15
      %vm5157 = vcmp.lt.s32.totalorder %v5029, 15
      %vm5158 = vcmp.lt.s32.totalorder %v5030, 15
      %v5159 = vsel %vm5127, 1, 0
      %v5160 = vsel %vm5128, 1, 0
      %v5161 = vsel %vm5129, 1, 0
      %v5162 = vsel %vm5130, 1, 0
      %v5163 = vsel %vm5131, 1, 0
      %v5164 = vsel %vm5132, 1, 0
      %v5165 = vsel %vm5133, 1, 0
      %v5166 = vsel %vm5134, 1, 0
      %v5167 = vsel %vm5135, 1, 0
      %v5168 = vsel %vm5136, 1, 0
      %v5169 = vsel %vm5137, 1, 0
      %v5170 = vsel %vm5138, 1, 0
      %v5171 = vsel %vm5139, 1, 0
      %v5172 = vsel %vm5140, 1, 0
      %v5173 = vsel %vm5141, 1, 0
      %v5174 = vsel %vm5142, 1, 0
      %v5175 = vsel %vm5143, 1, 0
      %v5176 = vsel %vm5144, 1, 0
      %v5177 = vsel %vm5145, 1, 0
      %v5178 = vsel %vm5146, 1, 0
      %v5179 = vsel %vm5147, 1, 0
      %v5180 = vsel %vm5148, 1, 0
      %v5181 = vsel %vm5149, 1, 0
      %v5182 = vsel %vm5150, 1, 0
      %v5183 = vsel %vm5151, 1, 0
      %v5184 = vsel %vm5152, 1, 0
      %v5185 = vsel %vm5153, 1, 0
      %v5186 = vsel %vm5154, 1, 0
      %v5187 = vsel %vm5155, 1, 0
      %v5188 = vsel %vm5156, 1, 0
      %v5189 = vsel %vm5157, 1, 0
      %v5190 = vsel %vm5158, 1, 0
      %v5191 = vcvt.s32.f32 %v5159
      %v5192 = vcvt.s32.f32 %v5160
      %v5193 = vcvt.s32.f32 %v5161
      %v5194 = vcvt.s32.f32 %v5162
      %v5195 = vcvt.s32.f32 %v5163
      %v5196 = vcvt.s32.f32 %v5164
      %v5197 = vcvt.s32.f32 %v5165
      %v5198 = vcvt.s32.f32 %v5166
      %v5199 = vcvt.s32.f32 %v5167
      %v5200 = vcvt.s32.f32 %v5168
      %v5201 = vcvt.s32.f32 %v5169
      %v5202 = vcvt.s32.f32 %v5170
      %v5203 = vcvt.s32.f32 %v5171
      %v5204 = vcvt.s32.f32 %v5172
      %v5205 = vcvt.s32.f32 %v5173
      %v5206 = vcvt.s32.f32 %v5174
      %v5207 = vcvt.s32.f32 %v5175
      %v5208 = vcvt.s32.f32 %v5176
      %v5209 = vcvt.s32.f32 %v5177
      %v5210 = vcvt.s32.f32 %v5178
      %v5211 = vcvt.s32.f32 %v5179
      %v5212 = vcvt.s32.f32 %v5180
      %v5213 = vcvt.s32.f32 %v5181
      %v5214 = vcvt.s32.f32 %v5182
      %v5215 = vcvt.s32.f32 %v5183
      %v5216 = vcvt.s32.f32 %v5184
      %v5217 = vcvt.s32.f32 %v5185
      %v5218 = vcvt.s32.f32 %v5186
      %v5219 = vcvt.s32.f32 %v5187
      %v5220 = vcvt.s32.f32 %v5188
      %v5221 = vcvt.s32.f32 %v5189
      %v5222 = vcvt.s32.f32 %v5190
      %v5223 = vmul.f32 %v4454, %v5095
      %v5224 = vmul.f32 %v4457, %v5096
      %v5225 = vmul.f32 %v4462, %v5097
      %v5226 = vmul.f32 %v4465, %v5098
      %v5227 = vmul.f32 %v4470, %v5099
      %v5228 = vmul.f32 %v4473, %v5100
      %v5229 = vmul.f32 %v4478, %v5101
      %v5230 = vmul.f32 %v4481, %v5102
      %v5231 = vmul.f32 %v4486, %v5103
      %v5232 = vmul.f32 %v4489, %v5104
      %v5233 = vmul.f32 %v4494, %v5105
      %v5234 = vmul.f32 %v4497, %v5106
      %v5235 = vmul.f32 %v4502, %v5107
      %v5236 = vmul.f32 %v4505, %v5108
      %v5237 = vmul.f32 %v4510, %v5109
      %v5238 = vmul.f32 %v4513, %v5110
      %v5239 = vmul.f32 %v4518, %v5111
      %v5240 = vmul.f32 %v4521, %v5112
      %v5241 = vmul.f32 %v4526, %v5113
      %v5242 = vmul.f32 %v4529, %v5114
      %v5243 = vmul.f32 %v4534, %v5115
      %v5244 = vmul.f32 %v4537, %v5116
      %v5245 = vmul.f32 %v4542, %v5117
      %v5246 = vmul.f32 %v4545, %v5118
      %v5247 = vmul.f32 %v4550, %v5119
      %v5248 = vmul.f32 %v4553, %v5120
      %v5249 = vmul.f32 %v4558, %v5121
      %v5250 = vmul.f32 %v4561, %v5122
      %v5251 = vmul.f32 %v4566, %v5123
      %v5252 = vmul.f32 %v4569, %v5124
      %v5253 = vmul.f32 %v4574, %v5125
      %v5254 = vmul.f32 %v4577, %v5126
      %vm5287 = vcmask 1046528
      %v5288 = vrot.slane %v5223, 1
      %v5289 = vrot.slane %v5224, 1
      %v5290 = vsel %vm5287, %v5288, %v5289
      %v5291 = vrot.slane %v5225, 1
      %v5292 = vsel %vm5287, %v5289, %v5291
      %v5293 = vrot.slane %v5226, 1
      %v5294 = vsel %vm5287, %v5291, %v5293
      %v5295 = vrot.slane %v5227, 1
      %v5296 = vsel %vm5287, %v5293, %v5295
      %v5297 = vrot.slane %v5228, 1
      %v5298 = vsel %vm5287, %v5295, %v5297
      %v5299 = vrot.slane %v5229, 1
      %v5300 = vsel %vm5287, %v5297, %v5299
      %v5301 = vrot.slane %v5230, 1
      %v5302 = vsel %vm5287, %v5299, %v5301
      %v5303 = vrot.slane %v5231, 1
      %v5304 = vsel %vm5287, %v5301, %v5303
      %v5305 = vrot.slane %v5232, 1
      %v5306 = vsel %vm5287, %v5303, %v5305
      %v5307 = vrot.slane %v5233, 1
      %v5308 = vsel %vm5287, %v5305, %v5307
      %v5309 = vrot.slane %v5234, 1
      %v5310 = vsel %vm5287, %v5307, %v5309
      %v5311 = vrot.slane %v5235, 1
      %v5312 = vsel %vm5287, %v5309, %v5311
      %v5313 = vrot.slane %v5236, 1
      %v5314 = vsel %vm5287, %v5311, %v5313
      %v5315 = vrot.slane %v5237, 1
      %v5316 = vsel %vm5287, %v5313, %v5315
      %v5317 = vrot.slane %v5238, 1
      %v5318 = vsel %vm5287, %v5315, %v5317
      %v5319 = vrot.slane %v5239, 1
      %v5320 = vsel %vm5287, %v5317, %v5319
      %v5321 = vrot.slane %v5240, 1
      %v5322 = vsel %vm5287, %v5319, %v5321
      %v5323 = vrot.slane %v5241, 1
      %v5324 = vsel %vm5287, %v5321, %v5323
      %v5325 = vrot.slane %v5242, 1
      %v5326 = vsel %vm5287, %v5323, %v5325
      %v5327 = vrot.slane %v5243, 1
      %v5328 = vsel %vm5287, %v5325, %v5327
      %v5329 = vrot.slane %v5244, 1
      %v5330 = vsel %vm5287, %v5327, %v5329
      %v5331 = vrot.slane %v5245, 1
      %v5332 = vsel %vm5287, %v5329, %v5331
      %v5333 = vrot.slane %v5246, 1
      %v5334 = vsel %vm5287, %v5331, %v5333
      %v5335 = vrot.slane %v5247, 1
      %v5336 = vsel %vm5287, %v5333, %v5335
      %v5337 = vrot.slane %v5248, 1
      %v5338 = vsel %vm5287, %v5335, %v5337
      %v5339 = vrot.slane %v5249, 1
      %v5340 = vsel %vm5287, %v5337, %v5339
      %v5341 = vrot.slane %v5250, 1
      %v5342 = vsel %vm5287, %v5339, %v5341
      %v5343 = vrot.slane %v5251, 1
      %v5344 = vsel %vm5287, %v5341, %v5343
      %v5345 = vrot.slane %v5252, 1
      %v5346 = vsel %vm5287, %v5343, %v5345
      %v5347 = vrot.slane %v5253, 1
      %v5348 = vsel %vm5287, %v5345, %v5347
      %v5349 = vrot.slane %v5254, 1
      %v5350 = vsel %vm5287, %v5347, %v5349
      %v5384 = vsel %vm5287, 0.0, %v5288
      %v5385 = vsel %vm5287, %v5349, 0.0
      %v5386 = vadd.f32 %v5384, 0.0
      %v5387 = vadd.f32 %v5290, 0.0
      %v5388 = vadd.f32 %v5292, 0.0
      %v5389 = vadd.f32 %v5294, 0.0
      %v5390 = vadd.f32 %v5296, 0.0
      %v5391 = vadd.f32 %v5298, 0.0
      %v5392 = vadd.f32 %v5300, 0.0
      %v5393 = vadd.f32 %v5302, 0.0
      %v5394 = vadd.f32 %v5304, 0.0
      %v5395 = vadd.f32 %v5306, 0.0
      %v5396 = vadd.f32 %v5308, 0.0
      %v5397 = vadd.f32 %v5310, 0.0
      %v5398 = vadd.f32 %v5312, 0.0
      %v5399 = vadd.f32 %v5314, 0.0
      %v5400 = vadd.f32 %v5316, 0.0
      %v5401 = vadd.f32 %v5318, 0.0
      %v5402 = vadd.f32 %v5320, 0.0
      %v5403 = vadd.f32 %v5322, 0.0
      %v5404 = vadd.f32 %v5324, 0.0
      %v5405 = vadd.f32 %v5326, 0.0
      %v5406 = vadd.f32 %v5328, 0.0
      %v5407 = vadd.f32 %v5330, 0.0
      %v5408 = vadd.f32 %v5332, 0.0
      %v5409 = vadd.f32 %v5334, 0.0
      %v5410 = vadd.f32 %v5336, 0.0
      %v5411 = vadd.f32 %v5338, 0.0
      %v5412 = vadd.f32 %v5340, 0.0
      %v5413 = vadd.f32 %v5342, 0.0
      %v5414 = vadd.f32 %v5344, 0.0
      %v5415 = vadd.f32 %v5346, 0.0
      %v5416 = vadd.f32 %v5348, 0.0
      %v5417 = vadd.f32 %v5350, 0.0
      %v5418 = vadd.f32 %v5385, 0.0
      %5451 = vrot.lane.b32.xlu0 %v4454, 124
      %v5452 = vpop.permute.xlu0 %5451
      %5453 = vrot.lane.b32.xlu0 %v4457, 124
      %v5454 = vpop.permute.xlu0 %5453
      %5455 = vrot.lane.b32.xlu0 %v4462, 124
      %v5456 = vpop.permute.xlu0 %5455
      %5457 = vrot.lane.b32.xlu0 %v4465, 124
      %v5458 = vpop.permute.xlu0 %5457
      %5459 = vrot.lane.b32.xlu0 %v4470, 124
      %v5460 = vpop.permute.xlu0 %5459
      %5461 = vrot.lane.b32.xlu0 %v4473, 124
      %v5462 = vpop.permute.xlu0 %5461
      %5463 = vrot.lane.b32.xlu0 %v4478, 124
      %v5464 = vpop.permute.xlu0 %5463
      %5465 = vrot.lane.b32.xlu0 %v4481, 124
      %v5466 = vpop.permute.xlu0 %5465
      %5467 = vrot.lane.b32.xlu0 %v4486, 124
      %v5468 = vpop.permute.xlu0 %5467
      %5469 = vrot.lane.b32.xlu0 %v4489, 124
      %v5470 = vpop.permute.xlu0 %5469
      %5471 = vrot.lane.b32.xlu0 %v4494, 124
      %v5472 = vpop.permute.xlu0 %5471
      %5473 = vrot.lane.b32.xlu0 %v4497, 124
      %v5474 = vpop.permute.xlu0 %5473
      %5475 = vrot.lane.b32.xlu0 %v4502, 124
      %v5476 = vpop.permute.xlu0 %5475
      %5477 = vrot.lane.b32.xlu0 %v4505, 124
      %v5478 = vpop.permute.xlu0 %5477
      %5479 = vrot.lane.b32.xlu0 %v4510, 124
      %v5480 = vpop.permute.xlu0 %5479
      %5481 = vrot.lane.b32.xlu0 %v4513, 124
      %v5482 = vpop.permute.xlu0 %5481
      %5483 = vrot.lane.b32.xlu0 %v4518, 124
      %v5484 = vpop.permute.xlu0 %5483
      %5485 = vrot.lane.b32.xlu0 %v4521, 124
      %v5486 = vpop.permute.xlu0 %5485
      %5487 = vrot.lane.b32.xlu0 %v4526, 124
      %v5488 = vpop.permute.xlu0 %5487
      %5489 = vrot.lane.b32.xlu0 %v4529, 124
      %v5490 = vpop.permute.xlu0 %5489
      %5491 = vrot.lane.b32.xlu0 %v4534, 124
      %v5492 = vpop.permute.xlu0 %5491
      %5493 = vrot.lane.b32.xlu0 %v4537, 124
      %v5494 = vpop.permute.xlu0 %5493
      %5495 = vrot.lane.b32.xlu0 %v4542, 124
      %v5496 = vpop.permute.xlu0 %5495
      %5497 = vrot.lane.b32.xlu0 %v4545, 124
      %v5498 = vpop.permute.xlu0 %5497
      %5499 = vrot.lane.b32.xlu0 %v4550, 124
      %v5500 = vpop.permute.xlu0 %5499
      %5501 = vrot.lane.b32.xlu0 %v4553, 124
      %v5502 = vpop.permute.xlu0 %5501
      %5503 = vrot.lane.b32.xlu0 %v4558, 124
      %v5504 = vpop.permute.xlu0 %5503
      %5505 = vrot.lane.b32.xlu0 %v4561, 124
      %v5506 = vpop.permute.xlu0 %5505
      %5507 = vrot.lane.b32.xlu0 %v4566, 124
      %v5508 = vpop.permute.xlu0 %5507
      %5509 = vrot.lane.b32.xlu0 %v4569, 124
      %v5510 = vpop.permute.xlu0 %5509
      %5511 = vrot.lane.b32.xlu0 %v4574, 124
      %v5512 = vpop.permute.xlu0 %5511
      %5513 = vrot.lane.b32.xlu0 %v4577, 124
      %v5514 = vpop.permute.xlu0 %5513
      %v5547 = vadd.f32 %v5386, 0.0
      %v5548 = vadd.f32 %v5387, %v5452
      %v5549 = vadd.f32 %v5388, %v5454
      %v5550 = vadd.f32 %v5389, %v5456
      %v5551 = vadd.f32 %v5390, %v5458
      %v5552 = vadd.f32 %v5391, %v5460
      %v5553 = vadd.f32 %v5392, %v5462
      %v5554 = vadd.f32 %v5393, %v5464
      %v5555 = vadd.f32 %v5394, %v5466
      %v5556 = vadd.f32 %v5395, %v5468
      %v5557 = vadd.f32 %v5396, %v5470
      %v5558 = vadd.f32 %v5397, %v5472
      %v5559 = vadd.f32 %v5398, %v5474
      %v5560 = vadd.f32 %v5399, %v5476
      %v5561 = vadd.f32 %v5400, %v5478
      %v5562 = vadd.f32 %v5401, %v5480
      %v5563 = vadd.f32 %v5402, %v5482
      %v5564 = vadd.f32 %v5403, %v5484
      %v5565 = vadd.f32 %v5404, %v5486
      %v5566 = vadd.f32 %v5405, %v5488
      %v5567 = vadd.f32 %v5406, %v5490
      %v5568 = vadd.f32 %v5407, %v5492
      %v5569 = vadd.f32 %v5408, %v5494
      %v5570 = vadd.f32 %v5409, %v5496
      %v5571 = vadd.f32 %v5410, %v5498
      %v5572 = vadd.f32 %v5411, %v5500
      %v5573 = vadd.f32 %v5412, %v5502
      %v5574 = vadd.f32 %v5413, %v5504
      %v5575 = vadd.f32 %v5414, %v5506
      %v5576 = vadd.f32 %v5415, %v5508
      %v5577 = vadd.f32 %v5416, %v5510
      %v5578 = vadd.f32 %v5417, %v5512
      %v5579 = vadd.f32 %v5418, %v5514
      %v5580 = vmul.f32 %v4454, %v5191
      %v5581 = vmul.f32 %v4457, %v5192
      %v5582 = vmul.f32 %v4462, %v5193
      %v5583 = vmul.f32 %v4465, %v5194
      %v5584 = vmul.f32 %v4470, %v5195
      %v5585 = vmul.f32 %v4473, %v5196
      %v5586 = vmul.f32 %v4478, %v5197
      %v5587 = vmul.f32 %v4481, %v5198
      %v5588 = vmul.f32 %v4486, %v5199
      %v5589 = vmul.f32 %v4489, %v5200
      %v5590 = vmul.f32 %v4494, %v5201
      %v5591 = vmul.f32 %v4497, %v5202
      %v5592 = vmul.f32 %v4502, %v5203
      %v5593 = vmul.f32 %v4505, %v5204
      %v5594 = vmul.f32 %v4510, %v5205
      %v5595 = vmul.f32 %v4513, %v5206
      %v5596 = vmul.f32 %v4518, %v5207
      %v5597 = vmul.f32 %v4521, %v5208
      %v5598 = vmul.f32 %v4526, %v5209
      %v5599 = vmul.f32 %v4529, %v5210
      %v5600 = vmul.f32 %v4534, %v5211
      %v5601 = vmul.f32 %v4537, %v5212
      %v5602 = vmul.f32 %v4542, %v5213
      %v5603 = vmul.f32 %v4545, %v5214
      %v5604 = vmul.f32 %v4550, %v5215
      %v5605 = vmul.f32 %v4553, %v5216
      %v5606 = vmul.f32 %v4558, %v5217
      %v5607 = vmul.f32 %v4561, %v5218
      %v5608 = vmul.f32 %v4566, %v5219
      %v5609 = vmul.f32 %v4569, %v5220
      %v5610 = vmul.f32 %v4574, %v5221
      %v5611 = vmul.f32 %v4577, %v5222
      %vm5644 = vcmask 1040384
      %v5645 = vrot.slane %v5580, 7
      %v5646 = vrot.slane %v5581, 7
      %v5647 = vsel %vm5644, %v5645, %v5646
      %v5648 = vrot.slane %v5582, 7
      %v5649 = vsel %vm5644, %v5646, %v5648
      %v5650 = vrot.slane %v5583, 7
      %v5651 = vsel %vm5644, %v5648, %v5650
      %v5652 = vrot.slane %v5584, 7
      %v5653 = vsel %vm5644, %v5650, %v5652
      %v5654 = vrot.slane %v5585, 7
      %v5655 = vsel %vm5644, %v5652, %v5654
      %v5656 = vrot.slane %v5586, 7
      %v5657 = vsel %vm5644, %v5654, %v5656
      %v5658 = vrot.slane %v5587, 7
      %v5659 = vsel %vm5644, %v5656, %v5658
      %v5660 = vrot.slane %v5588, 7
      %v5661 = vsel %vm5644, %v5658, %v5660
      %v5662 = vrot.slane %v5589, 7
      %v5663 = vsel %vm5644, %v5660, %v5662
      %v5664 = vrot.slane %v5590, 7
      %v5665 = vsel %vm5644, %v5662, %v5664
      %v5666 = vrot.slane %v5591, 7
      %v5667 = vsel %vm5644, %v5664, %v5666
      %v5668 = vrot.slane %v5592, 7
      %v5669 = vsel %vm5644, %v5666, %v5668
      %v5670 = vrot.slane %v5593, 7
      %v5671 = vsel %vm5644, %v5668, %v5670
      %v5672 = vrot.slane %v5594, 7
      %v5673 = vsel %vm5644, %v5670, %v5672
      %v5674 = vrot.slane %v5595, 7
      %v5675 = vsel %vm5644, %v5672, %v5674
      %v5676 = vrot.slane %v5596, 7
      %v5677 = vsel %vm5644, %v5674, %v5676
      %v5678 = vrot.slane %v5597, 7
      %v5679 = vsel %vm5644, %v5676, %v5678
      %v5680 = vrot.slane %v5598, 7
      %v5681 = vsel %vm5644, %v5678, %v5680
      %v5682 = vrot.slane %v5599, 7
      %v5683 = vsel %vm5644, %v5680, %v5682
      %v5684 = vrot.slane %v5600, 7
      %v5685 = vsel %vm5644, %v5682, %v5684
      %v5686 = vrot.slane %v5601, 7
      %v5687 = vsel %vm5644, %v5684, %v5686
      %v5688 = vrot.slane %v5602, 7
      %v5689 = vsel %vm5644, %v5686, %v5688
      %v5690 = vrot.slane %v5603, 7
      %v5691 = vsel %vm5644, %v5688, %v5690
      %v5692 = vrot.slane %v5604, 7
      %v5693 = vsel %vm5644, %v5690, %v5692
      %v5694 = vrot.slane %v5605, 7
      %v5695 = vsel %vm5644, %v5692, %v5694
      %v5696 = vrot.slane %v5606, 7
      %v5697 = vsel %vm5644, %v5694, %v5696
      %v5698 = vrot.slane %v5607, 7
      %v5699 = vsel %vm5644, %v5696, %v5698
      %v5700 = vrot.slane %v5608, 7
      %v5701 = vsel %vm5644, %v5698, %v5700
      %v5702 = vrot.slane %v5609, 7
      %v5703 = vsel %vm5644, %v5700, %v5702
      %v5704 = vrot.slane %v5610, 7
      %v5705 = vsel %vm5644, %v5702, %v5704
      %v5706 = vrot.slane %v5611, 7
      %v5707 = vsel %vm5644, %v5704, %v5706
      %5708 = vrot.lane.b32.xlu0 %v5645, 120
      %v5709 = vpop.permute.xlu0 %5708
      %5710 = vrot.lane.b32.xlu0 %v5647, 120
      %v5711 = vpop.permute.xlu0 %5710
      %5712 = vrot.lane.b32.xlu0 %v5649, 120
      %v5713 = vpop.permute.xlu0 %5712
      %5714 = vrot.lane.b32.xlu0 %v5651, 120
      %v5715 = vpop.permute.xlu0 %5714
      %5716 = vrot.lane.b32.xlu0 %v5653, 120
      %v5717 = vpop.permute.xlu0 %5716
      %5718 = vrot.lane.b32.xlu0 %v5655, 120
      %v5719 = vpop.permute.xlu0 %5718
      %5720 = vrot.lane.b32.xlu0 %v5657, 120
      %v5721 = vpop.permute.xlu0 %5720
      %5722 = vrot.lane.b32.xlu0 %v5659, 120
      %v5723 = vpop.permute.xlu0 %5722
      %5724 = vrot.lane.b32.xlu0 %v5661, 120
      %v5725 = vpop.permute.xlu0 %5724
      %5726 = vrot.lane.b32.xlu0 %v5663, 120
      %v5727 = vpop.permute.xlu0 %5726
      %5728 = vrot.lane.b32.xlu0 %v5665, 120
      %v5729 = vpop.permute.xlu0 %5728
      %5730 = vrot.lane.b32.xlu0 %v5667, 120
      %v5731 = vpop.permute.xlu0 %5730
      %5732 = vrot.lane.b32.xlu0 %v5669, 120
      %v5733 = vpop.permute.xlu0 %5732
      %5734 = vrot.lane.b32.xlu0 %v5671, 120
      %v5735 = vpop.permute.xlu0 %5734
      %5736 = vrot.lane.b32.xlu0 %v5673, 120
      %v5737 = vpop.permute.xlu0 %5736
      %5738 = vrot.lane.b32.xlu0 %v5675, 120
      %v5739 = vpop.permute.xlu0 %5738
      %5740 = vrot.lane.b32.xlu0 %v5677, 120
      %v5741 = vpop.permute.xlu0 %5740
      %5742 = vrot.lane.b32.xlu0 %v5679, 120
      %v5743 = vpop.permute.xlu0 %5742
      %5744 = vrot.lane.b32.xlu0 %v5681, 120
      %v5745 = vpop.permute.xlu0 %5744
      %5746 = vrot.lane.b32.xlu0 %v5683, 120
      %v5747 = vpop.permute.xlu0 %5746
      %5748 = vrot.lane.b32.xlu0 %v5685, 120
      %v5749 = vpop.permute.xlu0 %5748
      %5750 = vrot.lane.b32.xlu0 %v5687, 120
      %v5751 = vpop.permute.xlu0 %5750
      %5752 = vrot.lane.b32.xlu0 %v5689, 120
      %v5753 = vpop.permute.xlu0 %5752
      %5754 = vrot.lane.b32.xlu0 %v5691, 120
      %v5755 = vpop.permute.xlu0 %5754
      %5756 = vrot.lane.b32.xlu0 %v5693, 120
      %v5757 = vpop.permute.xlu0 %5756
      %5758 = vrot.lane.b32.xlu0 %v5695, 120
      %v5759 = vpop.permute.xlu0 %5758
      %5760 = vrot.lane.b32.xlu0 %v5697, 120
      %v5761 = vpop.permute.xlu0 %5760
      %5762 = vrot.lane.b32.xlu0 %v5699, 120
      %v5763 = vpop.permute.xlu0 %5762
      %5764 = vrot.lane.b32.xlu0 %v5701, 120
      %v5765 = vpop.permute.xlu0 %5764
      %5766 = vrot.lane.b32.xlu0 %v5703, 120
      %v5767 = vpop.permute.xlu0 %5766
      %5768 = vrot.lane.b32.xlu0 %v5705, 120
      %v5769 = vpop.permute.xlu0 %5768
      %5770 = vrot.lane.b32.xlu0 %v5707, 120
      %v5771 = vpop.permute.xlu0 %5770
      %5772 = vrot.lane.b32.xlu0 %v5706, 120
      %v5773 = vpop.permute.xlu0 %5772
      %v5807 = vsel %vm5644, 0.0, %v5709
      %v5808 = vsel %vm5644, %v5773, 0.0
      %v5809 = vadd.f32 %v5547, 0.0
      %v5810 = vadd.f32 %v5548, %v5807
      %v5811 = vadd.f32 %v5549, %v5711
      %v5812 = vadd.f32 %v5550, %v5713
      %v5813 = vadd.f32 %v5551, %v5715
      %v5814 = vadd.f32 %v5552, %v5717
      %v5815 = vadd.f32 %v5553, %v5719
      %v5816 = vadd.f32 %v5554, %v5721
      %v5817 = vadd.f32 %v5555, %v5723
      %v5818 = vadd.f32 %v5556, %v5725
      %v5819 = vadd.f32 %v5557, %v5727
      %v5820 = vadd.f32 %v5558, %v5729
      %v5821 = vadd.f32 %v5559, %v5731
      %v5822 = vadd.f32 %v5560, %v5733
      %v5823 = vadd.f32 %v5561, %v5735
      %v5824 = vadd.f32 %v5562, %v5737
      %v5825 = vadd.f32 %v5563, %v5739
      %v5826 = vadd.f32 %v5564, %v5741
      %v5827 = vadd.f32 %v5565, %v5743
      %v5828 = vadd.f32 %v5566, %v5745
      %v5829 = vadd.f32 %v5567, %v5747
      %v5830 = vadd.f32 %v5568, %v5749
      %v5831 = vadd.f32 %v5569, %v5751
      %v5832 = vadd.f32 %v5570, %v5753
      %v5833 = vadd.f32 %v5571, %v5755
      %v5834 = vadd.f32 %v5572, %v5757
      %v5835 = vadd.f32 %v5573, %v5759
      %v5836 = vadd.f32 %v5574, %v5761
      %v5837 = vadd.f32 %v5575, %v5763
      %v5838 = vadd.f32 %v5576, %v5765
      %v5839 = vadd.f32 %v5577, %v5767
      %v5840 = vadd.f32 %v5578, %v5769
      %v5841 = vadd.f32 %v5579, %v5771
      %v5842 = vadd.f32 %v5808, 0.0
      %5843 = vrot.lane.b32.xlu0 %v5288, 116
      %v5844 = vpop.permute.xlu0 %5843
      %5845 = vrot.lane.b32.xlu0 %v5290, 116
      %v5846 = vpop.permute.xlu0 %5845
      %5847 = vrot.lane.b32.xlu0 %v5292, 116
      %v5848 = vpop.permute.xlu0 %5847
      %5849 = vrot.lane.b32.xlu0 %v5294, 116
      %v5850 = vpop.permute.xlu0 %5849
      %5851 = vrot.lane.b32.xlu0 %v5296, 116
      %v5852 = vpop.permute.xlu0 %5851
      %5853 = vrot.lane.b32.xlu0 %v5298, 116
      %v5854 = vpop.permute.xlu0 %5853
      %5855 = vrot.lane.b32.xlu0 %v5300, 116
      %v5856 = vpop.permute.xlu0 %5855
      %5857 = vrot.lane.b32.xlu0 %v5302, 116
      %v5858 = vpop.permute.xlu0 %5857
      %5859 = vrot.lane.b32.xlu0 %v5304, 116
      %v5860 = vpop.permute.xlu0 %5859
      %5861 = vrot.lane.b32.xlu0 %v5306, 116
      %v5862 = vpop.permute.xlu0 %5861
      %5863 = vrot.lane.b32.xlu0 %v5308, 116
      %v5864 = vpop.permute.xlu0 %5863
      %5865 = vrot.lane.b32.xlu0 %v5310, 116
      %v5866 = vpop.permute.xlu0 %5865
      %5867 = vrot.lane.b32.xlu0 %v5312, 116
      %v5868 = vpop.permute.xlu0 %5867
      %5869 = vrot.lane.b32.xlu0 %v5314, 116
      %v5870 = vpop.permute.xlu0 %5869
      %5871 = vrot.lane.b32.xlu0 %v5316, 116
      %v5872 = vpop.permute.xlu0 %5871
      %5873 = vrot.lane.b32.xlu0 %v5318, 116
      %v5874 = vpop.permute.xlu0 %5873
      %5875 = vrot.lane.b32.xlu0 %v5320, 116
      %v5876 = vpop.permute.xlu0 %5875
      %5877 = vrot.lane.b32.xlu0 %v5322, 116
      %v5878 = vpop.permute.xlu0 %5877
      %5879 = vrot.lane.b32.xlu0 %v5324, 116
      %v5880 = vpop.permute.xlu0 %5879
      %5881 = vrot.lane.b32.xlu0 %v5326, 116
      %v5882 = vpop.permute.xlu0 %5881
      %5883 = vrot.lane.b32.xlu0 %v5328, 116
      %v5884 = vpop.permute.xlu0 %5883
      %5885 = vrot.lane.b32.xlu0 %v5330, 116
      %v5886 = vpop.permute.xlu0 %5885
      %5887 = vrot.lane.b32.xlu0 %v5332, 116
      %v5888 = vpop.permute.xlu0 %5887
      %5889 = vrot.lane.b32.xlu0 %v5334, 116
      %v5890 = vpop.permute.xlu0 %5889
      %5891 = vrot.lane.b32.xlu0 %v5336, 116
      %v5892 = vpop.permute.xlu0 %5891
      %5893 = vrot.lane.b32.xlu0 %v5338, 116
      %v5894 = vpop.permute.xlu0 %5893
      %5895 = vrot.lane.b32.xlu0 %v5340, 116
      %v5896 = vpop.permute.xlu0 %5895
      %5897 = vrot.lane.b32.xlu0 %v5342, 116
      %v5898 = vpop.permute.xlu0 %5897
      %5899 = vrot.lane.b32.xlu0 %v5344, 116
      %v5900 = vpop.permute.xlu0 %5899
      %5901 = vrot.lane.b32.xlu0 %v5346, 116
      %v5902 = vpop.permute.xlu0 %5901
      %5903 = vrot.lane.b32.xlu0 %v5348, 116
      %v5904 = vpop.permute.xlu0 %5903
      %5905 = vrot.lane.b32.xlu0 %v5350, 116
      %v5906 = vpop.permute.xlu0 %5905
      %5907 = vrot.lane.b32.xlu0 %v5349, 116
      %v5908 = vpop.permute.xlu0 %5907
      %v5942 = vsel %vm5287, 0.0, %v5844
      %v5943 = vsel %vm5287, %v5908, 0.0
      %v5944 = vadd.f32 %v5809, 0.0
      %v5945 = vadd.f32 %v5810, 0.0
      %v5946 = vadd.f32 %v5811, %v5942
      %v5947 = vadd.f32 %v5812, %v5846
      %v5948 = vadd.f32 %v5813, %v5848
      %v5949 = vadd.f32 %v5814, %v5850
      %v5950 = vadd.f32 %v5815, %v5852
      %v5951 = vadd.f32 %v5816, %v5854
      %v5952 = vadd.f32 %v5817, %v5856
      %v5953 = vadd.f32 %v5818, %v5858
      %v5954 = vadd.f32 %v5819, %v5860
      %v5955 = vadd.f32 %v5820, %v5862
      %v5956 = vadd.f32 %v5821, %v5864
      %v5957 = vadd.f32 %v5822, %v5866
      %v5958 = vadd.f32 %v5823, %v5868
      %v5959 = vadd.f32 %v5824, %v5870
      %v5960 = vadd.f32 %v5825, %v5872
      %v5961 = vadd.f32 %v5826, %v5874
      %v5962 = vadd.f32 %v5827, %v5876
      %v5963 = vadd.f32 %v5828, %v5878
      %v5964 = vadd.f32 %v5829, %v5880
      %v5965 = vadd.f32 %v5830, %v5882
      %v5966 = vadd.f32 %v5831, %v5884
      %v5967 = vadd.f32 %v5832, %v5886
      %v5968 = vadd.f32 %v5833, %v5888
      %v5969 = vadd.f32 %v5834, %v5890
      %v5970 = vadd.f32 %v5835, %v5892
      %v5971 = vadd.f32 %v5836, %v5894
      %v5972 = vadd.f32 %v5837, %v5896
      %v5973 = vadd.f32 %v5838, %v5898
      %v5974 = vadd.f32 %v5839, %v5900
      %v5975 = vadd.f32 %v5840, %v5902
      %v5976 = vadd.f32 %v5841, %v5904
      %v5977 = vadd.f32 %v5842, %v5906
      %v5978 = vadd.f32 %v5943, 0.0
      %5979 = vrot.lane.b32.xlu0 %v4454, 112
      %v5980 = vpop.permute.xlu0 %5979
      %5981 = vrot.lane.b32.xlu0 %v4457, 112
      %v5982 = vpop.permute.xlu0 %5981
      %5983 = vrot.lane.b32.xlu0 %v4462, 112
      %v5984 = vpop.permute.xlu0 %5983
      %5985 = vrot.lane.b32.xlu0 %v4465, 112
      %v5986 = vpop.permute.xlu0 %5985
      %5987 = vrot.lane.b32.xlu0 %v4470, 112
      %v5988 = vpop.permute.xlu0 %5987
      %5989 = vrot.lane.b32.xlu0 %v4473, 112
      %v5990 = vpop.permute.xlu0 %5989
      %5991 = vrot.lane.b32.xlu0 %v4478, 112
      %v5992 = vpop.permute.xlu0 %5991
      %5993 = vrot.lane.b32.xlu0 %v4481, 112
      %v5994 = vpop.permute.xlu0 %5993
      %5995 = vrot.lane.b32.xlu0 %v4486, 112
      %v5996 = vpop.permute.xlu0 %5995
      %5997 = vrot.lane.b32.xlu0 %v4489, 112
      %v5998 = vpop.permute.xlu0 %5997
      %5999 = vrot.lane.b32.xlu0 %v4494, 112
      %v6000 = vpop.permute.xlu0 %5999
      %6001 = vrot.lane.b32.xlu0 %v4497, 112
      %v6002 = vpop.permute.xlu0 %6001
      %6003 = vrot.lane.b32.xlu0 %v4502, 112
      %v6004 = vpop.permute.xlu0 %6003
      %6005 = vrot.lane.b32.xlu0 %v4505, 112
      %v6006 = vpop.permute.xlu0 %6005
      %6007 = vrot.lane.b32.xlu0 %v4510, 112
      %v6008 = vpop.permute.xlu0 %6007
      %6009 = vrot.lane.b32.xlu0 %v4513, 112
      %v6010 = vpop.permute.xlu0 %6009
      %6011 = vrot.lane.b32.xlu0 %v4518, 112
      %v6012 = vpop.permute.xlu0 %6011
      %6013 = vrot.lane.b32.xlu0 %v4521, 112
      %v6014 = vpop.permute.xlu0 %6013
      %6015 = vrot.lane.b32.xlu0 %v4526, 112
      %v6016 = vpop.permute.xlu0 %6015
      %6017 = vrot.lane.b32.xlu0 %v4529, 112
      %v6018 = vpop.permute.xlu0 %6017
      %6019 = vrot.lane.b32.xlu0 %v4534, 112
      %v6020 = vpop.permute.xlu0 %6019
      %6021 = vrot.lane.b32.xlu0 %v4537, 112
      %v6022 = vpop.permute.xlu0 %6021
      %6023 = vrot.lane.b32.xlu0 %v4542, 112
      %v6024 = vpop.permute.xlu0 %6023
      %6025 = vrot.lane.b32.xlu0 %v4545, 112
      %v6026 = vpop.permute.xlu0 %6025
      %6027 = vrot.lane.b32.xlu0 %v4550, 112
      %v6028 = vpop.permute.xlu0 %6027
      %6029 = vrot.lane.b32.xlu0 %v4553, 112
      %v6030 = vpop.permute.xlu0 %6029
      %6031 = vrot.lane.b32.xlu0 %v4558, 112
      %v6032 = vpop.permute.xlu0 %6031
      %6033 = vrot.lane.b32.xlu0 %v4561, 112
      %v6034 = vpop.permute.xlu0 %6033
      %6035 = vrot.lane.b32.xlu0 %v4566, 112
      %v6036 = vpop.permute.xlu0 %6035
      %6037 = vrot.lane.b32.xlu0 %v4569, 112
      %v6038 = vpop.permute.xlu0 %6037
      %6039 = vrot.lane.b32.xlu0 %v4574, 112
      %v6040 = vpop.permute.xlu0 %6039
      %6041 = vrot.lane.b32.xlu0 %v4577, 112
      %v6042 = vpop.permute.xlu0 %6041
      %v6075 = vadd.f32 %v5944, 0.0
      %v6076 = vadd.f32 %v5945, 0.0
      %v6077 = vadd.f32 %v5946, 0.0
      %v6078 = vadd.f32 %v5947, %v5980
      %v6079 = vadd.f32 %v5948, %v5982
      %v6080 = vadd.f32 %v5949, %v5984
      %v6081 = vadd.f32 %v5950, %v5986
      %v6082 = vadd.f32 %v5951, %v5988
      %v6083 = vadd.f32 %v5952, %v5990
      %v6084 = vadd.f32 %v5953, %v5992
      %v6085 = vadd.f32 %v5954, %v5994
      %v6086 = vadd.f32 %v5955, %v5996
      %v6087 = vadd.f32 %v5956, %v5998
      %v6088 = vadd.f32 %v5957, %v6000
      %v6089 = vadd.f32 %v5958, %v6002
      %v6090 = vadd.f32 %v5959, %v6004
      %v6091 = vadd.f32 %v5960, %v6006
      %v6092 = vadd.f32 %v5961, %v6008
      %v6093 = vadd.f32 %v5962, %v6010
      %v6094 = vadd.f32 %v5963, %v6012
      %v6095 = vadd.f32 %v5964, %v6014
      %v6096 = vadd.f32 %v5965, %v6016
      %v6097 = vadd.f32 %v5966, %v6018
      %v6098 = vadd.f32 %v5967, %v6020
      %v6099 = vadd.f32 %v5968, %v6022
      %v6100 = vadd.f32 %v5969, %v6024
      %v6101 = vadd.f32 %v5970, %v6026
      %v6102 = vadd.f32 %v5971, %v6028
      %v6103 = vadd.f32 %v5972, %v6030
      %v6104 = vadd.f32 %v5973, %v6032
      %v6105 = vadd.f32 %v5974, %v6034
      %v6106 = vadd.f32 %v5975, %v6036
      %v6107 = vadd.f32 %v5976, %v6038
      %v6108 = vadd.f32 %v5977, %v6040
      %v6109 = vadd.f32 %v5978, %v6042
      %6110 = vrot.lane.b32.xlu0 %v5645, 108
      %v6111 = vpop.permute.xlu0 %6110
      %6112 = vrot.lane.b32.xlu0 %v5647, 108
      %v6113 = vpop.permute.xlu0 %6112
      %6114 = vrot.lane.b32.xlu0 %v5649, 108
      %v6115 = vpop.permute.xlu0 %6114
      %6116 = vrot.lane.b32.xlu0 %v5651, 108
      %v6117 = vpop.permute.xlu0 %6116
      %6118 = vrot.lane.b32.xlu0 %v5653, 108
      %v6119 = vpop.permute.xlu0 %6118
      %6120 = vrot.lane.b32.xlu0 %v5655, 108
      %v6121 = vpop.permute.xlu0 %6120
      %6122 = vrot.lane.b32.xlu0 %v5657, 108
      %v6123 = vpop.permute.xlu0 %6122
      %6124 = vrot.lane.b32.xlu0 %v5659, 108
      %v6125 = vpop.permute.xlu0 %6124
      %6126 = vrot.lane.b32.xlu0 %v5661, 108
      %v6127 = vpop.permute.xlu0 %6126
      %6128 = vrot.lane.b32.xlu0 %v5663, 108
      %v6129 = vpop.permute.xlu0 %6128
      %6130 = vrot.lane.b32.xlu0 %v5665, 108
      %v6131 = vpop.permute.xlu0 %6130
      %6132 = vrot.lane.b32.xlu0 %v5667, 108
      %v6133 = vpop.permute.xlu0 %6132
      %6134 = vrot.lane.b32.xlu0 %v5669, 108
      %v6135 = vpop.permute.xlu0 %6134
      %6136 = vrot.lane.b32.xlu0 %v5671, 108
      %v6137 = vpop.permute.xlu0 %6136
      %6138 = vrot.lane.b32.xlu0 %v5673, 108
      %v6139 = vpop.permute.xlu0 %6138
      %6140 = vrot.lane.b32.xlu0 %v5675, 108
      %v6141 = vpop.permute.xlu0 %6140
      %6142 = vrot.lane.b32.xlu0 %v5677, 108
      %v6143 = vpop.permute.xlu0 %6142
      %6144 = vrot.lane.b32.xlu0 %v5679, 108
      %v6145 = vpop.permute.xlu0 %6144
      %6146 = vrot.lane.b32.xlu0 %v5681, 108
      %v6147 = vpop.permute.xlu0 %6146
      %6148 = vrot.lane.b32.xlu0 %v5683, 108
      %v6149 = vpop.permute.xlu0 %6148
      %6150 = vrot.lane.b32.xlu0 %v5685, 108
      %v6151 = vpop.permute.xlu0 %6150
      %6152 = vrot.lane.b32.xlu0 %v5687, 108
      %v6153 = vpop.permute.xlu0 %6152
      %6154 = vrot.lane.b32.xlu0 %v5689, 108
      %v6155 = vpop.permute.xlu0 %6154
      %6156 = vrot.lane.b32.xlu0 %v5691, 108
      %v6157 = vpop.permute.xlu0 %6156
      %6158 = vrot.lane.b32.xlu0 %v5693, 108
      %v6159 = vpop.permute.xlu0 %6158
      %6160 = vrot.lane.b32.xlu0 %v5695, 108
      %v6161 = vpop.permute.xlu0 %6160
      %6162 = vrot.lane.b32.xlu0 %v5697, 108
      %v6163 = vpop.permute.xlu0 %6162
      %6164 = vrot.lane.b32.xlu0 %v5699, 108
      %v6165 = vpop.permute.xlu0 %6164
      %6166 = vrot.lane.b32.xlu0 %v5701, 108
      %v6167 = vpop.permute.xlu0 %6166
      %6168 = vrot.lane.b32.xlu0 %v5703, 108
      %v6169 = vpop.permute.xlu0 %6168
      %6170 = vrot.lane.b32.xlu0 %v5705, 108
      %v6171 = vpop.permute.xlu0 %6170
      %6172 = vrot.lane.b32.xlu0 %v5707, 108
      %v6173 = vpop.permute.xlu0 %6172
      %6174 = vrot.lane.b32.xlu0 %v5706, 108
      %v6175 = vpop.permute.xlu0 %6174
      %v6209 = vsel %vm5644, 0.0, %v6111
      %v6210 = vsel %vm5644, %v6175, 0.0
      %v6211 = vadd.f32 %v6075, 0.0
      %v6212 = vadd.f32 %v6076, 0.0
      %v6213 = vadd.f32 %v6077, 0.0
      %v6214 = vadd.f32 %v6078, %v6209
      %v6215 = vadd.f32 %v6079, %v6113
      %v6216 = vadd.f32 %v6080, %v6115
      %v6217 = vadd.f32 %v6081, %v6117
      %v6218 = vadd.f32 %v6082, %v6119
      %v6219 = vadd.f32 %v6083, %v6121
      %v6220 = vadd.f32 %v6084, %v6123
      %v6221 = vadd.f32 %v6085, %v6125
      %v6222 = vadd.f32 %v6086, %v6127
      %v6223 = vadd.f32 %v6087, %v6129
      %v6224 = vadd.f32 %v6088, %v6131
      %v6225 = vadd.f32 %v6089, %v6133
      %v6226 = vadd.f32 %v6090, %v6135
      %v6227 = vadd.f32 %v6091, %v6137
      %v6228 = vadd.f32 %v6092, %v6139
      %v6229 = vadd.f32 %v6093, %v6141
      %v6230 = vadd.f32 %v6094, %v6143
      %v6231 = vadd.f32 %v6095, %v6145
      %v6232 = vadd.f32 %v6096, %v6147
      %v6233 = vadd.f32 %v6097, %v6149
      %v6234 = vadd.f32 %v6098, %v6151
      %v6235 = vadd.f32 %v6099, %v6153
      %v6236 = vadd.f32 %v6100, %v6155
      %v6237 = vadd.f32 %v6101, %v6157
      %v6238 = vadd.f32 %v6102, %v6159
      %v6239 = vadd.f32 %v6103, %v6161
      %v6240 = vadd.f32 %v6104, %v6163
      %v6241 = vadd.f32 %v6105, %v6165
      %v6242 = vadd.f32 %v6106, %v6167
      %v6243 = vadd.f32 %v6107, %v6169
      %v6244 = vadd.f32 %v6108, %v6171
      %v6245 = vadd.f32 %v6109, %v6173
      %v6246 = vadd.f32 %v6210, 0.0
      %6247 = vrot.lane.b32.xlu0 %v5288, 104
      %v6248 = vpop.permute.xlu0 %6247
      %6249 = vrot.lane.b32.xlu0 %v5290, 104
      %v6250 = vpop.permute.xlu0 %6249
      %6251 = vrot.lane.b32.xlu0 %v5292, 104
      %v6252 = vpop.permute.xlu0 %6251
      %6253 = vrot.lane.b32.xlu0 %v5294, 104
      %v6254 = vpop.permute.xlu0 %6253
      %6255 = vrot.lane.b32.xlu0 %v5296, 104
      %v6256 = vpop.permute.xlu0 %6255
      %6257 = vrot.lane.b32.xlu0 %v5298, 104
      %v6258 = vpop.permute.xlu0 %6257
      %6259 = vrot.lane.b32.xlu0 %v5300, 104
      %v6260 = vpop.permute.xlu0 %6259
      %6261 = vrot.lane.b32.xlu0 %v5302, 104
      %v6262 = vpop.permute.xlu0 %6261
      %6263 = vrot.lane.b32.xlu0 %v5304, 104
      %v6264 = vpop.permute.xlu0 %6263
      %6265 = vrot.lane.b32.xlu0 %v5306, 104
      %v6266 = vpop.permute.xlu0 %6265
      %6267 = vrot.lane.b32.xlu0 %v5308, 104
      %v6268 = vpop.permute.xlu0 %6267
      %6269 = vrot.lane.b32.xlu0 %v5310, 104
      %v6270 = vpop.permute.xlu0 %6269
      %6271 = vrot.lane.b32.xlu0 %v5312, 104
      %v6272 = vpop.permute.xlu0 %6271
      %6273 = vrot.lane.b32.xlu0 %v5314, 104
      %v6274 = vpop.permute.xlu0 %6273
      %6275 = vrot.lane.b32.xlu0 %v5316, 104
      %v6276 = vpop.permute.xlu0 %6275
      %6277 = vrot.lane.b32.xlu0 %v5318, 104
      %v6278 = vpop.permute.xlu0 %6277
      %6279 = vrot.lane.b32.xlu0 %v5320, 104
      %v6280 = vpop.permute.xlu0 %6279
      %6281 = vrot.lane.b32.xlu0 %v5322, 104
      %v6282 = vpop.permute.xlu0 %6281
      %6283 = vrot.lane.b32.xlu0 %v5324, 104
      %v6284 = vpop.permute.xlu0 %6283
      %6285 = vrot.lane.b32.xlu0 %v5326, 104
      %v6286 = vpop.permute.xlu0 %6285
      %6287 = vrot.lane.b32.xlu0 %v5328, 104
      %v6288 = vpop.permute.xlu0 %6287
      %6289 = vrot.lane.b32.xlu0 %v5330, 104
      %v6290 = vpop.permute.xlu0 %6289
      %6291 = vrot.lane.b32.xlu0 %v5332, 104
      %v6292 = vpop.permute.xlu0 %6291
      %6293 = vrot.lane.b32.xlu0 %v5334, 104
      %v6294 = vpop.permute.xlu0 %6293
      %6295 = vrot.lane.b32.xlu0 %v5336, 104
      %v6296 = vpop.permute.xlu0 %6295
      %6297 = vrot.lane.b32.xlu0 %v5338, 104
      %v6298 = vpop.permute.xlu0 %6297
      %6299 = vrot.lane.b32.xlu0 %v5340, 104
      %v6300 = vpop.permute.xlu0 %6299
      %6301 = vrot.lane.b32.xlu0 %v5342, 104
      %v6302 = vpop.permute.xlu0 %6301
      %6303 = vrot.lane.b32.xlu0 %v5344, 104
      %v6304 = vpop.permute.xlu0 %6303
      %6305 = vrot.lane.b32.xlu0 %v5346, 104
      %v6306 = vpop.permute.xlu0 %6305
      %6307 = vrot.lane.b32.xlu0 %v5348, 104
      %v6308 = vpop.permute.xlu0 %6307
      %6309 = vrot.lane.b32.xlu0 %v5350, 104
      %v6310 = vpop.permute.xlu0 %6309
      %6311 = vrot.lane.b32.xlu0 %v5349, 104
      %v6312 = vpop.permute.xlu0 %6311
      %v6346 = vsel %vm5287, 0.0, %v6248
      %v6347 = vsel %vm5287, %v6312, 0.0
      %v6348 = vadd.f32 %v6211, 0.0
      %v6349 = vadd.f32 %v6212, 0.0
      %v6350 = vadd.f32 %v6213, 0.0
      %v6351 = vadd.f32 %v6214, 0.0
      %v6352 = vadd.f32 %v6215, %v6346
      %v6353 = vadd.f32 %v6216, %v6250
      %v6354 = vadd.f32 %v6217, %v6252
      %v6355 = vadd.f32 %v6218, %v6254
      %v6356 = vadd.f32 %v6219, %v6256
      %v6357 = vadd.f32 %v6220, %v6258
      %v6358 = vadd.f32 %v6221, %v6260
      %v6359 = vadd.f32 %v6222, %v6262
      %v6360 = vadd.f32 %v6223, %v6264
      %v6361 = vadd.f32 %v6224, %v6266
      %v6362 = vadd.f32 %v6225, %v6268
      %v6363 = vadd.f32 %v6226, %v6270
      %v6364 = vadd.f32 %v6227, %v6272
      %v6365 = vadd.f32 %v6228, %v6274
      %v6366 = vadd.f32 %v6229, %v6276
      %v6367 = vadd.f32 %v6230, %v6278
      %v6368 = vadd.f32 %v6231, %v6280
      %v6369 = vadd.f32 %v6232, %v6282
      %v6370 = vadd.f32 %v6233, %v6284
      %v6371 = vadd.f32 %v6234, %v6286
      %v6372 = vadd.f32 %v6235, %v6288
      %v6373 = vadd.f32 %v6236, %v6290
      %v6374 = vadd.f32 %v6237, %v6292
      %v6375 = vadd.f32 %v6238, %v6294
      %v6376 = vadd.f32 %v6239, %v6296
      %v6377 = vadd.f32 %v6240, %v6298
      %v6378 = vadd.f32 %v6241, %v6300
      %v6379 = vadd.f32 %v6242, %v6302
      %v6380 = vadd.f32 %v6243, %v6304
      %v6381 = vadd.f32 %v6244, %v6306
      %v6382 = vadd.f32 %v6245, %v6308
      %v6383 = vadd.f32 %v6246, %v6310
      %v6384 = vadd.f32 %v6347, 0.0
      %6385 = vrot.lane.b32.xlu0 %v4454, 100
      %v6386 = vpop.permute.xlu0 %6385
      %6387 = vrot.lane.b32.xlu0 %v4457, 100
      %v6388 = vpop.permute.xlu0 %6387
      %6389 = vrot.lane.b32.xlu0 %v4462, 100
      %v6390 = vpop.permute.xlu0 %6389
      %6391 = vrot.lane.b32.xlu0 %v4465, 100
      %v6392 = vpop.permute.xlu0 %6391
      %6393 = vrot.lane.b32.xlu0 %v4470, 100
      %v6394 = vpop.permute.xlu0 %6393
      %6395 = vrot.lane.b32.xlu0 %v4473, 100
      %v6396 = vpop.permute.xlu0 %6395
      %6397 = vrot.lane.b32.xlu0 %v4478, 100
      %v6398 = vpop.permute.xlu0 %6397
      %6399 = vrot.lane.b32.xlu0 %v4481, 100
      %v6400 = vpop.permute.xlu0 %6399
      %6401 = vrot.lane.b32.xlu0 %v4486, 100
      %v6402 = vpop.permute.xlu0 %6401
      %6403 = vrot.lane.b32.xlu0 %v4489, 100
      %v6404 = vpop.permute.xlu0 %6403
      %6405 = vrot.lane.b32.xlu0 %v4494, 100
      %v6406 = vpop.permute.xlu0 %6405
      %6407 = vrot.lane.b32.xlu0 %v4497, 100
      %v6408 = vpop.permute.xlu0 %6407
      %6409 = vrot.lane.b32.xlu0 %v4502, 100
      %v6410 = vpop.permute.xlu0 %6409
      %6411 = vrot.lane.b32.xlu0 %v4505, 100
      %v6412 = vpop.permute.xlu0 %6411
      %6413 = vrot.lane.b32.xlu0 %v4510, 100
      %v6414 = vpop.permute.xlu0 %6413
      %6415 = vrot.lane.b32.xlu0 %v4513, 100
      %v6416 = vpop.permute.xlu0 %6415
      %6417 = vrot.lane.b32.xlu0 %v4518, 100
      %v6418 = vpop.permute.xlu0 %6417
      %6419 = vrot.lane.b32.xlu0 %v4521, 100
      %v6420 = vpop.permute.xlu0 %6419
      %6421 = vrot.lane.b32.xlu0 %v4526, 100
      %v6422 = vpop.permute.xlu0 %6421
      %6423 = vrot.lane.b32.xlu0 %v4529, 100
      %v6424 = vpop.permute.xlu0 %6423
      %6425 = vrot.lane.b32.xlu0 %v4534, 100
      %v6426 = vpop.permute.xlu0 %6425
      %6427 = vrot.lane.b32.xlu0 %v4537, 100
      %v6428 = vpop.permute.xlu0 %6427
      %6429 = vrot.lane.b32.xlu0 %v4542, 100
      %v6430 = vpop.permute.xlu0 %6429
      %6431 = vrot.lane.b32.xlu0 %v4545, 100
      %v6432 = vpop.permute.xlu0 %6431
      %6433 = vrot.lane.b32.xlu0 %v4550, 100
      %v6434 = vpop.permute.xlu0 %6433
      %6435 = vrot.lane.b32.xlu0 %v4553, 100
      %v6436 = vpop.permute.xlu0 %6435
      %6437 = vrot.lane.b32.xlu0 %v4558, 100
      %v6438 = vpop.permute.xlu0 %6437
      %6439 = vrot.lane.b32.xlu0 %v4561, 100
      %v6440 = vpop.permute.xlu0 %6439
      %6441 = vrot.lane.b32.xlu0 %v4566, 100
      %v6442 = vpop.permute.xlu0 %6441
      %6443 = vrot.lane.b32.xlu0 %v4569, 100
      %v6444 = vpop.permute.xlu0 %6443
      %6445 = vrot.lane.b32.xlu0 %v4574, 100
      %v6446 = vpop.permute.xlu0 %6445
      %6447 = vrot.lane.b32.xlu0 %v4577, 100
      %v6448 = vpop.permute.xlu0 %6447
      %v6481 = vadd.f32 %v6348, 0.0
      %v6482 = vadd.f32 %v6349, 0.0
      %v6483 = vadd.f32 %v6350, 0.0
      %v6484 = vadd.f32 %v6351, 0.0
      %v6485 = vadd.f32 %v6352, 0.0
      %v6486 = vadd.f32 %v6353, %v6386
      %v6487 = vadd.f32 %v6354, %v6388
      %v6488 = vadd.f32 %v6355, %v6390
      %v6489 = vadd.f32 %v6356, %v6392
      %v6490 = vadd.f32 %v6357, %v6394
      %v6491 = vadd.f32 %v6358, %v6396
      %v6492 = vadd.f32 %v6359, %v6398
      %v6493 = vadd.f32 %v6360, %v6400
      %v6494 = vadd.f32 %v6361, %v6402
      %v6495 = vadd.f32 %v6362, %v6404
      %v6496 = vadd.f32 %v6363, %v6406
      %v6497 = vadd.f32 %v6364, %v6408
      %v6498 = vadd.f32 %v6365, %v6410
      %v6499 = vadd.f32 %v6366, %v6412
      %v6500 = vadd.f32 %v6367, %v6414
      %v6501 = vadd.f32 %v6368, %v6416
      %v6502 = vadd.f32 %v6369, %v6418
      %v6503 = vadd.f32 %v6370, %v6420
      %v6504 = vadd.f32 %v6371, %v6422
      %v6505 = vadd.f32 %v6372, %v6424
      %v6506 = vadd.f32 %v6373, %v6426
      %v6507 = vadd.f32 %v6374, %v6428
      %v6508 = vadd.f32 %v6375, %v6430
      %v6509 = vadd.f32 %v6376, %v6432
      %v6510 = vadd.f32 %v6377, %v6434
      %v6511 = vadd.f32 %v6378, %v6436
      %v6512 = vadd.f32 %v6379, %v6438
      %v6513 = vadd.f32 %v6380, %v6440
      %v6514 = vadd.f32 %v6381, %v6442
      %v6515 = vadd.f32 %v6382, %v6444
      %v6516 = vadd.f32 %v6383, %v6446
      %v6517 = vadd.f32 %v6384, %v6448
      %6518 = vrot.lane.b32.xlu0 %v5645, 96
      %v6519 = vpop.permute.xlu0 %6518
      %6520 = vrot.lane.b32.xlu0 %v5647, 96
      %v6521 = vpop.permute.xlu0 %6520
      %6522 = vrot.lane.b32.xlu0 %v5649, 96
      %v6523 = vpop.permute.xlu0 %6522
      %6524 = vrot.lane.b32.xlu0 %v5651, 96
      %v6525 = vpop.permute.xlu0 %6524
      %6526 = vrot.lane.b32.xlu0 %v5653, 96
      %v6527 = vpop.permute.xlu0 %6526
      %6528 = vrot.lane.b32.xlu0 %v5655, 96
      %v6529 = vpop.permute.xlu0 %6528
      %6530 = vrot.lane.b32.xlu0 %v5657, 96
      %v6531 = vpop.permute.xlu0 %6530
      %6532 = vrot.lane.b32.xlu0 %v5659, 96
      %v6533 = vpop.permute.xlu0 %6532
      %6534 = vrot.lane.b32.xlu0 %v5661, 96
      %v6535 = vpop.permute.xlu0 %6534
      %6536 = vrot.lane.b32.xlu0 %v5663, 96
      %v6537 = vpop.permute.xlu0 %6536
      %6538 = vrot.lane.b32.xlu0 %v5665, 96
      %v6539 = vpop.permute.xlu0 %6538
      %6540 = vrot.lane.b32.xlu0 %v5667, 96
      %v6541 = vpop.permute.xlu0 %6540
      %6542 = vrot.lane.b32.xlu0 %v5669, 96
      %v6543 = vpop.permute.xlu0 %6542
      %6544 = vrot.lane.b32.xlu0 %v5671, 96
      %v6545 = vpop.permute.xlu0 %6544
      %6546 = vrot.lane.b32.xlu0 %v5673, 96
      %v6547 = vpop.permute.xlu0 %6546
      %6548 = vrot.lane.b32.xlu0 %v5675, 96
      %v6549 = vpop.permute.xlu0 %6548
      %6550 = vrot.lane.b32.xlu0 %v5677, 96
      %v6551 = vpop.permute.xlu0 %6550
      %6552 = vrot.lane.b32.xlu0 %v5679, 96
      %v6553 = vpop.permute.xlu0 %6552
      %6554 = vrot.lane.b32.xlu0 %v5681, 96
      %v6555 = vpop.permute.xlu0 %6554
      %6556 = vrot.lane.b32.xlu0 %v5683, 96
      %v6557 = vpop.permute.xlu0 %6556
      %6558 = vrot.lane.b32.xlu0 %v5685, 96
      %v6559 = vpop.permute.xlu0 %6558
      %6560 = vrot.lane.b32.xlu0 %v5687, 96
      %v6561 = vpop.permute.xlu0 %6560
      %6562 = vrot.lane.b32.xlu0 %v5689, 96
      %v6563 = vpop.permute.xlu0 %6562
      %6564 = vrot.lane.b32.xlu0 %v5691, 96
      %v6565 = vpop.permute.xlu0 %6564
      %6566 = vrot.lane.b32.xlu0 %v5693, 96
      %v6567 = vpop.permute.xlu0 %6566
      %6568 = vrot.lane.b32.xlu0 %v5695, 96
      %v6569 = vpop.permute.xlu0 %6568
      %6570 = vrot.lane.b32.xlu0 %v5697, 96
      %v6571 = vpop.permute.xlu0 %6570
      %6572 = vrot.lane.b32.xlu0 %v5699, 96
      %v6573 = vpop.permute.xlu0 %6572
      %6574 = vrot.lane.b32.xlu0 %v5701, 96
      %v6575 = vpop.permute.xlu0 %6574
      %6576 = vrot.lane.b32.xlu0 %v5703, 96
      %v6577 = vpop.permute.xlu0 %6576
      %6578 = vrot.lane.b32.xlu0 %v5705, 96
      %v6579 = vpop.permute.xlu0 %6578
      %6580 = vrot.lane.b32.xlu0 %v5707, 96
      %v6581 = vpop.permute.xlu0 %6580
      %6582 = vrot.lane.b32.xlu0 %v5706, 96
      %v6583 = vpop.permute.xlu0 %6582
      %v6617 = vsel %vm5644, 0.0, %v6519
      %v6618 = vsel %vm5644, %v6583, 0.0
      %v6619 = vadd.f32 %v6481, 0.0
      %v6620 = vadd.f32 %v6482, 0.0
      %v6621 = vadd.f32 %v6483, 0.0
      %v6622 = vadd.f32 %v6484, 0.0
      %v6623 = vadd.f32 %v6485, 0.0
      %v6624 = vadd.f32 %v6486, %v6617
      %v6625 = vadd.f32 %v6487, %v6521
      %v6626 = vadd.f32 %v6488, %v6523
      %v6627 = vadd.f32 %v6489, %v6525
      %v6628 = vadd.f32 %v6490, %v6527
      %v6629 = vadd.f32 %v6491, %v6529
      %v6630 = vadd.f32 %v6492, %v6531
      %v6631 = vadd.f32 %v6493, %v6533
      %v6632 = vadd.f32 %v6494, %v6535
      %v6633 = vadd.f32 %v6495, %v6537
      %v6634 = vadd.f32 %v6496, %v6539
      %v6635 = vadd.f32 %v6497, %v6541
      %v6636 = vadd.f32 %v6498, %v6543
      %v6637 = vadd.f32 %v6499, %v6545
      %v6638 = vadd.f32 %v6500, %v6547
      %v6639 = vadd.f32 %v6501, %v6549
      %v6640 = vadd.f32 %v6502, %v6551
      %v6641 = vadd.f32 %v6503, %v6553
      %v6642 = vadd.f32 %v6504, %v6555
      %v6643 = vadd.f32 %v6505, %v6557
      %v6644 = vadd.f32 %v6506, %v6559
      %v6645 = vadd.f32 %v6507, %v6561
      %v6646 = vadd.f32 %v6508, %v6563
      %v6647 = vadd.f32 %v6509, %v6565
      %v6648 = vadd.f32 %v6510, %v6567
      %v6649 = vadd.f32 %v6511, %v6569
      %v6650 = vadd.f32 %v6512, %v6571
      %v6651 = vadd.f32 %v6513, %v6573
      %v6652 = vadd.f32 %v6514, %v6575
      %v6653 = vadd.f32 %v6515, %v6577
      %v6654 = vadd.f32 %v6516, %v6579
      %v6655 = vadd.f32 %v6517, %v6581
      %v6656 = vadd.f32 %v6618, 0.0
      %s6657 = scalar_lea.vmem [#allocation2], %s4580
      %v6658 = vld [vmem:[%s6657] sm:$0xff]
      %v6659 = vld [vmem:[%s6657 + $0x8] sm:$0xff]
      %v6660 = vld [vmem:[%s6657 + $0x10] sm:$0xff]
      %v6661 = vld [vmem:[%s6657 + $0x18] sm:$0xff]
      %v6662 = vld [vmem:[%s6657 + $0x20] sm:$0xff]
      %v6663 = vld [vmem:[%s6657 + $0x28] sm:$0xff]
      %v6664 = vld [vmem:[%s6657 + $0x30] sm:$0xff]
      %v6665 = vld [vmem:[%s6657 + $0x38] sm:$0xff]
      %v6666 = vld [vmem:[%s6657 + $0x40] sm:$0xff]
      %v6667 = vld [vmem:[%s6657 + $0x48] sm:$0xff]
      %v6668 = vld [vmem:[%s6657 + $0x50] sm:$0xff]
      %v6669 = vld [vmem:[%s6657 + $0x58] sm:$0xff]
      %v6670 = vld [vmem:[%s6657 + $0x60] sm:$0xff]
      %v6671 = vld [vmem:[%s6657 + $0x68] sm:$0xff]
      %v6672 = vld [vmem:[%s6657 + $0x70] sm:$0xff]
      %v6673 = vld [vmem:[%s6657 + $0x78] sm:$0xff]
      %v6674 = vld [vmem:[%s6657 + $0x80] sm:$0xff]
      %v6675 = vld [vmem:[%s6657 + $0x88] sm:$0xff]
      %v6676 = vld [vmem:[%s6657 + $0x90] sm:$0xff]
      %v6677 = vld [vmem:[%s6657 + $0x98] sm:$0xff]
      %v6678 = vld [vmem:[%s6657 + $0xa0] sm:$0xff]
      %v6679 = vld [vmem:[%s6657 + $0xa8] sm:$0xff]
      %v6680 = vld [vmem:[%s6657 + $0xb0] sm:$0xff]
      %v6681 = vld [vmem:[%s6657 + $0xb8] sm:$0xff]
      %v6682 = vld [vmem:[%s6657 + $0xc0] sm:$0xff]
      %v6683 = vld [vmem:[%s6657 + $0xc8] sm:$0xff]
      %v6684 = vld [vmem:[%s6657 + $0xd0] sm:$0xff]
      %v6685 = vld [vmem:[%s6657 + $0xd8] sm:$0xff]
      %v6686 = vld [vmem:[%s6657 + $0xe0] sm:$0xff]
      %v6687 = vld [vmem:[%s6657 + $0xe8] sm:$0xff]
      %v6688 = vld [vmem:[%s6657 + $0xf0] sm:$0xff]
      %v6689 = vld [vmem:[%s6657 + $0xf8] sm:$0xff]
      %v6690 = vld [vmem:[%s6657 + $0x100] sm:$0xff]
      %v6691 = vld [vmem:[%s6657 + $0x108] sm:$0xff]
      %v6692 = vld [vmem:[%s6657 + $0x110] sm:$0xff]
      %v6693 = vld [vmem:[%s6657 + $0x118] sm:$0xff]
      %v6694 = vld [vmem:[%s6657 + $0x120] sm:$0xff]
      %v6695 = vld [vmem:[%s6657 + $0x128] sm:$0xff]
      %v6696 = vadd.f32 %v6658, %v6619
      %v6697 = vadd.f32 %v6659, %v6620
      %v6698 = vadd.f32 %v6660, %v6621
      %v6699 = vadd.f32 %v6661, %v6622
      %v6700 = vadd.f32 %v6662, %v6623
      %v6701 = vadd.f32 %v6663, %v6624
      %v6702 = vadd.f32 %v6664, %v6625
      %v6703 = vadd.f32 %v6665, %v6626
      %v6704 = vadd.f32 %v6666, %v6627
      %v6705 = vadd.f32 %v6667, %v6628
      %v6706 = vadd.f32 %v6668, %v6629
      %v6707 = vadd.f32 %v6669, %v6630
      %v6708 = vadd.f32 %v6670, %v6631
      %v6709 = vadd.f32 %v6671, %v6632
      %v6710 = vadd.f32 %v6672, %v6633
      %v6711 = vadd.f32 %v6673, %v6634
      %v6712 = vadd.f32 %v6674, %v6635
      %v6713 = vadd.f32 %v6675, %v6636
      %v6714 = vadd.f32 %v6676, %v6637
      %v6715 = vadd.f32 %v6677, %v6638
      %v6716 = vadd.f32 %v6678, %v6639
      %v6717 = vadd.f32 %v6679, %v6640
      %v6718 = vadd.f32 %v6680, %v6641
      %v6719 = vadd.f32 %v6681, %v6642
      %v6720 = vadd.f32 %v6682, %v6643
      %v6721 = vadd.f32 %v6683, %v6644
      %v6722 = vadd.f32 %v6684, %v6645
      %v6723 = vadd.f32 %v6685, %v6646
      %v6724 = vadd.f32 %v6686, %v6647
      %v6725 = vadd.f32 %v6687, %v6648
      %v6726 = vadd.f32 %v6688, %v6649
      %v6727 = vadd.f32 %v6689, %v6650
      %v6728 = vadd.f32 %v6690, %v6651
      %v6729 = vadd.f32 %v6691, %v6652
      %v6730 = vadd.f32 %v6692, %v6653
      %v6731 = vadd.f32 %v6693, %v6654
      %v6732 = vadd.f32 %v6694, %v6655
      %v6733 = vadd.f32 %v6695, %v6656
      %vm6734 = vcmask 31744
      %6735 = vst.msk [vmem:[%s6657] sm:$0xff] %vm6734, %v6696
      %6736 = vst.msk [vmem:[%s6657 + $0x8] sm:$0xff] %vm6734, %v6697
      %6737 = vst.msk [vmem:[%s6657 + $0x10] sm:$0xff] %vm6734, %v6698
      %6738 = vst.msk [vmem:[%s6657 + $0x18] sm:$0xff] %vm6734, %v6699
      %6739 = vst.msk [vmem:[%s6657 + $0x20] sm:$0xff] %vm6734, %v6700
      %6740 = vst.msk [vmem:[%s6657 + $0x28] sm:$0xff] %vm6734, %v6701
      %6741 = vst.msk [vmem:[%s6657 + $0x30] sm:$0xff] %vm6734, %v6702
      %6742 = vst.msk [vmem:[%s6657 + $0x38] sm:$0xff] %vm6734, %v6703
      %6743 = vst.msk [vmem:[%s6657 + $0x40] sm:$0xff] %vm6734, %v6704
      %6744 = vst.msk [vmem:[%s6657 + $0x48] sm:$0xff] %vm6734, %v6705
      %6745 = vst.msk [vmem:[%s6657 + $0x50] sm:$0xff] %vm6734, %v6706
      %6746 = vst.msk [vmem:[%s6657 + $0x58] sm:$0xff] %vm6734, %v6707
      %6747 = vst.msk [vmem:[%s6657 + $0x60] sm:$0xff] %vm6734, %v6708
      %6748 = vst.msk [vmem:[%s6657 + $0x68] sm:$0xff] %vm6734, %v6709
      %6749 = vst.msk [vmem:[%s6657 + $0x70] sm:$0xff] %vm6734, %v6710
      %6750 = vst.msk [vmem:[%s6657 + $0x78] sm:$0xff] %vm6734, %v6711
      %6751 = vst.msk [vmem:[%s6657 + $0x80] sm:$0xff] %vm6734, %v6712
      %6752 = vst.msk [vmem:[%s6657 + $0x88] sm:$0xff] %vm6734, %v6713
      %6753 = vst.msk [vmem:[%s6657 + $0x90] sm:$0xff] %vm6734, %v6714
      %6754 = vst.msk [vmem:[%s6657 + $0x98] sm:$0xff] %vm6734, %v6715
      %6755 = vst.msk [vmem:[%s6657 + $0xa0] sm:$0xff] %vm6734, %v6716
      %6756 = vst.msk [vmem:[%s6657 + $0xa8] sm:$0xff] %vm6734, %v6717
      %6757 = vst.msk [vmem:[%s6657 + $0xb0] sm:$0xff] %vm6734, %v6718
      %6758 = vst.msk [vmem:[%s6657 + $0xb8] sm:$0xff] %vm6734, %v6719
      %6759 = vst.msk [vmem:[%s6657 + $0xc0] sm:$0xff] %vm6734, %v6720
      %6760 = vst.msk [vmem:[%s6657 + $0xc8] sm:$0xff] %vm6734, %v6721
      %6761 = vst.msk [vmem:[%s6657 + $0xd0] sm:$0xff] %vm6734, %v6722
      %6762 = vst.msk [vmem:[%s6657 + $0xd8] sm:$0xff] %vm6734, %v6723
      %6763 = vst.msk [vmem:[%s6657 + $0xe0] sm:$0xff] %vm6734, %v6724
      %6764 = vst.msk [vmem:[%s6657 + $0xe8] sm:$0xff] %vm6734, %v6725
      %6765 = vst.msk [vmem:[%s6657 + $0xf0] sm:$0xff] %vm6734, %v6726
      %6766 = vst.msk [vmem:[%s6657 + $0xf8] sm:$0xff] %vm6734, %v6727
      %6767 = vst.msk [vmem:[%s6657 + $0x100] sm:$0xff] %vm6734, %v6728
      %6768 = vst.msk [vmem:[%s6657 + $0x108] sm:$0xff] %vm6734, %v6729
      %6769 = vst.msk [vmem:[%s6657 + $0x110] sm:$0xff] %vm6734, %v6730
      %6770 = vst.msk [vmem:[%s6657 + $0x118] sm:$0xff] %vm6734, %v6731
      %6771 = vst.msk [vmem:[%s6657 + $0x120] sm:$0xff] %vm6734, %v6732
      %6772 = vst.msk [vmem:[%s6657 + $0x128] sm:$0xff] %vm6734, %v6733
      // Predicated region
      $region41: #{large_pyramid_attention_forward.5} parent=35 // pred_check
        %p6773 = pneg %p287
      $region42: #{large_pyramid_attention_forward.5} parent=35 // pred_check_branch
        %6775 = sbr.rel (%p6773) target = $region44
      $region43: #{large_pyramid_attention_forward.5} parent=35 // pred_region
        %v6776 = vld [vmem:[#allocation2 + $0x18] sm:$0xff]
        %v6777 = vld [vmem:[#allocation2 + $0x20] sm:$0xff]
        %v6778 = vld [vmem:[#allocation2 + $0x28] sm:$0xff]
        %v6779 = vld [vmem:[#allocation2 + $0x30] sm:$0xff]
        %v6780 = vld [vmem:[#allocation2 + $0x38] sm:$0xff]
        %v6781 = vld [vmem:[#allocation2 + $0x40] sm:$0xff]
        %v6782 = vld [vmem:[#allocation2 + $0x48] sm:$0xff]
        %v6783 = vld [vmem:[#allocation2 + $0x50] sm:$0xff]
        %v6784 = vld [vmem:[#allocation2 + $0x58] sm:$0xff]
        %v6785 = vld [vmem:[#allocation2 + $0x60] sm:$0xff]
        %v6786 = vld [vmem:[#allocation2 + $0x68] sm:$0xff]
        %v6787 = vld [vmem:[#allocation2 + $0x70] sm:$0xff]
        %v6788 = vld [vmem:[#allocation2 + $0x78] sm:$0xff]
        %v6789 = vld [vmem:[#allocation2 + $0x80] sm:$0xff]
        %v6790 = vld [vmem:[#allocation2 + $0x88] sm:$0xff]
        %v6791 = vld [vmem:[#allocation2 + $0x90] sm:$0xff]
        %v6792 = vld [vmem:[#allocation2 + $0x98] sm:$0xff]
        %v6793 = vld [vmem:[#allocation2 + $0xa0] sm:$0xff]
        %v6794 = vld [vmem:[#allocation2 + $0xa8] sm:$0xff]
        %v6795 = vld [vmem:[#allocation2 + $0xb0] sm:$0xff]
        %v6796 = vld [vmem:[#allocation2 + $0xb8] sm:$0xff]
        %v6797 = vld [vmem:[#allocation2 + $0xc0] sm:$0xff]
        %v6798 = vld [vmem:[#allocation2 + $0xc8] sm:$0xff]
        %v6799 = vld [vmem:[#allocation2 + $0xd0] sm:$0xff]
        %v6800 = vld [vmem:[#allocation2 + $0xd8] sm:$0xff]
        %v6801 = vld [vmem:[#allocation2 + $0xe0] sm:$0xff]
        %v6802 = vld [vmem:[#allocation2 + $0xe8] sm:$0xff]
        %v6803 = vld [vmem:[#allocation2 + $0xf0] sm:$0xff]
        %v6804 = vld [vmem:[#allocation2 + $0xf8] sm:$0xff]
        %v6805 = vld [vmem:[#allocation2 + $0x100] sm:$0xff]
        %v6806 = vld [vmem:[#allocation2 + $0x108] sm:$0xff]
        %v6807 = vld [vmem:[#allocation2 + $0x110] sm:$0xff]
        %v6808 = vmul.f32 %v6776, 0.25
        %v6809 = vmul.f32 %v6777, 0.25
        %v6810 = vmul.f32 %v6778, 0.25
        %v6811 = vmul.f32 %v6779, 0.25
        %v6812 = vmul.f32 %v6780, 0.25
        %v6813 = vmul.f32 %v6781, 0.25
        %v6814 = vmul.f32 %v6782, 0.25
        %v6815 = vmul.f32 %v6783, 0.25
        %v6816 = vmul.f32 %v6784, 0.25
        %v6817 = vmul.f32 %v6785, 0.25
        %v6818 = vmul.f32 %v6786, 0.25
        %v6819 = vmul.f32 %v6787, 0.25
        %v6820 = vmul.f32 %v6788, 0.25
        %v6821 = vmul.f32 %v6789, 0.25
        %v6822 = vmul.f32 %v6790, 0.25
        %v6823 = vmul.f32 %v6791, 0.25
        %v6824 = vmul.f32 %v6792, 0.25
        %v6825 = vmul.f32 %v6793, 0.25
        %v6826 = vmul.f32 %v6794, 0.25
        %v6827 = vmul.f32 %v6795, 0.25
        %v6828 = vmul.f32 %v6796, 0.25
        %v6829 = vmul.f32 %v6797, 0.25
        %v6830 = vmul.f32 %v6798, 0.25
        %v6831 = vmul.f32 %v6799, 0.25
        %v6832 = vmul.f32 %v6800, 0.25
        %v6833 = vmul.f32 %v6801, 0.25
        %v6834 = vmul.f32 %v6802, 0.25
        %v6835 = vmul.f32 %v6803, 0.25
        %v6836 = vmul.f32 %v6804, 0.25
        %v6837 = vmul.f32 %v6805, 0.25
        %v6838 = vmul.f32 %v6806, 0.25
        %v6839 = vmul.f32 %v6807, 0.25
        %v6840 = vld [vmem:[%s280] sm:$0xff]
        %v6841 = vld [vmem:[%s280 + $0x8] sm:$0xff]
        %v6842 = vld [vmem:[%s280 + $0x10] sm:$0xff]
        %v6843 = vld [vmem:[%s280 + $0x18] sm:$0xff]
        %v6844 = vld [vmem:[%s280 + $0x20] sm:$0xff]
        %v6845 = vld [vmem:[%s280 + $0x28] sm:$0xff]
        %v6846 = vld [vmem:[%s280 + $0x30] sm:$0xff]
        %v6847 = vld [vmem:[%s280 + $0x38] sm:$0xff]
        %v6848 = vld [vmem:[%s280 + $0x40] sm:$0xff]
        %v6849 = vld [vmem:[%s280 + $0x48] sm:$0xff]
        %v6850 = vld [vmem:[%s280 + $0x50] sm:$0xff]
        %v6851 = vld [vmem:[%s280 + $0x58] sm:$0xff]
        %v6852 = vld [vmem:[%s280 + $0x60] sm:$0xff]
        %v6853 = vld [vmem:[%s280 + $0x68] sm:$0xff]
        %v6854 = vld [vmem:[%s280 + $0x70] sm:$0xff]
        %v6855 = vld [vmem:[%s280 + $0x78] sm:$0xff]
        %v6856 = vld [vmem:[%s280 + $0x80] sm:$0xff]
        %v6857 = vld [vmem:[%s280 + $0x88] sm:$0xff]
        %v6858 = vld [vmem:[%s280 + $0x90] sm:$0xff]
        %v6859 = vld [vmem:[%s280 + $0x98] sm:$0xff]
        %v6860 = vld [vmem:[%s280 + $0xa0] sm:$0xff]
        %v6861 = vld [vmem:[%s280 + $0xa8] sm:$0xff]
        %v6862 = vld [vmem:[%s280 + $0xb0] sm:$0xff]
        %v6863 = vld [vmem:[%s280 + $0xb8] sm:$0xff]
        %v6864 = vld [vmem:[%s280 + $0xc0] sm:$0xff]
        %v6865 = vld [vmem:[%s280 + $0xc8] sm:$0xff]
        %v6866 = vld [vmem:[%s280 + $0xd0] sm:$0xff]
        %v6867 = vld [vmem:[%s280 + $0xd8] sm:$0xff]
        %v6868 = vld [vmem:[%s280 + $0xe0] sm:$0xff]
        %v6869 = vld [vmem:[%s280 + $0xe8] sm:$0xff]
        %v6870 = vld [vmem:[%s280 + $0xf0] sm:$0xff]
        %v6871 = vld [vmem:[%s280 + $0xf8] sm:$0xff]
        %v6872 = vadd.f32 %v6808, %v6840
        %v6873 = vadd.f32 %v6809, %v6841
        %v6874 = vadd.f32 %v6810, %v6842
        %v6875 = vadd.f32 %v6811, %v6843
        %v6876 = vadd.f32 %v6812, %v6844
        %v6877 = vadd.f32 %v6813, %v6845
        %v6878 = vadd.f32 %v6814, %v6846
        %v6879 = vadd.f32 %v6815, %v6847
        %v6880 = vadd.f32 %v6816, %v6848
        %v6881 = vadd.f32 %v6817, %v6849
        %v6882 = vadd.f32 %v6818, %v6850
        %v6883 = vadd.f32 %v6819, %v6851
        %v6884 = vadd.f32 %v6820, %v6852
        %v6885 = vadd.f32 %v6821, %v6853
        %v6886 = vadd.f32 %v6822, %v6854
        %v6887 = vadd.f32 %v6823, %v6855
        %v6888 = vadd.f32 %v6824, %v6856
        %v6889 = vadd.f32 %v6825, %v6857
        %v6890 = vadd.f32 %v6826, %v6858
        %v6891 = vadd.f32 %v6827, %v6859
        %v6892 = vadd.f32 %v6828, %v6860
        %v6893 = vadd.f32 %v6829, %v6861
        %v6894 = vadd.f32 %v6830, %v6862
        %v6895 = vadd.f32 %v6831, %v6863
        %v6896 = vadd.f32 %v6832, %v6864
        %v6897 = vadd.f32 %v6833, %v6865
        %v6898 = vadd.f32 %v6834, %v6866
        %v6899 = vadd.f32 %v6835, %v6867
        %v6900 = vadd.f32 %v6836, %v6868
        %v6901 = vadd.f32 %v6837, %v6869
        %v6902 = vadd.f32 %v6838, %v6870
        %v6903 = vadd.f32 %v6839, %v6871
        %6904 = vst.msk [vmem:[%s285] sm:$0xff] %vm6734, %v6872
        %6905 = vst.msk [vmem:[%s285 + $0x8] sm:$0xff] %vm6734, %v6873
        %6906 = vst.msk [vmem:[%s285 + $0x10] sm:$0xff] %vm6734, %v6874
        %6907 = vst.msk [vmem:[%s285 + $0x18] sm:$0xff] %vm6734, %v6875
        %6908 = vst.msk [vmem:[%s285 + $0x20] sm:$0xff] %vm6734, %v6876
        %6909 = vst.msk [vmem:[%s285 + $0x28] sm:$0xff] %vm6734, %v6877
        %6910 = vst.msk [vmem:[%s285 + $0x30] sm:$0xff] %vm6734, %v6878
        %6911 = vst.msk [vmem:[%s285 + $0x38] sm:$0xff] %vm6734, %v6879
        %6912 = vst.msk [vmem:[%s285 + $0x40] sm:$0xff] %vm6734, %v6880
        %6913 = vst.msk [vmem:[%s285 + $0x48] sm:$0xff] %vm6734, %v6881
        %6914 = vst.msk [vmem:[%s285 + $0x50] sm:$0xff] %vm6734, %v6882
        %6915 = vst.msk [vmem:[%s285 + $0x58] sm:$0xff] %vm6734, %v6883
        %6916 = vst.msk [vmem:[%s285 + $0x60] sm:$0xff] %vm6734, %v6884
        %6917 = vst.msk [vmem:[%s285 + $0x68] sm:$0xff] %vm6734, %v6885
        %6918 = vst.msk [vmem:[%s285 + $0x70] sm:$0xff] %vm6734, %v6886
        %6919 = vst.msk [vmem:[%s285 + $0x78] sm:$0xff] %vm6734, %v6887
        %6920 = vst.msk [vmem:[%s285 + $0x80] sm:$0xff] %vm6734, %v6888
        %6921 = vst.msk [vmem:[%s285 + $0x88] sm:$0xff] %vm6734, %v6889
        %6922 = vst.msk [vmem:[%s285 + $0x90] sm:$0xff] %vm6734, %v6890
        %6923 = vst.msk [vmem:[%s285 + $0x98] sm:$0xff] %vm6734, %v6891
        %6924 = vst.msk [vmem:[%s285 + $0xa0] sm:$0xff] %vm6734, %v6892
        %6925 = vst.msk [vmem:[%s285 + $0xa8] sm:$0xff] %vm6734, %v6893
        %6926 = vst.msk [vmem:[%s285 + $0xb0] sm:$0xff] %vm6734, %v6894
        %6927 = vst.msk [vmem:[%s285 + $0xb8] sm:$0xff] %vm6734, %v6895
        %6928 = vst.msk [vmem:[%s285 + $0xc0] sm:$0xff] %vm6734, %v6896
        %6929 = vst.msk [vmem:[%s285 + $0xc8] sm:$0xff] %vm6734, %v6897
        %6930 = vst.msk [vmem:[%s285 + $0xd0] sm:$0xff] %vm6734, %v6898
        %6931 = vst.msk [vmem:[%s285 + $0xd8] sm:$0xff] %vm6734, %v6899
        %6932 = vst.msk [vmem:[%s285 + $0xe0] sm:$0xff] %vm6734, %v6900
        %6933 = vst.msk [vmem:[%s285 + $0xe8] sm:$0xff] %vm6734, %v6901
        %6934 = vst.msk [vmem:[%s285 + $0xf0] sm:$0xff] %vm6734, %v6902
        %6935 = vst.msk [vmem:[%s285 + $0xf8] sm:$0xff] %vm6734, %v6903
      $region44: #{large_pyramid_attention_forward.5} parent=35 // pred_fallthru
        _
      %p6936 = scmp.lt.s32.totalorder %s19, 1
      %s6937 = scalar_select %p6936, %s19, 1
      %s6938 = smul.addr %s6937, 32
      %s6939 = smul.addr %s6938, 8
      %s6940 = scalar_lea.vmem %s4, %s6939
      // Predicated region
      $region45: #{large_pyramid_attention_forward.5} parent=35 // pred_check
        %p6941 = pneg %p151
      $region46: #{large_pyramid_attention_forward.5} parent=35 // pred_check_branch
        %6943 = sbr.rel (%p6941) target = $region48
      $region47: #{large_pyramid_attention_forward.5} parent=35 // pred_region
        _
      $region48: #{large_pyramid_attention_forward.5} parent=35 // pred_fallthru
        _
    $region36: #{large_pyramid_attention_forward.5} parent=5 // pred_fallthru
      _
    %p6944 = scmp.le.s32.totalorder 2, %s10
    // Predicated region
    $region49: #{large_pyramid_attention_forward.5} parent=5 // pred_check
      %p6945 = pneg %p6944
    $region50: #{large_pyramid_attention_forward.5} parent=5 // pred_check_branch
      %6947 = sbr.rel (%p6945) target = $region52
    $region51: #{large_pyramid_attention_forward.5} parent=5 // pred_region
      %s6948 = ssub.s32 %s10, 2
      // Predicated region
      $region53: #{large_pyramid_attention_forward.5} parent=51 // pred_check
        %p6949 = pneg %p157
      $region54: #{large_pyramid_attention_forward.5} parent=51 // pred_check_branch
        %6951 = sbr.rel (%p6949) target = $region56
      $region55: #{large_pyramid_attention_forward.5} parent=51 // pred_region
        %p6952 = scmp.lt.s32.totalorder %s21, 1
        %s6953 = scalar_select %p6952, %s21, 1
        %s6954 = smul.addr %s6953, 32
        %s6955 = smul.addr %s6954, 8
        %s6956 = scalar_lea.vmem %s4, %s6955
      $region56: #{large_pyramid_attention_forward.5} parent=51 // pred_fallthru
        _
    $region52: #{large_pyramid_attention_forward.5} parent=5 // pred_fallthru
      _
  $region6: #{large_pyramid_attention_forward.5} parent=0 // loop_footer
    %s14 = sadd.s32 1, %s10
  $region7: #{large_pyramid_attention_forward.5} parent=0 // loop_footer_branch
    %9 = sbr.rel target = $region3
  $region8: #{large_pyramid_attention_forward.5} parent=0 // loop_exit
    _

</llo_original>
